<compile_context>
chip_gen: v7x
topology: tpu7x:2x2x1
jax: 0.10.0
libtpu: 0.0.40
codegen_flags: <defaults>
</compile_context>

<pallas_src>
from functools import partial

import jax
import jax.numpy as jnp
from jax.experimental import pallas as pl
from jax.experimental.pallas import tpu as pltpu

# Architecture constants fixed by the PyTorch module.
NUM_BLOCKS = 5
TOKENS = 2        # tokens_mlp_dim
TOK_HIDDEN = 2    # tokens_hidden_dim
CHANNELS = 40     # channels_mlp_dim
CH_HIDDEN = 40    # channels_hidden_dim
LN_EPS = 1e-5     # nn.LayerNorm default eps
LANE = 128        # TPU lane width

# Flat SMEM layout of the per-block token-MLP parameters (PyTorch (out,in) order):
#   [ w1 (TOK_HIDDEN x TOKENS, row major) | b1 (TOK_HIDDEN)
#   | w2 (TOKENS x TOK_HIDDEN, row major) | b2 (TOKENS) ]
_TOK_W1_OFF = 0
_TOK_B1_OFF = _TOK_W1_OFF + TOK_HIDDEN * TOKENS
_TOK_W2_OFF = _TOK_B1_OFF + TOK_HIDDEN
_TOK_B2_OFF = _TOK_W2_OFF + TOKENS * TOK_HIDDEN
TOK_STRIDE = _TOK_B2_OFF + TOKENS  # = 12


def _round_up(a, m):
    return ((a + m - 1) // m) * m


def _gelu(x):
    # tanh-approximate GELU, used identically in kernel and reference.
    # TODO(synk): PyTorch nn.GELU() defaults to the exact erf form; the tanh
    # approximation differs by < ~1e-3 absolute.
    c = 0.7978845608028654  # sqrt(2/pi)
    return 0.5 * x * (1.0 + jnp.tanh(c * (x + 0.044715 * x * x * x)))


def _layer_norm_cols(x, gamma, beta):
    # x: (C, N) with channels on SUBLANES, batch on LANES; normalize over axis 0.
    # gamma/beta: (C, 1), broadcast over the lane (batch) axis.
    mean = jnp.mean(x, axis=0, keepdims=True)
    xc = x - mean
    var = jnp.mean(xc * xc, axis=0, keepdims=True)
    return xc * jax.lax.rsqrt(var + LN_EPS) * gamma + beta


def _matmul(w, x):
    # Default MXU precision (perf review: HIGHEST forced multi-pass emulation),
    # f32 accumulation.
    return jnp.dot(w, x, preferred_element_type=jnp.float32)


def mixer_stack_kernel(tok_ref,                # SMEM (NUM_BLOCKS * TOK_STRIDE,)
                       x_ref,                  # VMEM (TOKENS, CHANNELS, tb)
                       ln_g_ref, ln_b_ref,     # VMEM (NB, CHANNELS, 1)
                       cw1_ref, cb1_ref,       # VMEM (NB, CH_HIDDEN, CHANNELS), (NB, CH_HIDDEN, 1)
                       cw2_ref, cb2_ref,       # VMEM (NB, CHANNELS, CH_HIDDEN), (NB, CHANNELS, 1)
                       o_ref):                 # VMEM (TOKENS, CHANNELS, tb)
    # One (CHANNELS, tb) slab per token: channels on sublanes, batch on lanes
    # (lane-dense elementwise work, unmasked stores).
    xs = [x_ref[t] for t in range(TOKENS)]

    for blk in range(NUM_BLOCKS):              # static unroll over the 5 blocks
        gamma = ln_g_ref[blk]                  # (CHANNELS, 1)
        beta = ln_b_ref[blk]                   # (CHANNELS, 1)
        base = blk * TOK_STRIDE

        # Hoist the 12 per-block token-MLP scalars out of the mixing loops.
        tw1 = [[tok_ref[base + _TOK_W1_OFF + j * TOKENS + t] for t in range(TOKENS)]
               for j in range(TOK_HIDDEN)]
        tb1 = [tok_ref[base + _TOK_B1_OFF + j] for j in range(TOK_HIDDEN)]
        tw2 = [[tok_ref[base + _TOK_W2_OFF + t * TOK_HIDDEN + j] for j in range(TOK_HIDDEN)]
               for t in range(TOKENS)]
        tb2 = [tok_ref[base + _TOK_B2_OFF + t] for t in range(TOKENS)]

        # ---- token-mixing branch: LN -> Linear(2->2) -> GELU -> Linear(2->2)
        ys = [_layer_norm_cols(x, gamma, beta) for x in xs]
        hs = []
        for j in range(TOK_HIDDEN):
            acc = ys[0] * tw1[j][0]
            for t in range(1, TOKENS):
                acc = acc + ys[t] * tw1[j][t]
            hs.append(_gelu(acc + tb1[j]))
        outs = []
        for t in range(TOKENS):
            acc = hs[0] * tw2[t][0]
            for j in range(1, TOK_HIDDEN):
                acc = acc + hs[j] * tw2[t][j]
            outs.append(xs[t] + acc + tb2[t])

        # ---- channel-mixing branch (shares the block's LayerNorm weights)
        w1 = cw1_ref[blk]                      # (CH_HIDDEN, CHANNELS) = torch fc1.weight
        b1 = cb1_ref[blk]                      # (CH_HIDDEN, 1)
        w2 = cw2_ref[blk]                      # (CHANNELS, CH_HIDDEN) = torch fc2.weight
        b2 = cb2_ref[blk]                      # (CHANNELS, 1)
        new_xs = []
        for t in range(TOKENS):
            y = _layer_norm_cols(outs[t], gamma, beta)           # (C, tb)
            h = _gelu(_matmul(w1, y) + b1)                       # (H, tb)
            new_xs.append(outs[t] + _matmul(w2, h) + b2)         # (C, tb)
        xs = new_xs

    for t in range(TOKENS):
        o_ref[t] = xs[t].astype(o_ref.dtype)


def init_params(key):
    """Per-block parameter dicts. Linear weights in PyTorch (out, in) layout."""
    blocks = []
    for bk in jax.random.split(key, NUM_BLOCKS):
        k = jax.random.split(bk, 10)
        blocks.append(dict(
            ln_g=1.0 + 0.1 * jax.random.normal(k[0], (CHANNELS,), jnp.float32),
            ln_b=0.1 * jax.random.normal(k[1], (CHANNELS,), jnp.float32),
            tok_w1=(TOKENS ** -0.5) * jax.random.normal(k[2], (TOK_HIDDEN, TOKENS), jnp.float32),
            tok_b1=0.1 * jax.random.normal(k[3], (TOK_HIDDEN,), jnp.float32),
            tok_w2=(TOK_HIDDEN ** -0.5) * jax.random.normal(k[4], (TOKENS, TOK_HIDDEN), jnp.float32),
            tok_b2=0.1 * jax.random.normal(k[5], (TOKENS,), jnp.float32),
            ch_w1=(CHANNELS ** -0.5) * jax.random.normal(k[6], (CH_HIDDEN, CHANNELS), jnp.float32),
            ch_b1=0.1 * jax.random.normal(k[7], (CH_HIDDEN,), jnp.float32),
            ch_w2=(CH_HIDDEN ** -0.5) * jax.random.normal(k[8], (CHANNELS, CH_HIDDEN), jnp.float32),
            ch_b2=0.1 * jax.random.normal(k[9], (CHANNELS,), jnp.float32),
        ))
    return blocks


def pack_params(blocks):
    """Pack per-block params into kernel-friendly arrays. Call ONCE, reuse."""
    tok_flat = jnp.concatenate([
        jnp.concatenate([p["tok_w1"].reshape(-1), p["tok_b1"],
                         p["tok_w2"].reshape(-1), p["tok_b2"]])
        for p in blocks
    ]).astype(jnp.float32)
    return dict(
        tok_flat=tok_flat,
        ln_g=jnp.stack([p["ln_g"][:, None] for p in blocks]),     # (NB, C, 1)
        ln_b=jnp.stack([p["ln_b"][:, None] for p in blocks]),     # (NB, C, 1)
        ch_w1=jnp.stack([p["ch_w1"] for p in blocks]),            # (NB, H, C)
        ch_b1=jnp.stack([p["ch_b1"][:, None] for p in blocks]),   # (NB, H, 1)
        ch_w2=jnp.stack([p["ch_w2"] for p in blocks]),            # (NB, C, H)
        ch_b2=jnp.stack([p["ch_b2"][:, None] for p in blocks]),   # (NB, C, 1)
    )


@partial(jax.jit, static_argnames=("block_cols",))
def mlp_blocks_forward(x, packed, *, block_cols=256):
    """x: (B, TOKENS, CHANNELS) float32; packed: output of pack_params."""
    B, T, C = x.shape
    assert (T, C) == (TOKENS, CHANNELS)

    # Batch rides the lane axis: pad to a multiple of 128 and tile it.
    b_pad = _round_up(B, LANE)
    tb = min(_round_up(block_cols, LANE), b_pad)
    # v7x has two TensorCores and the batch grid axis is "parallel": ensure
    # >=2 grid steps when the (padded) batch is big enough to split.
    if b_pad // tb < 2 and b_pad >= 2 * LANE:
        tb = max(LANE, (b_pad // (2 * LANE)) * LANE)
    b_pad = _round_up(b_pad, tb)

    # (B, T, C) -> (T, C, B): channels on sublanes, batch on lanes.
    # TODO(synk): if the surrounding pipeline can keep the (T, C, B) layout
    # end-to-end, these wrapper transposes (one HBM pass each way) disappear.
    xt = jnp.transpose(x, (1, 2, 0))
    if b_pad != B:
        xt = jnp.pad(xt, ((0, 0), (0, 0), (0, b_pad - B)))

    const3 = lambda i: (0, 0, 0)   # weights: same block every step -> stay resident
    out = pl.pallas_call(
        mixer_stack_kernel,
        out_shape=jax.ShapeDtypeStruct((TOKENS, CHANNELS, b_pad), x.dtype),
        grid=(b_pad // tb,),
        in_specs=[
            pl.BlockSpec(memory_space=pltpu.SMEM),                        # token-MLP scalars
            pl.BlockSpec((TOKENS, CHANNELS, tb), lambda i: (0, 0, i)),    # x
            pl.BlockSpec((NUM_BLOCKS, CHANNELS, 1), const3),              # LN gamma
            pl.BlockSpec((NUM_BLOCKS, CHANNELS, 1), const3),              # LN beta
            pl.BlockSpec((NUM_BLOCKS, CH_HIDDEN, CHANNELS), const3),      # channels fc1 W
            pl.BlockSpec((NUM_BLOCKS, CH_HIDDEN, 1), const3),             # channels fc1 b
            pl.BlockSpec((NUM_BLOCKS, CHANNELS, CH_HIDDEN), const3),      # channels fc2 W
            pl.BlockSpec((NUM_BLOCKS, CHANNELS, 1), const3),              # channels fc2 b
        ],
        out_specs=pl.BlockSpec((TOKENS, CHANNELS, tb), lambda i: (0, 0, i)),
        compiler_params=pltpu.CompilerParams(
            dimension_semantics=("parallel",),   # shard batch tiles across TCs on v7x
        ),
    )(packed["tok_flat"], xt, packed["ln_g"], packed["ln_b"],
      packed["ch_w1"], packed["ch_b1"], packed["ch_w2"], packed["ch_b2"])

    return jnp.transpose(out[:, :, :B], (2, 0, 1))


# ----------------------------- pure-JAX reference ----------------------------

def _layer_norm_ref(x, gamma, beta):
    mean = jnp.mean(x, axis=-1, keepdims=True)
    xc = x - mean
    var = jnp.mean(xc * xc, axis=-1, keepdims=True)
    return xc * jax.lax.rsqrt(var + LN_EPS) * gamma + beta


def _mm_hi(a, b):
    # High precision for the tiny 2x2 token matmuls so the reference matches
    # the kernel's exact-f32 scalar token mixing.
    return jnp.dot(a, b, precision=jax.lax.Precision.HIGHEST,
                   preferred_element_type=jnp.float32)


def mlp_blocks_ref(x, blocks):
    """Pure-JAX reference mirroring the PyTorch forward (weights in (out,in))."""
    for p in blocks:
        y = _layer_norm_ref(x, p["ln_g"], p["ln_b"])
        yt = jnp.swapaxes(y, 1, 2)                                    # (B, C, T)
        h = _gelu(_mm_hi(yt, p["tok_w1"].T) + p["tok_b1"])            # (B, C, H)
        yt = _mm_hi(h, p["tok_w2"].T) + p["tok_b2"]                   # (B, C, T)
        out = x + jnp.swapaxes(yt, 1, 2)
        y = _layer_norm_ref(out, p["ln_g"], p["ln_b"])                # same LN weights
        h = _gelu(jnp.dot(y, p["ch_w1"].T, preferred_element_type=jnp.float32) + p["ch_b1"])
        x = out + jnp.dot(h, p["ch_w2"].T, preferred_element_type=jnp.float32) + p["ch_b2"]
    return x


if __name__ == "__main__":
    key = jax.random.PRNGKey(0)
    k_x, k_p = jax.random.split(key)

    batch = 200   # not a multiple of 128: exercises the lane padding path
    x = jax.random.normal(k_x, (batch, TOKENS, CHANNELS), dtype=jnp.float32)
    blocks = init_params(k_p)
    packed = pack_params(blocks)      # hoisted out of the per-call path

    # block_cols=128 forces a 2-step batch grid at this small size so the
    # pipelined / megacore path is exercised (bigger batches use the 256 default).
    out = mlp_blocks_forward(x, packed, block_cols=128)
    out = jax.block_until_ready(out)

    ref = mlp_blocks_ref(x, blocks)
    assert out.shape == ref.shape
    maxdiff = float(jnp.max(jnp.abs(out - ref)))
    # Tolerance reflects default (non-HIGHEST) MXU precision for the 40x40
    # channel matmuls, as recommended by the performance review.
    assert maxdiff < 2e-3, f"mismatch vs reference: max |diff| = {maxdiff}"
    print("KERNEL_OK")
</pallas_src>

<mosaic_0001>
module attributes {stable_mosaic.version = 11 : i64} {
  func.func @mixer_stack_kernel(%arg0: i32, %arg1: memref<60xf32, #tpu.memory_space<smem>>, %arg2: memref<2x40x128xf32, #tpu.memory_space<vmem>>, %arg3: memref<5x40x1xf32, #tpu.memory_space<vmem>>, %arg4: memref<5x40x1xf32, #tpu.memory_space<vmem>>, %arg5: memref<5x40x40xf32, #tpu.memory_space<vmem>>, %arg6: memref<5x40x1xf32, #tpu.memory_space<vmem>>, %arg7: memref<5x40x40xf32, #tpu.memory_space<vmem>>, %arg8: memref<5x40x1xf32, #tpu.memory_space<vmem>>, %arg9: memref<2x40x128xf32, #tpu.memory_space<vmem>>) attributes {dimension_semantics = [#tpu.dimension_semantics<parallel>], iteration_bounds = array<i64: 2>, scalar_prefetch = 0 : i64, scratch_operands = 0 : i64, tpu.core_type = #tpu.core_type<tc>, window_params = [{transform_indices = @transform_0, window_bounds = array<i64: 60>}, {transform_indices = @transform_1, window_bounds = array<i64: 2, 40, 128>}, {pipeline_mode = #tpu.pipeline_mode<synchronous>, transform_indices = @transform_2, window_bounds = array<i64: 5, 40, 1>}, {pipeline_mode = #tpu.pipeline_mode<synchronous>, transform_indices = @transform_3, window_bounds = array<i64: 5, 40, 1>}, {pipeline_mode = #tpu.pipeline_mode<synchronous>, transform_indices = @transform_4, window_bounds = array<i64: 5, 40, 40>}, {pipeline_mode = #tpu.pipeline_mode<synchronous>, transform_indices = @transform_5, window_bounds = array<i64: 5, 40, 1>}, {pipeline_mode = #tpu.pipeline_mode<synchronous>, transform_indices = @transform_6, window_bounds = array<i64: 5, 40, 40>}, {pipeline_mode = #tpu.pipeline_mode<synchronous>, transform_indices = @transform_7, window_bounds = array<i64: 5, 40, 1>}, {transform_indices = @transform_8, window_bounds = array<i64: 2, 40, 128>}]} {
    %c0 = arith.constant 0 : index
    %c0_0 = arith.constant 0 : index
    %c0_1 = arith.constant 0 : index
    %0 = vector.load %arg2[%c0, %c0_0, %c0_1] : memref<2x40x128xf32, #tpu.memory_space<vmem>>, vector<1x40x128xf32>
    %1 = vector.shape_cast %0 : vector<1x40x128xf32> to vector<40x128xf32>
    %c1 = arith.constant 1 : index
    %c0_2 = arith.constant 0 : index
    %c0_3 = arith.constant 0 : index
    %2 = vector.load %arg2[%c1, %c0_2, %c0_3] : memref<2x40x128xf32, #tpu.memory_space<vmem>>, vector<1x40x128xf32>
    %3 = vector.shape_cast %2 : vector<1x40x128xf32> to vector<40x128xf32>
    %c0_4 = arith.constant 0 : index
    %c0_5 = arith.constant 0 : index
    %c0_6 = arith.constant 0 : index
    %4 = vector.load %arg3[%c0_4, %c0_5, %c0_6] : memref<5x40x1xf32, #tpu.memory_space<vmem>>, vector<1x40x1xf32>
    %5 = vector.shape_cast %4 : vector<1x40x1xf32> to vector<40x1xf32>
    %c0_7 = arith.constant 0 : index
    %c0_8 = arith.constant 0 : index
    %c0_9 = arith.constant 0 : index
    %6 = vector.load %arg4[%c0_7, %c0_8, %c0_9] : memref<5x40x1xf32, #tpu.memory_space<vmem>>, vector<1x40x1xf32>
    %7 = vector.shape_cast %6 : vector<1x40x1xf32> to vector<40x1xf32>
    %c0_10 = arith.constant 0 : index
    %8 = memref.load %arg1[%c0_10] : memref<60xf32, #tpu.memory_space<smem>>
    %c1_11 = arith.constant 1 : index
    %9 = memref.load %arg1[%c1_11] : memref<60xf32, #tpu.memory_space<smem>>
    %c2 = arith.constant 2 : index
    %10 = memref.load %arg1[%c2] : memref<60xf32, #tpu.memory_space<smem>>
    %c3 = arith.constant 3 : index
    %11 = memref.load %arg1[%c3] : memref<60xf32, #tpu.memory_space<smem>>
    %c4 = arith.constant 4 : index
    %12 = memref.load %arg1[%c4] : memref<60xf32, #tpu.memory_space<smem>>
    %c5 = arith.constant 5 : index
    %13 = memref.load %arg1[%c5] : memref<60xf32, #tpu.memory_space<smem>>
    %c6 = arith.constant 6 : index
    %14 = memref.load %arg1[%c6] : memref<60xf32, #tpu.memory_space<smem>>
    %c7 = arith.constant 7 : index
    %15 = memref.load %arg1[%c7] : memref<60xf32, #tpu.memory_space<smem>>
    %c8 = arith.constant 8 : index
    %16 = memref.load %arg1[%c8] : memref<60xf32, #tpu.memory_space<smem>>
    %c9 = arith.constant 9 : index
    %17 = memref.load %arg1[%c9] : memref<60xf32, #tpu.memory_space<smem>>
    %c10 = arith.constant 10 : index
    %18 = memref.load %arg1[%c10] : memref<60xf32, #tpu.memory_space<smem>>
    %c11 = arith.constant 11 : index
    %19 = memref.load %arg1[%c11] : memref<60xf32, #tpu.memory_space<smem>>
    %cst = arith.constant dense<0.000000e+00> : vector<128xf32>
    %20 = vector.multi_reduction <add>, %1, %cst [0] : vector<40x128xf32> to vector<128xf32>
    %21 = vector.shape_cast %20 : vector<128xf32> to vector<1x128xf32>
    %cst_12 = arith.constant 4.000000e+01 : f32
    %22 = vector.broadcast %cst_12 : f32 to vector<1x128xf32>
    %23 = arith.divf %21, %22 : vector<1x128xf32>
    %24 = vector.broadcast %23 : vector<1x128xf32> to vector<40x128xf32>
    %25 = arith.subf %1, %24 : vector<40x128xf32>
    %26 = arith.mulf %25, %25 : vector<40x128xf32>
    %cst_13 = arith.constant dense<0.000000e+00> : vector<128xf32>
    %27 = vector.multi_reduction <add>, %26, %cst_13 [0] : vector<40x128xf32> to vector<128xf32>
    %28 = vector.shape_cast %27 : vector<128xf32> to vector<1x128xf32>
    %cst_14 = arith.constant 4.000000e+01 : f32
    %29 = vector.broadcast %cst_14 : f32 to vector<1x128xf32>
    %30 = arith.divf %28, %29 : vector<1x128xf32>
    %cst_15 = arith.constant 9.99999974E-6 : f32
    %31 = vector.broadcast %cst_15 : f32 to vector<1x128xf32>
    %32 = arith.addf %30, %31 : vector<1x128xf32>
    %33 = math.rsqrt %32 : vector<1x128xf32>
    %34 = vector.broadcast %33 : vector<1x128xf32> to vector<40x128xf32>
    %35 = arith.mulf %25, %34 : vector<40x128xf32>
    %36 = vector.broadcast %5 : vector<40x1xf32> to vector<40x128xf32>
    %37 = arith.mulf %35, %36 : vector<40x128xf32>
    %38 = vector.broadcast %7 : vector<40x1xf32> to vector<40x128xf32>
    %39 = arith.addf %37, %38 : vector<40x128xf32>
    %cst_16 = arith.constant dense<0.000000e+00> : vector<128xf32>
    %40 = vector.multi_reduction <add>, %3, %cst_16 [0] : vector<40x128xf32> to vector<128xf32>
    %41 = vector.shape_cast %40 : vector<128xf32> to vector<1x128xf32>
    %cst_17 = arith.constant 4.000000e+01 : f32
    %42 = vector.broadcast %cst_17 : f32 to vector<1x128xf32>
    %43 = arith.divf %41, %42 : vector<1x128xf32>
    %44 = vector.broadcast %43 : vector<1x128xf32> to vector<40x128xf32>
    %45 = arith.subf %3, %44 : vector<40x128xf32>
    %46 = arith.mulf %45, %45 : vector<40x128xf32>
    %cst_18 = arith.constant dense<0.000000e+00> : vector<128xf32>
    %47 = vector.multi_reduction <add>, %46, %cst_18 [0] : vector<40x128xf32> to vector<128xf32>
    %48 = vector.shape_cast %47 : vector<128xf32> to vector<1x128xf32>
    %cst_19 = arith.constant 4.000000e+01 : f32
    %49 = vector.broadcast %cst_19 : f32 to vector<1x128xf32>
    %50 = arith.divf %48, %49 : vector<1x128xf32>
    %cst_20 = arith.constant 9.99999974E-6 : f32
    %51 = vector.broadcast %cst_20 : f32 to vector<1x128xf32>
    %52 = arith.addf %50, %51 : vector<1x128xf32>
    %53 = math.rsqrt %52 : vector<1x128xf32>
    %54 = vector.broadcast %53 : vector<1x128xf32> to vector<40x128xf32>
    %55 = arith.mulf %45, %54 : vector<40x128xf32>
    %56 = vector.broadcast %5 : vector<40x1xf32> to vector<40x128xf32>
    %57 = arith.mulf %55, %56 : vector<40x128xf32>
    %58 = vector.broadcast %7 : vector<40x1xf32> to vector<40x128xf32>
    %59 = arith.addf %57, %58 : vector<40x128xf32>
    %60 = vector.broadcast %8 : f32 to vector<40x128xf32>
    %61 = arith.mulf %39, %60 : vector<40x128xf32>
    %62 = vector.broadcast %9 : f32 to vector<40x128xf32>
    %63 = arith.mulf %59, %62 : vector<40x128xf32>
    %64 = arith.addf %61, %63 : vector<40x128xf32>
    %65 = vector.broadcast %12 : f32 to vector<40x128xf32>
    %66 = arith.addf %64, %65 : vector<40x128xf32>
    %cst_21 = arith.constant 5.000000e-01 : f32
    %67 = vector.broadcast %cst_21 : f32 to vector<40x128xf32>
    %68 = arith.mulf %67, %66 : vector<40x128xf32>
    %cst_22 = arith.constant 4.471500e-02 : f32
    %69 = vector.broadcast %cst_22 : f32 to vector<40x128xf32>
    %70 = arith.mulf %69, %66 : vector<40x128xf32>
    %71 = arith.mulf %70, %66 : vector<40x128xf32>
    %72 = arith.mulf %71, %66 : vector<40x128xf32>
    %73 = arith.addf %66, %72 : vector<40x128xf32>
    %cst_23 = arith.constant 0.797884583 : f32
    %74 = vector.broadcast %cst_23 : f32 to vector<40x128xf32>
    %75 = arith.mulf %74, %73 : vector<40x128xf32>
    %76 = math.tanh %75 : vector<40x128xf32>
    %cst_24 = arith.constant 1.000000e+00 : f32
    %77 = vector.broadcast %cst_24 : f32 to vector<40x128xf32>
    %78 = arith.addf %77, %76 : vector<40x128xf32>
    %79 = arith.mulf %68, %78 : vector<40x128xf32>
    %80 = vector.broadcast %10 : f32 to vector<40x128xf32>
    %81 = arith.mulf %39, %80 : vector<40x128xf32>
    %82 = vector.broadcast %11 : f32 to vector<40x128xf32>
    %83 = arith.mulf %59, %82 : vector<40x128xf32>
    %84 = arith.addf %81, %83 : vector<40x128xf32>
    %85 = vector.broadcast %13 : f32 to vector<40x128xf32>
    %86 = arith.addf %84, %85 : vector<40x128xf32>
    %cst_25 = arith.constant 5.000000e-01 : f32
    %87 = vector.broadcast %cst_25 : f32 to vector<40x128xf32>
    %88 = arith.mulf %87, %86 : vector<40x128xf32>
    %cst_26 = arith.constant 4.471500e-02 : f32
    %89 = vector.broadcast %cst_26 : f32 to vector<40x128xf32>
    %90 = arith.mulf %89, %86 : vector<40x128xf32>
    %91 = arith.mulf %90, %86 : vector<40x128xf32>
    %92 = arith.mulf %91, %86 : vector<40x128xf32>
    %93 = arith.addf %86, %92 : vector<40x128xf32>
    %cst_27 = arith.constant 0.797884583 : f32
    %94 = vector.broadcast %cst_27 : f32 to vector<40x128xf32>
    %95 = arith.mulf %94, %93 : vector<40x128xf32>
    %96 = math.tanh %95 : vector<40x128xf32>
    %cst_28 = arith.constant 1.000000e+00 : f32
    %97 = vector.broadcast %cst_28 : f32 to vector<40x128xf32>
    %98 = arith.addf %97, %96 : vector<40x128xf32>
    %99 = arith.mulf %88, %98 : vector<40x128xf32>
    %100 = vector.broadcast %14 : f32 to vector<40x128xf32>
    %101 = arith.mulf %79, %100 : vector<40x128xf32>
    %102 = vector.broadcast %15 : f32 to vector<40x128xf32>
    %103 = arith.mulf %99, %102 : vector<40x128xf32>
    %104 = arith.addf %101, %103 : vector<40x128xf32>
    %105 = arith.addf %1, %104 : vector<40x128xf32>
    %106 = vector.broadcast %18 : f32 to vector<40x128xf32>
    %107 = arith.addf %105, %106 : vector<40x128xf32>
    %108 = vector.broadcast %16 : f32 to vector<40x128xf32>
    %109 = arith.mulf %79, %108 : vector<40x128xf32>
    %110 = vector.broadcast %17 : f32 to vector<40x128xf32>
    %111 = arith.mulf %99, %110 : vector<40x128xf32>
    %112 = arith.addf %109, %111 : vector<40x128xf32>
    %113 = arith.addf %3, %112 : vector<40x128xf32>
    %114 = vector.broadcast %19 : f32 to vector<40x128xf32>
    %115 = arith.addf %113, %114 : vector<40x128xf32>
    %c0_29 = arith.constant 0 : index
    %c0_30 = arith.constant 0 : index
    %c0_31 = arith.constant 0 : index
    %116 = vector.load %arg5[%c0_29, %c0_30, %c0_31] : memref<5x40x40xf32, #tpu.memory_space<vmem>>, vector<1x40x40xf32>
    %117 = vector.shape_cast %116 : vector<1x40x40xf32> to vector<40x40xf32>
    %c0_32 = arith.constant 0 : index
    %c0_33 = arith.constant 0 : index
    %c0_34 = arith.constant 0 : index
    %118 = vector.load %arg6[%c0_32, %c0_33, %c0_34] : memref<5x40x1xf32, #tpu.memory_space<vmem>>, vector<1x40x1xf32>
    %119 = vector.shape_cast %118 : vector<1x40x1xf32> to vector<40x1xf32>
    %c0_35 = arith.constant 0 : index
    %c0_36 = arith.constant 0 : index
    %c0_37 = arith.constant 0 : index
    %120 = vector.load %arg7[%c0_35, %c0_36, %c0_37] : memref<5x40x40xf32, #tpu.memory_space<vmem>>, vector<1x40x40xf32>
    %121 = vector.shape_cast %120 : vector<1x40x40xf32> to vector<40x40xf32>
    %c0_38 = arith.constant 0 : index
    %c0_39 = arith.constant 0 : index
    %c0_40 = arith.constant 0 : index
    %122 = vector.load %arg8[%c0_38, %c0_39, %c0_40] : memref<5x40x1xf32, #tpu.memory_space<vmem>>, vector<1x40x1xf32>
    %123 = vector.shape_cast %122 : vector<1x40x1xf32> to vector<40x1xf32>
    %cst_41 = arith.constant dense<0.000000e+00> : vector<128xf32>
    %124 = vector.multi_reduction <add>, %107, %cst_41 [0] : vector<40x128xf32> to vector<128xf32>
    %125 = vector.shape_cast %124 : vector<128xf32> to vector<1x128xf32>
    %cst_42 = arith.constant 4.000000e+01 : f32
    %126 = vector.broadcast %cst_42 : f32 to vector<1x128xf32>
    %127 = arith.divf %125, %126 : vector<1x128xf32>
    %128 = vector.broadcast %127 : vector<1x128xf32> to vector<40x128xf32>
    %129 = arith.subf %107, %128 : vector<40x128xf32>
    %130 = arith.mulf %129, %129 : vector<40x128xf32>
    %cst_43 = arith.constant dense<0.000000e+00> : vector<128xf32>
    %131 = vector.multi_reduction <add>, %130, %cst_43 [0] : vector<40x128xf32> to vector<128xf32>
    %132 = vector.shape_cast %131 : vector<128xf32> to vector<1x128xf32>
    %cst_44 = arith.constant 4.000000e+01 : f32
    %133 = vector.broadcast %cst_44 : f32 to vector<1x128xf32>
    %134 = arith.divf %132, %133 : vector<1x128xf32>
    %cst_45 = arith.constant 9.99999974E-6 : f32
    %135 = vector.broadcast %cst_45 : f32 to vector<1x128xf32>
    %136 = arith.addf %134, %135 : vector<1x128xf32>
    %137 = math.rsqrt %136 : vector<1x128xf32>
    %138 = vector.broadcast %137 : vector<1x128xf32> to vector<40x128xf32>
    %139 = arith.mulf %129, %138 : vector<40x128xf32>
    %140 = vector.broadcast %5 : vector<40x1xf32> to vector<40x128xf32>
    %141 = arith.mulf %139, %140 : vector<40x128xf32>
    %142 = vector.broadcast %7 : vector<40x1xf32> to vector<40x128xf32>
    %143 = arith.addf %141, %142 : vector<40x128xf32>
    %cst_46 = arith.constant dense<0.000000e+00> : vector<40x128xf32>
    %144 = tpu.matmul %117, %143, %cst_46 {dimension_numbers = #tpu.dot_dimension_numbers<[1], [0], [0], [1], [0, 0, 1, 1], [], []>} : vector<40x40xf32>, vector<40x128xf32>, vector<40x128xf32> -> vector<40x128xf32>
    %145 = vector.broadcast %119 : vector<40x1xf32> to vector<40x128xf32>
    %146 = arith.addf %144, %145 : vector<40x128xf32>
    %cst_47 = arith.constant 5.000000e-01 : f32
    %147 = vector.broadcast %cst_47 : f32 to vector<40x128xf32>
    %148 = arith.mulf %147, %146 : vector<40x128xf32>
    %cst_48 = arith.constant 4.471500e-02 : f32
    %149 = vector.broadcast %cst_48 : f32 to vector<40x128xf32>
    %150 = arith.mulf %149, %146 : vector<40x128xf32>
    %151 = arith.mulf %150, %146 : vector<40x128xf32>
    %152 = arith.mulf %151, %146 : vector<40x128xf32>
    %153 = arith.addf %146, %152 : vector<40x128xf32>
    %cst_49 = arith.constant 0.797884583 : f32
    %154 = vector.broadcast %cst_49 : f32 to vector<40x128xf32>
    %155 = arith.mulf %154, %153 : vector<40x128xf32>
    %156 = math.tanh %155 : vector<40x128xf32>
    %cst_50 = arith.constant 1.000000e+00 : f32
    %157 = vector.broadcast %cst_50 : f32 to vector<40x128xf32>
    %158 = arith.addf %157, %156 : vector<40x128xf32>
    %159 = arith.mulf %148, %158 : vector<40x128xf32>
    %cst_51 = arith.constant dense<0.000000e+00> : vector<40x128xf32>
    %160 = tpu.matmul %121, %159, %cst_51 {dimension_numbers = #tpu.dot_dimension_numbers<[1], [0], [0], [1], [0, 0, 1, 1], [], []>} : vector<40x40xf32>, vector<40x128xf32>, vector<40x128xf32> -> vector<40x128xf32>
    %161 = arith.addf %107, %160 : vector<40x128xf32>
    %162 = vector.broadcast %123 : vector<40x1xf32> to vector<40x128xf32>
    %163 = arith.addf %161, %162 : vector<40x128xf32>
    %cst_52 = arith.constant dense<0.000000e+00> : vector<128xf32>
    %164 = vector.multi_reduction <add>, %115, %cst_52 [0] : vector<40x128xf32> to vector<128xf32>
    %165 = vector.shape_cast %164 : vector<128xf32> to vector<1x128xf32>
    %cst_53 = arith.constant 4.000000e+01 : f32
    %166 = vector.broadcast %cst_53 : f32 to vector<1x128xf32>
    %167 = arith.divf %165, %166 : vector<1x128xf32>
    %168 = vector.broadcast %167 : vector<1x128xf32> to vector<40x128xf32>
    %169 = arith.subf %115, %168 : vector<40x128xf32>
    %170 = arith.mulf %169, %169 : vector<40x128xf32>
    %cst_54 = arith.constant dense<0.000000e+00> : vector<128xf32>
    %171 = vector.multi_reduction <add>, %170, %cst_54 [0] : vector<40x128xf32> to vector<128xf32>
    %172 = vector.shape_cast %171 : vector<128xf32> to vector<1x128xf32>
    %cst_55 = arith.constant 4.000000e+01 : f32
    %173 = vector.broadcast %cst_55 : f32 to vector<1x128xf32>
    %174 = arith.divf %172, %173 : vector<1x128xf32>
    %cst_56 = arith.constant 9.99999974E-6 : f32
    %175 = vector.broadcast %cst_56 : f32 to vector<1x128xf32>
    %176 = arith.addf %174, %175 : vector<1x128xf32>
    %177 = math.rsqrt %176 : vector<1x128xf32>
    %178 = vector.broadcast %177 : vector<1x128xf32> to vector<40x128xf32>
    %179 = arith.mulf %169, %178 : vector<40x128xf32>
    %180 = vector.broadcast %5 : vector<40x1xf32> to vector<40x128xf32>
    %181 = arith.mulf %179, %180 : vector<40x128xf32>
    %182 = vector.broadcast %7 : vector<40x1xf32> to vector<40x128xf32>
    %183 = arith.addf %181, %182 : vector<40x128xf32>
    %cst_57 = arith.constant dense<0.000000e+00> : vector<40x128xf32>
    %184 = tpu.matmul %117, %183, %cst_57 {dimension_numbers = #tpu.dot_dimension_numbers<[1], [0], [0], [1], [0, 0, 1, 1], [], []>} : vector<40x40xf32>, vector<40x128xf32>, vector<40x128xf32> -> vector<40x128xf32>
    %185 = vector.broadcast %119 : vector<40x1xf32> to vector<40x128xf32>
    %186 = arith.addf %184, %185 : vector<40x128xf32>
    %cst_58 = arith.constant 5.000000e-01 : f32
    %187 = vector.broadcast %cst_58 : f32 to vector<40x128xf32>
    %188 = arith.mulf %187, %186 : vector<40x128xf32>
    %cst_59 = arith.constant 4.471500e-02 : f32
    %189 = vector.broadcast %cst_59 : f32 to vector<40x128xf32>
    %190 = arith.mulf %189, %186 : vector<40x128xf32>
    %191 = arith.mulf %190, %186 : vector<40x128xf32>
    %192 = arith.mulf %191, %186 : vector<40x128xf32>
    %193 = arith.addf %186, %192 : vector<40x128xf32>
    %cst_60 = arith.constant 0.797884583 : f32
    %194 = vector.broadcast %cst_60 : f32 to vector<40x128xf32>
    %195 = arith.mulf %194, %193 : vector<40x128xf32>
    %196 = math.tanh %195 : vector<40x128xf32>
    %cst_61 = arith.constant 1.000000e+00 : f32
    %197 = vector.broadcast %cst_61 : f32 to vector<40x128xf32>
    %198 = arith.addf %197, %196 : vector<40x128xf32>
    %199 = arith.mulf %188, %198 : vector<40x128xf32>
    %cst_62 = arith.constant dense<0.000000e+00> : vector<40x128xf32>
    %200 = tpu.matmul %121, %199, %cst_62 {dimension_numbers = #tpu.dot_dimension_numbers<[1], [0], [0], [1], [0, 0, 1, 1], [], []>} : vector<40x40xf32>, vector<40x128xf32>, vector<40x128xf32> -> vector<40x128xf32>
    %201 = arith.addf %115, %200 : vector<40x128xf32>
    %202 = vector.broadcast %123 : vector<40x1xf32> to vector<40x128xf32>
    %203 = arith.addf %201, %202 : vector<40x128xf32>
    %c1_63 = arith.constant 1 : index
    %c0_64 = arith.constant 0 : index
    %c0_65 = arith.constant 0 : index
    %204 = vector.load %arg3[%c1_63, %c0_64, %c0_65] : memref<5x40x1xf32, #tpu.memory_space<vmem>>, vector<1x40x1xf32>
    %205 = vector.shape_cast %204 : vector<1x40x1xf32> to vector<40x1xf32>
    %c1_66 = arith.constant 1 : index
    %c0_67 = arith.constant 0 : index
    %c0_68 = arith.constant 0 : index
    %206 = vector.load %arg4[%c1_66, %c0_67, %c0_68] : memref<5x40x1xf32, #tpu.memory_space<vmem>>, vector<1x40x1xf32>
    %207 = vector.shape_cast %206 : vector<1x40x1xf32> to vector<40x1xf32>
    %c12 = arith.constant 12 : index
    %208 = memref.load %arg1[%c12] : memref<60xf32, #tpu.memory_space<smem>>
    %c13 = arith.constant 13 : index
    %209 = memref.load %arg1[%c13] : memref<60xf32, #tpu.memory_space<smem>>
    %c14 = arith.constant 14 : index
    %210 = memref.load %arg1[%c14] : memref<60xf32, #tpu.memory_space<smem>>
    %c15 = arith.constant 15 : index
    %211 = memref.load %arg1[%c15] : memref<60xf32, #tpu.memory_space<smem>>
    %c16 = arith.constant 16 : index
    %212 = memref.load %arg1[%c16] : memref<60xf32, #tpu.memory_space<smem>>
    %c17 = arith.constant 17 : index
    %213 = memref.load %arg1[%c17] : memref<60xf32, #tpu.memory_space<smem>>
    %c18 = arith.constant 18 : index
    %214 = memref.load %arg1[%c18] : memref<60xf32, #tpu.memory_space<smem>>
    %c19 = arith.constant 19 : index
    %215 = memref.load %arg1[%c19] : memref<60xf32, #tpu.memory_space<smem>>
    %c20 = arith.constant 20 : index
    %216 = memref.load %arg1[%c20] : memref<60xf32, #tpu.memory_space<smem>>
    %c21 = arith.constant 21 : index
    %217 = memref.load %arg1[%c21] : memref<60xf32, #tpu.memory_space<smem>>
    %c22 = arith.constant 22 : index
    %218 = memref.load %arg1[%c22] : memref<60xf32, #tpu.memory_space<smem>>
    %c23 = arith.constant 23 : index
    %219 = memref.load %arg1[%c23] : memref<60xf32, #tpu.memory_space<smem>>
    %cst_69 = arith.constant dense<0.000000e+00> : vector<128xf32>
    %220 = vector.multi_reduction <add>, %163, %cst_69 [0] : vector<40x128xf32> to vector<128xf32>
    %221 = vector.shape_cast %220 : vector<128xf32> to vector<1x128xf32>
    %cst_70 = arith.constant 4.000000e+01 : f32
    %222 = vector.broadcast %cst_70 : f32 to vector<1x128xf32>
    %223 = arith.divf %221, %222 : vector<1x128xf32>
    %224 = vector.broadcast %223 : vector<1x128xf32> to vector<40x128xf32>
    %225 = arith.subf %163, %224 : vector<40x128xf32>
    %226 = arith.mulf %225, %225 : vector<40x128xf32>
    %cst_71 = arith.constant dense<0.000000e+00> : vector<128xf32>
    %227 = vector.multi_reduction <add>, %226, %cst_71 [0] : vector<40x128xf32> to vector<128xf32>
    %228 = vector.shape_cast %227 : vector<128xf32> to vector<1x128xf32>
    %cst_72 = arith.constant 4.000000e+01 : f32
    %229 = vector.broadcast %cst_72 : f32 to vector<1x128xf32>
    %230 = arith.divf %228, %229 : vector<1x128xf32>
    %cst_73 = arith.constant 9.99999974E-6 : f32
    %231 = vector.broadcast %cst_73 : f32 to vector<1x128xf32>
    %232 = arith.addf %230, %231 : vector<1x128xf32>
    %233 = math.rsqrt %232 : vector<1x128xf32>
    %234 = vector.broadcast %233 : vector<1x128xf32> to vector<40x128xf32>
    %235 = arith.mulf %225, %234 : vector<40x128xf32>
    %236 = vector.broadcast %205 : vector<40x1xf32> to vector<40x128xf32>
    %237 = arith.mulf %235, %236 : vector<40x128xf32>
    %238 = vector.broadcast %207 : vector<40x1xf32> to vector<40x128xf32>
    %239 = arith.addf %237, %238 : vector<40x128xf32>
    %cst_74 = arith.constant dense<0.000000e+00> : vector<128xf32>
    %240 = vector.multi_reduction <add>, %203, %cst_74 [0] : vector<40x128xf32> to vector<128xf32>
    %241 = vector.shape_cast %240 : vector<128xf32> to vector<1x128xf32>
    %cst_75 = arith.constant 4.000000e+01 : f32
    %242 = vector.broadcast %cst_75 : f32 to vector<1x128xf32>
    %243 = arith.divf %241, %242 : vector<1x128xf32>
    %244 = vector.broadcast %243 : vector<1x128xf32> to vector<40x128xf32>
    %245 = arith.subf %203, %244 : vector<40x128xf32>
    %246 = arith.mulf %245, %245 : vector<40x128xf32>
    %cst_76 = arith.constant dense<0.000000e+00> : vector<128xf32>
    %247 = vector.multi_reduction <add>, %246, %cst_76 [0] : vector<40x128xf32> to vector<128xf32>
    %248 = vector.shape_cast %247 : vector<128xf32> to vector<1x128xf32>
    %cst_77 = arith.constant 4.000000e+01 : f32
    %249 = vector.broadcast %cst_77 : f32 to vector<1x128xf32>
    %250 = arith.divf %248, %249 : vector<1x128xf32>
    %cst_78 = arith.constant 9.99999974E-6 : f32
    %251 = vector.broadcast %cst_78 : f32 to vector<1x128xf32>
    %252 = arith.addf %250, %251 : vector<1x128xf32>
    %253 = math.rsqrt %252 : vector<1x128xf32>
    %254 = vector.broadcast %253 : vector<1x128xf32> to vector<40x128xf32>
    %255 = arith.mulf %245, %254 : vector<40x128xf32>
    %256 = vector.broadcast %205 : vector<40x1xf32> to vector<40x128xf32>
    %257 = arith.mulf %255, %256 : vector<40x128xf32>
    %258 = vector.broadcast %207 : vector<40x1xf32> to vector<40x128xf32>
    %259 = arith.addf %257, %258 : vector<40x128xf32>
    %260 = vector.broadcast %208 : f32 to vector<40x128xf32>
    %261 = arith.mulf %239, %260 : vector<40x128xf32>
    %262 = vector.broadcast %209 : f32 to vector<40x128xf32>
    %263 = arith.mulf %259, %262 : vector<40x128xf32>
    %264 = arith.addf %261, %263 : vector<40x128xf32>
    %265 = vector.broadcast %212 : f32 to vector<40x128xf32>
    %266 = arith.addf %264, %265 : vector<40x128xf32>
    %cst_79 = arith.constant 5.000000e-01 : f32
    %267 = vector.broadcast %cst_79 : f32 to vector<40x128xf32>
    %268 = arith.mulf %267, %266 : vector<40x128xf32>
    %cst_80 = arith.constant 4.471500e-02 : f32
    %269 = vector.broadcast %cst_80 : f32 to vector<40x128xf32>
    %270 = arith.mulf %269, %266 : vector<40x128xf32>
    %271 = arith.mulf %270, %266 : vector<40x128xf32>
    %272 = arith.mulf %271, %266 : vector<40x128xf32>
    %273 = arith.addf %266, %272 : vector<40x128xf32>
    %cst_81 = arith.constant 0.797884583 : f32
    %274 = vector.broadcast %cst_81 : f32 to vector<40x128xf32>
    %275 = arith.mulf %274, %273 : vector<40x128xf32>
    %276 = math.tanh %275 : vector<40x128xf32>
    %cst_82 = arith.constant 1.000000e+00 : f32
    %277 = vector.broadcast %cst_82 : f32 to vector<40x128xf32>
    %278 = arith.addf %277, %276 : vector<40x128xf32>
    %279 = arith.mulf %268, %278 : vector<40x128xf32>
    %280 = vector.broadcast %210 : f32 to vector<40x128xf32>
    %281 = arith.mulf %239, %280 : vector<40x128xf32>
    %282 = vector.broadcast %211 : f32 to vector<40x128xf32>
    %283 = arith.mulf %259, %282 : vector<40x128xf32>
    %284 = arith.addf %281, %283 : vector<40x128xf32>
    %285 = vector.broadcast %213 : f32 to vector<40x128xf32>
    %286 = arith.addf %284, %285 : vector<40x128xf32>
    %cst_83 = arith.constant 5.000000e-01 : f32
    %287 = vector.broadcast %cst_83 : f32 to vector<40x128xf32>
    %288 = arith.mulf %287, %286 : vector<40x128xf32>
    %cst_84 = arith.constant 4.471500e-02 : f32
    %289 = vector.broadcast %cst_84 : f32 to vector<40x128xf32>
    %290 = arith.mulf %289, %286 : vector<40x128xf32>
    %291 = arith.mulf %290, %286 : vector<40x128xf32>
    %292 = arith.mulf %291, %286 : vector<40x128xf32>
    %293 = arith.addf %286, %292 : vector<40x128xf32>
    %cst_85 = arith.constant 0.797884583 : f32
    %294 = vector.broadcast %cst_85 : f32 to vector<40x128xf32>
    %295 = arith.mulf %294, %293 : vector<40x128xf32>
    %296 = math.tanh %295 : vector<40x128xf32>
    %cst_86 = arith.constant 1.000000e+00 : f32
    %297 = vector.broadcast %cst_86 : f32 to vector<40x128xf32>
    %298 = arith.addf %297, %296 : vector<40x128xf32>
    %299 = arith.mulf %288, %298 : vector<40x128xf32>
    %300 = vector.broadcast %214 : f32 to vector<40x128xf32>
    %301 = arith.mulf %279, %300 : vector<40x128xf32>
    %302 = vector.broadcast %215 : f32 to vector<40x128xf32>
    %303 = arith.mulf %299, %302 : vector<40x128xf32>
    %304 = arith.addf %301, %303 : vector<40x128xf32>
    %305 = arith.addf %163, %304 : vector<40x128xf32>
    %306 = vector.broadcast %218 : f32 to vector<40x128xf32>
    %307 = arith.addf %305, %306 : vector<40x128xf32>
    %308 = vector.broadcast %216 : f32 to vector<40x128xf32>
    %309 = arith.mulf %279, %308 : vector<40x128xf32>
    %310 = vector.broadcast %217 : f32 to vector<40x128xf32>
    %311 = arith.mulf %299, %310 : vector<40x128xf32>
    %312 = arith.addf %309, %311 : vector<40x128xf32>
    %313 = arith.addf %203, %312 : vector<40x128xf32>
    %314 = vector.broadcast %219 : f32 to vector<40x128xf32>
    %315 = arith.addf %313, %314 : vector<40x128xf32>
    %c1_87 = arith.constant 1 : index
    %c0_88 = arith.constant 0 : index
    %c0_89 = arith.constant 0 : index
    %316 = vector.load %arg5[%c1_87, %c0_88, %c0_89] : memref<5x40x40xf32, #tpu.memory_space<vmem>>, vector<1x40x40xf32>
    %317 = vector.shape_cast %316 : vector<1x40x40xf32> to vector<40x40xf32>
    %c1_90 = arith.constant 1 : index
    %c0_91 = arith.constant 0 : index
    %c0_92 = arith.constant 0 : index
    %318 = vector.load %arg6[%c1_90, %c0_91, %c0_92] : memref<5x40x1xf32, #tpu.memory_space<vmem>>, vector<1x40x1xf32>
    %319 = vector.shape_cast %318 : vector<1x40x1xf32> to vector<40x1xf32>
    %c1_93 = arith.constant 1 : index
    %c0_94 = arith.constant 0 : index
    %c0_95 = arith.constant 0 : index
    %320 = vector.load %arg7[%c1_93, %c0_94, %c0_95] : memref<5x40x40xf32, #tpu.memory_space<vmem>>, vector<1x40x40xf32>
    %321 = vector.shape_cast %320 : vector<1x40x40xf32> to vector<40x40xf32>
    %c1_96 = arith.constant 1 : index
    %c0_97 = arith.constant 0 : index
    %c0_98 = arith.constant 0 : index
    %322 = vector.load %arg8[%c1_96, %c0_97, %c0_98] : memref<5x40x1xf32, #tpu.memory_space<vmem>>, vector<1x40x1xf32>
    %323 = vector.shape_cast %322 : vector<1x40x1xf32> to vector<40x1xf32>
    %cst_99 = arith.constant dense<0.000000e+00> : vector<128xf32>
    %324 = vector.multi_reduction <add>, %307, %cst_99 [0] : vector<40x128xf32> to vector<128xf32>
    %325 = vector.shape_cast %324 : vector<128xf32> to vector<1x128xf32>
    %cst_100 = arith.constant 4.000000e+01 : f32
    %326 = vector.broadcast %cst_100 : f32 to vector<1x128xf32>
    %327 = arith.divf %325, %326 : vector<1x128xf32>
    %328 = vector.broadcast %327 : vector<1x128xf32> to vector<40x128xf32>
    %329 = arith.subf %307, %328 : vector<40x128xf32>
    %330 = arith.mulf %329, %329 : vector<40x128xf32>
    %cst_101 = arith.constant dense<0.000000e+00> : vector<128xf32>
    %331 = vector.multi_reduction <add>, %330, %cst_101 [0] : vector<40x128xf32> to vector<128xf32>
    %332 = vector.shape_cast %331 : vector<128xf32> to vector<1x128xf32>
    %cst_102 = arith.constant 4.000000e+01 : f32
    %333 = vector.broadcast %cst_102 : f32 to vector<1x128xf32>
    %334 = arith.divf %332, %333 : vector<1x128xf32>
    %cst_103 = arith.constant 9.99999974E-6 : f32
    %335 = vector.broadcast %cst_103 : f32 to vector<1x128xf32>
    %336 = arith.addf %334, %335 : vector<1x128xf32>
    %337 = math.rsqrt %336 : vector<1x128xf32>
    %338 = vector.broadcast %337 : vector<1x128xf32> to vector<40x128xf32>
    %339 = arith.mulf %329, %338 : vector<40x128xf32>
    %340 = vector.broadcast %205 : vector<40x1xf32> to vector<40x128xf32>
    %341 = arith.mulf %339, %340 : vector<40x128xf32>
    %342 = vector.broadcast %207 : vector<40x1xf32> to vector<40x128xf32>
    %343 = arith.addf %341, %342 : vector<40x128xf32>
    %cst_104 = arith.constant dense<0.000000e+00> : vector<40x128xf32>
    %344 = tpu.matmul %317, %343, %cst_104 {dimension_numbers = #tpu.dot_dimension_numbers<[1], [0], [0], [1], [0, 0, 1, 1], [], []>} : vector<40x40xf32>, vector<40x128xf32>, vector<40x128xf32> -> vector<40x128xf32>
    %345 = vector.broadcast %319 : vector<40x1xf32> to vector<40x128xf32>
    %346 = arith.addf %344, %345 : vector<40x128xf32>
    %cst_105 = arith.constant 5.000000e-01 : f32
    %347 = vector.broadcast %cst_105 : f32 to vector<40x128xf32>
    %348 = arith.mulf %347, %346 : vector<40x128xf32>
    %cst_106 = arith.constant 4.471500e-02 : f32
    %349 = vector.broadcast %cst_106 : f32 to vector<40x128xf32>
    %350 = arith.mulf %349, %346 : vector<40x128xf32>
    %351 = arith.mulf %350, %346 : vector<40x128xf32>
    %352 = arith.mulf %351, %346 : vector<40x128xf32>
    %353 = arith.addf %346, %352 : vector<40x128xf32>
    %cst_107 = arith.constant 0.797884583 : f32
    %354 = vector.broadcast %cst_107 : f32 to vector<40x128xf32>
    %355 = arith.mulf %354, %353 : vector<40x128xf32>
    %356 = math.tanh %355 : vector<40x128xf32>
    %cst_108 = arith.constant 1.000000e+00 : f32
    %357 = vector.broadcast %cst_108 : f32 to vector<40x128xf32>
    %358 = arith.addf %357, %356 : vector<40x128xf32>
    %359 = arith.mulf %348, %358 : vector<40x128xf32>
    %cst_109 = arith.constant dense<0.000000e+00> : vector<40x128xf32>
    %360 = tpu.matmul %321, %359, %cst_109 {dimension_numbers = #tpu.dot_dimension_numbers<[1], [0], [0], [1], [0, 0, 1, 1], [], []>} : vector<40x40xf32>, vector<40x128xf32>, vector<40x128xf32> -> vector<40x128xf32>
    %361 = arith.addf %307, %360 : vector<40x128xf32>
    %362 = vector.broadcast %323 : vector<40x1xf32> to vector<40x128xf32>
    %363 = arith.addf %361, %362 : vector<40x128xf32>
    %cst_110 = arith.constant dense<0.000000e+00> : vector<128xf32>
    %364 = vector.multi_reduction <add>, %315, %cst_110 [0] : vector<40x128xf32> to vector<128xf32>
    %365 = vector.shape_cast %364 : vector<128xf32> to vector<1x128xf32>
    %cst_111 = arith.constant 4.000000e+01 : f32
    %366 = vector.broadcast %cst_111 : f32 to vector<1x128xf32>
    %367 = arith.divf %365, %366 : vector<1x128xf32>
    %368 = vector.broadcast %367 : vector<1x128xf32> to vector<40x128xf32>
    %369 = arith.subf %315, %368 : vector<40x128xf32>
    %370 = arith.mulf %369, %369 : vector<40x128xf32>
    %cst_112 = arith.constant dense<0.000000e+00> : vector<128xf32>
    %371 = vector.multi_reduction <add>, %370, %cst_112 [0] : vector<40x128xf32> to vector<128xf32>
    %372 = vector.shape_cast %371 : vector<128xf32> to vector<1x128xf32>
    %cst_113 = arith.constant 4.000000e+01 : f32
    %373 = vector.broadcast %cst_113 : f32 to vector<1x128xf32>
    %374 = arith.divf %372, %373 : vector<1x128xf32>
    %cst_114 = arith.constant 9.99999974E-6 : f32
    %375 = vector.broadcast %cst_114 : f32 to vector<1x128xf32>
    %376 = arith.addf %374, %375 : vector<1x128xf32>
    %377 = math.rsqrt %376 : vector<1x128xf32>
    %378 = vector.broadcast %377 : vector<1x128xf32> to vector<40x128xf32>
    %379 = arith.mulf %369, %378 : vector<40x128xf32>
    %380 = vector.broadcast %205 : vector<40x1xf32> to vector<40x128xf32>
    %381 = arith.mulf %379, %380 : vector<40x128xf32>
    %382 = vector.broadcast %207 : vector<40x1xf32> to vector<40x128xf32>
    %383 = arith.addf %381, %382 : vector<40x128xf32>
    %cst_115 = arith.constant dense<0.000000e+00> : vector<40x128xf32>
    %384 = tpu.matmul %317, %383, %cst_115 {dimension_numbers = #tpu.dot_dimension_numbers<[1], [0], [0], [1], [0, 0, 1, 1], [], []>} : vector<40x40xf32>, vector<40x128xf32>, vector<40x128xf32> -> vector<40x128xf32>
    %385 = vector.broadcast %319 : vector<40x1xf32> to vector<40x128xf32>
    %386 = arith.addf %384, %385 : vector<40x128xf32>
    %cst_116 = arith.constant 5.000000e-01 : f32
    %387 = vector.broadcast %cst_116 : f32 to vector<40x128xf32>
    %388 = arith.mulf %387, %386 : vector<40x128xf32>
    %cst_117 = arith.constant 4.471500e-02 : f32
    %389 = vector.broadcast %cst_117 : f32 to vector<40x128xf32>
    %390 = arith.mulf %389, %386 : vector<40x128xf32>
    %391 = arith.mulf %390, %386 : vector<40x128xf32>
    %392 = arith.mulf %391, %386 : vector<40x128xf32>
    %393 = arith.addf %386, %392 : vector<40x128xf32>
    %cst_118 = arith.constant 0.797884583 : f32
    %394 = vector.broadcast %cst_118 : f32 to vector<40x128xf32>
    %395 = arith.mulf %394, %393 : vector<40x128xf32>
    %396 = math.tanh %395 : vector<40x128xf32>
    %cst_119 = arith.constant 1.000000e+00 : f32
    %397 = vector.broadcast %cst_119 : f32 to vector<40x128xf32>
    %398 = arith.addf %397, %396 : vector<40x128xf32>
    %399 = arith.mulf %388, %398 : vector<40x128xf32>
    %cst_120 = arith.constant dense<0.000000e+00> : vector<40x128xf32>
    %400 = tpu.matmul %321, %399, %cst_120 {dimension_numbers = #tpu.dot_dimension_numbers<[1], [0], [0], [1], [0, 0, 1, 1], [], []>} : vector<40x40xf32>, vector<40x128xf32>, vector<40x128xf32> -> vector<40x128xf32>
    %401 = arith.addf %315, %400 : vector<40x128xf32>
    %402 = vector.broadcast %323 : vector<40x1xf32> to vector<40x128xf32>
    %403 = arith.addf %401, %402 : vector<40x128xf32>
    %c2_121 = arith.constant 2 : index
    %c0_122 = arith.constant 0 : index
    %c0_123 = arith.constant 0 : index
    %404 = vector.load %arg3[%c2_121, %c0_122, %c0_123] : memref<5x40x1xf32, #tpu.memory_space<vmem>>, vector<1x40x1xf32>
    %405 = vector.shape_cast %404 : vector<1x40x1xf32> to vector<40x1xf32>
    %c2_124 = arith.constant 2 : index
    %c0_125 = arith.constant 0 : index
    %c0_126 = arith.constant 0 : index
    %406 = vector.load %arg4[%c2_124, %c0_125, %c0_126] : memref<5x40x1xf32, #tpu.memory_space<vmem>>, vector<1x40x1xf32>
    %407 = vector.shape_cast %406 : vector<1x40x1xf32> to vector<40x1xf32>
    %c24 = arith.constant 24 : index
    %408 = memref.load %arg1[%c24] : memref<60xf32, #tpu.memory_space<smem>>
    %c25 = arith.constant 25 : index
    %409 = memref.load %arg1[%c25] : memref<60xf32, #tpu.memory_space<smem>>
    %c26 = arith.constant 26 : index
    %410 = memref.load %arg1[%c26] : memref<60xf32, #tpu.memory_space<smem>>
    %c27 = arith.constant 27 : index
    %411 = memref.load %arg1[%c27] : memref<60xf32, #tpu.memory_space<smem>>
    %c28 = arith.constant 28 : index
    %412 = memref.load %arg1[%c28] : memref<60xf32, #tpu.memory_space<smem>>
    %c29 = arith.constant 29 : index
    %413 = memref.load %arg1[%c29] : memref<60xf32, #tpu.memory_space<smem>>
    %c30 = arith.constant 30 : index
    %414 = memref.load %arg1[%c30] : memref<60xf32, #tpu.memory_space<smem>>
    %c31 = arith.constant 31 : index
    %415 = memref.load %arg1[%c31] : memref<60xf32, #tpu.memory_space<smem>>
    %c32 = arith.constant 32 : index
    %416 = memref.load %arg1[%c32] : memref<60xf32, #tpu.memory_space<smem>>
    %c33 = arith.constant 33 : index
    %417 = memref.load %arg1[%c33] : memref<60xf32, #tpu.memory_space<smem>>
    %c34 = arith.constant 34 : index
    %418 = memref.load %arg1[%c34] : memref<60xf32, #tpu.memory_space<smem>>
    %c35 = arith.constant 35 : index
    %419 = memref.load %arg1[%c35] : memref<60xf32, #tpu.memory_space<smem>>
    %cst_127 = arith.constant dense<0.000000e+00> : vector<128xf32>
    %420 = vector.multi_reduction <add>, %363, %cst_127 [0] : vector<40x128xf32> to vector<128xf32>
    %421 = vector.shape_cast %420 : vector<128xf32> to vector<1x128xf32>
    %cst_128 = arith.constant 4.000000e+01 : f32
    %422 = vector.broadcast %cst_128 : f32 to vector<1x128xf32>
    %423 = arith.divf %421, %422 : vector<1x128xf32>
    %424 = vector.broadcast %423 : vector<1x128xf32> to vector<40x128xf32>
    %425 = arith.subf %363, %424 : vector<40x128xf32>
    %426 = arith.mulf %425, %425 : vector<40x128xf32>
    %cst_129 = arith.constant dense<0.000000e+00> : vector<128xf32>
    %427 = vector.multi_reduction <add>, %426, %cst_129 [0] : vector<40x128xf32> to vector<128xf32>
    %428 = vector.shape_cast %427 : vector<128xf32> to vector<1x128xf32>
    %cst_130 = arith.constant 4.000000e+01 : f32
    %429 = vector.broadcast %cst_130 : f32 to vector<1x128xf32>
    %430 = arith.divf %428, %429 : vector<1x128xf32>
    %cst_131 = arith.constant 9.99999974E-6 : f32
    %431 = vector.broadcast %cst_131 : f32 to vector<1x128xf32>
    %432 = arith.addf %430, %431 : vector<1x128xf32>
    %433 = math.rsqrt %432 : vector<1x128xf32>
    %434 = vector.broadcast %433 : vector<1x128xf32> to vector<40x128xf32>
    %435 = arith.mulf %425, %434 : vector<40x128xf32>
    %436 = vector.broadcast %405 : vector<40x1xf32> to vector<40x128xf32>
    %437 = arith.mulf %435, %436 : vector<40x128xf32>
    %438 = vector.broadcast %407 : vector<40x1xf32> to vector<40x128xf32>
    %439 = arith.addf %437, %438 : vector<40x128xf32>
    %cst_132 = arith.constant dense<0.000000e+00> : vector<128xf32>
    %440 = vector.multi_reduction <add>, %403, %cst_132 [0] : vector<40x128xf32> to vector<128xf32>
    %441 = vector.shape_cast %440 : vector<128xf32> to vector<1x128xf32>
    %cst_133 = arith.constant 4.000000e+01 : f32
    %442 = vector.broadcast %cst_133 : f32 to vector<1x128xf32>
    %443 = arith.divf %441, %442 : vector<1x128xf32>
    %444 = vector.broadcast %443 : vector<1x128xf32> to vector<40x128xf32>
    %445 = arith.subf %403, %444 : vector<40x128xf32>
    %446 = arith.mulf %445, %445 : vector<40x128xf32>
    %cst_134 = arith.constant dense<0.000000e+00> : vector<128xf32>
    %447 = vector.multi_reduction <add>, %446, %cst_134 [0] : vector<40x128xf32> to vector<128xf32>
    %448 = vector.shape_cast %447 : vector<128xf32> to vector<1x128xf32>
    %cst_135 = arith.constant 4.000000e+01 : f32
    %449 = vector.broadcast %cst_135 : f32 to vector<1x128xf32>
    %450 = arith.divf %448, %449 : vector<1x128xf32>
    %cst_136 = arith.constant 9.99999974E-6 : f32
    %451 = vector.broadcast %cst_136 : f32 to vector<1x128xf32>
    %452 = arith.addf %450, %451 : vector<1x128xf32>
    %453 = math.rsqrt %452 : vector<1x128xf32>
    %454 = vector.broadcast %453 : vector<1x128xf32> to vector<40x128xf32>
    %455 = arith.mulf %445, %454 : vector<40x128xf32>
    %456 = vector.broadcast %405 : vector<40x1xf32> to vector<40x128xf32>
    %457 = arith.mulf %455, %456 : vector<40x128xf32>
    %458 = vector.broadcast %407 : vector<40x1xf32> to vector<40x128xf32>
    %459 = arith.addf %457, %458 : vector<40x128xf32>
    %460 = vector.broadcast %408 : f32 to vector<40x128xf32>
    %461 = arith.mulf %439, %460 : vector<40x128xf32>
    %462 = vector.broadcast %409 : f32 to vector<40x128xf32>
    %463 = arith.mulf %459, %462 : vector<40x128xf32>
    %464 = arith.addf %461, %463 : vector<40x128xf32>
    %465 = vector.broadcast %412 : f32 to vector<40x128xf32>
    %466 = arith.addf %464, %465 : vector<40x128xf32>
    %cst_137 = arith.constant 5.000000e-01 : f32
    %467 = vector.broadcast %cst_137 : f32 to vector<40x128xf32>
    %468 = arith.mulf %467, %466 : vector<40x128xf32>
    %cst_138 = arith.constant 4.471500e-02 : f32
    %469 = vector.broadcast %cst_138 : f32 to vector<40x128xf32>
    %470 = arith.mulf %469, %466 : vector<40x128xf32>
    %471 = arith.mulf %470, %466 : vector<40x128xf32>
    %472 = arith.mulf %471, %466 : vector<40x128xf32>
    %473 = arith.addf %466, %472 : vector<40x128xf32>
    %cst_139 = arith.constant 0.797884583 : f32
    %474 = vector.broadcast %cst_139 : f32 to vector<40x128xf32>
    %475 = arith.mulf %474, %473 : vector<40x128xf32>
    %476 = math.tanh %475 : vector<40x128xf32>
    %cst_140 = arith.constant 1.000000e+00 : f32
    %477 = vector.broadcast %cst_140 : f32 to vector<40x128xf32>
    %478 = arith.addf %477, %476 : vector<40x128xf32>
    %479 = arith.mulf %468, %478 : vector<40x128xf32>
    %480 = vector.broadcast %410 : f32 to vector<40x128xf32>
    %481 = arith.mulf %439, %480 : vector<40x128xf32>
    %482 = vector.broadcast %411 : f32 to vector<40x128xf32>
    %483 = arith.mulf %459, %482 : vector<40x128xf32>
    %484 = arith.addf %481, %483 : vector<40x128xf32>
    %485 = vector.broadcast %413 : f32 to vector<40x128xf32>
    %486 = arith.addf %484, %485 : vector<40x128xf32>
    %cst_141 = arith.constant 5.000000e-01 : f32
    %487 = vector.broadcast %cst_141 : f32 to vector<40x128xf32>
    %488 = arith.mulf %487, %486 : vector<40x128xf32>
    %cst_142 = arith.constant 4.471500e-02 : f32
    %489 = vector.broadcast %cst_142 : f32 to vector<40x128xf32>
    %490 = arith.mulf %489, %486 : vector<40x128xf32>
    %491 = arith.mulf %490, %486 : vector<40x128xf32>
    %492 = arith.mulf %491, %486 : vector<40x128xf32>
    %493 = arith.addf %486, %492 : vector<40x128xf32>
    %cst_143 = arith.constant 0.797884583 : f32
    %494 = vector.broadcast %cst_143 : f32 to vector<40x128xf32>
    %495 = arith.mulf %494, %493 : vector<40x128xf32>
    %496 = math.tanh %495 : vector<40x128xf32>
    %cst_144 = arith.constant 1.000000e+00 : f32
    %497 = vector.broadcast %cst_144 : f32 to vector<40x128xf32>
    %498 = arith.addf %497, %496 : vector<40x128xf32>
    %499 = arith.mulf %488, %498 : vector<40x128xf32>
    %500 = vector.broadcast %414 : f32 to vector<40x128xf32>
    %501 = arith.mulf %479, %500 : vector<40x128xf32>
    %502 = vector.broadcast %415 : f32 to vector<40x128xf32>
    %503 = arith.mulf %499, %502 : vector<40x128xf32>
    %504 = arith.addf %501, %503 : vector<40x128xf32>
    %505 = arith.addf %363, %504 : vector<40x128xf32>
    %506 = vector.broadcast %418 : f32 to vector<40x128xf32>
    %507 = arith.addf %505, %506 : vector<40x128xf32>
    %508 = vector.broadcast %416 : f32 to vector<40x128xf32>
    %509 = arith.mulf %479, %508 : vector<40x128xf32>
    %510 = vector.broadcast %417 : f32 to vector<40x128xf32>
    %511 = arith.mulf %499, %510 : vector<40x128xf32>
    %512 = arith.addf %509, %511 : vector<40x128xf32>
    %513 = arith.addf %403, %512 : vector<40x128xf32>
    %514 = vector.broadcast %419 : f32 to vector<40x128xf32>
    %515 = arith.addf %513, %514 : vector<40x128xf32>
    %c2_145 = arith.constant 2 : index
    %c0_146 = arith.constant 0 : index
    %c0_147 = arith.constant 0 : index
    %516 = vector.load %arg5[%c2_145, %c0_146, %c0_147] : memref<5x40x40xf32, #tpu.memory_space<vmem>>, vector<1x40x40xf32>
    %517 = vector.shape_cast %516 : vector<1x40x40xf32> to vector<40x40xf32>
    %c2_148 = arith.constant 2 : index
    %c0_149 = arith.constant 0 : index
    %c0_150 = arith.constant 0 : index
    %518 = vector.load %arg6[%c2_148, %c0_149, %c0_150] : memref<5x40x1xf32, #tpu.memory_space<vmem>>, vector<1x40x1xf32>
    %519 = vector.shape_cast %518 : vector<1x40x1xf32> to vector<40x1xf32>
    %c2_151 = arith.constant 2 : index
    %c0_152 = arith.constant 0 : index
    %c0_153 = arith.constant 0 : index
    %520 = vector.load %arg7[%c2_151, %c0_152, %c0_153] : memref<5x40x40xf32, #tpu.memory_space<vmem>>, vector<1x40x40xf32>
    %521 = vector.shape_cast %520 : vector<1x40x40xf32> to vector<40x40xf32>
    %c2_154 = arith.constant 2 : index
    %c0_155 = arith.constant 0 : index
    %c0_156 = arith.constant 0 : index
    %522 = vector.load %arg8[%c2_154, %c0_155, %c0_156] : memref<5x40x1xf32, #tpu.memory_space<vmem>>, vector<1x40x1xf32>
    %523 = vector.shape_cast %522 : vector<1x40x1xf32> to vector<40x1xf32>
    %cst_157 = arith.constant dense<0.000000e+00> : vector<128xf32>
    %524 = vector.multi_reduction <add>, %507, %cst_157 [0] : vector<40x128xf32> to vector<128xf32>
    %525 = vector.shape_cast %524 : vector<128xf32> to vector<1x128xf32>
    %cst_158 = arith.constant 4.000000e+01 : f32
    %526 = vector.broadcast %cst_158 : f32 to vector<1x128xf32>
    %527 = arith.divf %525, %526 : vector<1x128xf32>
    %528 = vector.broadcast %527 : vector<1x128xf32> to vector<40x128xf32>
    %529 = arith.subf %507, %528 : vector<40x128xf32>
    %530 = arith.mulf %529, %529 : vector<40x128xf32>
    %cst_159 = arith.constant dense<0.000000e+00> : vector<128xf32>
    %531 = vector.multi_reduction <add>, %530, %cst_159 [0] : vector<40x128xf32> to vector<128xf32>
    %532 = vector.shape_cast %531 : vector<128xf32> to vector<1x128xf32>
    %cst_160 = arith.constant 4.000000e+01 : f32
    %533 = vector.broadcast %cst_160 : f32 to vector<1x128xf32>
    %534 = arith.divf %532, %533 : vector<1x128xf32>
    %cst_161 = arith.constant 9.99999974E-6 : f32
    %535 = vector.broadcast %cst_161 : f32 to vector<1x128xf32>
    %536 = arith.addf %534, %535 : vector<1x128xf32>
    %537 = math.rsqrt %536 : vector<1x128xf32>
    %538 = vector.broadcast %537 : vector<1x128xf32> to vector<40x128xf32>
    %539 = arith.mulf %529, %538 : vector<40x128xf32>
    %540 = vector.broadcast %405 : vector<40x1xf32> to vector<40x128xf32>
    %541 = arith.mulf %539, %540 : vector<40x128xf32>
    %542 = vector.broadcast %407 : vector<40x1xf32> to vector<40x128xf32>
    %543 = arith.addf %541, %542 : vector<40x128xf32>
    %cst_162 = arith.constant dense<0.000000e+00> : vector<40x128xf32>
    %544 = tpu.matmul %517, %543, %cst_162 {dimension_numbers = #tpu.dot_dimension_numbers<[1], [0], [0], [1], [0, 0, 1, 1], [], []>} : vector<40x40xf32>, vector<40x128xf32>, vector<40x128xf32> -> vector<40x128xf32>
    %545 = vector.broadcast %519 : vector<40x1xf32> to vector<40x128xf32>
    %546 = arith.addf %544, %545 : vector<40x128xf32>
    %cst_163 = arith.constant 5.000000e-01 : f32
    %547 = vector.broadcast %cst_163 : f32 to vector<40x128xf32>
    %548 = arith.mulf %547, %546 : vector<40x128xf32>
    %cst_164 = arith.constant 4.471500e-02 : f32
    %549 = vector.broadcast %cst_164 : f32 to vector<40x128xf32>
    %550 = arith.mulf %549, %546 : vector<40x128xf32>
    %551 = arith.mulf %550, %546 : vector<40x128xf32>
    %552 = arith.mulf %551, %546 : vector<40x128xf32>
    %553 = arith.addf %546, %552 : vector<40x128xf32>
    %cst_165 = arith.constant 0.797884583 : f32
    %554 = vector.broadcast %cst_165 : f32 to vector<40x128xf32>
    %555 = arith.mulf %554, %553 : vector<40x128xf32>
    %556 = math.tanh %555 : vector<40x128xf32>
    %cst_166 = arith.constant 1.000000e+00 : f32
    %557 = vector.broadcast %cst_166 : f32 to vector<40x128xf32>
    %558 = arith.addf %557, %556 : vector<40x128xf32>
    %559 = arith.mulf %548, %558 : vector<40x128xf32>
    %cst_167 = arith.constant dense<0.000000e+00> : vector<40x128xf32>
    %560 = tpu.matmul %521, %559, %cst_167 {dimension_numbers = #tpu.dot_dimension_numbers<[1], [0], [0], [1], [0, 0, 1, 1], [], []>} : vector<40x40xf32>, vector<40x128xf32>, vector<40x128xf32> -> vector<40x128xf32>
    %561 = arith.addf %507, %560 : vector<40x128xf32>
    %562 = vector.broadcast %523 : vector<40x1xf32> to vector<40x128xf32>
    %563 = arith.addf %561, %562 : vector<40x128xf32>
    %cst_168 = arith.constant dense<0.000000e+00> : vector<128xf32>
    %564 = vector.multi_reduction <add>, %515, %cst_168 [0] : vector<40x128xf32> to vector<128xf32>
    %565 = vector.shape_cast %564 : vector<128xf32> to vector<1x128xf32>
    %cst_169 = arith.constant 4.000000e+01 : f32
    %566 = vector.broadcast %cst_169 : f32 to vector<1x128xf32>
    %567 = arith.divf %565, %566 : vector<1x128xf32>
    %568 = vector.broadcast %567 : vector<1x128xf32> to vector<40x128xf32>
    %569 = arith.subf %515, %568 : vector<40x128xf32>
    %570 = arith.mulf %569, %569 : vector<40x128xf32>
    %cst_170 = arith.constant dense<0.000000e+00> : vector<128xf32>
    %571 = vector.multi_reduction <add>, %570, %cst_170 [0] : vector<40x128xf32> to vector<128xf32>
    %572 = vector.shape_cast %571 : vector<128xf32> to vector<1x128xf32>
    %cst_171 = arith.constant 4.000000e+01 : f32
    %573 = vector.broadcast %cst_171 : f32 to vector<1x128xf32>
    %574 = arith.divf %572, %573 : vector<1x128xf32>
    %cst_172 = arith.constant 9.99999974E-6 : f32
    %575 = vector.broadcast %cst_172 : f32 to vector<1x128xf32>
    %576 = arith.addf %574, %575 : vector<1x128xf32>
    %577 = math.rsqrt %576 : vector<1x128xf32>
    %578 = vector.broadcast %577 : vector<1x128xf32> to vector<40x128xf32>
    %579 = arith.mulf %569, %578 : vector<40x128xf32>
    %580 = vector.broadcast %405 : vector<40x1xf32> to vector<40x128xf32>
    %581 = arith.mulf %579, %580 : vector<40x128xf32>
    %582 = vector.broadcast %407 : vector<40x1xf32> to vector<40x128xf32>
    %583 = arith.addf %581, %582 : vector<40x128xf32>
    %cst_173 = arith.constant dense<0.000000e+00> : vector<40x128xf32>
    %584 = tpu.matmul %517, %583, %cst_173 {dimension_numbers = #tpu.dot_dimension_numbers<[1], [0], [0], [1], [0, 0, 1, 1], [], []>} : vector<40x40xf32>, vector<40x128xf32>, vector<40x128xf32> -> vector<40x128xf32>
    %585 = vector.broadcast %519 : vector<40x1xf32> to vector<40x128xf32>
    %586 = arith.addf %584, %585 : vector<40x128xf32>
    %cst_174 = arith.constant 5.000000e-01 : f32
    %587 = vector.broadcast %cst_174 : f32 to vector<40x128xf32>
    %588 = arith.mulf %587, %586 : vector<40x128xf32>
    %cst_175 = arith.constant 4.471500e-02 : f32
    %589 = vector.broadcast %cst_175 : f32 to vector<40x128xf32>
    %590 = arith.mulf %589, %586 : vector<40x128xf32>
    %591 = arith.mulf %590, %586 : vector<40x128xf32>
    %592 = arith.mulf %591, %586 : vector<40x128xf32>
    %593 = arith.addf %586, %592 : vector<40x128xf32>
    %cst_176 = arith.constant 0.797884583 : f32
    %594 = vector.broadcast %cst_176 : f32 to vector<40x128xf32>
    %595 = arith.mulf %594, %593 : vector<40x128xf32>
    %596 = math.tanh %595 : vector<40x128xf32>
    %cst_177 = arith.constant 1.000000e+00 : f32
    %597 = vector.broadcast %cst_177 : f32 to vector<40x128xf32>
    %598 = arith.addf %597, %596 : vector<40x128xf32>
    %599 = arith.mulf %588, %598 : vector<40x128xf32>
    %cst_178 = arith.constant dense<0.000000e+00> : vector<40x128xf32>
    %600 = tpu.matmul %521, %599, %cst_178 {dimension_numbers = #tpu.dot_dimension_numbers<[1], [0], [0], [1], [0, 0, 1, 1], [], []>} : vector<40x40xf32>, vector<40x128xf32>, vector<40x128xf32> -> vector<40x128xf32>
    %601 = arith.addf %515, %600 : vector<40x128xf32>
    %602 = vector.broadcast %523 : vector<40x1xf32> to vector<40x128xf32>
    %603 = arith.addf %601, %602 : vector<40x128xf32>
    %c3_179 = arith.constant 3 : index
    %c0_180 = arith.constant 0 : index
    %c0_181 = arith.constant 0 : index
    %604 = vector.load %arg3[%c3_179, %c0_180, %c0_181] : memref<5x40x1xf32, #tpu.memory_space<vmem>>, vector<1x40x1xf32>
    %605 = vector.shape_cast %604 : vector<1x40x1xf32> to vector<40x1xf32>
    %c3_182 = arith.constant 3 : index
    %c0_183 = arith.constant 0 : index
    %c0_184 = arith.constant 0 : index
    %606 = vector.load %arg4[%c3_182, %c0_183, %c0_184] : memref<5x40x1xf32, #tpu.memory_space<vmem>>, vector<1x40x1xf32>
    %607 = vector.shape_cast %606 : vector<1x40x1xf32> to vector<40x1xf32>
    %c36 = arith.constant 36 : index
    %608 = memref.load %arg1[%c36] : memref<60xf32, #tpu.memory_space<smem>>
    %c37 = arith.constant 37 : index
    %609 = memref.load %arg1[%c37] : memref<60xf32, #tpu.memory_space<smem>>
    %c38 = arith.constant 38 : index
    %610 = memref.load %arg1[%c38] : memref<60xf32, #tpu.memory_space<smem>>
    %c39 = arith.constant 39 : index
    %611 = memref.load %arg1[%c39] : memref<60xf32, #tpu.memory_space<smem>>
    %c40 = arith.constant 40 : index
    %612 = memref.load %arg1[%c40] : memref<60xf32, #tpu.memory_space<smem>>
    %c41 = arith.constant 41 : index
    %613 = memref.load %arg1[%c41] : memref<60xf32, #tpu.memory_space<smem>>
    %c42 = arith.constant 42 : index
    %614 = memref.load %arg1[%c42] : memref<60xf32, #tpu.memory_space<smem>>
    %c43 = arith.constant 43 : index
    %615 = memref.load %arg1[%c43] : memref<60xf32, #tpu.memory_space<smem>>
    %c44 = arith.constant 44 : index
    %616 = memref.load %arg1[%c44] : memref<60xf32, #tpu.memory_space<smem>>
    %c45 = arith.constant 45 : index
    %617 = memref.load %arg1[%c45] : memref<60xf32, #tpu.memory_space<smem>>
    %c46 = arith.constant 46 : index
    %618 = memref.load %arg1[%c46] : memref<60xf32, #tpu.memory_space<smem>>
    %c47 = arith.constant 47 : index
    %619 = memref.load %arg1[%c47] : memref<60xf32, #tpu.memory_space<smem>>
    %cst_185 = arith.constant dense<0.000000e+00> : vector<128xf32>
    %620 = vector.multi_reduction <add>, %563, %cst_185 [0] : vector<40x128xf32> to vector<128xf32>
    %621 = vector.shape_cast %620 : vector<128xf32> to vector<1x128xf32>
    %cst_186 = arith.constant 4.000000e+01 : f32
    %622 = vector.broadcast %cst_186 : f32 to vector<1x128xf32>
    %623 = arith.divf %621, %622 : vector<1x128xf32>
    %624 = vector.broadcast %623 : vector<1x128xf32> to vector<40x128xf32>
    %625 = arith.subf %563, %624 : vector<40x128xf32>
    %626 = arith.mulf %625, %625 : vector<40x128xf32>
    %cst_187 = arith.constant dense<0.000000e+00> : vector<128xf32>
    %627 = vector.multi_reduction <add>, %626, %cst_187 [0] : vector<40x128xf32> to vector<128xf32>
    %628 = vector.shape_cast %627 : vector<128xf32> to vector<1x128xf32>
    %cst_188 = arith.constant 4.000000e+01 : f32
    %629 = vector.broadcast %cst_188 : f32 to vector<1x128xf32>
    %630 = arith.divf %628, %629 : vector<1x128xf32>
    %cst_189 = arith.constant 9.99999974E-6 : f32
    %631 = vector.broadcast %cst_189 : f32 to vector<1x128xf32>
    %632 = arith.addf %630, %631 : vector<1x128xf32>
    %633 = math.rsqrt %632 : vector<1x128xf32>
    %634 = vector.broadcast %633 : vector<1x128xf32> to vector<40x128xf32>
    %635 = arith.mulf %625, %634 : vector<40x128xf32>
    %636 = vector.broadcast %605 : vector<40x1xf32> to vector<40x128xf32>
    %637 = arith.mulf %635, %636 : vector<40x128xf32>
    %638 = vector.broadcast %607 : vector<40x1xf32> to vector<40x128xf32>
    %639 = arith.addf %637, %638 : vector<40x128xf32>
    %cst_190 = arith.constant dense<0.000000e+00> : vector<128xf32>
    %640 = vector.multi_reduction <add>, %603, %cst_190 [0] : vector<40x128xf32> to vector<128xf32>
    %641 = vector.shape_cast %640 : vector<128xf32> to vector<1x128xf32>
    %cst_191 = arith.constant 4.000000e+01 : f32
    %642 = vector.broadcast %cst_191 : f32 to vector<1x128xf32>
    %643 = arith.divf %641, %642 : vector<1x128xf32>
    %644 = vector.broadcast %643 : vector<1x128xf32> to vector<40x128xf32>
    %645 = arith.subf %603, %644 : vector<40x128xf32>
    %646 = arith.mulf %645, %645 : vector<40x128xf32>
    %cst_192 = arith.constant dense<0.000000e+00> : vector<128xf32>
    %647 = vector.multi_reduction <add>, %646, %cst_192 [0] : vector<40x128xf32> to vector<128xf32>
    %648 = vector.shape_cast %647 : vector<128xf32> to vector<1x128xf32>
    %cst_193 = arith.constant 4.000000e+01 : f32
    %649 = vector.broadcast %cst_193 : f32 to vector<1x128xf32>
    %650 = arith.divf %648, %649 : vector<1x128xf32>
    %cst_194 = arith.constant 9.99999974E-6 : f32
    %651 = vector.broadcast %cst_194 : f32 to vector<1x128xf32>
    %652 = arith.addf %650, %651 : vector<1x128xf32>
    %653 = math.rsqrt %652 : vector<1x128xf32>
    %654 = vector.broadcast %653 : vector<1x128xf32> to vector<40x128xf32>
    %655 = arith.mulf %645, %654 : vector<40x128xf32>
    %656 = vector.broadcast %605 : vector<40x1xf32> to vector<40x128xf32>
    %657 = arith.mulf %655, %656 : vector<40x128xf32>
    %658 = vector.broadcast %607 : vector<40x1xf32> to vector<40x128xf32>
    %659 = arith.addf %657, %658 : vector<40x128xf32>
    %660 = vector.broadcast %608 : f32 to vector<40x128xf32>
    %661 = arith.mulf %639, %660 : vector<40x128xf32>
    %662 = vector.broadcast %609 : f32 to vector<40x128xf32>
    %663 = arith.mulf %659, %662 : vector<40x128xf32>
    %664 = arith.addf %661, %663 : vector<40x128xf32>
    %665 = vector.broadcast %612 : f32 to vector<40x128xf32>
    %666 = arith.addf %664, %665 : vector<40x128xf32>
    %cst_195 = arith.constant 5.000000e-01 : f32
    %667 = vector.broadcast %cst_195 : f32 to vector<40x128xf32>
    %668 = arith.mulf %667, %666 : vector<40x128xf32>
    %cst_196 = arith.constant 4.471500e-02 : f32
    %669 = vector.broadcast %cst_196 : f32 to vector<40x128xf32>
    %670 = arith.mulf %669, %666 : vector<40x128xf32>
    %671 = arith.mulf %670, %666 : vector<40x128xf32>
    %672 = arith.mulf %671, %666 : vector<40x128xf32>
    %673 = arith.addf %666, %672 : vector<40x128xf32>
    %cst_197 = arith.constant 0.797884583 : f32
    %674 = vector.broadcast %cst_197 : f32 to vector<40x128xf32>
    %675 = arith.mulf %674, %673 : vector<40x128xf32>
    %676 = math.tanh %675 : vector<40x128xf32>
    %cst_198 = arith.constant 1.000000e+00 : f32
    %677 = vector.broadcast %cst_198 : f32 to vector<40x128xf32>
    %678 = arith.addf %677, %676 : vector<40x128xf32>
    %679 = arith.mulf %668, %678 : vector<40x128xf32>
    %680 = vector.broadcast %610 : f32 to vector<40x128xf32>
    %681 = arith.mulf %639, %680 : vector<40x128xf32>
    %682 = vector.broadcast %611 : f32 to vector<40x128xf32>
    %683 = arith.mulf %659, %682 : vector<40x128xf32>
    %684 = arith.addf %681, %683 : vector<40x128xf32>
    %685 = vector.broadcast %613 : f32 to vector<40x128xf32>
    %686 = arith.addf %684, %685 : vector<40x128xf32>
    %cst_199 = arith.constant 5.000000e-01 : f32
    %687 = vector.broadcast %cst_199 : f32 to vector<40x128xf32>
    %688 = arith.mulf %687, %686 : vector<40x128xf32>
    %cst_200 = arith.constant 4.471500e-02 : f32
    %689 = vector.broadcast %cst_200 : f32 to vector<40x128xf32>
    %690 = arith.mulf %689, %686 : vector<40x128xf32>
    %691 = arith.mulf %690, %686 : vector<40x128xf32>
    %692 = arith.mulf %691, %686 : vector<40x128xf32>
    %693 = arith.addf %686, %692 : vector<40x128xf32>
    %cst_201 = arith.constant 0.797884583 : f32
    %694 = vector.broadcast %cst_201 : f32 to vector<40x128xf32>
    %695 = arith.mulf %694, %693 : vector<40x128xf32>
    %696 = math.tanh %695 : vector<40x128xf32>
    %cst_202 = arith.constant 1.000000e+00 : f32
    %697 = vector.broadcast %cst_202 : f32 to vector<40x128xf32>
    %698 = arith.addf %697, %696 : vector<40x128xf32>
    %699 = arith.mulf %688, %698 : vector<40x128xf32>
    %700 = vector.broadcast %614 : f32 to vector<40x128xf32>
    %701 = arith.mulf %679, %700 : vector<40x128xf32>
    %702 = vector.broadcast %615 : f32 to vector<40x128xf32>
    %703 = arith.mulf %699, %702 : vector<40x128xf32>
    %704 = arith.addf %701, %703 : vector<40x128xf32>
    %705 = arith.addf %563, %704 : vector<40x128xf32>
    %706 = vector.broadcast %618 : f32 to vector<40x128xf32>
    %707 = arith.addf %705, %706 : vector<40x128xf32>
    %708 = vector.broadcast %616 : f32 to vector<40x128xf32>
    %709 = arith.mulf %679, %708 : vector<40x128xf32>
    %710 = vector.broadcast %617 : f32 to vector<40x128xf32>
    %711 = arith.mulf %699, %710 : vector<40x128xf32>
    %712 = arith.addf %709, %711 : vector<40x128xf32>
    %713 = arith.addf %603, %712 : vector<40x128xf32>
    %714 = vector.broadcast %619 : f32 to vector<40x128xf32>
    %715 = arith.addf %713, %714 : vector<40x128xf32>
    %c3_203 = arith.constant 3 : index
    %c0_204 = arith.constant 0 : index
    %c0_205 = arith.constant 0 : index
    %716 = vector.load %arg5[%c3_203, %c0_204, %c0_205] : memref<5x40x40xf32, #tpu.memory_space<vmem>>, vector<1x40x40xf32>
    %717 = vector.shape_cast %716 : vector<1x40x40xf32> to vector<40x40xf32>
    %c3_206 = arith.constant 3 : index
    %c0_207 = arith.constant 0 : index
    %c0_208 = arith.constant 0 : index
    %718 = vector.load %arg6[%c3_206, %c0_207, %c0_208] : memref<5x40x1xf32, #tpu.memory_space<vmem>>, vector<1x40x1xf32>
    %719 = vector.shape_cast %718 : vector<1x40x1xf32> to vector<40x1xf32>
    %c3_209 = arith.constant 3 : index
    %c0_210 = arith.constant 0 : index
    %c0_211 = arith.constant 0 : index
    %720 = vector.load %arg7[%c3_209, %c0_210, %c0_211] : memref<5x40x40xf32, #tpu.memory_space<vmem>>, vector<1x40x40xf32>
    %721 = vector.shape_cast %720 : vector<1x40x40xf32> to vector<40x40xf32>
    %c3_212 = arith.constant 3 : index
    %c0_213 = arith.constant 0 : index
    %c0_214 = arith.constant 0 : index
    %722 = vector.load %arg8[%c3_212, %c0_213, %c0_214] : memref<5x40x1xf32, #tpu.memory_space<vmem>>, vector<1x40x1xf32>
    %723 = vector.shape_cast %722 : vector<1x40x1xf32> to vector<40x1xf32>
    %cst_215 = arith.constant dense<0.000000e+00> : vector<128xf32>
    %724 = vector.multi_reduction <add>, %707, %cst_215 [0] : vector<40x128xf32> to vector<128xf32>
    %725 = vector.shape_cast %724 : vector<128xf32> to vector<1x128xf32>
    %cst_216 = arith.constant 4.000000e+01 : f32
    %726 = vector.broadcast %cst_216 : f32 to vector<1x128xf32>
    %727 = arith.divf %725, %726 : vector<1x128xf32>
    %728 = vector.broadcast %727 : vector<1x128xf32> to vector<40x128xf32>
    %729 = arith.subf %707, %728 : vector<40x128xf32>
    %730 = arith.mulf %729, %729 : vector<40x128xf32>
    %cst_217 = arith.constant dense<0.000000e+00> : vector<128xf32>
    %731 = vector.multi_reduction <add>, %730, %cst_217 [0] : vector<40x128xf32> to vector<128xf32>
    %732 = vector.shape_cast %731 : vector<128xf32> to vector<1x128xf32>
    %cst_218 = arith.constant 4.000000e+01 : f32
    %733 = vector.broadcast %cst_218 : f32 to vector<1x128xf32>
    %734 = arith.divf %732, %733 : vector<1x128xf32>
    %cst_219 = arith.constant 9.99999974E-6 : f32
    %735 = vector.broadcast %cst_219 : f32 to vector<1x128xf32>
    %736 = arith.addf %734, %735 : vector<1x128xf32>
    %737 = math.rsqrt %736 : vector<1x128xf32>
    %738 = vector.broadcast %737 : vector<1x128xf32> to vector<40x128xf32>
    %739 = arith.mulf %729, %738 : vector<40x128xf32>
    %740 = vector.broadcast %605 : vector<40x1xf32> to vector<40x128xf32>
    %741 = arith.mulf %739, %740 : vector<40x128xf32>
    %742 = vector.broadcast %607 : vector<40x1xf32> to vector<40x128xf32>
    %743 = arith.addf %741, %742 : vector<40x128xf32>
    %cst_220 = arith.constant dense<0.000000e+00> : vector<40x128xf32>
    %744 = tpu.matmul %717, %743, %cst_220 {dimension_numbers = #tpu.dot_dimension_numbers<[1], [0], [0], [1], [0, 0, 1, 1], [], []>} : vector<40x40xf32>, vector<40x128xf32>, vector<40x128xf32> -> vector<40x128xf32>
    %745 = vector.broadcast %719 : vector<40x1xf32> to vector<40x128xf32>
    %746 = arith.addf %744, %745 : vector<40x128xf32>
    %cst_221 = arith.constant 5.000000e-01 : f32
    %747 = vector.broadcast %cst_221 : f32 to vector<40x128xf32>
    %748 = arith.mulf %747, %746 : vector<40x128xf32>
    %cst_222 = arith.constant 4.471500e-02 : f32
    %749 = vector.broadcast %cst_222 : f32 to vector<40x128xf32>
    %750 = arith.mulf %749, %746 : vector<40x128xf32>
    %751 = arith.mulf %750, %746 : vector<40x128xf32>
    %752 = arith.mulf %751, %746 : vector<40x128xf32>
    %753 = arith.addf %746, %752 : vector<40x128xf32>
    %cst_223 = arith.constant 0.797884583 : f32
    %754 = vector.broadcast %cst_223 : f32 to vector<40x128xf32>
    %755 = arith.mulf %754, %753 : vector<40x128xf32>
    %756 = math.tanh %755 : vector<40x128xf32>
    %cst_224 = arith.constant 1.000000e+00 : f32
    %757 = vector.broadcast %cst_224 : f32 to vector<40x128xf32>
    %758 = arith.addf %757, %756 : vector<40x128xf32>
    %759 = arith.mulf %748, %758 : vector<40x128xf32>
    %cst_225 = arith.constant dense<0.000000e+00> : vector<40x128xf32>
    %760 = tpu.matmul %721, %759, %cst_225 {dimension_numbers = #tpu.dot_dimension_numbers<[1], [0], [0], [1], [0, 0, 1, 1], [], []>} : vector<40x40xf32>, vector<40x128xf32>, vector<40x128xf32> -> vector<40x128xf32>
    %761 = arith.addf %707, %760 : vector<40x128xf32>
    %762 = vector.broadcast %723 : vector<40x1xf32> to vector<40x128xf32>
    %763 = arith.addf %761, %762 : vector<40x128xf32>
    %cst_226 = arith.constant dense<0.000000e+00> : vector<128xf32>
    %764 = vector.multi_reduction <add>, %715, %cst_226 [0] : vector<40x128xf32> to vector<128xf32>
    %765 = vector.shape_cast %764 : vector<128xf32> to vector<1x128xf32>
    %cst_227 = arith.constant 4.000000e+01 : f32
    %766 = vector.broadcast %cst_227 : f32 to vector<1x128xf32>
    %767 = arith.divf %765, %766 : vector<1x128xf32>
    %768 = vector.broadcast %767 : vector<1x128xf32> to vector<40x128xf32>
    %769 = arith.subf %715, %768 : vector<40x128xf32>
    %770 = arith.mulf %769, %769 : vector<40x128xf32>
    %cst_228 = arith.constant dense<0.000000e+00> : vector<128xf32>
    %771 = vector.multi_reduction <add>, %770, %cst_228 [0] : vector<40x128xf32> to vector<128xf32>
    %772 = vector.shape_cast %771 : vector<128xf32> to vector<1x128xf32>
    %cst_229 = arith.constant 4.000000e+01 : f32
    %773 = vector.broadcast %cst_229 : f32 to vector<1x128xf32>
    %774 = arith.divf %772, %773 : vector<1x128xf32>
    %cst_230 = arith.constant 9.99999974E-6 : f32
    %775 = vector.broadcast %cst_230 : f32 to vector<1x128xf32>
    %776 = arith.addf %774, %775 : vector<1x128xf32>
    %777 = math.rsqrt %776 : vector<1x128xf32>
    %778 = vector.broadcast %777 : vector<1x128xf32> to vector<40x128xf32>
    %779 = arith.mulf %769, %778 : vector<40x128xf32>
    %780 = vector.broadcast %605 : vector<40x1xf32> to vector<40x128xf32>
    %781 = arith.mulf %779, %780 : vector<40x128xf32>
    %782 = vector.broadcast %607 : vector<40x1xf32> to vector<40x128xf32>
    %783 = arith.addf %781, %782 : vector<40x128xf32>
    %cst_231 = arith.constant dense<0.000000e+00> : vector<40x128xf32>
    %784 = tpu.matmul %717, %783, %cst_231 {dimension_numbers = #tpu.dot_dimension_numbers<[1], [0], [0], [1], [0, 0, 1, 1], [], []>} : vector<40x40xf32>, vector<40x128xf32>, vector<40x128xf32> -> vector<40x128xf32>
    %785 = vector.broadcast %719 : vector<40x1xf32> to vector<40x128xf32>
    %786 = arith.addf %784, %785 : vector<40x128xf32>
    %cst_232 = arith.constant 5.000000e-01 : f32
    %787 = vector.broadcast %cst_232 : f32 to vector<40x128xf32>
    %788 = arith.mulf %787, %786 : vector<40x128xf32>
    %cst_233 = arith.constant 4.471500e-02 : f32
    %789 = vector.broadcast %cst_233 : f32 to vector<40x128xf32>
    %790 = arith.mulf %789, %786 : vector<40x128xf32>
    %791 = arith.mulf %790, %786 : vector<40x128xf32>
    %792 = arith.mulf %791, %786 : vector<40x128xf32>
    %793 = arith.addf %786, %792 : vector<40x128xf32>
    %cst_234 = arith.constant 0.797884583 : f32
    %794 = vector.broadcast %cst_234 : f32 to vector<40x128xf32>
    %795 = arith.mulf %794, %793 : vector<40x128xf32>
    %796 = math.tanh %795 : vector<40x128xf32>
    %cst_235 = arith.constant 1.000000e+00 : f32
    %797 = vector.broadcast %cst_235 : f32 to vector<40x128xf32>
    %798 = arith.addf %797, %796 : vector<40x128xf32>
    %799 = arith.mulf %788, %798 : vector<40x128xf32>
    %cst_236 = arith.constant dense<0.000000e+00> : vector<40x128xf32>
    %800 = tpu.matmul %721, %799, %cst_236 {dimension_numbers = #tpu.dot_dimension_numbers<[1], [0], [0], [1], [0, 0, 1, 1], [], []>} : vector<40x40xf32>, vector<40x128xf32>, vector<40x128xf32> -> vector<40x128xf32>
    %801 = arith.addf %715, %800 : vector<40x128xf32>
    %802 = vector.broadcast %723 : vector<40x1xf32> to vector<40x128xf32>
    %803 = arith.addf %801, %802 : vector<40x128xf32>
    %c4_237 = arith.constant 4 : index
    %c0_238 = arith.constant 0 : index
    %c0_239 = arith.constant 0 : index
    %804 = vector.load %arg3[%c4_237, %c0_238, %c0_239] : memref<5x40x1xf32, #tpu.memory_space<vmem>>, vector<1x40x1xf32>
    %805 = vector.shape_cast %804 : vector<1x40x1xf32> to vector<40x1xf32>
    %c4_240 = arith.constant 4 : index
    %c0_241 = arith.constant 0 : index
    %c0_242 = arith.constant 0 : index
    %806 = vector.load %arg4[%c4_240, %c0_241, %c0_242] : memref<5x40x1xf32, #tpu.memory_space<vmem>>, vector<1x40x1xf32>
    %807 = vector.shape_cast %806 : vector<1x40x1xf32> to vector<40x1xf32>
    %c48 = arith.constant 48 : index
    %808 = memref.load %arg1[%c48] : memref<60xf32, #tpu.memory_space<smem>>
    %c49 = arith.constant 49 : index
    %809 = memref.load %arg1[%c49] : memref<60xf32, #tpu.memory_space<smem>>
    %c50 = arith.constant 50 : index
    %810 = memref.load %arg1[%c50] : memref<60xf32, #tpu.memory_space<smem>>
    %c51 = arith.constant 51 : index
    %811 = memref.load %arg1[%c51] : memref<60xf32, #tpu.memory_space<smem>>
    %c52 = arith.constant 52 : index
    %812 = memref.load %arg1[%c52] : memref<60xf32, #tpu.memory_space<smem>>
    %c53 = arith.constant 53 : index
    %813 = memref.load %arg1[%c53] : memref<60xf32, #tpu.memory_space<smem>>
    %c54 = arith.constant 54 : index
    %814 = memref.load %arg1[%c54] : memref<60xf32, #tpu.memory_space<smem>>
    %c55 = arith.constant 55 : index
    %815 = memref.load %arg1[%c55] : memref<60xf32, #tpu.memory_space<smem>>
    %c56 = arith.constant 56 : index
    %816 = memref.load %arg1[%c56] : memref<60xf32, #tpu.memory_space<smem>>
    %c57 = arith.constant 57 : index
    %817 = memref.load %arg1[%c57] : memref<60xf32, #tpu.memory_space<smem>>
    %c58 = arith.constant 58 : index
    %818 = memref.load %arg1[%c58] : memref<60xf32, #tpu.memory_space<smem>>
    %c59 = arith.constant 59 : index
    %819 = memref.load %arg1[%c59] : memref<60xf32, #tpu.memory_space<smem>>
    %cst_243 = arith.constant dense<0.000000e+00> : vector<128xf32>
    %820 = vector.multi_reduction <add>, %763, %cst_243 [0] : vector<40x128xf32> to vector<128xf32>
    %821 = vector.shape_cast %820 : vector<128xf32> to vector<1x128xf32>
    %cst_244 = arith.constant 4.000000e+01 : f32
    %822 = vector.broadcast %cst_244 : f32 to vector<1x128xf32>
    %823 = arith.divf %821, %822 : vector<1x128xf32>
    %824 = vector.broadcast %823 : vector<1x128xf32> to vector<40x128xf32>
    %825 = arith.subf %763, %824 : vector<40x128xf32>
    %826 = arith.mulf %825, %825 : vector<40x128xf32>
    %cst_245 = arith.constant dense<0.000000e+00> : vector<128xf32>
    %827 = vector.multi_reduction <add>, %826, %cst_245 [0] : vector<40x128xf32> to vector<128xf32>
    %828 = vector.shape_cast %827 : vector<128xf32> to vector<1x128xf32>
    %cst_246 = arith.constant 4.000000e+01 : f32
    %829 = vector.broadcast %cst_246 : f32 to vector<1x128xf32>
    %830 = arith.divf %828, %829 : vector<1x128xf32>
    %cst_247 = arith.constant 9.99999974E-6 : f32
    %831 = vector.broadcast %cst_247 : f32 to vector<1x128xf32>
    %832 = arith.addf %830, %831 : vector<1x128xf32>
    %833 = math.rsqrt %832 : vector<1x128xf32>
    %834 = vector.broadcast %833 : vector<1x128xf32> to vector<40x128xf32>
    %835 = arith.mulf %825, %834 : vector<40x128xf32>
    %836 = vector.broadcast %805 : vector<40x1xf32> to vector<40x128xf32>
    %837 = arith.mulf %835, %836 : vector<40x128xf32>
    %838 = vector.broadcast %807 : vector<40x1xf32> to vector<40x128xf32>
    %839 = arith.addf %837, %838 : vector<40x128xf32>
    %cst_248 = arith.constant dense<0.000000e+00> : vector<128xf32>
    %840 = vector.multi_reduction <add>, %803, %cst_248 [0] : vector<40x128xf32> to vector<128xf32>
    %841 = vector.shape_cast %840 : vector<128xf32> to vector<1x128xf32>
    %cst_249 = arith.constant 4.000000e+01 : f32
    %842 = vector.broadcast %cst_249 : f32 to vector<1x128xf32>
    %843 = arith.divf %841, %842 : vector<1x128xf32>
    %844 = vector.broadcast %843 : vector<1x128xf32> to vector<40x128xf32>
    %845 = arith.subf %803, %844 : vector<40x128xf32>
    %846 = arith.mulf %845, %845 : vector<40x128xf32>
    %cst_250 = arith.constant dense<0.000000e+00> : vector<128xf32>
    %847 = vector.multi_reduction <add>, %846, %cst_250 [0] : vector<40x128xf32> to vector<128xf32>
    %848 = vector.shape_cast %847 : vector<128xf32> to vector<1x128xf32>
    %cst_251 = arith.constant 4.000000e+01 : f32
    %849 = vector.broadcast %cst_251 : f32 to vector<1x128xf32>
    %850 = arith.divf %848, %849 : vector<1x128xf32>
    %cst_252 = arith.constant 9.99999974E-6 : f32
    %851 = vector.broadcast %cst_252 : f32 to vector<1x128xf32>
    %852 = arith.addf %850, %851 : vector<1x128xf32>
    %853 = math.rsqrt %852 : vector<1x128xf32>
    %854 = vector.broadcast %853 : vector<1x128xf32> to vector<40x128xf32>
    %855 = arith.mulf %845, %854 : vector<40x128xf32>
    %856 = vector.broadcast %805 : vector<40x1xf32> to vector<40x128xf32>
    %857 = arith.mulf %855, %856 : vector<40x128xf32>
    %858 = vector.broadcast %807 : vector<40x1xf32> to vector<40x128xf32>
    %859 = arith.addf %857, %858 : vector<40x128xf32>
    %860 = vector.broadcast %808 : f32 to vector<40x128xf32>
    %861 = arith.mulf %839, %860 : vector<40x128xf32>
    %862 = vector.broadcast %809 : f32 to vector<40x128xf32>
    %863 = arith.mulf %859, %862 : vector<40x128xf32>
    %864 = arith.addf %861, %863 : vector<40x128xf32>
    %865 = vector.broadcast %812 : f32 to vector<40x128xf32>
    %866 = arith.addf %864, %865 : vector<40x128xf32>
    %cst_253 = arith.constant 5.000000e-01 : f32
    %867 = vector.broadcast %cst_253 : f32 to vector<40x128xf32>
    %868 = arith.mulf %867, %866 : vector<40x128xf32>
    %cst_254 = arith.constant 4.471500e-02 : f32
    %869 = vector.broadcast %cst_254 : f32 to vector<40x128xf32>
    %870 = arith.mulf %869, %866 : vector<40x128xf32>
    %871 = arith.mulf %870, %866 : vector<40x128xf32>
    %872 = arith.mulf %871, %866 : vector<40x128xf32>
    %873 = arith.addf %866, %872 : vector<40x128xf32>
    %cst_255 = arith.constant 0.797884583 : f32
    %874 = vector.broadcast %cst_255 : f32 to vector<40x128xf32>
    %875 = arith.mulf %874, %873 : vector<40x128xf32>
    %876 = math.tanh %875 : vector<40x128xf32>
    %cst_256 = arith.constant 1.000000e+00 : f32
    %877 = vector.broadcast %cst_256 : f32 to vector<40x128xf32>
    %878 = arith.addf %877, %876 : vector<40x128xf32>
    %879 = arith.mulf %868, %878 : vector<40x128xf32>
    %880 = vector.broadcast %810 : f32 to vector<40x128xf32>
    %881 = arith.mulf %839, %880 : vector<40x128xf32>
    %882 = vector.broadcast %811 : f32 to vector<40x128xf32>
    %883 = arith.mulf %859, %882 : vector<40x128xf32>
    %884 = arith.addf %881, %883 : vector<40x128xf32>
    %885 = vector.broadcast %813 : f32 to vector<40x128xf32>
    %886 = arith.addf %884, %885 : vector<40x128xf32>
    %cst_257 = arith.constant 5.000000e-01 : f32
    %887 = vector.broadcast %cst_257 : f32 to vector<40x128xf32>
    %888 = arith.mulf %887, %886 : vector<40x128xf32>
    %cst_258 = arith.constant 4.471500e-02 : f32
    %889 = vector.broadcast %cst_258 : f32 to vector<40x128xf32>
    %890 = arith.mulf %889, %886 : vector<40x128xf32>
    %891 = arith.mulf %890, %886 : vector<40x128xf32>
    %892 = arith.mulf %891, %886 : vector<40x128xf32>
    %893 = arith.addf %886, %892 : vector<40x128xf32>
    %cst_259 = arith.constant 0.797884583 : f32
    %894 = vector.broadcast %cst_259 : f32 to vector<40x128xf32>
    %895 = arith.mulf %894, %893 : vector<40x128xf32>
    %896 = math.tanh %895 : vector<40x128xf32>
    %cst_260 = arith.constant 1.000000e+00 : f32
    %897 = vector.broadcast %cst_260 : f32 to vector<40x128xf32>
    %898 = arith.addf %897, %896 : vector<40x128xf32>
    %899 = arith.mulf %888, %898 : vector<40x128xf32>
    %900 = vector.broadcast %814 : f32 to vector<40x128xf32>
    %901 = arith.mulf %879, %900 : vector<40x128xf32>
    %902 = vector.broadcast %815 : f32 to vector<40x128xf32>
    %903 = arith.mulf %899, %902 : vector<40x128xf32>
    %904 = arith.addf %901, %903 : vector<40x128xf32>
    %905 = arith.addf %763, %904 : vector<40x128xf32>
    %906 = vector.broadcast %818 : f32 to vector<40x128xf32>
    %907 = arith.addf %905, %906 : vector<40x128xf32>
    %908 = vector.broadcast %816 : f32 to vector<40x128xf32>
    %909 = arith.mulf %879, %908 : vector<40x128xf32>
    %910 = vector.broadcast %817 : f32 to vector<40x128xf32>
    %911 = arith.mulf %899, %910 : vector<40x128xf32>
    %912 = arith.addf %909, %911 : vector<40x128xf32>
    %913 = arith.addf %803, %912 : vector<40x128xf32>
    %914 = vector.broadcast %819 : f32 to vector<40x128xf32>
    %915 = arith.addf %913, %914 : vector<40x128xf32>
    %c4_261 = arith.constant 4 : index
    %c0_262 = arith.constant 0 : index
    %c0_263 = arith.constant 0 : index
    %916 = vector.load %arg5[%c4_261, %c0_262, %c0_263] : memref<5x40x40xf32, #tpu.memory_space<vmem>>, vector<1x40x40xf32>
    %917 = vector.shape_cast %916 : vector<1x40x40xf32> to vector<40x40xf32>
    %c4_264 = arith.constant 4 : index
    %c0_265 = arith.constant 0 : index
    %c0_266 = arith.constant 0 : index
    %918 = vector.load %arg6[%c4_264, %c0_265, %c0_266] : memref<5x40x1xf32, #tpu.memory_space<vmem>>, vector<1x40x1xf32>
    %919 = vector.shape_cast %918 : vector<1x40x1xf32> to vector<40x1xf32>
    %c4_267 = arith.constant 4 : index
    %c0_268 = arith.constant 0 : index
    %c0_269 = arith.constant 0 : index
    %920 = vector.load %arg7[%c4_267, %c0_268, %c0_269] : memref<5x40x40xf32, #tpu.memory_space<vmem>>, vector<1x40x40xf32>
    %921 = vector.shape_cast %920 : vector<1x40x40xf32> to vector<40x40xf32>
    %c4_270 = arith.constant 4 : index
    %c0_271 = arith.constant 0 : index
    %c0_272 = arith.constant 0 : index
    %922 = vector.load %arg8[%c4_270, %c0_271, %c0_272] : memref<5x40x1xf32, #tpu.memory_space<vmem>>, vector<1x40x1xf32>
    %923 = vector.shape_cast %922 : vector<1x40x1xf32> to vector<40x1xf32>
    %cst_273 = arith.constant dense<0.000000e+00> : vector<128xf32>
    %924 = vector.multi_reduction <add>, %907, %cst_273 [0] : vector<40x128xf32> to vector<128xf32>
    %925 = vector.shape_cast %924 : vector<128xf32> to vector<1x128xf32>
    %cst_274 = arith.constant 4.000000e+01 : f32
    %926 = vector.broadcast %cst_274 : f32 to vector<1x128xf32>
    %927 = arith.divf %925, %926 : vector<1x128xf32>
    %928 = vector.broadcast %927 : vector<1x128xf32> to vector<40x128xf32>
    %929 = arith.subf %907, %928 : vector<40x128xf32>
    %930 = arith.mulf %929, %929 : vector<40x128xf32>
    %cst_275 = arith.constant dense<0.000000e+00> : vector<128xf32>
    %931 = vector.multi_reduction <add>, %930, %cst_275 [0] : vector<40x128xf32> to vector<128xf32>
    %932 = vector.shape_cast %931 : vector<128xf32> to vector<1x128xf32>
    %cst_276 = arith.constant 4.000000e+01 : f32
    %933 = vector.broadcast %cst_276 : f32 to vector<1x128xf32>
    %934 = arith.divf %932, %933 : vector<1x128xf32>
    %cst_277 = arith.constant 9.99999974E-6 : f32
    %935 = vector.broadcast %cst_277 : f32 to vector<1x128xf32>
    %936 = arith.addf %934, %935 : vector<1x128xf32>
    %937 = math.rsqrt %936 : vector<1x128xf32>
    %938 = vector.broadcast %937 : vector<1x128xf32> to vector<40x128xf32>
    %939 = arith.mulf %929, %938 : vector<40x128xf32>
    %940 = vector.broadcast %805 : vector<40x1xf32> to vector<40x128xf32>
    %941 = arith.mulf %939, %940 : vector<40x128xf32>
    %942 = vector.broadcast %807 : vector<40x1xf32> to vector<40x128xf32>
    %943 = arith.addf %941, %942 : vector<40x128xf32>
    %cst_278 = arith.constant dense<0.000000e+00> : vector<40x128xf32>
    %944 = tpu.matmul %917, %943, %cst_278 {dimension_numbers = #tpu.dot_dimension_numbers<[1], [0], [0], [1], [0, 0, 1, 1], [], []>} : vector<40x40xf32>, vector<40x128xf32>, vector<40x128xf32> -> vector<40x128xf32>
    %945 = vector.broadcast %919 : vector<40x1xf32> to vector<40x128xf32>
    %946 = arith.addf %944, %945 : vector<40x128xf32>
    %cst_279 = arith.constant 5.000000e-01 : f32
    %947 = vector.broadcast %cst_279 : f32 to vector<40x128xf32>
    %948 = arith.mulf %947, %946 : vector<40x128xf32>
    %cst_280 = arith.constant 4.471500e-02 : f32
    %949 = vector.broadcast %cst_280 : f32 to vector<40x128xf32>
    %950 = arith.mulf %949, %946 : vector<40x128xf32>
    %951 = arith.mulf %950, %946 : vector<40x128xf32>
    %952 = arith.mulf %951, %946 : vector<40x128xf32>
    %953 = arith.addf %946, %952 : vector<40x128xf32>
    %cst_281 = arith.constant 0.797884583 : f32
    %954 = vector.broadcast %cst_281 : f32 to vector<40x128xf32>
    %955 = arith.mulf %954, %953 : vector<40x128xf32>
    %956 = math.tanh %955 : vector<40x128xf32>
    %cst_282 = arith.constant 1.000000e+00 : f32
    %957 = vector.broadcast %cst_282 : f32 to vector<40x128xf32>
    %958 = arith.addf %957, %956 : vector<40x128xf32>
    %959 = arith.mulf %948, %958 : vector<40x128xf32>
    %cst_283 = arith.constant dense<0.000000e+00> : vector<40x128xf32>
    %960 = tpu.matmul %921, %959, %cst_283 {dimension_numbers = #tpu.dot_dimension_numbers<[1], [0], [0], [1], [0, 0, 1, 1], [], []>} : vector<40x40xf32>, vector<40x128xf32>, vector<40x128xf32> -> vector<40x128xf32>
    %961 = arith.addf %907, %960 : vector<40x128xf32>
    %962 = vector.broadcast %923 : vector<40x1xf32> to vector<40x128xf32>
    %963 = arith.addf %961, %962 : vector<40x128xf32>
    %cst_284 = arith.constant dense<0.000000e+00> : vector<128xf32>
    %964 = vector.multi_reduction <add>, %915, %cst_284 [0] : vector<40x128xf32> to vector<128xf32>
    %965 = vector.shape_cast %964 : vector<128xf32> to vector<1x128xf32>
    %cst_285 = arith.constant 4.000000e+01 : f32
    %966 = vector.broadcast %cst_285 : f32 to vector<1x128xf32>
    %967 = arith.divf %965, %966 : vector<1x128xf32>
    %968 = vector.broadcast %967 : vector<1x128xf32> to vector<40x128xf32>
    %969 = arith.subf %915, %968 : vector<40x128xf32>
    %970 = arith.mulf %969, %969 : vector<40x128xf32>
    %cst_286 = arith.constant dense<0.000000e+00> : vector<128xf32>
    %971 = vector.multi_reduction <add>, %970, %cst_286 [0] : vector<40x128xf32> to vector<128xf32>
    %972 = vector.shape_cast %971 : vector<128xf32> to vector<1x128xf32>
    %cst_287 = arith.constant 4.000000e+01 : f32
    %973 = vector.broadcast %cst_287 : f32 to vector<1x128xf32>
    %974 = arith.divf %972, %973 : vector<1x128xf32>
    %cst_288 = arith.constant 9.99999974E-6 : f32
    %975 = vector.broadcast %cst_288 : f32 to vector<1x128xf32>
    %976 = arith.addf %974, %975 : vector<1x128xf32>
    %977 = math.rsqrt %976 : vector<1x128xf32>
    %978 = vector.broadcast %977 : vector<1x128xf32> to vector<40x128xf32>
    %979 = arith.mulf %969, %978 : vector<40x128xf32>
    %980 = vector.broadcast %805 : vector<40x1xf32> to vector<40x128xf32>
    %981 = arith.mulf %979, %980 : vector<40x128xf32>
    %982 = vector.broadcast %807 : vector<40x1xf32> to vector<40x128xf32>
    %983 = arith.addf %981, %982 : vector<40x128xf32>
    %cst_289 = arith.constant dense<0.000000e+00> : vector<40x128xf32>
    %984 = tpu.matmul %917, %983, %cst_289 {dimension_numbers = #tpu.dot_dimension_numbers<[1], [0], [0], [1], [0, 0, 1, 1], [], []>} : vector<40x40xf32>, vector<40x128xf32>, vector<40x128xf32> -> vector<40x128xf32>
    %985 = vector.broadcast %919 : vector<40x1xf32> to vector<40x128xf32>
    %986 = arith.addf %984, %985 : vector<40x128xf32>
    %cst_290 = arith.constant 5.000000e-01 : f32
    %987 = vector.broadcast %cst_290 : f32 to vector<40x128xf32>
    %988 = arith.mulf %987, %986 : vector<40x128xf32>
    %cst_291 = arith.constant 4.471500e-02 : f32
    %989 = vector.broadcast %cst_291 : f32 to vector<40x128xf32>
    %990 = arith.mulf %989, %986 : vector<40x128xf32>
    %991 = arith.mulf %990, %986 : vector<40x128xf32>
    %992 = arith.mulf %991, %986 : vector<40x128xf32>
    %993 = arith.addf %986, %992 : vector<40x128xf32>
    %cst_292 = arith.constant 0.797884583 : f32
    %994 = vector.broadcast %cst_292 : f32 to vector<40x128xf32>
    %995 = arith.mulf %994, %993 : vector<40x128xf32>
    %996 = math.tanh %995 : vector<40x128xf32>
    %cst_293 = arith.constant 1.000000e+00 : f32
    %997 = vector.broadcast %cst_293 : f32 to vector<40x128xf32>
    %998 = arith.addf %997, %996 : vector<40x128xf32>
    %999 = arith.mulf %988, %998 : vector<40x128xf32>
    %cst_294 = arith.constant dense<0.000000e+00> : vector<40x128xf32>
    %1000 = tpu.matmul %921, %999, %cst_294 {dimension_numbers = #tpu.dot_dimension_numbers<[1], [0], [0], [1], [0, 0, 1, 1], [], []>} : vector<40x40xf32>, vector<40x128xf32>, vector<40x128xf32> -> vector<40x128xf32>
    %1001 = arith.addf %915, %1000 : vector<40x128xf32>
    %1002 = vector.broadcast %923 : vector<40x1xf32> to vector<40x128xf32>
    %1003 = arith.addf %1001, %1002 : vector<40x128xf32>
    %c0_295 = arith.constant 0 : index
    %c0_296 = arith.constant 0 : index
    %c0_297 = arith.constant 0 : index
    %1004 = vector.load %arg9[%c0_295, %c0_296, %c0_297] : memref<2x40x128xf32, #tpu.memory_space<vmem>>, vector<1x40x128xf32>
    %1005 = vector.shape_cast %1004 : vector<1x40x128xf32> to vector<40x128xf32>
    %1006 = vector.shape_cast %963 : vector<40x128xf32> to vector<1x40x128xf32>
    tpu.vector_store %arg9[%c0_295, %c0_296, %c0_297], %1006 {strides = array<i32>} : memref<2x40x128xf32, #tpu.memory_space<vmem>>, vector<1x40x128xf32>,
    %c1_298 = arith.constant 1 : index
    %c0_299 = arith.constant 0 : index
    %c0_300 = arith.constant 0 : index
    %1007 = vector.load %arg9[%c1_298, %c0_299, %c0_300] : memref<2x40x128xf32, #tpu.memory_space<vmem>>, vector<1x40x128xf32>
    %1008 = vector.shape_cast %1007 : vector<1x40x128xf32> to vector<40x128xf32>
    %1009 = vector.shape_cast %1003 : vector<40x128xf32> to vector<1x40x128xf32>
    tpu.vector_store %arg9[%c1_298, %c0_299, %c0_300], %1009 {strides = array<i32>} : memref<2x40x128xf32, #tpu.memory_space<vmem>>, vector<1x40x128xf32>,
    return
  }
  func.func @transform_0(%arg0: i32) -> i32 {
    %c0_i32 = arith.constant 0 : i32
    %c0_i32_0 = arith.constant 0 : i32
    return %c0_i32 : i32
  }
  func.func @transform_1(%arg0: i32) -> (i32, i32, i32) {
    %c0_i32 = arith.constant 0 : i32
    %c0_i32_0 = arith.constant 0 : i32
    %c0_i32_1 = arith.constant 0 : i32
    return %c0_i32, %c0_i32_0, %arg0 : i32, i32, i32
  }
  func.func @transform_2(%arg0: i32) -> (i32, i32, i32) {
    %c0_i32 = arith.constant 0 : i32
    %c0_i32_0 = arith.constant 0 : i32
    %c0_i32_1 = arith.constant 0 : i32
    %c0_i32_2 = arith.constant 0 : i32
    return %c0_i32, %c0_i32_0, %c0_i32_1 : i32, i32, i32
  }
  func.func @transform_3(%arg0: i32) -> (i32, i32, i32) {
    %c0_i32 = arith.constant 0 : i32
    %c0_i32_0 = arith.constant 0 : i32
    %c0_i32_1 = arith.constant 0 : i32
    %c0_i32_2 = arith.constant 0 : i32
    return %c0_i32, %c0_i32_0, %c0_i32_1 : i32, i32, i32
  }
  func.func @transform_4(%arg0: i32) -> (i32, i32, i32) {
    %c0_i32 = arith.constant 0 : i32
    %c0_i32_0 = arith.constant 0 : i32
    %c0_i32_1 = arith.constant 0 : i32
    %c0_i32_2 = arith.constant 0 : i32
    return %c0_i32, %c0_i32_0, %c0_i32_1 : i32, i32, i32
  }
  func.func @transform_5(%arg0: i32) -> (i32, i32, i32) {
    %c0_i32 = arith.constant 0 : i32
    %c0_i32_0 = arith.constant 0 : i32
    %c0_i32_1 = arith.constant 0 : i32
    %c0_i32_2 = arith.constant 0 : i32
    return %c0_i32, %c0_i32_0, %c0_i32_1 : i32, i32, i32
  }
  func.func @transform_6(%arg0: i32) -> (i32, i32, i32) {
    %c0_i32 = arith.constant 0 : i32
    %c0_i32_0 = arith.constant 0 : i32
    %c0_i32_1 = arith.constant 0 : i32
    %c0_i32_2 = arith.constant 0 : i32
    return %c0_i32, %c0_i32_0, %c0_i32_1 : i32, i32, i32
  }
  func.func @transform_7(%arg0: i32) -> (i32, i32, i32) {
    %c0_i32 = arith.constant 0 : i32
    %c0_i32_0 = arith.constant 0 : i32
    %c0_i32_1 = arith.constant 0 : i32
    %c0_i32_2 = arith.constant 0 : i32
    return %c0_i32, %c0_i32_0, %c0_i32_1 : i32, i32, i32
  }
  func.func @transform_8(%arg0: i32) -> (i32, i32, i32) {
    %c0_i32 = arith.constant 0 : i32
    %c0_i32_0 = arith.constant 0 : i32
    %c0_i32_1 = arith.constant 0 : i32
    return %c0_i32, %c0_i32_0, %arg0 : i32, i32, i32
  }
}

</mosaic_0001>

<llo_original>
// kernel: mlp_blocks_forward.1
$region0: #{mlp_blocks_forward.1}
  #allocation0 [shape = 'u32[]', space=smem, size = 0x4, offset = 0x4, fixed_abs, tag = 'smem constant byte address 0x4 - core index']
  #allocation1 [shape = 'u32[144,128]{1,0:T(1,128)}', space=vmem, size = 0x12000, scoped, tag = 'internal scratch']
  %s0 = inlined_call_operand.vmem [shape: f32[60], index: 0, kind: input, shape index: {}]
  %s1 = inlined_call_operand.vmem [shape: f32[2,40,256], index: 1, kind: input, shape index: {}]
  %s2 = inlined_call_operand.vmem [shape: f32[5,40,1], index: 2, kind: input, shape index: {}]
  %s3 = inlined_call_operand.vmem [shape: f32[5,40,1], index: 3, kind: input, shape index: {}]
  %s4 = inlined_call_operand.vmem [shape: f32[5,40,40], index: 4, kind: input, shape index: {}]
  %s5 = inlined_call_operand.vmem [shape: f32[5,40,1], index: 5, kind: input, shape index: {}]
  %s6 = inlined_call_operand.vmem [shape: f32[5,40,40], index: 6, kind: input, shape index: {}]
  %s7 = inlined_call_operand.vmem [shape: f32[5,40,1], index: 7, kind: input, shape index: {}]
  %s8 = inlined_call_operand.vmem [shape: f32[2,40,256], index: 8, kind: output, shape index: {}]
  %s9 = sld [smem:[#allocation0]]
  $region141: #{mlp_blocks_forward.1} parent=0
    _
  %s11 = ssub.s32 1, %s9
  %s12 = scalar_select 0, %s11, %s9
  $region1: #{mlp_blocks_forward.1} parent=0
    #allocation2 [shape = 'u8[512]{0}', space=smem, size = 0x200, scoped, tag = 'input window, operand 0, single buffered']
    #allocation3 [shape = 's32[2]{0}', space=sflag, size = 0x8, scoped, tag = 'scoped memory for mlp_blocks_forward.1']
    #allocation4 [shape = 'u8[81920]{0}', space=vmem, size = 0x14000, scoped, tag = 'input window, operand 1']
    #allocation5 [shape = 'u8[81920]{0}', space=vmem, size = 0x14000, scoped, tag = 'output window, operand 0']
    %13 = vsyncpa [#allocation3], 0
    loop: start=0, step=1, limit=4
    $region2: #{mlp_blocks_forward.1} parent=1 // loop_pre_header
      _
    $region3: #{mlp_blocks_forward.1} parent=1 // loop_header
      %s15 = sphi 0, %s19
      %p16 = scmp.ge.s32.totalorder %s15, 4
      %s23 = sphi 0, %s23
      %s25 = sphi 0, %s23
      %s26 = sphi 0, %s25
      %s40 = sphi 0, %s26
      %s46 = sphi 0, %s48
      %s49 = sphi 0, %s46
      %s50 = sphi 0, %s49
      %s66 = sphi 0, %s50
      %s70 = sphi 0, %s70
      %s72 = sphi 0, %s70
      %s73 = sphi 0, %s72
      %s87 = sphi 0, %s73
      %s91 = sphi 0, %s91
      %s93 = sphi 0, %s91
      %s94 = sphi 0, %s93
      %s108 = sphi 0, %s94
      %s112 = sphi 0, %s112
      %s114 = sphi 0, %s112
      %s115 = sphi 0, %s114
      %s129 = sphi 0, %s115
      %s133 = sphi 0, %s133
      %s135 = sphi 0, %s133
      %s136 = sphi 0, %s135
      %s150 = sphi 0, %s136
      %s154 = sphi 0, %s154
      %s156 = sphi 0, %s154
      %s157 = sphi 0, %s156
      %s171 = sphi 0, %s157
      %s175 = sphi 0, %s175
      %s177 = sphi 0, %s175
      %s178 = sphi 0, %s177
      %s192 = sphi 0, %s178
      %s198 = sphi 0, %s200
      %s201 = sphi 0, %s198
      %s202 = sphi 0, %s201
      %s218 = sphi 0, %s202
    $region4: #{mlp_blocks_forward.1} parent=1 // loop_header_branch
      %18 = sbr.rel (%p16) target = $region8
    $region5: #{mlp_blocks_forward.1} parent=1 // loop_body
      %s20 = ssub.s32 %s15, 1
      %s21 = ssub.s32 %s15, 2
      %s22 = sadd.s32 %s15, 1
      %s24 = sadd.s32 %s23, 1
      %p27 = scmp.eq.s32.totalorder %s15, 1
      %p28 = scmp.ne.s32.totalorder %s23, %s25
      %p29 = scmp.eq.s32.totalorder %s15, 0
      %p30 = por %p28, %p29
      %p31 = scmp.ne.s32.totalorder %s23, %s25
      %p32 = scmp.eq.s32.totalorder %s20, 1
      %p33 = por %p31, %p32
      %p34 = scmp.ne.s32.totalorder %s25, %s26
      %p35 = scmp.eq.s32.totalorder %s20, 0
      %p36 = por %p34, %p35
      %p37 = scmp.ne.s32.totalorder %s25, %s26
      %p38 = scmp.eq.s32.totalorder %s21, 1
      %p39 = por %p37, %p38
      %p41 = scmp.ne.s32.totalorder %s26, %s40
      %p42 = scmp.eq.s32.totalorder %s21, 0
      %p43 = por %p41, %p42
      %s44 = ssub.s32 %s15, %s22
      %p45 = scmp.eq.s32.totalorder %s44, 0
      %s47 = sadd.s32 %s46, 1
      %s48 = scalar_select %p45, %s46, %s47
      %p51 = pneg %p45
      %p52 = scmp.eq.s32.totalorder %s15, 1
      %p53 = por %p51, %p52
      %p54 = scmp.ne.s32.totalorder %s46, %s49
      %p55 = scmp.eq.s32.totalorder %s15, 0
      %p56 = por %p54, %p55
      %p57 = scmp.ne.s32.totalorder %s46, %s49
      %p58 = scmp.eq.s32.totalorder %s20, 1
      %p59 = por %p57, %p58
      %p60 = scmp.ne.s32.totalorder %s49, %s50
      %p61 = scmp.eq.s32.totalorder %s20, 0
      %p62 = por %p60, %p61
      %p63 = scmp.ne.s32.totalorder %s49, %s50
      %p64 = scmp.eq.s32.totalorder %s21, 1
      %p65 = por %p63, %p64
      %p67 = scmp.ne.s32.totalorder %s50, %s66
      %p68 = scmp.eq.s32.totalorder %s21, 0
      %p69 = por %p67, %p68
      %s71 = sadd.s32 %s70, 1
      %p74 = scmp.eq.s32.totalorder %s15, 1
      %p75 = scmp.ne.s32.totalorder %s70, %s72
      %p76 = scmp.eq.s32.totalorder %s15, 0
      %p77 = por %p75, %p76
      %p78 = scmp.ne.s32.totalorder %s70, %s72
      %p79 = scmp.eq.s32.totalorder %s20, 1
      %p80 = por %p78, %p79
      %p81 = scmp.ne.s32.totalorder %s72, %s73
      %p82 = scmp.eq.s32.totalorder %s20, 0
      %p83 = por %p81, %p82
      %p84 = scmp.ne.s32.totalorder %s72, %s73
      %p85 = scmp.eq.s32.totalorder %s21, 1
      %p86 = por %p84, %p85
      %p88 = scmp.ne.s32.totalorder %s73, %s87
      %p89 = scmp.eq.s32.totalorder %s21, 0
      %p90 = por %p88, %p89
      %s92 = sadd.s32 %s91, 1
      %p95 = scmp.eq.s32.totalorder %s15, 1
      %p96 = scmp.ne.s32.totalorder %s91, %s93
      %p97 = scmp.eq.s32.totalorder %s15, 0
      %p98 = por %p96, %p97
      %p99 = scmp.ne.s32.totalorder %s91, %s93
      %p100 = scmp.eq.s32.totalorder %s20, 1
      %p101 = por %p99, %p100
      %p102 = scmp.ne.s32.totalorder %s93, %s94
      %p103 = scmp.eq.s32.totalorder %s20, 0
      %p104 = por %p102, %p103
      %p105 = scmp.ne.s32.totalorder %s93, %s94
      %p106 = scmp.eq.s32.totalorder %s21, 1
      %p107 = por %p105, %p106
      %p109 = scmp.ne.s32.totalorder %s94, %s108
      %p110 = scmp.eq.s32.totalorder %s21, 0
      %p111 = por %p109, %p110
      %s113 = sadd.s32 %s112, 1
      %p116 = scmp.eq.s32.totalorder %s15, 1
      %p117 = scmp.ne.s32.totalorder %s112, %s114
      %p118 = scmp.eq.s32.totalorder %s15, 0
      %p119 = por %p117, %p118
      %p120 = scmp.ne.s32.totalorder %s112, %s114
      %p121 = scmp.eq.s32.totalorder %s20, 1
      %p122 = por %p120, %p121
      %p123 = scmp.ne.s32.totalorder %s114, %s115
      %p124 = scmp.eq.s32.totalorder %s20, 0
      %p125 = por %p123, %p124
      %p126 = scmp.ne.s32.totalorder %s114, %s115
      %p127 = scmp.eq.s32.totalorder %s21, 1
      %p128 = por %p126, %p127
      %p130 = scmp.ne.s32.totalorder %s115, %s129
      %p131 = scmp.eq.s32.totalorder %s21, 0
      %p132 = por %p130, %p131
      %s134 = sadd.s32 %s133, 1
      %p137 = scmp.eq.s32.totalorder %s15, 1
      %p138 = scmp.ne.s32.totalorder %s133, %s135
      %p139 = scmp.eq.s32.totalorder %s15, 0
      %p140 = por %p138, %p139
      %p141 = scmp.ne.s32.totalorder %s133, %s135
      %p142 = scmp.eq.s32.totalorder %s20, 1
      %p143 = por %p141, %p142
      %p144 = scmp.ne.s32.totalorder %s135, %s136
      %p145 = scmp.eq.s32.totalorder %s20, 0
      %p146 = por %p144, %p145
      %p147 = scmp.ne.s32.totalorder %s135, %s136
      %p148 = scmp.eq.s32.totalorder %s21, 1
      %p149 = por %p147, %p148
      %p151 = scmp.ne.s32.totalorder %s136, %s150
      %p152 = scmp.eq.s32.totalorder %s21, 0
      %p153 = por %p151, %p152
      %s155 = sadd.s32 %s154, 1
      %p158 = scmp.eq.s32.totalorder %s15, 1
      %p159 = scmp.ne.s32.totalorder %s154, %s156
      %p160 = scmp.eq.s32.totalorder %s15, 0
      %p161 = por %p159, %p160
      %p162 = scmp.ne.s32.totalorder %s154, %s156
      %p163 = scmp.eq.s32.totalorder %s20, 1
      %p164 = por %p162, %p163
      %p165 = scmp.ne.s32.totalorder %s156, %s157
      %p166 = scmp.eq.s32.totalorder %s20, 0
      %p167 = por %p165, %p166
      %p168 = scmp.ne.s32.totalorder %s156, %s157
      %p169 = scmp.eq.s32.totalorder %s21, 1
      %p170 = por %p168, %p169
      %p172 = scmp.ne.s32.totalorder %s157, %s171
      %p173 = scmp.eq.s32.totalorder %s21, 0
      %p174 = por %p172, %p173
      %s176 = sadd.s32 %s175, 1
      %p179 = scmp.eq.s32.totalorder %s15, 1
      %p180 = scmp.ne.s32.totalorder %s175, %s177
      %p181 = scmp.eq.s32.totalorder %s15, 0
      %p182 = por %p180, %p181
      %p183 = scmp.ne.s32.totalorder %s175, %s177
      %p184 = scmp.eq.s32.totalorder %s20, 1
      %p185 = por %p183, %p184
      %p186 = scmp.ne.s32.totalorder %s177, %s178
      %p187 = scmp.eq.s32.totalorder %s20, 0
      %p188 = por %p186, %p187
      %p189 = scmp.ne.s32.totalorder %s177, %s178
      %p190 = scmp.eq.s32.totalorder %s21, 1
      %p191 = por %p189, %p190
      %p193 = scmp.ne.s32.totalorder %s178, %s192
      %p194 = scmp.eq.s32.totalorder %s21, 0
      %p195 = por %p193, %p194
      %s196 = ssub.s32 %s15, %s22
      %p197 = scmp.eq.s32.totalorder %s196, 0
      %s199 = sadd.s32 %s198, 1
      %s200 = scalar_select %p197, %s198, %s199
      %p203 = pneg %p197
      %p204 = scmp.eq.s32.totalorder %s15, 1
      %p205 = por %p203, %p204
      %p206 = scmp.ne.s32.totalorder %s198, %s201
      %p207 = scmp.eq.s32.totalorder %s15, 0
      %p208 = por %p206, %p207
      %p209 = scmp.ne.s32.totalorder %s198, %s201
      %p210 = scmp.eq.s32.totalorder %s20, 1
      %p211 = por %p209, %p210
      %p212 = scmp.ne.s32.totalorder %s201, %s202
      %p213 = scmp.eq.s32.totalorder %s20, 0
      %p214 = por %p212, %p213
      %p215 = scmp.ne.s32.totalorder %s201, %s202
      %p216 = scmp.eq.s32.totalorder %s21, 1
      %p217 = por %p215, %p216
      %p219 = scmp.ne.s32.totalorder %s202, %s218
      %p220 = scmp.eq.s32.totalorder %s21, 0
      %p221 = por %p219, %p220
      %p222 = scmp.le.s32.totalorder 1, %s15
      %p223 = scmp.lt.s32.totalorder %s15, 3
      %p224 = pnand %p222, %p223
      %p225 = pneg %p224
      // Predicated region
      $region9: #{mlp_blocks_forward.1} parent=5 // pred_check
        _
      $region10: #{mlp_blocks_forward.1} parent=5 // pred_check_branch
        %227 = sbr.rel (%p224) target = $region12
      $region11: #{mlp_blocks_forward.1} parent=5 // pred_region
        %s228 = ssub.s32 %s15, 1
        // Predicated region
        $region13: #{mlp_blocks_forward.1} parent=11 // pred_check
          %p229 = pneg %p36
        $region14: #{mlp_blocks_forward.1} parent=11 // pred_check_branch
          %231 = sbr.rel (%p229) target = $region16
        $region15: #{mlp_blocks_forward.1} parent=11 // pred_region
          %s233 = ssub.s32 16, 16
          %234 = vsyncadd [#allocation3], %s233
          %s236 = sshll.u32 %s0, 4
          %s237 = int_to_ptr.vmem [resolvable:$true] %s236
          %239 = dma.vmem_to_smem %s237, 16, [#allocation2], [#allocation3]
        $region16: #{mlp_blocks_forward.1} parent=11 // pred_fallthru
          _
        // Predicated region
        $region17: #{mlp_blocks_forward.1} parent=11 // pred_check
          %p240 = pneg %p83
        $region18: #{mlp_blocks_forward.1} parent=11 // pred_check_branch
          %242 = sbr.rel (%p240) target = $region20
        $region19: #{mlp_blocks_forward.1} parent=11 // pred_region
          _
        $region20: #{mlp_blocks_forward.1} parent=11 // pred_fallthru
          _
        // Predicated region
        $region21: #{mlp_blocks_forward.1} parent=11 // pred_check
          %p243 = pneg %p104
        $region22: #{mlp_blocks_forward.1} parent=11 // pred_check_branch
          %245 = sbr.rel (%p243) target = $region24
        $region23: #{mlp_blocks_forward.1} parent=11 // pred_region
          _
        $region24: #{mlp_blocks_forward.1} parent=11 // pred_fallthru
          _
        // Predicated region
        $region25: #{mlp_blocks_forward.1} parent=11 // pred_check
          %p246 = pneg %p125
        $region26: #{mlp_blocks_forward.1} parent=11 // pred_check_branch
          %248 = sbr.rel (%p246) target = $region28
        $region27: #{mlp_blocks_forward.1} parent=11 // pred_region
          _
        $region28: #{mlp_blocks_forward.1} parent=11 // pred_fallthru
          _
        // Predicated region
        $region29: #{mlp_blocks_forward.1} parent=11 // pred_check
          %p249 = pneg %p146
        $region30: #{mlp_blocks_forward.1} parent=11 // pred_check_branch
          %251 = sbr.rel (%p249) target = $region32
        $region31: #{mlp_blocks_forward.1} parent=11 // pred_region
          _
        $region32: #{mlp_blocks_forward.1} parent=11 // pred_fallthru
          _
        // Predicated region
        $region33: #{mlp_blocks_forward.1} parent=11 // pred_check
          %p252 = pneg %p167
        $region34: #{mlp_blocks_forward.1} parent=11 // pred_check_branch
          %254 = sbr.rel (%p252) target = $region36
        $region35: #{mlp_blocks_forward.1} parent=11 // pred_region
          _
        $region36: #{mlp_blocks_forward.1} parent=11 // pred_fallthru
          _
        // Predicated region
        $region37: #{mlp_blocks_forward.1} parent=11 // pred_check
          %p255 = pneg %p188
        $region38: #{mlp_blocks_forward.1} parent=11 // pred_check_branch
          %257 = sbr.rel (%p255) target = $region40
        $region39: #{mlp_blocks_forward.1} parent=11 // pred_region
          _
        $region40: #{mlp_blocks_forward.1} parent=11 // pred_fallthru
          _
      $region12: #{mlp_blocks_forward.1} parent=5 // pred_fallthru
        _
      %p258 = scmp.lt.s32.totalorder %s15, 2
      // Predicated region
      $region41: #{mlp_blocks_forward.1} parent=5 // pred_check
        %p259 = pneg %p258
      $region42: #{mlp_blocks_forward.1} parent=5 // pred_check_branch
        %261 = sbr.rel (%p259) target = $region44
      $region43: #{mlp_blocks_forward.1} parent=5 // pred_region
        // Predicated region
        $region45: #{mlp_blocks_forward.1} parent=43 // pred_check
          %p262 = pneg %p56
        $region46: #{mlp_blocks_forward.1} parent=43 // pred_check_branch
          %264 = sbr.rel (%p262) target = $region48
        $region47: #{mlp_blocks_forward.1} parent=43 // pred_region
          %s265 = sand.u32 %s46, 1
          %s266 = sand.u32 %s46, 1
          %s267 = smul.addr %s266, 80
          %s268 = scalar_lea.vmem [#allocation4], %s267
          %s269 = smul.addr %s15, 8
          %s270 = scalar_lea.vmem %s1, %s269
          // Predicated region
          $region49: #{mlp_blocks_forward.1} parent=47 // pred_check
            _
          $region50: #{mlp_blocks_forward.1} parent=47 // pred_check_branch
            %272 = sbr.rel (0) target = $region52
          $region51: #{mlp_blocks_forward.1} parent=47 // pred_region
            // Predicated region
            $region53: #{mlp_blocks_forward.1} parent=51 // pred_check
              _
            $region54: #{mlp_blocks_forward.1} parent=51 // pred_check_branch
              %274 = sbr.rel (0) target = $region56
            $region55: #{mlp_blocks_forward.1} parent=51 // pred_region
              // Predicated region
              $region68: #{mlp_blocks_forward.1} parent=55 // pred_check
                _
              $region69: #{mlp_blocks_forward.1} parent=55 // pred_check_branch
                %307 = sbr.rel (0) target = $region71
              $region70: #{mlp_blocks_forward.1} parent=55 // pred_region
                loop: start=0, step=1, limit=1
                $region72: #{mlp_blocks_forward.1} parent=70 // loop_pre_header
                  _
                $region73: #{mlp_blocks_forward.1} parent=70 // loop_header
                  %s309 = sphi 0, %s313
                  %p310 = scmp.ge.s32.totalorder %s309, 1
                  %s314 = sphi %s270, %s270
                  %s315 = sphi %s268, %s268
                $region74: #{mlp_blocks_forward.1} parent=70 // loop_header_branch
                  %312 = sbr.rel (%p310) target = $region78
                $region75: #{mlp_blocks_forward.1} parent=70 // loop_body
                  %v316 = vld [vmem:[%s314] sm:$0xff]
                  %317 = vst [vmem:[%s315] sm:$0xff] %v316
                  %v318 = vld [vmem:[%s314 + $0x10] sm:$0xff]
                  %319 = vst [vmem:[%s315 + $0x8] sm:$0xff] %v318
                  %v320 = vld [vmem:[%s314 + $0x20] sm:$0xff]
                  %321 = vst [vmem:[%s315 + $0x10] sm:$0xff] %v320
                  %v322 = vld [vmem:[%s314 + $0x30] sm:$0xff]
                  %323 = vst [vmem:[%s315 + $0x18] sm:$0xff] %v322
                  %v324 = vld [vmem:[%s314 + $0x40] sm:$0xff]
                  %325 = vst [vmem:[%s315 + $0x20] sm:$0xff] %v324
                  %v326 = vld [vmem:[%s314 + $0x50] sm:$0xff]
                  %327 = vst [vmem:[%s315 + $0x28] sm:$0xff] %v326
                  %v328 = vld [vmem:[%s314 + $0x60] sm:$0xff]
                  %329 = vst [vmem:[%s315 + $0x30] sm:$0xff] %v328
                  %v330 = vld [vmem:[%s314 + $0x70] sm:$0xff]
                  %331 = vst [vmem:[%s315 + $0x38] sm:$0xff] %v330
                  %v332 = vld [vmem:[%s314 + $0x80] sm:$0xff]
                  %333 = vst [vmem:[%s315 + $0x40] sm:$0xff] %v332
                  %v334 = vld [vmem:[%s314 + $0x90] sm:$0xff]
                  %335 = vst [vmem:[%s315 + $0x48] sm:$0xff] %v334
                $region76: #{mlp_blocks_forward.1} parent=70 // loop_footer
                  %s313 = sadd.s32 1, %s309
                $region77: #{mlp_blocks_forward.1} parent=70 // loop_footer_branch
                  %308 = sbr.rel target = $region73
                $region78: #{mlp_blocks_forward.1} parent=70 // loop_exit
                  _
              $region71: #{mlp_blocks_forward.1} parent=55 // pred_fallthru
                _
              // Predicated region
              $region79: #{mlp_blocks_forward.1} parent=55 // pred_check
                _
              $region80: #{mlp_blocks_forward.1} parent=55 // pred_check_branch
                %337 = sbr.rel target = $region82
              $region81: #{mlp_blocks_forward.1} parent=55 // pred_region
                _
              $region82: #{mlp_blocks_forward.1} parent=55 // pred_fallthru
                _
            $region56: #{mlp_blocks_forward.1} parent=51 // pred_fallthru
              _
            // Predicated region
            $region57: #{mlp_blocks_forward.1} parent=51 // pred_check
              _
            $region58: #{mlp_blocks_forward.1} parent=51 // pred_check_branch
              %276 = sbr.rel target = $region60
            $region59: #{mlp_blocks_forward.1} parent=51 // pred_region
              loop: start=0, step=1, limit=1
              $region61: #{mlp_blocks_forward.1} parent=59 // loop_pre_header
                _
              $region62: #{mlp_blocks_forward.1} parent=59 // loop_header
                %s279 = sphi 0, %s283
                %p280 = scmp.ge.s32.totalorder %s279, 1
                %s284 = sphi %s270, %s270
                %s285 = sphi %s268, %s268
              $region63: #{mlp_blocks_forward.1} parent=59 // loop_header_branch
                %282 = sbr.rel (%p280) target = $region67
              $region64: #{mlp_blocks_forward.1} parent=59 // loop_body
                %v286 = vld [vmem:[%s284] sm:$0xff]
                %287 = vst [vmem:[%s285] sm:$0xff] %v286
                %v288 = vld [vmem:[%s284 + $0x10] sm:$0xff]
                %289 = vst [vmem:[%s285 + $0x8] sm:$0xff] %v288
                %v290 = vld [vmem:[%s284 + $0x20] sm:$0xff]
                %291 = vst [vmem:[%s285 + $0x10] sm:$0xff] %v290
                %v292 = vld [vmem:[%s284 + $0x30] sm:$0xff]
                %293 = vst [vmem:[%s285 + $0x18] sm:$0xff] %v292
                %v294 = vld [vmem:[%s284 + $0x40] sm:$0xff]
                %295 = vst [vmem:[%s285 + $0x20] sm:$0xff] %v294
                %v296 = vld [vmem:[%s284 + $0x50] sm:$0xff]
                %297 = vst [vmem:[%s285 + $0x28] sm:$0xff] %v296
                %v298 = vld [vmem:[%s284 + $0x60] sm:$0xff]
                %299 = vst [vmem:[%s285 + $0x30] sm:$0xff] %v298
                %v300 = vld [vmem:[%s284 + $0x70] sm:$0xff]
                %301 = vst [vmem:[%s285 + $0x38] sm:$0xff] %v300
                %v302 = vld [vmem:[%s284 + $0x80] sm:$0xff]
                %303 = vst [vmem:[%s285 + $0x40] sm:$0xff] %v302
                %v304 = vld [vmem:[%s284 + $0x90] sm:$0xff]
                %305 = vst [vmem:[%s285 + $0x48] sm:$0xff] %v304
              $region65: #{mlp_blocks_forward.1} parent=59 // loop_footer
                %s283 = sadd.s32 1, %s279
              $region66: #{mlp_blocks_forward.1} parent=59 // loop_footer_branch
                %278 = sbr.rel target = $region62
              $region67: #{mlp_blocks_forward.1} parent=59 // loop_exit
                _
            $region60: #{mlp_blocks_forward.1} parent=51 // pred_fallthru
              _
          $region52: #{mlp_blocks_forward.1} parent=47 // pred_fallthru
            _
          %338 = vnop
        $region48: #{mlp_blocks_forward.1} parent=43 // pred_fallthru
          _
      $region44: #{mlp_blocks_forward.1} parent=5 // pred_fallthru
        _
      %p339 = scmp.le.s32.totalorder 1, %s15
      %p340 = scmp.lt.s32.totalorder %s15, 3
      %p341 = pnand %p339, %p340
      %p342 = pneg %p341
      // Predicated region
      $region83: #{mlp_blocks_forward.1} parent=5 // pred_check
        _
      $region84: #{mlp_blocks_forward.1} parent=5 // pred_check_branch
        %344 = sbr.rel (%p341) target = $region86
      $region85: #{mlp_blocks_forward.1} parent=5 // pred_region
        %s345 = ssub.s32 %s15, 1
        // Predicated region
        $region87: #{mlp_blocks_forward.1} parent=85 // pred_check
          %p346 = pneg %p36
        $region88: #{mlp_blocks_forward.1} parent=85 // pred_check_branch
          %348 = sbr.rel (%p346) target = $region90
        $region89: #{mlp_blocks_forward.1} parent=85 // pred_region
          %349 = dma.done [#allocation3], 16
        $region90: #{mlp_blocks_forward.1} parent=85 // pred_fallthru
          _
        %s350 = sand.u32 %s49, 1
        %s351 = sand.u32 %s49, 1
        %s352 = smul.addr %s351, 80
        %s353 = scalar_lea.vmem [#allocation4], %s352
        // Predicated region
        $region91: #{mlp_blocks_forward.1} parent=85 // pred_check
          %p354 = pneg %p62
        $region92: #{mlp_blocks_forward.1} parent=85 // pred_check_branch
          %356 = sbr.rel (%p354) target = $region94
        $region93: #{mlp_blocks_forward.1} parent=85 // pred_region
          _
        $region94: #{mlp_blocks_forward.1} parent=85 // pred_fallthru
          _
        %357 = sfence
        %p358 = pneg %p36
        %p359 = pneg %p33
        %s360 = sand.u32 %s49, 1
        %s361 = sand.u32 %s49, 1
        %s362 = smul.addr %s361, 80
        %s363 = scalar_lea.vmem [#allocation4], %s362
        %p364 = pneg %p62
        %p365 = pneg %p59
        %p366 = pneg %p83
        %p367 = pneg %p80
        %p368 = pneg %p104
        %p369 = pneg %p101
        %p370 = pneg %p125
        %p371 = pneg %p122
        %p372 = pneg %p146
        %p373 = pneg %p143
        %p374 = pneg %p167
        %p375 = pneg %p164
        %p376 = pneg %p188
        %p377 = pneg %p185
        %p378 = pneg %p214
        %p379 = pneg %p211
        %s380 = sand.u32 %s201, 1
        %s381 = sand.u32 %s201, 1
        %s382 = smul.addr %s381, 80
        %s383 = scalar_lea.vmem [#allocation5], %s382
        %v384 = vld [vmem:[%s353] sm:$0xff]
        %v385 = vld [vmem:[%s353 + $0x8] sm:$0xff]
        %v386 = vld [vmem:[%s353 + $0x10] sm:$0xff]
        %v387 = vld [vmem:[%s353 + $0x18] sm:$0xff]
        %v388 = vld [vmem:[%s353 + $0x20] sm:$0xff]
        %s389 = scalar_lea.vmem %s353, 40 [#allocation4]
        %v390 = vld [vmem:[%s389] sm:$0xff]
        %v391 = vld [vmem:[%s389 + $0x8] sm:$0xff]
        %v392 = vld [vmem:[%s389 + $0x10] sm:$0xff]
        %v393 = vld [vmem:[%s389 + $0x18] sm:$0xff]
        %v394 = vld [vmem:[%s389 + $0x20] sm:$0xff]
        %v395 = vld [vmem:[%s2] sm:$0xff]
        %v396 = vld [vmem:[%s2 + $0x8] sm:$0xff]
        %v397 = vld [vmem:[%s2 + $0x10] sm:$0xff]
        %v398 = vld [vmem:[%s2 + $0x18] sm:$0xff]
        %v399 = vld [vmem:[%s2 + $0x20] sm:$0xff]
        %v400 = vld [vmem:[%s3] sm:$0xff]
        %v401 = vld [vmem:[%s3 + $0x8] sm:$0xff]
        %v402 = vld [vmem:[%s3 + $0x10] sm:$0xff]
        %v403 = vld [vmem:[%s3 + $0x18] sm:$0xff]
        %v404 = vld [vmem:[%s3 + $0x20] sm:$0xff]
        %s405 = sld [smem:[#allocation2]]
        %s406 = sld [smem:[#allocation2 + $0x1]]
        %s407 = sld [smem:[#allocation2 + $0x2]]
        %s408 = sld [smem:[#allocation2 + $0x3]]
        %s409 = sld [smem:[#allocation2 + $0x4]]
        %s410 = sld [smem:[#allocation2 + $0x5]]
        %s411 = sld [smem:[#allocation2 + $0x6]]
        %s412 = sld [smem:[#allocation2 + $0x7]]
        %s413 = sld [smem:[#allocation2 + $0x8]]
        %s414 = sld [smem:[#allocation2 + $0x9]]
        %s415 = sld [smem:[#allocation2 + $0xa]]
        %s416 = sld [smem:[#allocation2 + $0xb]]
        %v417 = vadd.f32 %v384, %v385
        %v418 = vadd.f32 %v417, %v386
        %v419 = vadd.f32 %v418, %v387
        %v420 = vadd.f32 %v419, %v388
        %v421 = vrot.slane %v420, 4
        %v422 = vadd.f32 %v420, %v421
        %v423 = vrot.slane %v422, 2
        %v424 = vadd.f32 %v422, %v423
        %v425 = vrot.slane %v424, 1
        %v426 = vadd.f32 %v424, %v425
        %v427 = vrcp.pop 40.0
        %v428 = vmul.f32 %v426, %v427
        %v429 = vsub.f32 %v384, %v428
        %v430 = vsub.f32 %v385, %v428
        %v431 = vsub.f32 %v386, %v428
        %v432 = vsub.f32 %v387, %v428
        %v433 = vsub.f32 %v388, %v428
        %v434 = vmul.f32 %v429, %v429
        %v435 = vmul.f32 %v430, %v430
        %v436 = vmul.f32 %v431, %v431
        %v437 = vmul.f32 %v432, %v432
        %v438 = vmul.f32 %v433, %v433
        %v439 = vadd.f32 %v434, %v435
        %v440 = vadd.f32 %v439, %v436
        %v441 = vadd.f32 %v440, %v437
        %v442 = vadd.f32 %v441, %v438
        %v443 = vrot.slane %v442, 4
        %v444 = vadd.f32 %v442, %v443
        %v445 = vrot.slane %v444, 2
        %v446 = vadd.f32 %v444, %v445
        %v447 = vrot.slane %v446, 1
        %v448 = vadd.f32 %v446, %v447
        %v449 = vmul.f32 %v448, %v427
        %v450 = vadd.f32 %v449, 1e-05
        %v451 = vrsqrt.pop %v450
        %v452 = vmul.f32 %v429, %v451
        %v453 = vmul.f32 %v430, %v451
        %v454 = vmul.f32 %v431, %v451
        %v455 = vmul.f32 %v432, %v451
        %v456 = vmul.f32 %v433, %v451
        %458 = vset.pattern.permute.xlu0 0
        %459 = vperm.xlu0 %458, %v395
        %v460 = vpop.permute.xlu0 %459
        %463 = vset.pattern.permute.xlu0 0
        %464 = vperm.xlu0 %463, %v396
        %v465 = vpop.permute.xlu0 %464
        %468 = vset.pattern.permute.xlu0 0
        %469 = vperm.xlu0 %468, %v397
        %v470 = vpop.permute.xlu0 %469
        %473 = vset.pattern.permute.xlu0 0
        %474 = vperm.xlu0 %473, %v398
        %v475 = vpop.permute.xlu0 %474
        %478 = vset.pattern.permute.xlu0 0
        %479 = vperm.xlu0 %478, %v399
        %v480 = vpop.permute.xlu0 %479
        %v482 = vmul.f32 %v452, %v460
        %v483 = vmul.f32 %v453, %v465
        %v484 = vmul.f32 %v454, %v470
        %v485 = vmul.f32 %v455, %v475
        %v486 = vmul.f32 %v456, %v480
        %488 = vset.pattern.permute.xlu0 0
        %489 = vperm.xlu0 %488, %v400
        %v490 = vpop.permute.xlu0 %489
        %493 = vset.pattern.permute.xlu0 0
        %494 = vperm.xlu0 %493, %v401
        %v495 = vpop.permute.xlu0 %494
        %498 = vset.pattern.permute.xlu0 0
        %499 = vperm.xlu0 %498, %v402
        %v500 = vpop.permute.xlu0 %499
        %503 = vset.pattern.permute.xlu0 0
        %504 = vperm.xlu0 %503, %v403
        %v505 = vpop.permute.xlu0 %504
        %508 = vset.pattern.permute.xlu0 0
        %509 = vperm.xlu0 %508, %v404
        %v510 = vpop.permute.xlu0 %509
        %v512 = vadd.f32 %v482, %v490
        %v513 = vadd.f32 %v483, %v495
        %v514 = vadd.f32 %v484, %v500
        %v515 = vadd.f32 %v485, %v505
        %v516 = vadd.f32 %v486, %v510
        %v517 = vadd.f32 %v390, %v391
        %v518 = vadd.f32 %v517, %v392
        %v519 = vadd.f32 %v518, %v393
        %v520 = vadd.f32 %v519, %v394
        %v521 = vrot.slane %v520, 4
        %v522 = vadd.f32 %v520, %v521
        %v523 = vrot.slane %v522, 2
        %v524 = vadd.f32 %v522, %v523
        %v525 = vrot.slane %v524, 1
        %v526 = vadd.f32 %v524, %v525
        %v527 = vmul.f32 %v526, %v427
        %v528 = vsub.f32 %v390, %v527
        %v529 = vsub.f32 %v391, %v527
        %v530 = vsub.f32 %v392, %v527
        %v531 = vsub.f32 %v393, %v527
        %v532 = vsub.f32 %v394, %v527
        %v533 = vmul.f32 %v528, %v528
        %v534 = vmul.f32 %v529, %v529
        %v535 = vmul.f32 %v530, %v530
        %v536 = vmul.f32 %v531, %v531
        %v537 = vmul.f32 %v532, %v532
        %v538 = vadd.f32 %v533, %v534
        %v539 = vadd.f32 %v538, %v535
        %v540 = vadd.f32 %v539, %v536
        %v541 = vadd.f32 %v540, %v537
        %v542 = vrot.slane %v541, 4
        %v543 = vadd.f32 %v541, %v542
        %v544 = vrot.slane %v543, 2
        %v545 = vadd.f32 %v543, %v544
        %v546 = vrot.slane %v545, 1
        %v547 = vadd.f32 %v545, %v546
        %v548 = vmul.f32 %v547, %v427
        %v549 = vadd.f32 %v548, 1e-05
        %v550 = vrsqrt.pop %v549
        %v551 = vmul.f32 %v528, %v550
        %v552 = vmul.f32 %v529, %v550
        %v553 = vmul.f32 %v530, %v550
        %v554 = vmul.f32 %v531, %v550
        %v555 = vmul.f32 %v532, %v550
        %v556 = vmul.f32 %v551, %v460
        %v557 = vmul.f32 %v552, %v465
        %v558 = vmul.f32 %v553, %v470
        %v559 = vmul.f32 %v554, %v475
        %v560 = vmul.f32 %v555, %v480
        %v561 = vadd.f32 %v556, %v490
        %v562 = vadd.f32 %v557, %v495
        %v563 = vadd.f32 %v558, %v500
        %v564 = vadd.f32 %v559, %v505
        %v565 = vadd.f32 %v560, %v510
        %v566 = vstv %s405
        %v567 = vmul.f32 %v512, %v566
        %v568 = vmul.f32 %v513, %v566
        %v569 = vmul.f32 %v514, %v566
        %v570 = vmul.f32 %v515, %v566
        %v571 = vmul.f32 %v516, %v566
        %v572 = vstv %s406
        %v573 = vmul.f32 %v561, %v572
        %v574 = vmul.f32 %v562, %v572
        %v575 = vmul.f32 %v563, %v572
        %v576 = vmul.f32 %v564, %v572
        %v577 = vmul.f32 %v565, %v572
        %v578 = vadd.f32 %v567, %v573
        %v579 = vadd.f32 %v568, %v574
        %v580 = vadd.f32 %v569, %v575
        %v581 = vadd.f32 %v570, %v576
        %v582 = vadd.f32 %v571, %v577
        %v583 = vstv %s409
        %v584 = vadd.f32 %v578, %v583
        %v585 = vadd.f32 %v579, %v583
        %v586 = vadd.f32 %v580, %v583
        %v587 = vadd.f32 %v581, %v583
        %v588 = vadd.f32 %v582, %v583
        %v589 = vmul.f32 %v584, 0.5
        %v590 = vmul.f32 %v585, 0.5
        %v591 = vmul.f32 %v586, 0.5
        %v592 = vmul.f32 %v587, 0.5
        %v593 = vmul.f32 %v588, 0.5
        %v594 = vmul.f32 %v584, 0.044715
        %v595 = vmul.f32 %v585, 0.044715
        %v596 = vmul.f32 %v586, 0.044715
        %v597 = vmul.f32 %v587, 0.044715
        %v598 = vmul.f32 %v588, 0.044715
        %v599 = vmul.f32 %v594, %v584
        %v600 = vmul.f32 %v595, %v585
        %v601 = vmul.f32 %v596, %v586
        %v602 = vmul.f32 %v597, %v587
        %v603 = vmul.f32 %v598, %v588
        %v604 = vmul.f32 %v599, %v584
        %v605 = vmul.f32 %v600, %v585
        %v606 = vmul.f32 %v601, %v586
        %v607 = vmul.f32 %v602, %v587
        %v608 = vmul.f32 %v603, %v588
        %v609 = vadd.f32 %v584, %v604
        %v610 = vadd.f32 %v585, %v605
        %v611 = vadd.f32 %v586, %v606
        %v612 = vadd.f32 %v587, %v607
        %v613 = vadd.f32 %v588, %v608
        %v614 = vmul.f32 %v609, 0.7978846
        %v615 = vmul.f32 %v610, 0.7978846
        %v616 = vmul.f32 %v611, 0.7978846
        %v617 = vmul.f32 %v612, 0.7978846
        %v618 = vmul.f32 %v613, 0.7978846
        %v619 = vtanh.pop %v614
        %v620 = vtanh.pop %v615
        %v621 = vtanh.pop %v616
        %v622 = vtanh.pop %v617
        %v623 = vtanh.pop %v618
        %v624 = vadd.f32 %v619, 1.0
        %v625 = vadd.f32 %v620, 1.0
        %v626 = vadd.f32 %v621, 1.0
        %v627 = vadd.f32 %v622, 1.0
        %v628 = vadd.f32 %v623, 1.0
        %v629 = vmul.f32 %v589, %v624
        %v630 = vmul.f32 %v590, %v625
        %v631 = vmul.f32 %v591, %v626
        %v632 = vmul.f32 %v592, %v627
        %v633 = vmul.f32 %v593, %v628
        %v634 = vstv %s407
        %v635 = vmul.f32 %v512, %v634
        %v636 = vmul.f32 %v513, %v634
        %v637 = vmul.f32 %v514, %v634
        %v638 = vmul.f32 %v515, %v634
        %v639 = vmul.f32 %v516, %v634
        %v640 = vstv %s408
        %v641 = vmul.f32 %v561, %v640
        %v642 = vmul.f32 %v562, %v640
        %v643 = vmul.f32 %v563, %v640
        %v644 = vmul.f32 %v564, %v640
        %v645 = vmul.f32 %v565, %v640
        %v646 = vadd.f32 %v635, %v641
        %v647 = vadd.f32 %v636, %v642
        %v648 = vadd.f32 %v637, %v643
        %v649 = vadd.f32 %v638, %v644
        %v650 = vadd.f32 %v639, %v645
        %v651 = vstv %s410
        %v652 = vadd.f32 %v646, %v651
        %v653 = vadd.f32 %v647, %v651
        %v654 = vadd.f32 %v648, %v651
        %v655 = vadd.f32 %v649, %v651
        %v656 = vadd.f32 %v650, %v651
        %v657 = vmul.f32 %v652, 0.5
        %v658 = vmul.f32 %v653, 0.5
        %v659 = vmul.f32 %v654, 0.5
        %v660 = vmul.f32 %v655, 0.5
        %v661 = vmul.f32 %v656, 0.5
        %v662 = vmul.f32 %v652, 0.044715
        %v663 = vmul.f32 %v653, 0.044715
        %v664 = vmul.f32 %v654, 0.044715
        %v665 = vmul.f32 %v655, 0.044715
        %v666 = vmul.f32 %v656, 0.044715
        %v667 = vmul.f32 %v662, %v652
        %v668 = vmul.f32 %v663, %v653
        %v669 = vmul.f32 %v664, %v654
        %v670 = vmul.f32 %v665, %v655
        %v671 = vmul.f32 %v666, %v656
        %v672 = vmul.f32 %v667, %v652
        %v673 = vmul.f32 %v668, %v653
        %v674 = vmul.f32 %v669, %v654
        %v675 = vmul.f32 %v670, %v655
        %v676 = vmul.f32 %v671, %v656
        %v677 = vadd.f32 %v652, %v672
        %v678 = vadd.f32 %v653, %v673
        %v679 = vadd.f32 %v654, %v674
        %v680 = vadd.f32 %v655, %v675
        %v681 = vadd.f32 %v656, %v676
        %v682 = vmul.f32 %v677, 0.7978846
        %v683 = vmul.f32 %v678, 0.7978846
        %v684 = vmul.f32 %v679, 0.7978846
        %v685 = vmul.f32 %v680, 0.7978846
        %v686 = vmul.f32 %v681, 0.7978846
        %v687 = vtanh.pop %v682
        %v688 = vtanh.pop %v683
        %v689 = vtanh.pop %v684
        %v690 = vtanh.pop %v685
        %v691 = vtanh.pop %v686
        %v692 = vadd.f32 %v687, 1.0
        %v693 = vadd.f32 %v688, 1.0
        %v694 = vadd.f32 %v689, 1.0
        %v695 = vadd.f32 %v690, 1.0
        %v696 = vadd.f32 %v691, 1.0
        %v697 = vmul.f32 %v657, %v692
        %v698 = vmul.f32 %v658, %v693
        %v699 = vmul.f32 %v659, %v694
        %v700 = vmul.f32 %v660, %v695
        %v701 = vmul.f32 %v661, %v696
        %v702 = vstv %s411
        %v703 = vmul.f32 %v629, %v702
        %v704 = vmul.f32 %v630, %v702
        %v705 = vmul.f32 %v631, %v702
        %v706 = vmul.f32 %v632, %v702
        %v707 = vmul.f32 %v633, %v702
        %v708 = vstv %s412
        %v709 = vmul.f32 %v697, %v708
        %v710 = vmul.f32 %v698, %v708
        %v711 = vmul.f32 %v699, %v708
        %v712 = vmul.f32 %v700, %v708
        %v713 = vmul.f32 %v701, %v708
        %v714 = vadd.f32 %v703, %v709
        %v715 = vadd.f32 %v704, %v710
        %v716 = vadd.f32 %v705, %v711
        %v717 = vadd.f32 %v706, %v712
        %v718 = vadd.f32 %v707, %v713
        %v719 = vadd.f32 %v384, %v714
        %v720 = vadd.f32 %v385, %v715
        %v721 = vadd.f32 %v386, %v716
        %v722 = vadd.f32 %v387, %v717
        %v723 = vadd.f32 %v388, %v718
        %v724 = vstv %s415
        %v725 = vadd.f32 %v719, %v724
        %v726 = vadd.f32 %v720, %v724
        %v727 = vadd.f32 %v721, %v724
        %v728 = vadd.f32 %v722, %v724
        %v729 = vadd.f32 %v723, %v724
        %v730 = vstv %s413
        %v731 = vmul.f32 %v629, %v730
        %v732 = vmul.f32 %v630, %v730
        %v733 = vmul.f32 %v631, %v730
        %v734 = vmul.f32 %v632, %v730
        %v735 = vmul.f32 %v633, %v730
        %v736 = vstv %s414
        %v737 = vmul.f32 %v697, %v736
        %v738 = vmul.f32 %v698, %v736
        %v739 = vmul.f32 %v699, %v736
        %v740 = vmul.f32 %v700, %v736
        %v741 = vmul.f32 %v701, %v736
        %v742 = vadd.f32 %v731, %v737
        %v743 = vadd.f32 %v732, %v738
        %v744 = vadd.f32 %v733, %v739
        %v745 = vadd.f32 %v734, %v740
        %v746 = vadd.f32 %v735, %v741
        %v747 = vadd.f32 %v390, %v742
        %v748 = vadd.f32 %v391, %v743
        %v749 = vadd.f32 %v392, %v744
        %v750 = vadd.f32 %v393, %v745
        %v751 = vadd.f32 %v394, %v746
        %v752 = vstv %s416
        %v753 = vadd.f32 %v747, %v752
        %v754 = vadd.f32 %v748, %v752
        %v755 = vadd.f32 %v749, %v752
        %v756 = vadd.f32 %v750, %v752
        %v757 = vadd.f32 %v751, %v752
        %v758 = vld [vmem:[%s4] sm:$0xff]
        %v759 = vld [vmem:[%s4 + $0x8] sm:$0xff]
        %v760 = vld [vmem:[%s4 + $0x10] sm:$0xff]
        %v761 = vld [vmem:[%s4 + $0x18] sm:$0xff]
        %v762 = vld [vmem:[%s4 + $0x20] sm:$0xff]
        %v763 = vld [vmem:[%s5] sm:$0xff]
        %v764 = vld [vmem:[%s5 + $0x8] sm:$0xff]
        %v765 = vld [vmem:[%s5 + $0x10] sm:$0xff]
        %v766 = vld [vmem:[%s5 + $0x18] sm:$0xff]
        %v767 = vld [vmem:[%s5 + $0x20] sm:$0xff]
        %v768 = vld [vmem:[%s6] sm:$0xff]
        %v769 = vld [vmem:[%s6 + $0x8] sm:$0xff]
        %v770 = vld [vmem:[%s6 + $0x10] sm:$0xff]
        %v771 = vld [vmem:[%s6 + $0x18] sm:$0xff]
        %v772 = vld [vmem:[%s6 + $0x20] sm:$0xff]
        %v773 = vld [vmem:[%s7] sm:$0xff]
        %v774 = vld [vmem:[%s7 + $0x8] sm:$0xff]
        %v775 = vld [vmem:[%s7 + $0x10] sm:$0xff]
        %v776 = vld [vmem:[%s7 + $0x18] sm:$0xff]
        %v777 = vld [vmem:[%s7 + $0x20] sm:$0xff]
        %v778 = vadd.f32 %v725, %v726
        %v779 = vadd.f32 %v778, %v727
        %v780 = vadd.f32 %v779, %v728
        %v781 = vadd.f32 %v780, %v729
        %v782 = vrot.slane %v781, 4
        %v783 = vadd.f32 %v781, %v782
        %v784 = vrot.slane %v783, 2
        %v785 = vadd.f32 %v783, %v784
        %v786 = vrot.slane %v785, 1
        %v787 = vadd.f32 %v785, %v786
        %v788 = vmul.f32 %v787, %v427
        %v789 = vsub.f32 %v725, %v788
        %v790 = vsub.f32 %v726, %v788
        %v791 = vsub.f32 %v727, %v788
        %v792 = vsub.f32 %v728, %v788
        %v793 = vsub.f32 %v729, %v788
        %v794 = vmul.f32 %v789, %v789
        %v795 = vmul.f32 %v790, %v790
        %v796 = vmul.f32 %v791, %v791
        %v797 = vmul.f32 %v792, %v792
        %v798 = vmul.f32 %v793, %v793
        %v799 = vadd.f32 %v794, %v795
        %v800 = vadd.f32 %v799, %v796
        %v801 = vadd.f32 %v800, %v797
        %v802 = vadd.f32 %v801, %v798
        %v803 = vrot.slane %v802, 4
        %v804 = vadd.f32 %v802, %v803
        %v805 = vrot.slane %v804, 2
        %v806 = vadd.f32 %v804, %v805
        %v807 = vrot.slane %v806, 1
        %v808 = vadd.f32 %v806, %v807
        %v809 = vmul.f32 %v808, %v427
        %v810 = vadd.f32 %v809, 1e-05
        %v811 = vrsqrt.pop %v810
        %v812 = vmul.f32 %v789, %v811
        %v813 = vmul.f32 %v790, %v811
        %v814 = vmul.f32 %v791, %v811
        %v815 = vmul.f32 %v792, %v811
        %v816 = vmul.f32 %v793, %v811
        %v817 = vmul.f32 %v812, %v460
        %v818 = vmul.f32 %v813, %v465
        %v819 = vmul.f32 %v814, %v470
        %v820 = vmul.f32 %v815, %v475
        %v821 = vmul.f32 %v816, %v480
        %v822 = vadd.f32 %v817, %v490
        %v823 = vadd.f32 %v818, %v495
        %v824 = vadd.f32 %v819, %v500
        %v825 = vadd.f32 %v820, %v505
        %v826 = vadd.f32 %v821, %v510
        %828 = vset.pattern.permute.xlu0 0
        %829 = vperm.xlu0 %828, %v763
        %v830 = vpop.permute.xlu0 %829
        %833 = vset.pattern.permute.xlu0 0
        %834 = vperm.xlu0 %833, %v764
        %v835 = vpop.permute.xlu0 %834
        %838 = vset.pattern.permute.xlu0 0
        %839 = vperm.xlu0 %838, %v765
        %v840 = vpop.permute.xlu0 %839
        %843 = vset.pattern.permute.xlu0 0
        %844 = vperm.xlu0 %843, %v766
        %v845 = vpop.permute.xlu0 %844
        %848 = vset.pattern.permute.xlu0 0
        %849 = vperm.xlu0 %848, %v767
        %v850 = vpop.permute.xlu0 %849
        %vm852 = vcmask 326656
        %v854 = vsel %vm852, %v758, 0
        %v857 = vsel %vm852, %v759, 0
        %v860 = vsel %vm852, %v760, 0
        %v863 = vsel %vm852, %v761, 0
        %v866 = vsel %vm852, %v762, 0
        %868 = vmatprep.subr.mxu0 0.0
        %869 = vmatpush1.msra.mxu0 %v822
        %870 = vmatprep.subr.mxu0 0.0
        %871 = vmatpush1.msra.mxu0 %v823
        %872 = vmatprep.subr.mxu0 0.0
        %873 = vmatpush1.msra.mxu0 %v824
        %874 = vmatprep.subr.mxu0 0.0
        %875 = vmatpush1.msra.mxu0 %v825
        %876 = vmatprep.subr.mxu0 0.0
        %877 = vmatpush1.msra.mxu0 %v826
        %878 = vmatprep.subr.mxu0 0.0
        %879 = vmatpush1.msra.mxu0 0.0
        %880 = vmatprep.subr.mxu0 0.0
        %881 = vmatpush1.msra.mxu0 0.0
        %882 = vmatprep.subr.mxu0 0.0
        %883 = vmatpush1.msra.mxu0 0.0
        %884 = vmatprep.subr.mxu0 0.0
        %885 = vmatpush1.msra.mxu0 0.0
        %886 = vmatprep.subr.mxu0 0.0
        %887 = vmatpush1.msra.mxu0 0.0
        %888 = vmatprep.subr.mxu0 0.0
        %889 = vmatpush1.msra.mxu0 0.0
        %890 = vmatprep.subr.mxu0 0.0
        %891 = vmatpush1.msra.mxu0 0.0
        %892 = vmatprep.subr.mxu0 0.0
        %893 = vmatpush1.msra.mxu0 0.0
        %894 = vmatprep.subr.mxu0 0.0
        %895 = vmatpush1.msra.mxu0 0.0
        %896 = vmatprep.subr.mxu0 0.0
        %897 = vmatpush1.msra.mxu0 0.0
        %898 = vmatprep.subr.mxu0 0.0
        %899 = vmatpush1.msra.mxu0 0.0
        %900 = vmatprep.subr.mxu0 0.0
        %901 = vmatpush1.msra.mxu0 0.0
        %902 = vmatprep.subr.mxu0 0.0
        %903 = vmatpush1.msra.mxu0 0.0
        %904 = vmatprep.subr.mxu0 0.0
        %905 = vmatpush1.msra.mxu0 0.0
        %906 = vmatprep.subr.mxu0 0.0
        %907 = vmatpush1.msra.mxu0 0.0
        %908 = vmatprep.subr.mxu0 0.0
        %909 = vmatpush1.msra.mxu0 0.0
        %910 = vmatprep.subr.mxu0 0.0
        %911 = vmatpush1.msra.mxu0 0.0
        %912 = vmatprep.subr.mxu0 0.0
        %913 = vmatpush1.msra.mxu0 0.0
        %914 = vmatprep.subr.mxu0 0.0
        %915 = vmatpush1.msra.mxu0 0.0
        %916 = vmatprep.subr.mxu0 0.0
        %917 = vmatpush1.msra.mxu0 0.0
        %918 = vmatprep.subr.mxu0 0.0
        %919 = vmatpush1.msra.mxu0 0.0
        %920 = vmatprep.subr.mxu0 0.0
        %921 = vmatpush1.msra.mxu0 0.0
        %922 = vmatprep.subr.mxu0 0.0
        %923 = vmatpush1.msra.mxu0 0.0
        %924 = vmatprep.subr.mxu0 0.0
        %925 = vmatpush1.msra.mxu0 0.0
        %926 = vmatprep.subr.mxu0 0.0
        %927 = vmatpush1.msra.mxu0 0.0
        %928 = vmatprep.subr.mxu0 0.0
        %929 = vmatpush1.msra.mxu0 0.0
        %930 = vmatprep.subr.mxu0 0.0
        %931 = vmatpush1.msra.mxu0 0.0
        %932 = vmatprep.mubr.f32.mxu0 0.0
        %933 = vmatmul.mubr.f32.gmra.mrb[0].mxu0 %v854
        %v934 = vpop.f32.mrb[0].mxu0
        %v935 = vadd.f32 %v830, %v934
        %v936 = vpop.f32.mrb[0].mxu0
        %937 = vmatprep.mubr.f32.mxu0 0.0
        %938 = vmatmul.mubr.f32.gmra.mrb[0].mxu0 %v857
        %v939 = vpop.f32.mrb[0].mxu0
        %v940 = vadd.f32 %v835, %v939
        %v941 = vpop.f32.mrb[0].mxu0
        %942 = vmatprep.mubr.f32.mxu0 0.0
        %943 = vmatmul.mubr.f32.gmra.mrb[0].mxu0 %v860
        %v944 = vpop.f32.mrb[0].mxu0
        %v945 = vadd.f32 %v840, %v944
        %v946 = vpop.f32.mrb[0].mxu0
        %947 = vmatprep.mubr.f32.mxu0 0.0
        %948 = vmatmul.mubr.f32.gmra.mrb[0].mxu0 %v863
        %v949 = vpop.f32.mrb[0].mxu0
        %v950 = vadd.f32 %v845, %v949
        %v951 = vpop.f32.mrb[0].mxu0
        %952 = vmatprep.mubr.f32.mxu0 0.0
        %953 = vmatmul.mubr.f32.gmra.mrb[0].mxu0 %v866
        %v954 = vpop.f32.mrb[0].mxu0
        %v955 = vadd.f32 %v850, %v954
        %v956 = vpop.f32.mrb[0].mxu0
        %957 = vdwg.mxu0
        %v958 = vmul.f32 %v935, 0.5
        %v959 = vmul.f32 %v940, 0.5
        %v960 = vmul.f32 %v945, 0.5
        %v961 = vmul.f32 %v950, 0.5
        %v962 = vmul.f32 %v955, 0.5
        %v963 = vmul.f32 %v935, 0.044715
        %v964 = vmul.f32 %v940, 0.044715
        %v965 = vmul.f32 %v945, 0.044715
        %v966 = vmul.f32 %v950, 0.044715
        %v967 = vmul.f32 %v955, 0.044715
        %v968 = vmul.f32 %v963, %v935
        %v969 = vmul.f32 %v964, %v940
        %v970 = vmul.f32 %v965, %v945
        %v971 = vmul.f32 %v966, %v950
        %v972 = vmul.f32 %v967, %v955
        %v973 = vmul.f32 %v968, %v935
        %v974 = vmul.f32 %v969, %v940
        %v975 = vmul.f32 %v970, %v945
        %v976 = vmul.f32 %v971, %v950
        %v977 = vmul.f32 %v972, %v955
        %v978 = vadd.f32 %v935, %v973
        %v979 = vadd.f32 %v940, %v974
        %v980 = vadd.f32 %v945, %v975
        %v981 = vadd.f32 %v950, %v976
        %v982 = vadd.f32 %v955, %v977
        %v983 = vmul.f32 %v978, 0.7978846
        %v984 = vmul.f32 %v979, 0.7978846
        %v985 = vmul.f32 %v980, 0.7978846
        %v986 = vmul.f32 %v981, 0.7978846
        %v987 = vmul.f32 %v982, 0.7978846
        %v988 = vtanh.pop %v983
        %v989 = vtanh.pop %v984
        %v990 = vtanh.pop %v985
        %v991 = vtanh.pop %v986
        %v992 = vtanh.pop %v987
        %v993 = vadd.f32 %v988, 1.0
        %v994 = vadd.f32 %v989, 1.0
        %v995 = vadd.f32 %v990, 1.0
        %v996 = vadd.f32 %v991, 1.0
        %v997 = vadd.f32 %v992, 1.0
        %v998 = vmul.f32 %v958, %v993
        %v999 = vmul.f32 %v959, %v994
        %v1000 = vmul.f32 %v960, %v995
        %v1001 = vmul.f32 %v961, %v996
        %v1002 = vmul.f32 %v962, %v997
        %v1004 = vsel %vm852, %v768, 0
        %v1007 = vsel %vm852, %v769, 0
        %v1010 = vsel %vm852, %v770, 0
        %v1013 = vsel %vm852, %v771, 0
        %v1016 = vsel %vm852, %v772, 0
        %1018 = vmatprep.subr.mxu0 0.0
        %1019 = vmatpush1.msra.mxu0 %v998
        %1020 = vmatprep.subr.mxu0 0.0
        %1021 = vmatpush1.msra.mxu0 %v999
        %1022 = vmatprep.subr.mxu0 0.0
        %1023 = vmatpush1.msra.mxu0 %v1000
        %1024 = vmatprep.subr.mxu0 0.0
        %1025 = vmatpush1.msra.mxu0 %v1001
        %1026 = vmatprep.subr.mxu0 0.0
        %1027 = vmatpush1.msra.mxu0 %v1002
        %1028 = vmatprep.subr.mxu0 0.0
        %1029 = vmatpush1.msra.mxu0 0.0
        %1030 = vmatprep.subr.mxu0 0.0
        %1031 = vmatpush1.msra.mxu0 0.0
        %1032 = vmatprep.subr.mxu0 0.0
        %1033 = vmatpush1.msra.mxu0 0.0
        %1034 = vmatprep.subr.mxu0 0.0
        %1035 = vmatpush1.msra.mxu0 0.0
        %1036 = vmatprep.subr.mxu0 0.0
        %1037 = vmatpush1.msra.mxu0 0.0
        %1038 = vmatprep.subr.mxu0 0.0
        %1039 = vmatpush1.msra.mxu0 0.0
        %1040 = vmatprep.subr.mxu0 0.0
        %1041 = vmatpush1.msra.mxu0 0.0
        %1042 = vmatprep.subr.mxu0 0.0
        %1043 = vmatpush1.msra.mxu0 0.0
        %1044 = vmatprep.subr.mxu0 0.0
        %1045 = vmatpush1.msra.mxu0 0.0
        %1046 = vmatprep.subr.mxu0 0.0
        %1047 = vmatpush1.msra.mxu0 0.0
        %1048 = vmatprep.subr.mxu0 0.0
        %1049 = vmatpush1.msra.mxu0 0.0
        %1050 = vmatprep.subr.mxu0 0.0
        %1051 = vmatpush1.msra.mxu0 0.0
        %1052 = vmatprep.subr.mxu0 0.0
        %1053 = vmatpush1.msra.mxu0 0.0
        %1054 = vmatprep.subr.mxu0 0.0
        %1055 = vmatpush1.msra.mxu0 0.0
        %1056 = vmatprep.subr.mxu0 0.0
        %1057 = vmatpush1.msra.mxu0 0.0
        %1058 = vmatprep.subr.mxu0 0.0
        %1059 = vmatpush1.msra.mxu0 0.0
        %1060 = vmatprep.subr.mxu0 0.0
        %1061 = vmatpush1.msra.mxu0 0.0
        %1062 = vmatprep.subr.mxu0 0.0
        %1063 = vmatpush1.msra.mxu0 0.0
        %1064 = vmatprep.subr.mxu0 0.0
        %1065 = vmatpush1.msra.mxu0 0.0
        %1066 = vmatprep.subr.mxu0 0.0
        %1067 = vmatpush1.msra.mxu0 0.0
        %1068 = vmatprep.subr.mxu0 0.0
        %1069 = vmatpush1.msra.mxu0 0.0
        %1070 = vmatprep.subr.mxu0 0.0
        %1071 = vmatpush1.msra.mxu0 0.0
        %1072 = vmatprep.subr.mxu0 0.0
        %1073 = vmatpush1.msra.mxu0 0.0
        %1074 = vmatprep.subr.mxu0 0.0
        %1075 = vmatpush1.msra.mxu0 0.0
        %1076 = vmatprep.subr.mxu0 0.0
        %1077 = vmatpush1.msra.mxu0 0.0
        %1078 = vmatprep.subr.mxu0 0.0
        %1079 = vmatpush1.msra.mxu0 0.0
        %1080 = vmatprep.subr.mxu0 0.0
        %1081 = vmatpush1.msra.mxu0 0.0
        %1082 = vmatprep.mubr.f32.mxu0 0.0
        %1083 = vmatmul.mubr.f32.gmra.mrb[0].mxu0 %v1004
        %v1084 = vpop.f32.mrb[0].mxu0
        %v1085 = vadd.f32 0.0, %v1084
        %v1086 = vpop.f32.mrb[0].mxu0
        %1087 = vmatprep.mubr.f32.mxu0 0.0
        %1088 = vmatmul.mubr.f32.gmra.mrb[0].mxu0 %v1007
        %v1089 = vpop.f32.mrb[0].mxu0
        %v1090 = vadd.f32 0.0, %v1089
        %v1091 = vpop.f32.mrb[0].mxu0
        %1092 = vmatprep.mubr.f32.mxu0 0.0
        %1093 = vmatmul.mubr.f32.gmra.mrb[0].mxu0 %v1010
        %v1094 = vpop.f32.mrb[0].mxu0
        %v1095 = vadd.f32 0.0, %v1094
        %v1096 = vpop.f32.mrb[0].mxu0
        %1097 = vmatprep.mubr.f32.mxu0 0.0
        %1098 = vmatmul.mubr.f32.gmra.mrb[0].mxu0 %v1013
        %v1099 = vpop.f32.mrb[0].mxu0
        %v1100 = vadd.f32 0.0, %v1099
        %v1101 = vpop.f32.mrb[0].mxu0
        %1102 = vmatprep.mubr.f32.mxu0 0.0
        %1103 = vmatmul.mubr.f32.gmra.mrb[0].mxu0 %v1016
        %v1104 = vpop.f32.mrb[0].mxu0
        %v1105 = vadd.f32 0.0, %v1104
        %v1106 = vpop.f32.mrb[0].mxu0
        %1107 = vdwg.mxu0
        %v1108 = vadd.f32 %v725, %v1085
        %v1109 = vadd.f32 %v726, %v1090
        %v1110 = vadd.f32 %v727, %v1095
        %v1111 = vadd.f32 %v728, %v1100
        %v1112 = vadd.f32 %v729, %v1105
        %1114 = vset.pattern.permute.xlu0 0
        %1115 = vperm.xlu0 %1114, %v773
        %v1116 = vpop.permute.xlu0 %1115
        %1119 = vset.pattern.permute.xlu0 0
        %1120 = vperm.xlu0 %1119, %v774
        %v1121 = vpop.permute.xlu0 %1120
        %1124 = vset.pattern.permute.xlu0 0
        %1125 = vperm.xlu0 %1124, %v775
        %v1126 = vpop.permute.xlu0 %1125
        %1129 = vset.pattern.permute.xlu0 0
        %1130 = vperm.xlu0 %1129, %v776
        %v1131 = vpop.permute.xlu0 %1130
        %1134 = vset.pattern.permute.xlu0 0
        %1135 = vperm.xlu0 %1134, %v777
        %v1136 = vpop.permute.xlu0 %1135
        %v1138 = vadd.f32 %v1108, %v1116
        %v1139 = vadd.f32 %v1109, %v1121
        %v1140 = vadd.f32 %v1110, %v1126
        %v1141 = vadd.f32 %v1111, %v1131
        %v1142 = vadd.f32 %v1112, %v1136
        %v1143 = vadd.f32 %v753, %v754
        %v1144 = vadd.f32 %v1143, %v755
        %v1145 = vadd.f32 %v1144, %v756
        %v1146 = vadd.f32 %v1145, %v757
        %v1147 = vrot.slane %v1146, 4
        %v1148 = vadd.f32 %v1146, %v1147
        %v1149 = vrot.slane %v1148, 2
        %v1150 = vadd.f32 %v1148, %v1149
        %v1151 = vrot.slane %v1150, 1
        %v1152 = vadd.f32 %v1150, %v1151
        %v1153 = vmul.f32 %v1152, %v427
        %v1154 = vsub.f32 %v753, %v1153
        %v1155 = vsub.f32 %v754, %v1153
        %v1156 = vsub.f32 %v755, %v1153
        %v1157 = vsub.f32 %v756, %v1153
        %v1158 = vsub.f32 %v757, %v1153
        %v1159 = vmul.f32 %v1154, %v1154
        %v1160 = vmul.f32 %v1155, %v1155
        %v1161 = vmul.f32 %v1156, %v1156
        %v1162 = vmul.f32 %v1157, %v1157
        %v1163 = vmul.f32 %v1158, %v1158
        %v1164 = vadd.f32 %v1159, %v1160
        %v1165 = vadd.f32 %v1164, %v1161
        %v1166 = vadd.f32 %v1165, %v1162
        %v1167 = vadd.f32 %v1166, %v1163
        %v1168 = vrot.slane %v1167, 4
        %v1169 = vadd.f32 %v1167, %v1168
        %v1170 = vrot.slane %v1169, 2
        %v1171 = vadd.f32 %v1169, %v1170
        %v1172 = vrot.slane %v1171, 1
        %v1173 = vadd.f32 %v1171, %v1172
        %v1174 = vmul.f32 %v1173, %v427
        %v1175 = vadd.f32 %v1174, 1e-05
        %v1176 = vrsqrt.pop %v1175
        %v1177 = vmul.f32 %v1154, %v1176
        %v1178 = vmul.f32 %v1155, %v1176
        %v1179 = vmul.f32 %v1156, %v1176
        %v1180 = vmul.f32 %v1157, %v1176
        %v1181 = vmul.f32 %v1158, %v1176
        %v1182 = vmul.f32 %v1177, %v460
        %v1183 = vmul.f32 %v1178, %v465
        %v1184 = vmul.f32 %v1179, %v470
        %v1185 = vmul.f32 %v1180, %v475
        %v1186 = vmul.f32 %v1181, %v480
        %v1187 = vadd.f32 %v1182, %v490
        %v1188 = vadd.f32 %v1183, %v495
        %v1189 = vadd.f32 %v1184, %v500
        %v1190 = vadd.f32 %v1185, %v505
        %v1191 = vadd.f32 %v1186, %v510
        %1192 = vmatprep.subr.mxu0 0.0
        %1193 = vmatpush1.msra.mxu0 %v1187
        %1194 = vmatprep.subr.mxu0 0.0
        %1195 = vmatpush1.msra.mxu0 %v1188
        %1196 = vmatprep.subr.mxu0 0.0
        %1197 = vmatpush1.msra.mxu0 %v1189
        %1198 = vmatprep.subr.mxu0 0.0
        %1199 = vmatpush1.msra.mxu0 %v1190
        %1200 = vmatprep.subr.mxu0 0.0
        %1201 = vmatpush1.msra.mxu0 %v1191
        %1202 = vmatprep.subr.mxu0 0.0
        %1203 = vmatpush1.msra.mxu0 0.0
        %1204 = vmatprep.subr.mxu0 0.0
        %1205 = vmatpush1.msra.mxu0 0.0
        %1206 = vmatprep.subr.mxu0 0.0
        %1207 = vmatpush1.msra.mxu0 0.0
        %1208 = vmatprep.subr.mxu0 0.0
        %1209 = vmatpush1.msra.mxu0 0.0
        %1210 = vmatprep.subr.mxu0 0.0
        %1211 = vmatpush1.msra.mxu0 0.0
        %1212 = vmatprep.subr.mxu0 0.0
        %1213 = vmatpush1.msra.mxu0 0.0
        %1214 = vmatprep.subr.mxu0 0.0
        %1215 = vmatpush1.msra.mxu0 0.0
        %1216 = vmatprep.subr.mxu0 0.0
        %1217 = vmatpush1.msra.mxu0 0.0
        %1218 = vmatprep.subr.mxu0 0.0
        %1219 = vmatpush1.msra.mxu0 0.0
        %1220 = vmatprep.subr.mxu0 0.0
        %1221 = vmatpush1.msra.mxu0 0.0
        %1222 = vmatprep.subr.mxu0 0.0
        %1223 = vmatpush1.msra.mxu0 0.0
        %1224 = vmatprep.subr.mxu0 0.0
        %1225 = vmatpush1.msra.mxu0 0.0
        %1226 = vmatprep.subr.mxu0 0.0
        %1227 = vmatpush1.msra.mxu0 0.0
        %1228 = vmatprep.subr.mxu0 0.0
        %1229 = vmatpush1.msra.mxu0 0.0
        %1230 = vmatprep.subr.mxu0 0.0
        %1231 = vmatpush1.msra.mxu0 0.0
        %1232 = vmatprep.subr.mxu0 0.0
        %1233 = vmatpush1.msra.mxu0 0.0
        %1234 = vmatprep.subr.mxu0 0.0
        %1235 = vmatpush1.msra.mxu0 0.0
        %1236 = vmatprep.subr.mxu0 0.0
        %1237 = vmatpush1.msra.mxu0 0.0
        %1238 = vmatprep.subr.mxu0 0.0
        %1239 = vmatpush1.msra.mxu0 0.0
        %1240 = vmatprep.subr.mxu0 0.0
        %1241 = vmatpush1.msra.mxu0 0.0
        %1242 = vmatprep.subr.mxu0 0.0
        %1243 = vmatpush1.msra.mxu0 0.0
        %1244 = vmatprep.subr.mxu0 0.0
        %1245 = vmatpush1.msra.mxu0 0.0
        %1246 = vmatprep.subr.mxu0 0.0
        %1247 = vmatpush1.msra.mxu0 0.0
        %1248 = vmatprep.subr.mxu0 0.0
        %1249 = vmatpush1.msra.mxu0 0.0
        %1250 = vmatprep.subr.mxu0 0.0
        %1251 = vmatpush1.msra.mxu0 0.0
        %1252 = vmatprep.subr.mxu0 0.0
        %1253 = vmatpush1.msra.mxu0 0.0
        %1254 = vmatprep.subr.mxu0 0.0
        %1255 = vmatpush1.msra.mxu0 0.0
        %1256 = vmatprep.mubr.f32.mxu0 0.0
        %1257 = vmatmul.mubr.f32.gmra.mrb[0].mxu0 %v854
        %v1258 = vpop.f32.mrb[0].mxu0
        %v1259 = vadd.f32 %v830, %v1258
        %v1260 = vpop.f32.mrb[0].mxu0
        %1261 = vmatprep.mubr.f32.mxu0 0.0
        %1262 = vmatmul.mubr.f32.gmra.mrb[0].mxu0 %v857
        %v1263 = vpop.f32.mrb[0].mxu0
        %v1264 = vadd.f32 %v835, %v1263
        %v1265 = vpop.f32.mrb[0].mxu0
        %1266 = vmatprep.mubr.f32.mxu0 0.0
        %1267 = vmatmul.mubr.f32.gmra.mrb[0].mxu0 %v860
        %v1268 = vpop.f32.mrb[0].mxu0
        %v1269 = vadd.f32 %v840, %v1268
        %v1270 = vpop.f32.mrb[0].mxu0
        %1271 = vmatprep.mubr.f32.mxu0 0.0
        %1272 = vmatmul.mubr.f32.gmra.mrb[0].mxu0 %v863
        %v1273 = vpop.f32.mrb[0].mxu0
        %v1274 = vadd.f32 %v845, %v1273
        %v1275 = vpop.f32.mrb[0].mxu0
        %1276 = vmatprep.mubr.f32.mxu0 0.0
        %1277 = vmatmul.mubr.f32.gmra.mrb[0].mxu0 %v866
        %v1278 = vpop.f32.mrb[0].mxu0
        %v1279 = vadd.f32 %v850, %v1278
        %v1280 = vpop.f32.mrb[0].mxu0
        %1281 = vdwg.mxu0
        %v1282 = vmul.f32 %v1259, 0.5
        %v1283 = vmul.f32 %v1264, 0.5
        %v1284 = vmul.f32 %v1269, 0.5
        %v1285 = vmul.f32 %v1274, 0.5
        %v1286 = vmul.f32 %v1279, 0.5
        %v1287 = vmul.f32 %v1259, 0.044715
        %v1288 = vmul.f32 %v1264, 0.044715
        %v1289 = vmul.f32 %v1269, 0.044715
        %v1290 = vmul.f32 %v1274, 0.044715
        %v1291 = vmul.f32 %v1279, 0.044715
        %v1292 = vmul.f32 %v1287, %v1259
        %v1293 = vmul.f32 %v1288, %v1264
        %v1294 = vmul.f32 %v1289, %v1269
        %v1295 = vmul.f32 %v1290, %v1274
        %v1296 = vmul.f32 %v1291, %v1279
        %v1297 = vmul.f32 %v1292, %v1259
        %v1298 = vmul.f32 %v1293, %v1264
        %v1299 = vmul.f32 %v1294, %v1269
        %v1300 = vmul.f32 %v1295, %v1274
        %v1301 = vmul.f32 %v1296, %v1279
        %v1302 = vadd.f32 %v1259, %v1297
        %v1303 = vadd.f32 %v1264, %v1298
        %v1304 = vadd.f32 %v1269, %v1299
        %v1305 = vadd.f32 %v1274, %v1300
        %v1306 = vadd.f32 %v1279, %v1301
        %v1307 = vmul.f32 %v1302, 0.7978846
        %v1308 = vmul.f32 %v1303, 0.7978846
        %v1309 = vmul.f32 %v1304, 0.7978846
        %v1310 = vmul.f32 %v1305, 0.7978846
        %v1311 = vmul.f32 %v1306, 0.7978846
        %v1312 = vtanh.pop %v1307
        %v1313 = vtanh.pop %v1308
        %v1314 = vtanh.pop %v1309
        %v1315 = vtanh.pop %v1310
        %v1316 = vtanh.pop %v1311
        %v1317 = vadd.f32 %v1312, 1.0
        %v1318 = vadd.f32 %v1313, 1.0
        %v1319 = vadd.f32 %v1314, 1.0
        %v1320 = vadd.f32 %v1315, 1.0
        %v1321 = vadd.f32 %v1316, 1.0
        %v1322 = vmul.f32 %v1282, %v1317
        %v1323 = vmul.f32 %v1283, %v1318
        %v1324 = vmul.f32 %v1284, %v1319
        %v1325 = vmul.f32 %v1285, %v1320
        %v1326 = vmul.f32 %v1286, %v1321
        %1327 = vmatprep.subr.mxu0 0.0
        %1328 = vmatpush1.msra.mxu0 %v1322
        %1329 = vmatprep.subr.mxu0 0.0
        %1330 = vmatpush1.msra.mxu0 %v1323
        %1331 = vmatprep.subr.mxu0 0.0
        %1332 = vmatpush1.msra.mxu0 %v1324
        %1333 = vmatprep.subr.mxu0 0.0
        %1334 = vmatpush1.msra.mxu0 %v1325
        %1335 = vmatprep.subr.mxu0 0.0
        %1336 = vmatpush1.msra.mxu0 %v1326
        %1337 = vmatprep.subr.mxu0 0.0
        %1338 = vmatpush1.msra.mxu0 0.0
        %1339 = vmatprep.subr.mxu0 0.0
        %1340 = vmatpush1.msra.mxu0 0.0
        %1341 = vmatprep.subr.mxu0 0.0
        %1342 = vmatpush1.msra.mxu0 0.0
        %1343 = vmatprep.subr.mxu0 0.0
        %1344 = vmatpush1.msra.mxu0 0.0
        %1345 = vmatprep.subr.mxu0 0.0
        %1346 = vmatpush1.msra.mxu0 0.0
        %1347 = vmatprep.subr.mxu0 0.0
        %1348 = vmatpush1.msra.mxu0 0.0
        %1349 = vmatprep.subr.mxu0 0.0
        %1350 = vmatpush1.msra.mxu0 0.0
        %1351 = vmatprep.subr.mxu0 0.0
        %1352 = vmatpush1.msra.mxu0 0.0
        %1353 = vmatprep.subr.mxu0 0.0
        %1354 = vmatpush1.msra.mxu0 0.0
        %1355 = vmatprep.subr.mxu0 0.0
        %1356 = vmatpush1.msra.mxu0 0.0
        %1357 = vmatprep.subr.mxu0 0.0
        %1358 = vmatpush1.msra.mxu0 0.0
        %1359 = vmatprep.subr.mxu0 0.0
        %1360 = vmatpush1.msra.mxu0 0.0
        %1361 = vmatprep.subr.mxu0 0.0
        %1362 = vmatpush1.msra.mxu0 0.0
        %1363 = vmatprep.subr.mxu0 0.0
        %1364 = vmatpush1.msra.mxu0 0.0
        %1365 = vmatprep.subr.mxu0 0.0
        %1366 = vmatpush1.msra.mxu0 0.0
        %1367 = vmatprep.subr.mxu0 0.0
        %1368 = vmatpush1.msra.mxu0 0.0
        %1369 = vmatprep.subr.mxu0 0.0
        %1370 = vmatpush1.msra.mxu0 0.0
        %1371 = vmatprep.subr.mxu0 0.0
        %1372 = vmatpush1.msra.mxu0 0.0
        %1373 = vmatprep.subr.mxu0 0.0
        %1374 = vmatpush1.msra.mxu0 0.0
        %1375 = vmatprep.subr.mxu0 0.0
        %1376 = vmatpush1.msra.mxu0 0.0
        %1377 = vmatprep.subr.mxu0 0.0
        %1378 = vmatpush1.msra.mxu0 0.0
        %1379 = vmatprep.subr.mxu0 0.0
        %1380 = vmatpush1.msra.mxu0 0.0
        %1381 = vmatprep.subr.mxu0 0.0
        %1382 = vmatpush1.msra.mxu0 0.0
        %1383 = vmatprep.subr.mxu0 0.0
        %1384 = vmatpush1.msra.mxu0 0.0
        %1385 = vmatprep.subr.mxu0 0.0
        %1386 = vmatpush1.msra.mxu0 0.0
        %1387 = vmatprep.subr.mxu0 0.0
        %1388 = vmatpush1.msra.mxu0 0.0
        %1389 = vmatprep.subr.mxu0 0.0
        %1390 = vmatpush1.msra.mxu0 0.0
        %1391 = vmatprep.mubr.f32.mxu0 0.0
        %1392 = vmatmul.mubr.f32.gmra.mrb[0].mxu0 %v1004
        %v1393 = vpop.f32.mrb[0].mxu0
        %v1394 = vadd.f32 0.0, %v1393
        %v1395 = vpop.f32.mrb[0].mxu0
        %1396 = vmatprep.mubr.f32.mxu0 0.0
        %1397 = vmatmul.mubr.f32.gmra.mrb[0].mxu0 %v1007
        %v1398 = vpop.f32.mrb[0].mxu0
        %v1399 = vadd.f32 0.0, %v1398
        %v1400 = vpop.f32.mrb[0].mxu0
        %1401 = vmatprep.mubr.f32.mxu0 0.0
        %1402 = vmatmul.mubr.f32.gmra.mrb[0].mxu0 %v1010
        %v1403 = vpop.f32.mrb[0].mxu0
        %v1404 = vadd.f32 0.0, %v1403
        %v1405 = vpop.f32.mrb[0].mxu0
        %1406 = vmatprep.mubr.f32.mxu0 0.0
        %1407 = vmatmul.mubr.f32.gmra.mrb[0].mxu0 %v1013
        %v1408 = vpop.f32.mrb[0].mxu0
        %v1409 = vadd.f32 0.0, %v1408
        %v1410 = vpop.f32.mrb[0].mxu0
        %1411 = vmatprep.mubr.f32.mxu0 0.0
        %1412 = vmatmul.mubr.f32.gmra.mrb[0].mxu0 %v1016
        %v1413 = vpop.f32.mrb[0].mxu0
        %v1414 = vadd.f32 0.0, %v1413
        %v1415 = vpop.f32.mrb[0].mxu0
        %1416 = vdwg.mxu0
        %v1417 = vadd.f32 %v753, %v1394
        %v1418 = vadd.f32 %v754, %v1399
        %v1419 = vadd.f32 %v755, %v1404
        %v1420 = vadd.f32 %v756, %v1409
        %v1421 = vadd.f32 %v757, %v1414
        %v1422 = vadd.f32 %v1417, %v1116
        %v1423 = vadd.f32 %v1418, %v1121
        %v1424 = vadd.f32 %v1419, %v1126
        %v1425 = vadd.f32 %v1420, %v1131
        %v1426 = vadd.f32 %v1421, %v1136
        %s1427 = scalar_lea.vmem %s2, 40
        %v1428 = vld [vmem:[%s1427] sm:$0xff]
        %v1429 = vld [vmem:[%s1427 + $0x8] sm:$0xff]
        %v1430 = vld [vmem:[%s1427 + $0x10] sm:$0xff]
        %v1431 = vld [vmem:[%s1427 + $0x18] sm:$0xff]
        %v1432 = vld [vmem:[%s1427 + $0x20] sm:$0xff]
        %s1433 = scalar_lea.vmem %s3, 40
        %v1434 = vld [vmem:[%s1433] sm:$0xff]
        %v1435 = vld [vmem:[%s1433 + $0x8] sm:$0xff]
        %v1436 = vld [vmem:[%s1433 + $0x10] sm:$0xff]
        %v1437 = vld [vmem:[%s1433 + $0x18] sm:$0xff]
        %v1438 = vld [vmem:[%s1433 + $0x20] sm:$0xff]
        %s1439 = sld [smem:[#allocation2 + $0xc]]
        %s1440 = sld [smem:[#allocation2 + $0xd]]
        %s1441 = sld [smem:[#allocation2 + $0xe]]
        %s1442 = sld [smem:[#allocation2 + $0xf]]
        %s1443 = sld [smem:[#allocation2 + $0x10]]
        %s1444 = sld [smem:[#allocation2 + $0x11]]
        %s1445 = sld [smem:[#allocation2 + $0x12]]
        %s1446 = sld [smem:[#allocation2 + $0x13]]
        %s1447 = sld [smem:[#allocation2 + $0x14]]
        %s1448 = sld [smem:[#allocation2 + $0x15]]
        %s1449 = sld [smem:[#allocation2 + $0x16]]
        %s1450 = sld [smem:[#allocation2 + $0x17]]
        %v1451 = vadd.f32 %v1138, %v1139
        %v1452 = vadd.f32 %v1451, %v1140
        %v1453 = vadd.f32 %v1452, %v1141
        %v1454 = vadd.f32 %v1453, %v1142
        %v1455 = vrot.slane %v1454, 4
        %v1456 = vadd.f32 %v1454, %v1455
        %v1457 = vrot.slane %v1456, 2
        %v1458 = vadd.f32 %v1456, %v1457
        %v1459 = vrot.slane %v1458, 1
        %v1460 = vadd.f32 %v1458, %v1459
        %v1461 = vmul.f32 %v1460, %v427
        %v1462 = vsub.f32 %v1138, %v1461
        %v1463 = vsub.f32 %v1139, %v1461
        %v1464 = vsub.f32 %v1140, %v1461
        %v1465 = vsub.f32 %v1141, %v1461
        %v1466 = vsub.f32 %v1142, %v1461
        %v1467 = vmul.f32 %v1462, %v1462
        %v1468 = vmul.f32 %v1463, %v1463
        %v1469 = vmul.f32 %v1464, %v1464
        %v1470 = vmul.f32 %v1465, %v1465
        %v1471 = vmul.f32 %v1466, %v1466
        %v1472 = vadd.f32 %v1467, %v1468
        %v1473 = vadd.f32 %v1472, %v1469
        %v1474 = vadd.f32 %v1473, %v1470
        %v1475 = vadd.f32 %v1474, %v1471
        %v1476 = vrot.slane %v1475, 4
        %v1477 = vadd.f32 %v1475, %v1476
        %v1478 = vrot.slane %v1477, 2
        %v1479 = vadd.f32 %v1477, %v1478
        %v1480 = vrot.slane %v1479, 1
        %v1481 = vadd.f32 %v1479, %v1480
        %v1482 = vmul.f32 %v1481, %v427
        %v1483 = vadd.f32 %v1482, 1e-05
        %v1484 = vrsqrt.pop %v1483
        %v1485 = vmul.f32 %v1462, %v1484
        %v1486 = vmul.f32 %v1463, %v1484
        %v1487 = vmul.f32 %v1464, %v1484
        %v1488 = vmul.f32 %v1465, %v1484
        %v1489 = vmul.f32 %v1466, %v1484
        %1491 = vset.pattern.permute.xlu0 0
        %1492 = vperm.xlu0 %1491, %v1428
        %v1493 = vpop.permute.xlu0 %1492
        %1496 = vset.pattern.permute.xlu0 0
        %1497 = vperm.xlu0 %1496, %v1429
        %v1498 = vpop.permute.xlu0 %1497
        %1501 = vset.pattern.permute.xlu0 0
        %1502 = vperm.xlu0 %1501, %v1430
        %v1503 = vpop.permute.xlu0 %1502
        %1506 = vset.pattern.permute.xlu0 0
        %1507 = vperm.xlu0 %1506, %v1431
        %v1508 = vpop.permute.xlu0 %1507
        %1511 = vset.pattern.permute.xlu0 0
        %1512 = vperm.xlu0 %1511, %v1432
        %v1513 = vpop.permute.xlu0 %1512
        %v1515 = vmul.f32 %v1485, %v1493
        %v1516 = vmul.f32 %v1486, %v1498
        %v1517 = vmul.f32 %v1487, %v1503
        %v1518 = vmul.f32 %v1488, %v1508
        %v1519 = vmul.f32 %v1489, %v1513
        %1521 = vset.pattern.permute.xlu0 0
        %1522 = vperm.xlu0 %1521, %v1434
        %v1523 = vpop.permute.xlu0 %1522
        %1526 = vset.pattern.permute.xlu0 0
        %1527 = vperm.xlu0 %1526, %v1435
        %v1528 = vpop.permute.xlu0 %1527
        %1531 = vset.pattern.permute.xlu0 0
        %1532 = vperm.xlu0 %1531, %v1436
        %v1533 = vpop.permute.xlu0 %1532
        %1536 = vset.pattern.permute.xlu0 0
        %1537 = vperm.xlu0 %1536, %v1437
        %v1538 = vpop.permute.xlu0 %1537
        %1541 = vset.pattern.permute.xlu0 0
        %1542 = vperm.xlu0 %1541, %v1438
        %v1543 = vpop.permute.xlu0 %1542
        %v1545 = vadd.f32 %v1515, %v1523
        %v1546 = vadd.f32 %v1516, %v1528
        %v1547 = vadd.f32 %v1517, %v1533
        %v1548 = vadd.f32 %v1518, %v1538
        %v1549 = vadd.f32 %v1519, %v1543
        %v1550 = vadd.f32 %v1422, %v1423
        %v1551 = vadd.f32 %v1550, %v1424
        %v1552 = vadd.f32 %v1551, %v1425
        %v1553 = vadd.f32 %v1552, %v1426
        %v1554 = vrot.slane %v1553, 4
        %v1555 = vadd.f32 %v1553, %v1554
        %v1556 = vrot.slane %v1555, 2
        %v1557 = vadd.f32 %v1555, %v1556
        %v1558 = vrot.slane %v1557, 1
        %v1559 = vadd.f32 %v1557, %v1558
        %v1560 = vmul.f32 %v1559, %v427
        %v1561 = vsub.f32 %v1422, %v1560
        %v1562 = vsub.f32 %v1423, %v1560
        %v1563 = vsub.f32 %v1424, %v1560
        %v1564 = vsub.f32 %v1425, %v1560
        %v1565 = vsub.f32 %v1426, %v1560
        %v1566 = vmul.f32 %v1561, %v1561
        %v1567 = vmul.f32 %v1562, %v1562
        %v1568 = vmul.f32 %v1563, %v1563
        %v1569 = vmul.f32 %v1564, %v1564
        %v1570 = vmul.f32 %v1565, %v1565
        %v1571 = vadd.f32 %v1566, %v1567
        %v1572 = vadd.f32 %v1571, %v1568
        %v1573 = vadd.f32 %v1572, %v1569
        %v1574 = vadd.f32 %v1573, %v1570
        %v1575 = vrot.slane %v1574, 4
        %v1576 = vadd.f32 %v1574, %v1575
        %v1577 = vrot.slane %v1576, 2
        %v1578 = vadd.f32 %v1576, %v1577
        %v1579 = vrot.slane %v1578, 1
        %v1580 = vadd.f32 %v1578, %v1579
        %v1581 = vmul.f32 %v1580, %v427
        %v1582 = vadd.f32 %v1581, 1e-05
        %v1583 = vrsqrt.pop %v1582
        %v1584 = vmul.f32 %v1561, %v1583
        %v1585 = vmul.f32 %v1562, %v1583
        %v1586 = vmul.f32 %v1563, %v1583
        %v1587 = vmul.f32 %v1564, %v1583
        %v1588 = vmul.f32 %v1565, %v1583
        %v1589 = vmul.f32 %v1584, %v1493
        %v1590 = vmul.f32 %v1585, %v1498
        %v1591 = vmul.f32 %v1586, %v1503
        %v1592 = vmul.f32 %v1587, %v1508
        %v1593 = vmul.f32 %v1588, %v1513
        %v1594 = vadd.f32 %v1589, %v1523
        %v1595 = vadd.f32 %v1590, %v1528
        %v1596 = vadd.f32 %v1591, %v1533
        %v1597 = vadd.f32 %v1592, %v1538
        %v1598 = vadd.f32 %v1593, %v1543
        %v1599 = vstv %s1439
        %v1600 = vmul.f32 %v1545, %v1599
        %v1601 = vmul.f32 %v1546, %v1599
        %v1602 = vmul.f32 %v1547, %v1599
        %v1603 = vmul.f32 %v1548, %v1599
        %v1604 = vmul.f32 %v1549, %v1599
        %v1605 = vstv %s1440
        %v1606 = vmul.f32 %v1594, %v1605
        %v1607 = vmul.f32 %v1595, %v1605
        %v1608 = vmul.f32 %v1596, %v1605
        %v1609 = vmul.f32 %v1597, %v1605
        %v1610 = vmul.f32 %v1598, %v1605
        %v1611 = vadd.f32 %v1600, %v1606
        %v1612 = vadd.f32 %v1601, %v1607
        %v1613 = vadd.f32 %v1602, %v1608
        %v1614 = vadd.f32 %v1603, %v1609
        %v1615 = vadd.f32 %v1604, %v1610
        %v1616 = vstv %s1443
        %v1617 = vadd.f32 %v1611, %v1616
        %v1618 = vadd.f32 %v1612, %v1616
        %v1619 = vadd.f32 %v1613, %v1616
        %v1620 = vadd.f32 %v1614, %v1616
        %v1621 = vadd.f32 %v1615, %v1616
        %v1622 = vmul.f32 %v1617, 0.5
        %v1623 = vmul.f32 %v1618, 0.5
        %v1624 = vmul.f32 %v1619, 0.5
        %v1625 = vmul.f32 %v1620, 0.5
        %v1626 = vmul.f32 %v1621, 0.5
        %v1627 = vmul.f32 %v1617, 0.044715
        %v1628 = vmul.f32 %v1618, 0.044715
        %v1629 = vmul.f32 %v1619, 0.044715
        %v1630 = vmul.f32 %v1620, 0.044715
        %v1631 = vmul.f32 %v1621, 0.044715
        %v1632 = vmul.f32 %v1627, %v1617
        %v1633 = vmul.f32 %v1628, %v1618
        %v1634 = vmul.f32 %v1629, %v1619
        %v1635 = vmul.f32 %v1630, %v1620
        %v1636 = vmul.f32 %v1631, %v1621
        %v1637 = vmul.f32 %v1632, %v1617
        %v1638 = vmul.f32 %v1633, %v1618
        %v1639 = vmul.f32 %v1634, %v1619
        %v1640 = vmul.f32 %v1635, %v1620
        %v1641 = vmul.f32 %v1636, %v1621
        %v1642 = vadd.f32 %v1617, %v1637
        %v1643 = vadd.f32 %v1618, %v1638
        %v1644 = vadd.f32 %v1619, %v1639
        %v1645 = vadd.f32 %v1620, %v1640
        %v1646 = vadd.f32 %v1621, %v1641
        %v1647 = vmul.f32 %v1642, 0.7978846
        %v1648 = vmul.f32 %v1643, 0.7978846
        %v1649 = vmul.f32 %v1644, 0.7978846
        %v1650 = vmul.f32 %v1645, 0.7978846
        %v1651 = vmul.f32 %v1646, 0.7978846
        %v1652 = vtanh.pop %v1647
        %v1653 = vtanh.pop %v1648
        %v1654 = vtanh.pop %v1649
        %v1655 = vtanh.pop %v1650
        %v1656 = vtanh.pop %v1651
        %v1657 = vadd.f32 %v1652, 1.0
        %v1658 = vadd.f32 %v1653, 1.0
        %v1659 = vadd.f32 %v1654, 1.0
        %v1660 = vadd.f32 %v1655, 1.0
        %v1661 = vadd.f32 %v1656, 1.0
        %v1662 = vmul.f32 %v1622, %v1657
        %v1663 = vmul.f32 %v1623, %v1658
        %v1664 = vmul.f32 %v1624, %v1659
        %v1665 = vmul.f32 %v1625, %v1660
        %v1666 = vmul.f32 %v1626, %v1661
        %v1667 = vstv %s1441
        %v1668 = vmul.f32 %v1545, %v1667
        %v1669 = vmul.f32 %v1546, %v1667
        %v1670 = vmul.f32 %v1547, %v1667
        %v1671 = vmul.f32 %v1548, %v1667
        %v1672 = vmul.f32 %v1549, %v1667
        %v1673 = vstv %s1442
        %v1674 = vmul.f32 %v1594, %v1673
        %v1675 = vmul.f32 %v1595, %v1673
        %v1676 = vmul.f32 %v1596, %v1673
        %v1677 = vmul.f32 %v1597, %v1673
        %v1678 = vmul.f32 %v1598, %v1673
        %v1679 = vadd.f32 %v1668, %v1674
        %v1680 = vadd.f32 %v1669, %v1675
        %v1681 = vadd.f32 %v1670, %v1676
        %v1682 = vadd.f32 %v1671, %v1677
        %v1683 = vadd.f32 %v1672, %v1678
        %v1684 = vstv %s1444
        %v1685 = vadd.f32 %v1679, %v1684
        %v1686 = vadd.f32 %v1680, %v1684
        %v1687 = vadd.f32 %v1681, %v1684
        %v1688 = vadd.f32 %v1682, %v1684
        %v1689 = vadd.f32 %v1683, %v1684
        %v1690 = vmul.f32 %v1685, 0.5
        %v1691 = vmul.f32 %v1686, 0.5
        %v1692 = vmul.f32 %v1687, 0.5
        %v1693 = vmul.f32 %v1688, 0.5
        %v1694 = vmul.f32 %v1689, 0.5
        %v1695 = vmul.f32 %v1685, 0.044715
        %v1696 = vmul.f32 %v1686, 0.044715
        %v1697 = vmul.f32 %v1687, 0.044715
        %v1698 = vmul.f32 %v1688, 0.044715
        %v1699 = vmul.f32 %v1689, 0.044715
        %v1700 = vmul.f32 %v1695, %v1685
        %v1701 = vmul.f32 %v1696, %v1686
        %v1702 = vmul.f32 %v1697, %v1687
        %v1703 = vmul.f32 %v1698, %v1688
        %v1704 = vmul.f32 %v1699, %v1689
        %v1705 = vmul.f32 %v1700, %v1685
        %v1706 = vmul.f32 %v1701, %v1686
        %v1707 = vmul.f32 %v1702, %v1687
        %v1708 = vmul.f32 %v1703, %v1688
        %v1709 = vmul.f32 %v1704, %v1689
        %v1710 = vadd.f32 %v1685, %v1705
        %v1711 = vadd.f32 %v1686, %v1706
        %v1712 = vadd.f32 %v1687, %v1707
        %v1713 = vadd.f32 %v1688, %v1708
        %v1714 = vadd.f32 %v1689, %v1709
        %v1715 = vmul.f32 %v1710, 0.7978846
        %v1716 = vmul.f32 %v1711, 0.7978846
        %v1717 = vmul.f32 %v1712, 0.7978846
        %v1718 = vmul.f32 %v1713, 0.7978846
        %v1719 = vmul.f32 %v1714, 0.7978846
        %v1720 = vtanh.pop %v1715
        %v1721 = vtanh.pop %v1716
        %v1722 = vtanh.pop %v1717
        %v1723 = vtanh.pop %v1718
        %v1724 = vtanh.pop %v1719
        %v1725 = vadd.f32 %v1720, 1.0
        %v1726 = vadd.f32 %v1721, 1.0
        %v1727 = vadd.f32 %v1722, 1.0
        %v1728 = vadd.f32 %v1723, 1.0
        %v1729 = vadd.f32 %v1724, 1.0
        %v1730 = vmul.f32 %v1690, %v1725
        %v1731 = vmul.f32 %v1691, %v1726
        %v1732 = vmul.f32 %v1692, %v1727
        %v1733 = vmul.f32 %v1693, %v1728
        %v1734 = vmul.f32 %v1694, %v1729
        %v1735 = vstv %s1445
        %v1736 = vmul.f32 %v1662, %v1735
        %v1737 = vmul.f32 %v1663, %v1735
        %v1738 = vmul.f32 %v1664, %v1735
        %v1739 = vmul.f32 %v1665, %v1735
        %v1740 = vmul.f32 %v1666, %v1735
        %v1741 = vstv %s1446
        %v1742 = vmul.f32 %v1730, %v1741
        %v1743 = vmul.f32 %v1731, %v1741
        %v1744 = vmul.f32 %v1732, %v1741
        %v1745 = vmul.f32 %v1733, %v1741
        %v1746 = vmul.f32 %v1734, %v1741
        %v1747 = vadd.f32 %v1736, %v1742
        %v1748 = vadd.f32 %v1737, %v1743
        %v1749 = vadd.f32 %v1738, %v1744
        %v1750 = vadd.f32 %v1739, %v1745
        %v1751 = vadd.f32 %v1740, %v1746
        %v1752 = vadd.f32 %v1138, %v1747
        %v1753 = vadd.f32 %v1139, %v1748
        %v1754 = vadd.f32 %v1140, %v1749
        %v1755 = vadd.f32 %v1141, %v1750
        %v1756 = vadd.f32 %v1142, %v1751
        %v1757 = vstv %s1449
        %v1758 = vadd.f32 %v1752, %v1757
        %v1759 = vadd.f32 %v1753, %v1757
        %v1760 = vadd.f32 %v1754, %v1757
        %v1761 = vadd.f32 %v1755, %v1757
        %v1762 = vadd.f32 %v1756, %v1757
        %v1763 = vstv %s1447
        %v1764 = vmul.f32 %v1662, %v1763
        %v1765 = vmul.f32 %v1663, %v1763
        %v1766 = vmul.f32 %v1664, %v1763
        %v1767 = vmul.f32 %v1665, %v1763
        %v1768 = vmul.f32 %v1666, %v1763
        %v1769 = vstv %s1448
        %v1770 = vmul.f32 %v1730, %v1769
        %v1771 = vmul.f32 %v1731, %v1769
        %v1772 = vmul.f32 %v1732, %v1769
        %v1773 = vmul.f32 %v1733, %v1769
        %v1774 = vmul.f32 %v1734, %v1769
        %v1775 = vadd.f32 %v1764, %v1770
        %v1776 = vadd.f32 %v1765, %v1771
        %v1777 = vadd.f32 %v1766, %v1772
        %v1778 = vadd.f32 %v1767, %v1773
        %v1779 = vadd.f32 %v1768, %v1774
        %v1780 = vadd.f32 %v1422, %v1775
        %v1781 = vadd.f32 %v1423, %v1776
        %v1782 = vadd.f32 %v1424, %v1777
        %v1783 = vadd.f32 %v1425, %v1778
        %v1784 = vadd.f32 %v1426, %v1779
        %v1785 = vstv %s1450
        %v1786 = vadd.f32 %v1780, %v1785
        %v1787 = vadd.f32 %v1781, %v1785
        %v1788 = vadd.f32 %v1782, %v1785
        %v1789 = vadd.f32 %v1783, %v1785
        %v1790 = vadd.f32 %v1784, %v1785
        %s1791 = scalar_lea.vmem %s4, 40
        %v1792 = vld [vmem:[%s1791] sm:$0xff]
        %v1793 = vld [vmem:[%s1791 + $0x8] sm:$0xff]
        %v1794 = vld [vmem:[%s1791 + $0x10] sm:$0xff]
        %v1795 = vld [vmem:[%s1791 + $0x18] sm:$0xff]
        %v1796 = vld [vmem:[%s1791 + $0x20] sm:$0xff]
        %s1797 = scalar_lea.vmem %s5, 40
        %v1798 = vld [vmem:[%s1797] sm:$0xff]
        %v1799 = vld [vmem:[%s1797 + $0x8] sm:$0xff]
        %v1800 = vld [vmem:[%s1797 + $0x10] sm:$0xff]
        %v1801 = vld [vmem:[%s1797 + $0x18] sm:$0xff]
        %v1802 = vld [vmem:[%s1797 + $0x20] sm:$0xff]
        %s1803 = scalar_lea.vmem %s6, 40
        %v1804 = vld [vmem:[%s1803] sm:$0xff]
        %v1805 = vld [vmem:[%s1803 + $0x8] sm:$0xff]
        %v1806 = vld [vmem:[%s1803 + $0x10] sm:$0xff]
        %v1807 = vld [vmem:[%s1803 + $0x18] sm:$0xff]
        %v1808 = vld [vmem:[%s1803 + $0x20] sm:$0xff]
        %s1809 = scalar_lea.vmem %s7, 40
        %v1810 = vld [vmem:[%s1809] sm:$0xff]
        %v1811 = vld [vmem:[%s1809 + $0x8] sm:$0xff]
        %v1812 = vld [vmem:[%s1809 + $0x10] sm:$0xff]
        %v1813 = vld [vmem:[%s1809 + $0x18] sm:$0xff]
        %v1814 = vld [vmem:[%s1809 + $0x20] sm:$0xff]
        %v1815 = vadd.f32 %v1758, %v1759
        %v1816 = vadd.f32 %v1815, %v1760
        %v1817 = vadd.f32 %v1816, %v1761
        %v1818 = vadd.f32 %v1817, %v1762
        %v1819 = vrot.slane %v1818, 4
        %v1820 = vadd.f32 %v1818, %v1819
        %v1821 = vrot.slane %v1820, 2
        %v1822 = vadd.f32 %v1820, %v1821
        %v1823 = vrot.slane %v1822, 1
        %v1824 = vadd.f32 %v1822, %v1823
        %v1825 = vmul.f32 %v1824, %v427
        %v1826 = vsub.f32 %v1758, %v1825
        %v1827 = vsub.f32 %v1759, %v1825
        %v1828 = vsub.f32 %v1760, %v1825
        %v1829 = vsub.f32 %v1761, %v1825
        %v1830 = vsub.f32 %v1762, %v1825
        %v1831 = vmul.f32 %v1826, %v1826
        %v1832 = vmul.f32 %v1827, %v1827
        %v1833 = vmul.f32 %v1828, %v1828
        %v1834 = vmul.f32 %v1829, %v1829
        %v1835 = vmul.f32 %v1830, %v1830
        %v1836 = vadd.f32 %v1831, %v1832
        %v1837 = vadd.f32 %v1836, %v1833
        %v1838 = vadd.f32 %v1837, %v1834
        %v1839 = vadd.f32 %v1838, %v1835
        %v1840 = vrot.slane %v1839, 4
        %v1841 = vadd.f32 %v1839, %v1840
        %v1842 = vrot.slane %v1841, 2
        %v1843 = vadd.f32 %v1841, %v1842
        %v1844 = vrot.slane %v1843, 1
        %v1845 = vadd.f32 %v1843, %v1844
        %v1846 = vmul.f32 %v1845, %v427
        %v1847 = vadd.f32 %v1846, 1e-05
        %v1848 = vrsqrt.pop %v1847
        %v1849 = vmul.f32 %v1826, %v1848
        %v1850 = vmul.f32 %v1827, %v1848
        %v1851 = vmul.f32 %v1828, %v1848
        %v1852 = vmul.f32 %v1829, %v1848
        %v1853 = vmul.f32 %v1830, %v1848
        %v1854 = vmul.f32 %v1849, %v1493
        %v1855 = vmul.f32 %v1850, %v1498
        %v1856 = vmul.f32 %v1851, %v1503
        %v1857 = vmul.f32 %v1852, %v1508
        %v1858 = vmul.f32 %v1853, %v1513
        %v1859 = vadd.f32 %v1854, %v1523
        %v1860 = vadd.f32 %v1855, %v1528
        %v1861 = vadd.f32 %v1856, %v1533
        %v1862 = vadd.f32 %v1857, %v1538
        %v1863 = vadd.f32 %v1858, %v1543
        %1865 = vset.pattern.permute.xlu0 0
        %1866 = vperm.xlu0 %1865, %v1798
        %v1867 = vpop.permute.xlu0 %1866
        %1870 = vset.pattern.permute.xlu0 0
        %1871 = vperm.xlu0 %1870, %v1799
        %v1872 = vpop.permute.xlu0 %1871
        %1875 = vset.pattern.permute.xlu0 0
        %1876 = vperm.xlu0 %1875, %v1800
        %v1877 = vpop.permute.xlu0 %1876
        %1880 = vset.pattern.permute.xlu0 0
        %1881 = vperm.xlu0 %1880, %v1801
        %v1882 = vpop.permute.xlu0 %1881
        %1885 = vset.pattern.permute.xlu0 0
        %1886 = vperm.xlu0 %1885, %v1802
        %v1887 = vpop.permute.xlu0 %1886
        %v1890 = vsel %vm852, %v1792, 0
        %v1893 = vsel %vm852, %v1793, 0
        %v1896 = vsel %vm852, %v1794, 0
        %v1899 = vsel %vm852, %v1795, 0
        %v1902 = vsel %vm852, %v1796, 0
        %1904 = vmatprep.subr.mxu0 0.0
        %1905 = vmatpush1.msra.mxu0 %v1859
        %1906 = vmatprep.subr.mxu0 0.0
        %1907 = vmatpush1.msra.mxu0 %v1860
        %1908 = vmatprep.subr.mxu0 0.0
        %1909 = vmatpush1.msra.mxu0 %v1861
        %1910 = vmatprep.subr.mxu0 0.0
        %1911 = vmatpush1.msra.mxu0 %v1862
        %1912 = vmatprep.subr.mxu0 0.0
        %1913 = vmatpush1.msra.mxu0 %v1863
        %1914 = vmatprep.subr.mxu0 0.0
        %1915 = vmatpush1.msra.mxu0 0.0
        %1916 = vmatprep.subr.mxu0 0.0
        %1917 = vmatpush1.msra.mxu0 0.0
        %1918 = vmatprep.subr.mxu0 0.0
        %1919 = vmatpush1.msra.mxu0 0.0
        %1920 = vmatprep.subr.mxu0 0.0
        %1921 = vmatpush1.msra.mxu0 0.0
        %1922 = vmatprep.subr.mxu0 0.0
        %1923 = vmatpush1.msra.mxu0 0.0
        %1924 = vmatprep.subr.mxu0 0.0
        %1925 = vmatpush1.msra.mxu0 0.0
        %1926 = vmatprep.subr.mxu0 0.0
        %1927 = vmatpush1.msra.mxu0 0.0
        %1928 = vmatprep.subr.mxu0 0.0
        %1929 = vmatpush1.msra.mxu0 0.0
        %1930 = vmatprep.subr.mxu0 0.0
        %1931 = vmatpush1.msra.mxu0 0.0
        %1932 = vmatprep.subr.mxu0 0.0
        %1933 = vmatpush1.msra.mxu0 0.0
        %1934 = vmatprep.subr.mxu0 0.0
        %1935 = vmatpush1.msra.mxu0 0.0
        %1936 = vmatprep.subr.mxu0 0.0
        %1937 = vmatpush1.msra.mxu0 0.0
        %1938 = vmatprep.subr.mxu0 0.0
        %1939 = vmatpush1.msra.mxu0 0.0
        %1940 = vmatprep.subr.mxu0 0.0
        %1941 = vmatpush1.msra.mxu0 0.0
        %1942 = vmatprep.subr.mxu0 0.0
        %1943 = vmatpush1.msra.mxu0 0.0
        %1944 = vmatprep.subr.mxu0 0.0
        %1945 = vmatpush1.msra.mxu0 0.0
        %1946 = vmatprep.subr.mxu0 0.0
        %1947 = vmatpush1.msra.mxu0 0.0
        %1948 = vmatprep.subr.mxu0 0.0
        %1949 = vmatpush1.msra.mxu0 0.0
        %1950 = vmatprep.subr.mxu0 0.0
        %1951 = vmatpush1.msra.mxu0 0.0
        %1952 = vmatprep.subr.mxu0 0.0
        %1953 = vmatpush1.msra.mxu0 0.0
        %1954 = vmatprep.subr.mxu0 0.0
        %1955 = vmatpush1.msra.mxu0 0.0
        %1956 = vmatprep.subr.mxu0 0.0
        %1957 = vmatpush1.msra.mxu0 0.0
        %1958 = vmatprep.subr.mxu0 0.0
        %1959 = vmatpush1.msra.mxu0 0.0
        %1960 = vmatprep.subr.mxu0 0.0
        %1961 = vmatpush1.msra.mxu0 0.0
        %1962 = vmatprep.subr.mxu0 0.0
        %1963 = vmatpush1.msra.mxu0 0.0
        %1964 = vmatprep.subr.mxu0 0.0
        %1965 = vmatpush1.msra.mxu0 0.0
        %1966 = vmatprep.subr.mxu0 0.0
        %1967 = vmatpush1.msra.mxu0 0.0
        %1968 = vmatprep.mubr.f32.mxu0 0.0
        %1969 = vmatmul.mubr.f32.gmra.mrb[0].mxu0 %v1890
        %v1970 = vpop.f32.mrb[0].mxu0
        %v1971 = vadd.f32 %v1867, %v1970
        %v1972 = vpop.f32.mrb[0].mxu0
        %1973 = vmatprep.mubr.f32.mxu0 0.0
        %1974 = vmatmul.mubr.f32.gmra.mrb[0].mxu0 %v1893
        %v1975 = vpop.f32.mrb[0].mxu0
        %v1976 = vadd.f32 %v1872, %v1975
        %v1977 = vpop.f32.mrb[0].mxu0
        %1978 = vmatprep.mubr.f32.mxu0 0.0
        %1979 = vmatmul.mubr.f32.gmra.mrb[0].mxu0 %v1896
        %v1980 = vpop.f32.mrb[0].mxu0
        %v1981 = vadd.f32 %v1877, %v1980
        %v1982 = vpop.f32.mrb[0].mxu0
        %1983 = vmatprep.mubr.f32.mxu0 0.0
        %1984 = vmatmul.mubr.f32.gmra.mrb[0].mxu0 %v1899
        %v1985 = vpop.f32.mrb[0].mxu0
        %v1986 = vadd.f32 %v1882, %v1985
        %v1987 = vpop.f32.mrb[0].mxu0
        %1988 = vmatprep.mubr.f32.mxu0 0.0
        %1989 = vmatmul.mubr.f32.gmra.mrb[0].mxu0 %v1902
        %v1990 = vpop.f32.mrb[0].mxu0
        %v1991 = vadd.f32 %v1887, %v1990
        %v1992 = vpop.f32.mrb[0].mxu0
        %1993 = vdwg.mxu0
        %v1994 = vmul.f32 %v1971, 0.5
        %v1995 = vmul.f32 %v1976, 0.5
        %v1996 = vmul.f32 %v1981, 0.5
        %v1997 = vmul.f32 %v1986, 0.5
        %v1998 = vmul.f32 %v1991, 0.5
        %v1999 = vmul.f32 %v1971, 0.044715
        %v2000 = vmul.f32 %v1976, 0.044715
        %v2001 = vmul.f32 %v1981, 0.044715
        %v2002 = vmul.f32 %v1986, 0.044715
        %v2003 = vmul.f32 %v1991, 0.044715
        %v2004 = vmul.f32 %v1999, %v1971
        %v2005 = vmul.f32 %v2000, %v1976
        %v2006 = vmul.f32 %v2001, %v1981
        %v2007 = vmul.f32 %v2002, %v1986
        %v2008 = vmul.f32 %v2003, %v1991
        %v2009 = vmul.f32 %v2004, %v1971
        %v2010 = vmul.f32 %v2005, %v1976
        %v2011 = vmul.f32 %v2006, %v1981
        %v2012 = vmul.f32 %v2007, %v1986
        %v2013 = vmul.f32 %v2008, %v1991
        %v2014 = vadd.f32 %v1971, %v2009
        %v2015 = vadd.f32 %v1976, %v2010
        %v2016 = vadd.f32 %v1981, %v2011
        %v2017 = vadd.f32 %v1986, %v2012
        %v2018 = vadd.f32 %v1991, %v2013
        %v2019 = vmul.f32 %v2014, 0.7978846
        %v2020 = vmul.f32 %v2015, 0.7978846
        %v2021 = vmul.f32 %v2016, 0.7978846
        %v2022 = vmul.f32 %v2017, 0.7978846
        %v2023 = vmul.f32 %v2018, 0.7978846
        %v2024 = vtanh.pop %v2019
        %v2025 = vtanh.pop %v2020
        %v2026 = vtanh.pop %v2021
        %v2027 = vtanh.pop %v2022
        %v2028 = vtanh.pop %v2023
        %v2029 = vadd.f32 %v2024, 1.0
        %v2030 = vadd.f32 %v2025, 1.0
        %v2031 = vadd.f32 %v2026, 1.0
        %v2032 = vadd.f32 %v2027, 1.0
        %v2033 = vadd.f32 %v2028, 1.0
        %v2034 = vmul.f32 %v1994, %v2029
        %v2035 = vmul.f32 %v1995, %v2030
        %v2036 = vmul.f32 %v1996, %v2031
        %v2037 = vmul.f32 %v1997, %v2032
        %v2038 = vmul.f32 %v1998, %v2033
        %v2040 = vsel %vm852, %v1804, 0
        %v2043 = vsel %vm852, %v1805, 0
        %v2046 = vsel %vm852, %v1806, 0
        %v2049 = vsel %vm852, %v1807, 0
        %v2052 = vsel %vm852, %v1808, 0
        %2054 = vmatprep.subr.mxu0 0.0
        %2055 = vmatpush1.msra.mxu0 %v2034
        %2056 = vmatprep.subr.mxu0 0.0
        %2057 = vmatpush1.msra.mxu0 %v2035
        %2058 = vmatprep.subr.mxu0 0.0
        %2059 = vmatpush1.msra.mxu0 %v2036
        %2060 = vmatprep.subr.mxu0 0.0
        %2061 = vmatpush1.msra.mxu0 %v2037
        %2062 = vmatprep.subr.mxu0 0.0
        %2063 = vmatpush1.msra.mxu0 %v2038
        %2064 = vmatprep.subr.mxu0 0.0
        %2065 = vmatpush1.msra.mxu0 0.0
        %2066 = vmatprep.subr.mxu0 0.0
        %2067 = vmatpush1.msra.mxu0 0.0
        %2068 = vmatprep.subr.mxu0 0.0
        %2069 = vmatpush1.msra.mxu0 0.0
        %2070 = vmatprep.subr.mxu0 0.0
        %2071 = vmatpush1.msra.mxu0 0.0
        %2072 = vmatprep.subr.mxu0 0.0
        %2073 = vmatpush1.msra.mxu0 0.0
        %2074 = vmatprep.subr.mxu0 0.0
        %2075 = vmatpush1.msra.mxu0 0.0
        %2076 = vmatprep.subr.mxu0 0.0
        %2077 = vmatpush1.msra.mxu0 0.0
        %2078 = vmatprep.subr.mxu0 0.0
        %2079 = vmatpush1.msra.mxu0 0.0
        %2080 = vmatprep.subr.mxu0 0.0
        %2081 = vmatpush1.msra.mxu0 0.0
        %2082 = vmatprep.subr.mxu0 0.0
        %2083 = vmatpush1.msra.mxu0 0.0
        %2084 = vmatprep.subr.mxu0 0.0
        %2085 = vmatpush1.msra.mxu0 0.0
        %2086 = vmatprep.subr.mxu0 0.0
        %2087 = vmatpush1.msra.mxu0 0.0
        %2088 = vmatprep.subr.mxu0 0.0
        %2089 = vmatpush1.msra.mxu0 0.0
        %2090 = vmatprep.subr.mxu0 0.0
        %2091 = vmatpush1.msra.mxu0 0.0
        %2092 = vmatprep.subr.mxu0 0.0
        %2093 = vmatpush1.msra.mxu0 0.0
        %2094 = vmatprep.subr.mxu0 0.0
        %2095 = vmatpush1.msra.mxu0 0.0
        %2096 = vmatprep.subr.mxu0 0.0
        %2097 = vmatpush1.msra.mxu0 0.0
        %2098 = vmatprep.subr.mxu0 0.0
        %2099 = vmatpush1.msra.mxu0 0.0
        %2100 = vmatprep.subr.mxu0 0.0
        %2101 = vmatpush1.msra.mxu0 0.0
        %2102 = vmatprep.subr.mxu0 0.0
        %2103 = vmatpush1.msra.mxu0 0.0
        %2104 = vmatprep.subr.mxu0 0.0
        %2105 = vmatpush1.msra.mxu0 0.0
        %2106 = vmatprep.subr.mxu0 0.0
        %2107 = vmatpush1.msra.mxu0 0.0
        %2108 = vmatprep.subr.mxu0 0.0
        %2109 = vmatpush1.msra.mxu0 0.0
        %2110 = vmatprep.subr.mxu0 0.0
        %2111 = vmatpush1.msra.mxu0 0.0
        %2112 = vmatprep.subr.mxu0 0.0
        %2113 = vmatpush1.msra.mxu0 0.0
        %2114 = vmatprep.subr.mxu0 0.0
        %2115 = vmatpush1.msra.mxu0 0.0
        %2116 = vmatprep.subr.mxu0 0.0
        %2117 = vmatpush1.msra.mxu0 0.0
        %2118 = vmatprep.mubr.f32.mxu0 0.0
        %2119 = vmatmul.mubr.f32.gmra.mrb[0].mxu0 %v2040
        %v2120 = vpop.f32.mrb[0].mxu0
        %v2121 = vadd.f32 0.0, %v2120
        %v2122 = vpop.f32.mrb[0].mxu0
        %2123 = vmatprep.mubr.f32.mxu0 0.0
        %2124 = vmatmul.mubr.f32.gmra.mrb[0].mxu0 %v2043
        %v2125 = vpop.f32.mrb[0].mxu0
        %v2126 = vadd.f32 0.0, %v2125
        %v2127 = vpop.f32.mrb[0].mxu0
        %2128 = vmatprep.mubr.f32.mxu0 0.0
        %2129 = vmatmul.mubr.f32.gmra.mrb[0].mxu0 %v2046
        %v2130 = vpop.f32.mrb[0].mxu0
        %v2131 = vadd.f32 0.0, %v2130
        %v2132 = vpop.f32.mrb[0].mxu0
        %2133 = vmatprep.mubr.f32.mxu0 0.0
        %2134 = vmatmul.mubr.f32.gmra.mrb[0].mxu0 %v2049
        %v2135 = vpop.f32.mrb[0].mxu0
        %v2136 = vadd.f32 0.0, %v2135
        %v2137 = vpop.f32.mrb[0].mxu0
        %2138 = vmatprep.mubr.f32.mxu0 0.0
        %2139 = vmatmul.mubr.f32.gmra.mrb[0].mxu0 %v2052
        %v2140 = vpop.f32.mrb[0].mxu0
        %v2141 = vadd.f32 0.0, %v2140
        %v2142 = vpop.f32.mrb[0].mxu0
        %2143 = vdwg.mxu0
        %v2144 = vadd.f32 %v1758, %v2121
        %v2145 = vadd.f32 %v1759, %v2126
        %v2146 = vadd.f32 %v1760, %v2131
        %v2147 = vadd.f32 %v1761, %v2136
        %v2148 = vadd.f32 %v1762, %v2141
        %2150 = vset.pattern.permute.xlu0 0
        %2151 = vperm.xlu0 %2150, %v1810
        %v2152 = vpop.permute.xlu0 %2151
        %2155 = vset.pattern.permute.xlu0 0
        %2156 = vperm.xlu0 %2155, %v1811
        %v2157 = vpop.permute.xlu0 %2156
        %2160 = vset.pattern.permute.xlu0 0
        %2161 = vperm.xlu0 %2160, %v1812
        %v2162 = vpop.permute.xlu0 %2161
        %2165 = vset.pattern.permute.xlu0 0
        %2166 = vperm.xlu0 %2165, %v1813
        %v2167 = vpop.permute.xlu0 %2166
        %2170 = vset.pattern.permute.xlu0 0
        %2171 = vperm.xlu0 %2170, %v1814
        %v2172 = vpop.permute.xlu0 %2171
        %v2174 = vadd.f32 %v2144, %v2152
        %v2175 = vadd.f32 %v2145, %v2157
        %v2176 = vadd.f32 %v2146, %v2162
        %v2177 = vadd.f32 %v2147, %v2167
        %v2178 = vadd.f32 %v2148, %v2172
        %v2179 = vadd.f32 %v1786, %v1787
        %v2180 = vadd.f32 %v2179, %v1788
        %v2181 = vadd.f32 %v2180, %v1789
        %v2182 = vadd.f32 %v2181, %v1790
        %v2183 = vrot.slane %v2182, 4
        %v2184 = vadd.f32 %v2182, %v2183
        %v2185 = vrot.slane %v2184, 2
        %v2186 = vadd.f32 %v2184, %v2185
        %v2187 = vrot.slane %v2186, 1
        %v2188 = vadd.f32 %v2186, %v2187
        %v2189 = vmul.f32 %v2188, %v427
        %v2190 = vsub.f32 %v1786, %v2189
        %v2191 = vsub.f32 %v1787, %v2189
        %v2192 = vsub.f32 %v1788, %v2189
        %v2193 = vsub.f32 %v1789, %v2189
        %v2194 = vsub.f32 %v1790, %v2189
        %v2195 = vmul.f32 %v2190, %v2190
        %v2196 = vmul.f32 %v2191, %v2191
        %v2197 = vmul.f32 %v2192, %v2192
        %v2198 = vmul.f32 %v2193, %v2193
        %v2199 = vmul.f32 %v2194, %v2194
        %v2200 = vadd.f32 %v2195, %v2196
        %v2201 = vadd.f32 %v2200, %v2197
        %v2202 = vadd.f32 %v2201, %v2198
        %v2203 = vadd.f32 %v2202, %v2199
        %v2204 = vrot.slane %v2203, 4
        %v2205 = vadd.f32 %v2203, %v2204
        %v2206 = vrot.slane %v2205, 2
        %v2207 = vadd.f32 %v2205, %v2206
        %v2208 = vrot.slane %v2207, 1
        %v2209 = vadd.f32 %v2207, %v2208
        %v2210 = vmul.f32 %v2209, %v427
        %v2211 = vadd.f32 %v2210, 1e-05
        %v2212 = vrsqrt.pop %v2211
        %v2213 = vmul.f32 %v2190, %v2212
        %v2214 = vmul.f32 %v2191, %v2212
        %v2215 = vmul.f32 %v2192, %v2212
        %v2216 = vmul.f32 %v2193, %v2212
        %v2217 = vmul.f32 %v2194, %v2212
        %v2218 = vmul.f32 %v2213, %v1493
        %v2219 = vmul.f32 %v2214, %v1498
        %v2220 = vmul.f32 %v2215, %v1503
        %v2221 = vmul.f32 %v2216, %v1508
        %v2222 = vmul.f32 %v2217, %v1513
        %v2223 = vadd.f32 %v2218, %v1523
        %v2224 = vadd.f32 %v2219, %v1528
        %v2225 = vadd.f32 %v2220, %v1533
        %v2226 = vadd.f32 %v2221, %v1538
        %v2227 = vadd.f32 %v2222, %v1543
        %2228 = vmatprep.subr.mxu0 0.0
        %2229 = vmatpush1.msra.mxu0 %v2223
        %2230 = vmatprep.subr.mxu0 0.0
        %2231 = vmatpush1.msra.mxu0 %v2224
        %2232 = vmatprep.subr.mxu0 0.0
        %2233 = vmatpush1.msra.mxu0 %v2225
        %2234 = vmatprep.subr.mxu0 0.0
        %2235 = vmatpush1.msra.mxu0 %v2226
        %2236 = vmatprep.subr.mxu0 0.0
        %2237 = vmatpush1.msra.mxu0 %v2227
        %2238 = vmatprep.subr.mxu0 0.0
        %2239 = vmatpush1.msra.mxu0 0.0
        %2240 = vmatprep.subr.mxu0 0.0
        %2241 = vmatpush1.msra.mxu0 0.0
        %2242 = vmatprep.subr.mxu0 0.0
        %2243 = vmatpush1.msra.mxu0 0.0
        %2244 = vmatprep.subr.mxu0 0.0
        %2245 = vmatpush1.msra.mxu0 0.0
        %2246 = vmatprep.subr.mxu0 0.0
        %2247 = vmatpush1.msra.mxu0 0.0
        %2248 = vmatprep.subr.mxu0 0.0
        %2249 = vmatpush1.msra.mxu0 0.0
        %2250 = vmatprep.subr.mxu0 0.0
        %2251 = vmatpush1.msra.mxu0 0.0
        %2252 = vmatprep.subr.mxu0 0.0
        %2253 = vmatpush1.msra.mxu0 0.0
        %2254 = vmatprep.subr.mxu0 0.0
        %2255 = vmatpush1.msra.mxu0 0.0
        %2256 = vmatprep.subr.mxu0 0.0
        %2257 = vmatpush1.msra.mxu0 0.0
        %2258 = vmatprep.subr.mxu0 0.0
        %2259 = vmatpush1.msra.mxu0 0.0
        %2260 = vmatprep.subr.mxu0 0.0
        %2261 = vmatpush1.msra.mxu0 0.0
        %2262 = vmatprep.subr.mxu0 0.0
        %2263 = vmatpush1.msra.mxu0 0.0
        %2264 = vmatprep.subr.mxu0 0.0
        %2265 = vmatpush1.msra.mxu0 0.0
        %2266 = vmatprep.subr.mxu0 0.0
        %2267 = vmatpush1.msra.mxu0 0.0
        %2268 = vmatprep.subr.mxu0 0.0
        %2269 = vmatpush1.msra.mxu0 0.0
        %2270 = vmatprep.subr.mxu0 0.0
        %2271 = vmatpush1.msra.mxu0 0.0
        %2272 = vmatprep.subr.mxu0 0.0
        %2273 = vmatpush1.msra.mxu0 0.0
        %2274 = vmatprep.subr.mxu0 0.0
        %2275 = vmatpush1.msra.mxu0 0.0
        %2276 = vmatprep.subr.mxu0 0.0
        %2277 = vmatpush1.msra.mxu0 0.0
        %2278 = vmatprep.subr.mxu0 0.0
        %2279 = vmatpush1.msra.mxu0 0.0
        %2280 = vmatprep.subr.mxu0 0.0
        %2281 = vmatpush1.msra.mxu0 0.0
        %2282 = vmatprep.subr.mxu0 0.0
        %2283 = vmatpush1.msra.mxu0 0.0
        %2284 = vmatprep.subr.mxu0 0.0
        %2285 = vmatpush1.msra.mxu0 0.0
        %2286 = vmatprep.subr.mxu0 0.0
        %2287 = vmatpush1.msra.mxu0 0.0
        %2288 = vmatprep.subr.mxu0 0.0
        %2289 = vmatpush1.msra.mxu0 0.0
        %2290 = vmatprep.subr.mxu0 0.0
        %2291 = vmatpush1.msra.mxu0 0.0
        %2292 = vmatprep.mubr.f32.mxu0 0.0
        %2293 = vmatmul.mubr.f32.gmra.mrb[0].mxu0 %v1890
        %v2294 = vpop.f32.mrb[0].mxu0
        %v2295 = vadd.f32 %v1867, %v2294
        %v2296 = vpop.f32.mrb[0].mxu0
        %2297 = vmatprep.mubr.f32.mxu0 0.0
        %2298 = vmatmul.mubr.f32.gmra.mrb[0].mxu0 %v1893
        %v2299 = vpop.f32.mrb[0].mxu0
        %v2300 = vadd.f32 %v1872, %v2299
        %v2301 = vpop.f32.mrb[0].mxu0
        %2302 = vmatprep.mubr.f32.mxu0 0.0
        %2303 = vmatmul.mubr.f32.gmra.mrb[0].mxu0 %v1896
        %v2304 = vpop.f32.mrb[0].mxu0
        %v2305 = vadd.f32 %v1877, %v2304
        %v2306 = vpop.f32.mrb[0].mxu0
        %2307 = vmatprep.mubr.f32.mxu0 0.0
        %2308 = vmatmul.mubr.f32.gmra.mrb[0].mxu0 %v1899
        %v2309 = vpop.f32.mrb[0].mxu0
        %v2310 = vadd.f32 %v1882, %v2309
        %v2311 = vpop.f32.mrb[0].mxu0
        %2312 = vmatprep.mubr.f32.mxu0 0.0
        %2313 = vmatmul.mubr.f32.gmra.mrb[0].mxu0 %v1902
        %v2314 = vpop.f32.mrb[0].mxu0
        %v2315 = vadd.f32 %v1887, %v2314
        %v2316 = vpop.f32.mrb[0].mxu0
        %2317 = vdwg.mxu0
        %v2318 = vmul.f32 %v2295, 0.5
        %v2319 = vmul.f32 %v2300, 0.5
        %v2320 = vmul.f32 %v2305, 0.5
        %v2321 = vmul.f32 %v2310, 0.5
        %v2322 = vmul.f32 %v2315, 0.5
        %v2323 = vmul.f32 %v2295, 0.044715
        %v2324 = vmul.f32 %v2300, 0.044715
        %v2325 = vmul.f32 %v2305, 0.044715
        %v2326 = vmul.f32 %v2310, 0.044715
        %v2327 = vmul.f32 %v2315, 0.044715
        %v2328 = vmul.f32 %v2323, %v2295
        %v2329 = vmul.f32 %v2324, %v2300
        %v2330 = vmul.f32 %v2325, %v2305
        %v2331 = vmul.f32 %v2326, %v2310
        %v2332 = vmul.f32 %v2327, %v2315
        %v2333 = vmul.f32 %v2328, %v2295
        %v2334 = vmul.f32 %v2329, %v2300
        %v2335 = vmul.f32 %v2330, %v2305
        %v2336 = vmul.f32 %v2331, %v2310
        %v2337 = vmul.f32 %v2332, %v2315
        %v2338 = vadd.f32 %v2295, %v2333
        %v2339 = vadd.f32 %v2300, %v2334
        %v2340 = vadd.f32 %v2305, %v2335
        %v2341 = vadd.f32 %v2310, %v2336
        %v2342 = vadd.f32 %v2315, %v2337
        %v2343 = vmul.f32 %v2338, 0.7978846
        %v2344 = vmul.f32 %v2339, 0.7978846
        %v2345 = vmul.f32 %v2340, 0.7978846
        %v2346 = vmul.f32 %v2341, 0.7978846
        %v2347 = vmul.f32 %v2342, 0.7978846
        %v2348 = vtanh.pop %v2343
        %v2349 = vtanh.pop %v2344
        %v2350 = vtanh.pop %v2345
        %v2351 = vtanh.pop %v2346
        %v2352 = vtanh.pop %v2347
        %v2353 = vadd.f32 %v2348, 1.0
        %v2354 = vadd.f32 %v2349, 1.0
        %v2355 = vadd.f32 %v2350, 1.0
        %v2356 = vadd.f32 %v2351, 1.0
        %v2357 = vadd.f32 %v2352, 1.0
        %v2358 = vmul.f32 %v2318, %v2353
        %v2359 = vmul.f32 %v2319, %v2354
        %v2360 = vmul.f32 %v2320, %v2355
        %v2361 = vmul.f32 %v2321, %v2356
        %v2362 = vmul.f32 %v2322, %v2357
        %2363 = vmatprep.subr.mxu0 0.0
        %2364 = vmatpush1.msra.mxu0 %v2358
        %2365 = vmatprep.subr.mxu0 0.0
        %2366 = vmatpush1.msra.mxu0 %v2359
        %2367 = vmatprep.subr.mxu0 0.0
        %2368 = vmatpush1.msra.mxu0 %v2360
        %2369 = vmatprep.subr.mxu0 0.0
        %2370 = vmatpush1.msra.mxu0 %v2361
        %2371 = vmatprep.subr.mxu0 0.0
        %2372 = vmatpush1.msra.mxu0 %v2362
        %2373 = vmatprep.subr.mxu0 0.0
        %2374 = vmatpush1.msra.mxu0 0.0
        %2375 = vmatprep.subr.mxu0 0.0
        %2376 = vmatpush1.msra.mxu0 0.0
        %2377 = vmatprep.subr.mxu0 0.0
        %2378 = vmatpush1.msra.mxu0 0.0
        %2379 = vmatprep.subr.mxu0 0.0
        %2380 = vmatpush1.msra.mxu0 0.0
        %2381 = vmatprep.subr.mxu0 0.0
        %2382 = vmatpush1.msra.mxu0 0.0
        %2383 = vmatprep.subr.mxu0 0.0
        %2384 = vmatpush1.msra.mxu0 0.0
        %2385 = vmatprep.subr.mxu0 0.0
        %2386 = vmatpush1.msra.mxu0 0.0
        %2387 = vmatprep.subr.mxu0 0.0
        %2388 = vmatpush1.msra.mxu0 0.0
        %2389 = vmatprep.subr.mxu0 0.0
        %2390 = vmatpush1.msra.mxu0 0.0
        %2391 = vmatprep.subr.mxu0 0.0
        %2392 = vmatpush1.msra.mxu0 0.0
        %2393 = vmatprep.subr.mxu0 0.0
        %2394 = vmatpush1.msra.mxu0 0.0
        %2395 = vmatprep.subr.mxu0 0.0
        %2396 = vmatpush1.msra.mxu0 0.0
        %2397 = vmatprep.subr.mxu0 0.0
        %2398 = vmatpush1.msra.mxu0 0.0
        %2399 = vmatprep.subr.mxu0 0.0
        %2400 = vmatpush1.msra.mxu0 0.0
        %2401 = vmatprep.subr.mxu0 0.0
        %2402 = vmatpush1.msra.mxu0 0.0
        %2403 = vmatprep.subr.mxu0 0.0
        %2404 = vmatpush1.msra.mxu0 0.0
        %2405 = vmatprep.subr.mxu0 0.0
        %2406 = vmatpush1.msra.mxu0 0.0
        %2407 = vmatprep.subr.mxu0 0.0
        %2408 = vmatpush1.msra.mxu0 0.0
        %2409 = vmatprep.subr.mxu0 0.0
        %2410 = vmatpush1.msra.mxu0 0.0
        %2411 = vmatprep.subr.mxu0 0.0
        %2412 = vmatpush1.msra.mxu0 0.0
        %2413 = vmatprep.subr.mxu0 0.0
        %2414 = vmatpush1.msra.mxu0 0.0
        %2415 = vmatprep.subr.mxu0 0.0
        %2416 = vmatpush1.msra.mxu0 0.0
        %2417 = vmatprep.subr.mxu0 0.0
        %2418 = vmatpush1.msra.mxu0 0.0
        %2419 = vmatprep.subr.mxu0 0.0
        %2420 = vmatpush1.msra.mxu0 0.0
        %2421 = vmatprep.subr.mxu0 0.0
        %2422 = vmatpush1.msra.mxu0 0.0
        %2423 = vmatprep.subr.mxu0 0.0
        %2424 = vmatpush1.msra.mxu0 0.0
        %2425 = vmatprep.subr.mxu0 0.0
        %2426 = vmatpush1.msra.mxu0 0.0
        %2427 = vmatprep.mubr.f32.mxu0 0.0
        %2428 = vmatmul.mubr.f32.gmra.mrb[0].mxu0 %v2040
        %v2429 = vpop.f32.mrb[0].mxu0
        %v2430 = vadd.f32 0.0, %v2429
        %v2431 = vpop.f32.mrb[0].mxu0
        %2432 = vmatprep.mubr.f32.mxu0 0.0
        %2433 = vmatmul.mubr.f32.gmra.mrb[0].mxu0 %v2043
        %v2434 = vpop.f32.mrb[0].mxu0
        %v2435 = vadd.f32 0.0, %v2434
        %v2436 = vpop.f32.mrb[0].mxu0
        %2437 = vmatprep.mubr.f32.mxu0 0.0
        %2438 = vmatmul.mubr.f32.gmra.mrb[0].mxu0 %v2046
        %v2439 = vpop.f32.mrb[0].mxu0
        %v2440 = vadd.f32 0.0, %v2439
        %v2441 = vpop.f32.mrb[0].mxu0
        %2442 = vmatprep.mubr.f32.mxu0 0.0
        %2443 = vmatmul.mubr.f32.gmra.mrb[0].mxu0 %v2049
        %v2444 = vpop.f32.mrb[0].mxu0
        %v2445 = vadd.f32 0.0, %v2444
        %v2446 = vpop.f32.mrb[0].mxu0
        %2447 = vmatprep.mubr.f32.mxu0 0.0
        %2448 = vmatmul.mubr.f32.gmra.mrb[0].mxu0 %v2052
        %v2449 = vpop.f32.mrb[0].mxu0
        %v2450 = vadd.f32 0.0, %v2449
        %v2451 = vpop.f32.mrb[0].mxu0
        %2452 = vdwg.mxu0
        %v2453 = vadd.f32 %v1786, %v2430
        %v2454 = vadd.f32 %v1787, %v2435
        %v2455 = vadd.f32 %v1788, %v2440
        %v2456 = vadd.f32 %v1789, %v2445
        %v2457 = vadd.f32 %v1790, %v2450
        %v2458 = vadd.f32 %v2453, %v2152
        %v2459 = vadd.f32 %v2454, %v2157
        %v2460 = vadd.f32 %v2455, %v2162
        %v2461 = vadd.f32 %v2456, %v2167
        %v2462 = vadd.f32 %v2457, %v2172
        %s2463 = scalar_lea.vmem %s2, 80
        %v2464 = vld [vmem:[%s2463] sm:$0xff]
        %v2465 = vld [vmem:[%s2463 + $0x8] sm:$0xff]
        %v2466 = vld [vmem:[%s2463 + $0x10] sm:$0xff]
        %v2467 = vld [vmem:[%s2463 + $0x18] sm:$0xff]
        %v2468 = vld [vmem:[%s2463 + $0x20] sm:$0xff]
        %s2469 = scalar_lea.vmem %s3, 80
        %v2470 = vld [vmem:[%s2469] sm:$0xff]
        %v2471 = vld [vmem:[%s2469 + $0x8] sm:$0xff]
        %v2472 = vld [vmem:[%s2469 + $0x10] sm:$0xff]
        %v2473 = vld [vmem:[%s2469 + $0x18] sm:$0xff]
        %v2474 = vld [vmem:[%s2469 + $0x20] sm:$0xff]
        %s2475 = sld [smem:[#allocation2 + $0x18]]
        %s2476 = sld [smem:[#allocation2 + $0x19]]
        %s2477 = sld [smem:[#allocation2 + $0x1a]]
        %s2478 = sld [smem:[#allocation2 + $0x1b]]
        %s2479 = sld [smem:[#allocation2 + $0x1c]]
        %s2480 = sld [smem:[#allocation2 + $0x1d]]
        %s2481 = sld [smem:[#allocation2 + $0x1e]]
        %s2482 = sld [smem:[#allocation2 + $0x1f]]
        %s2483 = sld [smem:[#allocation2 + $0x20]]
        %s2484 = sld [smem:[#allocation2 + $0x21]]
        %s2485 = sld [smem:[#allocation2 + $0x22]]
        %s2486 = sld [smem:[#allocation2 + $0x23]]
        %v2487 = vadd.f32 %v2174, %v2175
        %v2488 = vadd.f32 %v2487, %v2176
        %v2489 = vadd.f32 %v2488, %v2177
        %v2490 = vadd.f32 %v2489, %v2178
        %v2491 = vrot.slane %v2490, 4
        %v2492 = vadd.f32 %v2490, %v2491
        %v2493 = vrot.slane %v2492, 2
        %v2494 = vadd.f32 %v2492, %v2493
        %v2495 = vrot.slane %v2494, 1
        %v2496 = vadd.f32 %v2494, %v2495
        %v2497 = vmul.f32 %v2496, %v427
        %v2498 = vsub.f32 %v2174, %v2497
        %v2499 = vsub.f32 %v2175, %v2497
        %v2500 = vsub.f32 %v2176, %v2497
        %v2501 = vsub.f32 %v2177, %v2497
        %v2502 = vsub.f32 %v2178, %v2497
        %v2503 = vmul.f32 %v2498, %v2498
        %v2504 = vmul.f32 %v2499, %v2499
        %v2505 = vmul.f32 %v2500, %v2500
        %v2506 = vmul.f32 %v2501, %v2501
        %v2507 = vmul.f32 %v2502, %v2502
        %v2508 = vadd.f32 %v2503, %v2504
        %v2509 = vadd.f32 %v2508, %v2505
        %v2510 = vadd.f32 %v2509, %v2506
        %v2511 = vadd.f32 %v2510, %v2507
        %v2512 = vrot.slane %v2511, 4
        %v2513 = vadd.f32 %v2511, %v2512
        %v2514 = vrot.slane %v2513, 2
        %v2515 = vadd.f32 %v2513, %v2514
        %v2516 = vrot.slane %v2515, 1
        %v2517 = vadd.f32 %v2515, %v2516
        %v2518 = vmul.f32 %v2517, %v427
        %v2519 = vadd.f32 %v2518, 1e-05
        %v2520 = vrsqrt.pop %v2519
        %v2521 = vmul.f32 %v2498, %v2520
        %v2522 = vmul.f32 %v2499, %v2520
        %v2523 = vmul.f32 %v2500, %v2520
        %v2524 = vmul.f32 %v2501, %v2520
        %v2525 = vmul.f32 %v2502, %v2520
        %2527 = vset.pattern.permute.xlu0 0
        %2528 = vperm.xlu0 %2527, %v2464
        %v2529 = vpop.permute.xlu0 %2528
        %2532 = vset.pattern.permute.xlu0 0
        %2533 = vperm.xlu0 %2532, %v2465
        %v2534 = vpop.permute.xlu0 %2533
        %2537 = vset.pattern.permute.xlu0 0
        %2538 = vperm.xlu0 %2537, %v2466
        %v2539 = vpop.permute.xlu0 %2538
        %2542 = vset.pattern.permute.xlu0 0
        %2543 = vperm.xlu0 %2542, %v2467
        %v2544 = vpop.permute.xlu0 %2543
        %2547 = vset.pattern.permute.xlu0 0
        %2548 = vperm.xlu0 %2547, %v2468
        %v2549 = vpop.permute.xlu0 %2548
        %v2551 = vmul.f32 %v2521, %v2529
        %v2552 = vmul.f32 %v2522, %v2534
        %v2553 = vmul.f32 %v2523, %v2539
        %v2554 = vmul.f32 %v2524, %v2544
        %v2555 = vmul.f32 %v2525, %v2549
        %2557 = vset.pattern.permute.xlu0 0
        %2558 = vperm.xlu0 %2557, %v2470
        %v2559 = vpop.permute.xlu0 %2558
        %2562 = vset.pattern.permute.xlu0 0
        %2563 = vperm.xlu0 %2562, %v2471
        %v2564 = vpop.permute.xlu0 %2563
        %2567 = vset.pattern.permute.xlu0 0
        %2568 = vperm.xlu0 %2567, %v2472
        %v2569 = vpop.permute.xlu0 %2568
        %2572 = vset.pattern.permute.xlu0 0
        %2573 = vperm.xlu0 %2572, %v2473
        %v2574 = vpop.permute.xlu0 %2573
        %2577 = vset.pattern.permute.xlu0 0
        %2578 = vperm.xlu0 %2577, %v2474
        %v2579 = vpop.permute.xlu0 %2578
        %v2581 = vadd.f32 %v2551, %v2559
        %v2582 = vadd.f32 %v2552, %v2564
        %v2583 = vadd.f32 %v2553, %v2569
        %v2584 = vadd.f32 %v2554, %v2574
        %v2585 = vadd.f32 %v2555, %v2579
        %v2586 = vadd.f32 %v2458, %v2459
        %v2587 = vadd.f32 %v2586, %v2460
        %v2588 = vadd.f32 %v2587, %v2461
        %v2589 = vadd.f32 %v2588, %v2462
        %v2590 = vrot.slane %v2589, 4
        %v2591 = vadd.f32 %v2589, %v2590
        %v2592 = vrot.slane %v2591, 2
        %v2593 = vadd.f32 %v2591, %v2592
        %v2594 = vrot.slane %v2593, 1
        %v2595 = vadd.f32 %v2593, %v2594
        %v2596 = vmul.f32 %v2595, %v427
        %v2597 = vsub.f32 %v2458, %v2596
        %v2598 = vsub.f32 %v2459, %v2596
        %v2599 = vsub.f32 %v2460, %v2596
        %v2600 = vsub.f32 %v2461, %v2596
        %v2601 = vsub.f32 %v2462, %v2596
        %v2602 = vmul.f32 %v2597, %v2597
        %v2603 = vmul.f32 %v2598, %v2598
        %v2604 = vmul.f32 %v2599, %v2599
        %v2605 = vmul.f32 %v2600, %v2600
        %v2606 = vmul.f32 %v2601, %v2601
        %v2607 = vadd.f32 %v2602, %v2603
        %v2608 = vadd.f32 %v2607, %v2604
        %v2609 = vadd.f32 %v2608, %v2605
        %v2610 = vadd.f32 %v2609, %v2606
        %v2611 = vrot.slane %v2610, 4
        %v2612 = vadd.f32 %v2610, %v2611
        %v2613 = vrot.slane %v2612, 2
        %v2614 = vadd.f32 %v2612, %v2613
        %v2615 = vrot.slane %v2614, 1
        %v2616 = vadd.f32 %v2614, %v2615
        %v2617 = vmul.f32 %v2616, %v427
        %v2618 = vadd.f32 %v2617, 1e-05
        %v2619 = vrsqrt.pop %v2618
        %v2620 = vmul.f32 %v2597, %v2619
        %v2621 = vmul.f32 %v2598, %v2619
        %v2622 = vmul.f32 %v2599, %v2619
        %v2623 = vmul.f32 %v2600, %v2619
        %v2624 = vmul.f32 %v2601, %v2619
        %v2625 = vmul.f32 %v2620, %v2529
        %v2626 = vmul.f32 %v2621, %v2534
        %v2627 = vmul.f32 %v2622, %v2539
        %v2628 = vmul.f32 %v2623, %v2544
        %v2629 = vmul.f32 %v2624, %v2549
        %v2630 = vadd.f32 %v2625, %v2559
        %v2631 = vadd.f32 %v2626, %v2564
        %v2632 = vadd.f32 %v2627, %v2569
        %v2633 = vadd.f32 %v2628, %v2574
        %v2634 = vadd.f32 %v2629, %v2579
        %v2635 = vstv %s2475
        %v2636 = vmul.f32 %v2581, %v2635
        %v2637 = vmul.f32 %v2582, %v2635
        %v2638 = vmul.f32 %v2583, %v2635
        %v2639 = vmul.f32 %v2584, %v2635
        %v2640 = vmul.f32 %v2585, %v2635
        %v2641 = vstv %s2476
        %v2642 = vmul.f32 %v2630, %v2641
        %v2643 = vmul.f32 %v2631, %v2641
        %v2644 = vmul.f32 %v2632, %v2641
        %v2645 = vmul.f32 %v2633, %v2641
        %v2646 = vmul.f32 %v2634, %v2641
        %v2647 = vadd.f32 %v2636, %v2642
        %v2648 = vadd.f32 %v2637, %v2643
        %v2649 = vadd.f32 %v2638, %v2644
        %v2650 = vadd.f32 %v2639, %v2645
        %v2651 = vadd.f32 %v2640, %v2646
        %v2652 = vstv %s2479
        %v2653 = vadd.f32 %v2647, %v2652
        %v2654 = vadd.f32 %v2648, %v2652
        %v2655 = vadd.f32 %v2649, %v2652
        %v2656 = vadd.f32 %v2650, %v2652
        %v2657 = vadd.f32 %v2651, %v2652
        %v2658 = vmul.f32 %v2653, 0.5
        %v2659 = vmul.f32 %v2654, 0.5
        %v2660 = vmul.f32 %v2655, 0.5
        %v2661 = vmul.f32 %v2656, 0.5
        %v2662 = vmul.f32 %v2657, 0.5
        %v2663 = vmul.f32 %v2653, 0.044715
        %v2664 = vmul.f32 %v2654, 0.044715
        %v2665 = vmul.f32 %v2655, 0.044715
        %v2666 = vmul.f32 %v2656, 0.044715
        %v2667 = vmul.f32 %v2657, 0.044715
        %v2668 = vmul.f32 %v2663, %v2653
        %v2669 = vmul.f32 %v2664, %v2654
        %v2670 = vmul.f32 %v2665, %v2655
        %v2671 = vmul.f32 %v2666, %v2656
        %v2672 = vmul.f32 %v2667, %v2657
        %v2673 = vmul.f32 %v2668, %v2653
        %v2674 = vmul.f32 %v2669, %v2654
        %v2675 = vmul.f32 %v2670, %v2655
        %v2676 = vmul.f32 %v2671, %v2656
        %v2677 = vmul.f32 %v2672, %v2657
        %v2678 = vadd.f32 %v2653, %v2673
        %v2679 = vadd.f32 %v2654, %v2674
        %v2680 = vadd.f32 %v2655, %v2675
        %v2681 = vadd.f32 %v2656, %v2676
        %v2682 = vadd.f32 %v2657, %v2677
        %v2683 = vmul.f32 %v2678, 0.7978846
        %v2684 = vmul.f32 %v2679, 0.7978846
        %v2685 = vmul.f32 %v2680, 0.7978846
        %v2686 = vmul.f32 %v2681, 0.7978846
        %v2687 = vmul.f32 %v2682, 0.7978846
        %v2688 = vtanh.pop %v2683
        %v2689 = vtanh.pop %v2684
        %v2690 = vtanh.pop %v2685
        %v2691 = vtanh.pop %v2686
        %v2692 = vtanh.pop %v2687
        %v2693 = vadd.f32 %v2688, 1.0
        %v2694 = vadd.f32 %v2689, 1.0
        %v2695 = vadd.f32 %v2690, 1.0
        %v2696 = vadd.f32 %v2691, 1.0
        %v2697 = vadd.f32 %v2692, 1.0
        %v2698 = vmul.f32 %v2658, %v2693
        %v2699 = vmul.f32 %v2659, %v2694
        %v2700 = vmul.f32 %v2660, %v2695
        %v2701 = vmul.f32 %v2661, %v2696
        %v2702 = vmul.f32 %v2662, %v2697
        %v2703 = vstv %s2477
        %v2704 = vmul.f32 %v2581, %v2703
        %v2705 = vmul.f32 %v2582, %v2703
        %v2706 = vmul.f32 %v2583, %v2703
        %v2707 = vmul.f32 %v2584, %v2703
        %v2708 = vmul.f32 %v2585, %v2703
        %v2709 = vstv %s2478
        %v2710 = vmul.f32 %v2630, %v2709
        %v2711 = vmul.f32 %v2631, %v2709
        %v2712 = vmul.f32 %v2632, %v2709
        %v2713 = vmul.f32 %v2633, %v2709
        %v2714 = vmul.f32 %v2634, %v2709
        %v2715 = vadd.f32 %v2704, %v2710
        %v2716 = vadd.f32 %v2705, %v2711
        %v2717 = vadd.f32 %v2706, %v2712
        %v2718 = vadd.f32 %v2707, %v2713
        %v2719 = vadd.f32 %v2708, %v2714
        %v2720 = vstv %s2480
        %v2721 = vadd.f32 %v2715, %v2720
        %v2722 = vadd.f32 %v2716, %v2720
        %v2723 = vadd.f32 %v2717, %v2720
        %v2724 = vadd.f32 %v2718, %v2720
        %v2725 = vadd.f32 %v2719, %v2720
        %v2726 = vmul.f32 %v2721, 0.5
        %v2727 = vmul.f32 %v2722, 0.5
        %v2728 = vmul.f32 %v2723, 0.5
        %v2729 = vmul.f32 %v2724, 0.5
        %v2730 = vmul.f32 %v2725, 0.5
        %v2731 = vmul.f32 %v2721, 0.044715
        %v2732 = vmul.f32 %v2722, 0.044715
        %v2733 = vmul.f32 %v2723, 0.044715
        %v2734 = vmul.f32 %v2724, 0.044715
        %v2735 = vmul.f32 %v2725, 0.044715
        %v2736 = vmul.f32 %v2731, %v2721
        %v2737 = vmul.f32 %v2732, %v2722
        %v2738 = vmul.f32 %v2733, %v2723
        %v2739 = vmul.f32 %v2734, %v2724
        %v2740 = vmul.f32 %v2735, %v2725
        %v2741 = vmul.f32 %v2736, %v2721
        %v2742 = vmul.f32 %v2737, %v2722
        %v2743 = vmul.f32 %v2738, %v2723
        %v2744 = vmul.f32 %v2739, %v2724
        %v2745 = vmul.f32 %v2740, %v2725
        %v2746 = vadd.f32 %v2721, %v2741
        %v2747 = vadd.f32 %v2722, %v2742
        %v2748 = vadd.f32 %v2723, %v2743
        %v2749 = vadd.f32 %v2724, %v2744
        %v2750 = vadd.f32 %v2725, %v2745
        %v2751 = vmul.f32 %v2746, 0.7978846
        %v2752 = vmul.f32 %v2747, 0.7978846
        %v2753 = vmul.f32 %v2748, 0.7978846
        %v2754 = vmul.f32 %v2749, 0.7978846
        %v2755 = vmul.f32 %v2750, 0.7978846
        %v2756 = vtanh.pop %v2751
        %v2757 = vtanh.pop %v2752
        %v2758 = vtanh.pop %v2753
        %v2759 = vtanh.pop %v2754
        %v2760 = vtanh.pop %v2755
        %v2761 = vadd.f32 %v2756, 1.0
        %v2762 = vadd.f32 %v2757, 1.0
        %v2763 = vadd.f32 %v2758, 1.0
        %v2764 = vadd.f32 %v2759, 1.0
        %v2765 = vadd.f32 %v2760, 1.0
        %v2766 = vmul.f32 %v2726, %v2761
        %v2767 = vmul.f32 %v2727, %v2762
        %v2768 = vmul.f32 %v2728, %v2763
        %v2769 = vmul.f32 %v2729, %v2764
        %v2770 = vmul.f32 %v2730, %v2765
        %v2771 = vstv %s2481
        %v2772 = vmul.f32 %v2698, %v2771
        %v2773 = vmul.f32 %v2699, %v2771
        %v2774 = vmul.f32 %v2700, %v2771
        %v2775 = vmul.f32 %v2701, %v2771
        %v2776 = vmul.f32 %v2702, %v2771
        %v2777 = vstv %s2482
        %v2778 = vmul.f32 %v2766, %v2777
        %v2779 = vmul.f32 %v2767, %v2777
        %v2780 = vmul.f32 %v2768, %v2777
        %v2781 = vmul.f32 %v2769, %v2777
        %v2782 = vmul.f32 %v2770, %v2777
        %v2783 = vadd.f32 %v2772, %v2778
        %v2784 = vadd.f32 %v2773, %v2779
        %v2785 = vadd.f32 %v2774, %v2780
        %v2786 = vadd.f32 %v2775, %v2781
        %v2787 = vadd.f32 %v2776, %v2782
        %v2788 = vadd.f32 %v2174, %v2783
        %v2789 = vadd.f32 %v2175, %v2784
        %v2790 = vadd.f32 %v2176, %v2785
        %v2791 = vadd.f32 %v2177, %v2786
        %v2792 = vadd.f32 %v2178, %v2787
        %v2793 = vstv %s2485
        %v2794 = vadd.f32 %v2788, %v2793
        %v2795 = vadd.f32 %v2789, %v2793
        %v2796 = vadd.f32 %v2790, %v2793
        %v2797 = vadd.f32 %v2791, %v2793
        %v2798 = vadd.f32 %v2792, %v2793
        %v2799 = vstv %s2483
        %v2800 = vmul.f32 %v2698, %v2799
        %v2801 = vmul.f32 %v2699, %v2799
        %v2802 = vmul.f32 %v2700, %v2799
        %v2803 = vmul.f32 %v2701, %v2799
        %v2804 = vmul.f32 %v2702, %v2799
        %v2805 = vstv %s2484
        %v2806 = vmul.f32 %v2766, %v2805
        %v2807 = vmul.f32 %v2767, %v2805
        %v2808 = vmul.f32 %v2768, %v2805
        %v2809 = vmul.f32 %v2769, %v2805
        %v2810 = vmul.f32 %v2770, %v2805
        %v2811 = vadd.f32 %v2800, %v2806
        %v2812 = vadd.f32 %v2801, %v2807
        %v2813 = vadd.f32 %v2802, %v2808
        %v2814 = vadd.f32 %v2803, %v2809
        %v2815 = vadd.f32 %v2804, %v2810
        %v2816 = vadd.f32 %v2458, %v2811
        %v2817 = vadd.f32 %v2459, %v2812
        %v2818 = vadd.f32 %v2460, %v2813
        %v2819 = vadd.f32 %v2461, %v2814
        %v2820 = vadd.f32 %v2462, %v2815
        %v2821 = vstv %s2486
        %v2822 = vadd.f32 %v2816, %v2821
        %v2823 = vadd.f32 %v2817, %v2821
        %v2824 = vadd.f32 %v2818, %v2821
        %v2825 = vadd.f32 %v2819, %v2821
        %v2826 = vadd.f32 %v2820, %v2821
        %s2827 = scalar_lea.vmem %s4, 80
        %v2828 = vld [vmem:[%s2827] sm:$0xff]
        %v2829 = vld [vmem:[%s2827 + $0x8] sm:$0xff]
        %v2830 = vld [vmem:[%s2827 + $0x10] sm:$0xff]
        %v2831 = vld [vmem:[%s2827 + $0x18] sm:$0xff]
        %v2832 = vld [vmem:[%s2827 + $0x20] sm:$0xff]
        %s2833 = scalar_lea.vmem %s5, 80
        %v2834 = vld [vmem:[%s2833] sm:$0xff]
        %v2835 = vld [vmem:[%s2833 + $0x8] sm:$0xff]
        %v2836 = vld [vmem:[%s2833 + $0x10] sm:$0xff]
        %v2837 = vld [vmem:[%s2833 + $0x18] sm:$0xff]
        %v2838 = vld [vmem:[%s2833 + $0x20] sm:$0xff]
        %s2839 = scalar_lea.vmem %s6, 80
        %v2840 = vld [vmem:[%s2839] sm:$0xff]
        %v2841 = vld [vmem:[%s2839 + $0x8] sm:$0xff]
        %v2842 = vld [vmem:[%s2839 + $0x10] sm:$0xff]
        %v2843 = vld [vmem:[%s2839 + $0x18] sm:$0xff]
        %v2844 = vld [vmem:[%s2839 + $0x20] sm:$0xff]
        %s2845 = scalar_lea.vmem %s7, 80
        %v2846 = vld [vmem:[%s2845] sm:$0xff]
        %v2847 = vld [vmem:[%s2845 + $0x8] sm:$0xff]
        %v2848 = vld [vmem:[%s2845 + $0x10] sm:$0xff]
        %v2849 = vld [vmem:[%s2845 + $0x18] sm:$0xff]
        %v2850 = vld [vmem:[%s2845 + $0x20] sm:$0xff]
        %v2851 = vadd.f32 %v2794, %v2795
        %v2852 = vadd.f32 %v2851, %v2796
        %v2853 = vadd.f32 %v2852, %v2797
        %v2854 = vadd.f32 %v2853, %v2798
        %v2855 = vrot.slane %v2854, 4
        %v2856 = vadd.f32 %v2854, %v2855
        %v2857 = vrot.slane %v2856, 2
        %v2858 = vadd.f32 %v2856, %v2857
        %v2859 = vrot.slane %v2858, 1
        %v2860 = vadd.f32 %v2858, %v2859
        %v2861 = vmul.f32 %v2860, %v427
        %v2862 = vsub.f32 %v2794, %v2861
        %v2863 = vsub.f32 %v2795, %v2861
        %v2864 = vsub.f32 %v2796, %v2861
        %v2865 = vsub.f32 %v2797, %v2861
        %v2866 = vsub.f32 %v2798, %v2861
        %v2867 = vmul.f32 %v2862, %v2862
        %v2868 = vmul.f32 %v2863, %v2863
        %v2869 = vmul.f32 %v2864, %v2864
        %v2870 = vmul.f32 %v2865, %v2865
        %v2871 = vmul.f32 %v2866, %v2866
        %v2872 = vadd.f32 %v2867, %v2868
        %v2873 = vadd.f32 %v2872, %v2869
        %v2874 = vadd.f32 %v2873, %v2870
        %v2875 = vadd.f32 %v2874, %v2871
        %v2876 = vrot.slane %v2875, 4
        %v2877 = vadd.f32 %v2875, %v2876
        %v2878 = vrot.slane %v2877, 2
        %v2879 = vadd.f32 %v2877, %v2878
        %v2880 = vrot.slane %v2879, 1
        %v2881 = vadd.f32 %v2879, %v2880
        %v2882 = vmul.f32 %v2881, %v427
        %v2883 = vadd.f32 %v2882, 1e-05
        %v2884 = vrsqrt.pop %v2883
        %v2885 = vmul.f32 %v2862, %v2884
        %v2886 = vmul.f32 %v2863, %v2884
        %v2887 = vmul.f32 %v2864, %v2884
        %v2888 = vmul.f32 %v2865, %v2884
        %v2889 = vmul.f32 %v2866, %v2884
        %v2890 = vmul.f32 %v2885, %v2529
        %v2891 = vmul.f32 %v2886, %v2534
        %v2892 = vmul.f32 %v2887, %v2539
        %v2893 = vmul.f32 %v2888, %v2544
        %v2894 = vmul.f32 %v2889, %v2549
        %v2895 = vadd.f32 %v2890, %v2559
        %v2896 = vadd.f32 %v2891, %v2564
        %v2897 = vadd.f32 %v2892, %v2569
        %v2898 = vadd.f32 %v2893, %v2574
        %v2899 = vadd.f32 %v2894, %v2579
        %2901 = vset.pattern.permute.xlu0 0
        %2902 = vperm.xlu0 %2901, %v2834
        %v2903 = vpop.permute.xlu0 %2902
        %2906 = vset.pattern.permute.xlu0 0
        %2907 = vperm.xlu0 %2906, %v2835
        %v2908 = vpop.permute.xlu0 %2907
        %2911 = vset.pattern.permute.xlu0 0
        %2912 = vperm.xlu0 %2911, %v2836
        %v2913 = vpop.permute.xlu0 %2912
        %2916 = vset.pattern.permute.xlu0 0
        %2917 = vperm.xlu0 %2916, %v2837
        %v2918 = vpop.permute.xlu0 %2917
        %2921 = vset.pattern.permute.xlu0 0
        %2922 = vperm.xlu0 %2921, %v2838
        %v2923 = vpop.permute.xlu0 %2922
        %v2926 = vsel %vm852, %v2828, 0
        %v2929 = vsel %vm852, %v2829, 0
        %v2932 = vsel %vm852, %v2830, 0
        %v2935 = vsel %vm852, %v2831, 0
        %v2938 = vsel %vm852, %v2832, 0
        %2940 = vmatprep.subr.mxu0 0.0
        %2941 = vmatpush1.msra.mxu0 %v2895
        %2942 = vmatprep.subr.mxu0 0.0
        %2943 = vmatpush1.msra.mxu0 %v2896
        %2944 = vmatprep.subr.mxu0 0.0
        %2945 = vmatpush1.msra.mxu0 %v2897
        %2946 = vmatprep.subr.mxu0 0.0
        %2947 = vmatpush1.msra.mxu0 %v2898
        %2948 = vmatprep.subr.mxu0 0.0
        %2949 = vmatpush1.msra.mxu0 %v2899
        %2950 = vmatprep.subr.mxu0 0.0
        %2951 = vmatpush1.msra.mxu0 0.0
        %2952 = vmatprep.subr.mxu0 0.0
        %2953 = vmatpush1.msra.mxu0 0.0
        %2954 = vmatprep.subr.mxu0 0.0
        %2955 = vmatpush1.msra.mxu0 0.0
        %2956 = vmatprep.subr.mxu0 0.0
        %2957 = vmatpush1.msra.mxu0 0.0
        %2958 = vmatprep.subr.mxu0 0.0
        %2959 = vmatpush1.msra.mxu0 0.0
        %2960 = vmatprep.subr.mxu0 0.0
        %2961 = vmatpush1.msra.mxu0 0.0
        %2962 = vmatprep.subr.mxu0 0.0
        %2963 = vmatpush1.msra.mxu0 0.0
        %2964 = vmatprep.subr.mxu0 0.0
        %2965 = vmatpush1.msra.mxu0 0.0
        %2966 = vmatprep.subr.mxu0 0.0
        %2967 = vmatpush1.msra.mxu0 0.0
        %2968 = vmatprep.subr.mxu0 0.0
        %2969 = vmatpush1.msra.mxu0 0.0
        %2970 = vmatprep.subr.mxu0 0.0
        %2971 = vmatpush1.msra.mxu0 0.0
        %2972 = vmatprep.subr.mxu0 0.0
        %2973 = vmatpush1.msra.mxu0 0.0
        %2974 = vmatprep.subr.mxu0 0.0
        %2975 = vmatpush1.msra.mxu0 0.0
        %2976 = vmatprep.subr.mxu0 0.0
        %2977 = vmatpush1.msra.mxu0 0.0
        %2978 = vmatprep.subr.mxu0 0.0
        %2979 = vmatpush1.msra.mxu0 0.0
        %2980 = vmatprep.subr.mxu0 0.0
        %2981 = vmatpush1.msra.mxu0 0.0
        %2982 = vmatprep.subr.mxu0 0.0
        %2983 = vmatpush1.msra.mxu0 0.0
        %2984 = vmatprep.subr.mxu0 0.0
        %2985 = vmatpush1.msra.mxu0 0.0
        %2986 = vmatprep.subr.mxu0 0.0
        %2987 = vmatpush1.msra.mxu0 0.0
        %2988 = vmatprep.subr.mxu0 0.0
        %2989 = vmatpush1.msra.mxu0 0.0
        %2990 = vmatprep.subr.mxu0 0.0
        %2991 = vmatpush1.msra.mxu0 0.0
        %2992 = vmatprep.subr.mxu0 0.0
        %2993 = vmatpush1.msra.mxu0 0.0
        %2994 = vmatprep.subr.mxu0 0.0
        %2995 = vmatpush1.msra.mxu0 0.0
        %2996 = vmatprep.subr.mxu0 0.0
        %2997 = vmatpush1.msra.mxu0 0.0
        %2998 = vmatprep.subr.mxu0 0.0
        %2999 = vmatpush1.msra.mxu0 0.0
        %3000 = vmatprep.subr.mxu0 0.0
        %3001 = vmatpush1.msra.mxu0 0.0
        %3002 = vmatprep.subr.mxu0 0.0
        %3003 = vmatpush1.msra.mxu0 0.0
        %3004 = vmatprep.mubr.f32.mxu0 0.0
        %3005 = vmatmul.mubr.f32.gmra.mrb[0].mxu0 %v2926
        %v3006 = vpop.f32.mrb[0].mxu0
        %v3007 = vadd.f32 %v2903, %v3006
        %v3008 = vpop.f32.mrb[0].mxu0
        %3009 = vmatprep.mubr.f32.mxu0 0.0
        %3010 = vmatmul.mubr.f32.gmra.mrb[0].mxu0 %v2929
        %v3011 = vpop.f32.mrb[0].mxu0
        %v3012 = vadd.f32 %v2908, %v3011
        %v3013 = vpop.f32.mrb[0].mxu0
        %3014 = vmatprep.mubr.f32.mxu0 0.0
        %3015 = vmatmul.mubr.f32.gmra.mrb[0].mxu0 %v2932
        %v3016 = vpop.f32.mrb[0].mxu0
        %v3017 = vadd.f32 %v2913, %v3016
        %v3018 = vpop.f32.mrb[0].mxu0
        %3019 = vmatprep.mubr.f32.mxu0 0.0
        %3020 = vmatmul.mubr.f32.gmra.mrb[0].mxu0 %v2935
        %v3021 = vpop.f32.mrb[0].mxu0
        %v3022 = vadd.f32 %v2918, %v3021
        %v3023 = vpop.f32.mrb[0].mxu0
        %3024 = vmatprep.mubr.f32.mxu0 0.0
        %3025 = vmatmul.mubr.f32.gmra.mrb[0].mxu0 %v2938
        %v3026 = vpop.f32.mrb[0].mxu0
        %v3027 = vadd.f32 %v2923, %v3026
        %v3028 = vpop.f32.mrb[0].mxu0
        %3029 = vdwg.mxu0
        %v3030 = vmul.f32 %v3007, 0.5
        %v3031 = vmul.f32 %v3012, 0.5
        %v3032 = vmul.f32 %v3017, 0.5
        %v3033 = vmul.f32 %v3022, 0.5
        %v3034 = vmul.f32 %v3027, 0.5
        %v3035 = vmul.f32 %v3007, 0.044715
        %v3036 = vmul.f32 %v3012, 0.044715
        %v3037 = vmul.f32 %v3017, 0.044715
        %v3038 = vmul.f32 %v3022, 0.044715
        %v3039 = vmul.f32 %v3027, 0.044715
        %v3040 = vmul.f32 %v3035, %v3007
        %v3041 = vmul.f32 %v3036, %v3012
        %v3042 = vmul.f32 %v3037, %v3017
        %v3043 = vmul.f32 %v3038, %v3022
        %v3044 = vmul.f32 %v3039, %v3027
        %v3045 = vmul.f32 %v3040, %v3007
        %v3046 = vmul.f32 %v3041, %v3012
        %v3047 = vmul.f32 %v3042, %v3017
        %v3048 = vmul.f32 %v3043, %v3022
        %v3049 = vmul.f32 %v3044, %v3027
        %v3050 = vadd.f32 %v3007, %v3045
        %v3051 = vadd.f32 %v3012, %v3046
        %v3052 = vadd.f32 %v3017, %v3047
        %v3053 = vadd.f32 %v3022, %v3048
        %v3054 = vadd.f32 %v3027, %v3049
        %v3055 = vmul.f32 %v3050, 0.7978846
        %v3056 = vmul.f32 %v3051, 0.7978846
        %v3057 = vmul.f32 %v3052, 0.7978846
        %v3058 = vmul.f32 %v3053, 0.7978846
        %v3059 = vmul.f32 %v3054, 0.7978846
        %v3060 = vtanh.pop %v3055
        %v3061 = vtanh.pop %v3056
        %v3062 = vtanh.pop %v3057
        %v3063 = vtanh.pop %v3058
        %v3064 = vtanh.pop %v3059
        %v3065 = vadd.f32 %v3060, 1.0
        %v3066 = vadd.f32 %v3061, 1.0
        %v3067 = vadd.f32 %v3062, 1.0
        %v3068 = vadd.f32 %v3063, 1.0
        %v3069 = vadd.f32 %v3064, 1.0
        %v3070 = vmul.f32 %v3030, %v3065
        %v3071 = vmul.f32 %v3031, %v3066
        %v3072 = vmul.f32 %v3032, %v3067
        %v3073 = vmul.f32 %v3033, %v3068
        %v3074 = vmul.f32 %v3034, %v3069
        %v3076 = vsel %vm852, %v2840, 0
        %v3079 = vsel %vm852, %v2841, 0
        %v3082 = vsel %vm852, %v2842, 0
        %v3085 = vsel %vm852, %v2843, 0
        %v3088 = vsel %vm852, %v2844, 0
        %3090 = vmatprep.subr.mxu0 0.0
        %3091 = vmatpush1.msra.mxu0 %v3070
        %3092 = vmatprep.subr.mxu0 0.0
        %3093 = vmatpush1.msra.mxu0 %v3071
        %3094 = vmatprep.subr.mxu0 0.0
        %3095 = vmatpush1.msra.mxu0 %v3072
        %3096 = vmatprep.subr.mxu0 0.0
        %3097 = vmatpush1.msra.mxu0 %v3073
        %3098 = vmatprep.subr.mxu0 0.0
        %3099 = vmatpush1.msra.mxu0 %v3074
        %3100 = vmatprep.subr.mxu0 0.0
        %3101 = vmatpush1.msra.mxu0 0.0
        %3102 = vmatprep.subr.mxu0 0.0
        %3103 = vmatpush1.msra.mxu0 0.0
        %3104 = vmatprep.subr.mxu0 0.0
        %3105 = vmatpush1.msra.mxu0 0.0
        %3106 = vmatprep.subr.mxu0 0.0
        %3107 = vmatpush1.msra.mxu0 0.0
        %3108 = vmatprep.subr.mxu0 0.0
        %3109 = vmatpush1.msra.mxu0 0.0
        %3110 = vmatprep.subr.mxu0 0.0
        %3111 = vmatpush1.msra.mxu0 0.0
        %3112 = vmatprep.subr.mxu0 0.0
        %3113 = vmatpush1.msra.mxu0 0.0
        %3114 = vmatprep.subr.mxu0 0.0
        %3115 = vmatpush1.msra.mxu0 0.0
        %3116 = vmatprep.subr.mxu0 0.0
        %3117 = vmatpush1.msra.mxu0 0.0
        %3118 = vmatprep.subr.mxu0 0.0
        %3119 = vmatpush1.msra.mxu0 0.0
        %3120 = vmatprep.subr.mxu0 0.0
        %3121 = vmatpush1.msra.mxu0 0.0
        %3122 = vmatprep.subr.mxu0 0.0
        %3123 = vmatpush1.msra.mxu0 0.0
        %3124 = vmatprep.subr.mxu0 0.0
        %3125 = vmatpush1.msra.mxu0 0.0
        %3126 = vmatprep.subr.mxu0 0.0
        %3127 = vmatpush1.msra.mxu0 0.0
        %3128 = vmatprep.subr.mxu0 0.0
        %3129 = vmatpush1.msra.mxu0 0.0
        %3130 = vmatprep.subr.mxu0 0.0
        %3131 = vmatpush1.msra.mxu0 0.0
        %3132 = vmatprep.subr.mxu0 0.0
        %3133 = vmatpush1.msra.mxu0 0.0
        %3134 = vmatprep.subr.mxu0 0.0
        %3135 = vmatpush1.msra.mxu0 0.0
        %3136 = vmatprep.subr.mxu0 0.0
        %3137 = vmatpush1.msra.mxu0 0.0
        %3138 = vmatprep.subr.mxu0 0.0
        %3139 = vmatpush1.msra.mxu0 0.0
        %3140 = vmatprep.subr.mxu0 0.0
        %3141 = vmatpush1.msra.mxu0 0.0
        %3142 = vmatprep.subr.mxu0 0.0
        %3143 = vmatpush1.msra.mxu0 0.0
        %3144 = vmatprep.subr.mxu0 0.0
        %3145 = vmatpush1.msra.mxu0 0.0
        %3146 = vmatprep.subr.mxu0 0.0
        %3147 = vmatpush1.msra.mxu0 0.0
        %3148 = vmatprep.subr.mxu0 0.0
        %3149 = vmatpush1.msra.mxu0 0.0
        %3150 = vmatprep.subr.mxu0 0.0
        %3151 = vmatpush1.msra.mxu0 0.0
        %3152 = vmatprep.subr.mxu0 0.0
        %3153 = vmatpush1.msra.mxu0 0.0
        %3154 = vmatprep.mubr.f32.mxu0 0.0
        %3155 = vmatmul.mubr.f32.gmra.mrb[0].mxu0 %v3076
        %v3156 = vpop.f32.mrb[0].mxu0
        %v3157 = vadd.f32 0.0, %v3156
        %v3158 = vpop.f32.mrb[0].mxu0
        %3159 = vmatprep.mubr.f32.mxu0 0.0
        %3160 = vmatmul.mubr.f32.gmra.mrb[0].mxu0 %v3079
        %v3161 = vpop.f32.mrb[0].mxu0
        %v3162 = vadd.f32 0.0, %v3161
        %v3163 = vpop.f32.mrb[0].mxu0
        %3164 = vmatprep.mubr.f32.mxu0 0.0
        %3165 = vmatmul.mubr.f32.gmra.mrb[0].mxu0 %v3082
        %v3166 = vpop.f32.mrb[0].mxu0
        %v3167 = vadd.f32 0.0, %v3166
        %v3168 = vpop.f32.mrb[0].mxu0
        %3169 = vmatprep.mubr.f32.mxu0 0.0
        %3170 = vmatmul.mubr.f32.gmra.mrb[0].mxu0 %v3085
        %v3171 = vpop.f32.mrb[0].mxu0
        %v3172 = vadd.f32 0.0, %v3171
        %v3173 = vpop.f32.mrb[0].mxu0
        %3174 = vmatprep.mubr.f32.mxu0 0.0
        %3175 = vmatmul.mubr.f32.gmra.mrb[0].mxu0 %v3088
        %v3176 = vpop.f32.mrb[0].mxu0
        %v3177 = vadd.f32 0.0, %v3176
        %v3178 = vpop.f32.mrb[0].mxu0
        %3179 = vdwg.mxu0
        %v3180 = vadd.f32 %v2794, %v3157
        %v3181 = vadd.f32 %v2795, %v3162
        %v3182 = vadd.f32 %v2796, %v3167
        %v3183 = vadd.f32 %v2797, %v3172
        %v3184 = vadd.f32 %v2798, %v3177
        %3186 = vset.pattern.permute.xlu0 0
        %3187 = vperm.xlu0 %3186, %v2846
        %v3188 = vpop.permute.xlu0 %3187
        %3191 = vset.pattern.permute.xlu0 0
        %3192 = vperm.xlu0 %3191, %v2847
        %v3193 = vpop.permute.xlu0 %3192
        %3196 = vset.pattern.permute.xlu0 0
        %3197 = vperm.xlu0 %3196, %v2848
        %v3198 = vpop.permute.xlu0 %3197
        %3201 = vset.pattern.permute.xlu0 0
        %3202 = vperm.xlu0 %3201, %v2849
        %v3203 = vpop.permute.xlu0 %3202
        %3206 = vset.pattern.permute.xlu0 0
        %3207 = vperm.xlu0 %3206, %v2850
        %v3208 = vpop.permute.xlu0 %3207
        %v3210 = vadd.f32 %v3180, %v3188
        %v3211 = vadd.f32 %v3181, %v3193
        %v3212 = vadd.f32 %v3182, %v3198
        %v3213 = vadd.f32 %v3183, %v3203
        %v3214 = vadd.f32 %v3184, %v3208
        %v3215 = vadd.f32 %v2822, %v2823
        %v3216 = vadd.f32 %v3215, %v2824
        %v3217 = vadd.f32 %v3216, %v2825
        %v3218 = vadd.f32 %v3217, %v2826
        %v3219 = vrot.slane %v3218, 4
        %v3220 = vadd.f32 %v3218, %v3219
        %v3221 = vrot.slane %v3220, 2
        %v3222 = vadd.f32 %v3220, %v3221
        %v3223 = vrot.slane %v3222, 1
        %v3224 = vadd.f32 %v3222, %v3223
        %v3225 = vmul.f32 %v3224, %v427
        %v3226 = vsub.f32 %v2822, %v3225
        %v3227 = vsub.f32 %v2823, %v3225
        %v3228 = vsub.f32 %v2824, %v3225
        %v3229 = vsub.f32 %v2825, %v3225
        %v3230 = vsub.f32 %v2826, %v3225
        %v3231 = vmul.f32 %v3226, %v3226
        %v3232 = vmul.f32 %v3227, %v3227
        %v3233 = vmul.f32 %v3228, %v3228
        %v3234 = vmul.f32 %v3229, %v3229
        %v3235 = vmul.f32 %v3230, %v3230
        %v3236 = vadd.f32 %v3231, %v3232
        %v3237 = vadd.f32 %v3236, %v3233
        %v3238 = vadd.f32 %v3237, %v3234
        %v3239 = vadd.f32 %v3238, %v3235
        %v3240 = vrot.slane %v3239, 4
        %v3241 = vadd.f32 %v3239, %v3240
        %v3242 = vrot.slane %v3241, 2
        %v3243 = vadd.f32 %v3241, %v3242
        %v3244 = vrot.slane %v3243, 1
        %v3245 = vadd.f32 %v3243, %v3244
        %v3246 = vmul.f32 %v3245, %v427
        %v3247 = vadd.f32 %v3246, 1e-05
        %v3248 = vrsqrt.pop %v3247
        %v3249 = vmul.f32 %v3226, %v3248
        %v3250 = vmul.f32 %v3227, %v3248
        %v3251 = vmul.f32 %v3228, %v3248
        %v3252 = vmul.f32 %v3229, %v3248
        %v3253 = vmul.f32 %v3230, %v3248
        %v3254 = vmul.f32 %v3249, %v2529
        %v3255 = vmul.f32 %v3250, %v2534
        %v3256 = vmul.f32 %v3251, %v2539
        %v3257 = vmul.f32 %v3252, %v2544
        %v3258 = vmul.f32 %v3253, %v2549
        %v3259 = vadd.f32 %v3254, %v2559
        %v3260 = vadd.f32 %v3255, %v2564
        %v3261 = vadd.f32 %v3256, %v2569
        %v3262 = vadd.f32 %v3257, %v2574
        %v3263 = vadd.f32 %v3258, %v2579
        %3264 = vmatprep.subr.mxu0 0.0
        %3265 = vmatpush1.msra.mxu0 %v3259
        %3266 = vmatprep.subr.mxu0 0.0
        %3267 = vmatpush1.msra.mxu0 %v3260
        %3268 = vmatprep.subr.mxu0 0.0
        %3269 = vmatpush1.msra.mxu0 %v3261
        %3270 = vmatprep.subr.mxu0 0.0
        %3271 = vmatpush1.msra.mxu0 %v3262
        %3272 = vmatprep.subr.mxu0 0.0
        %3273 = vmatpush1.msra.mxu0 %v3263
        %3274 = vmatprep.subr.mxu0 0.0
        %3275 = vmatpush1.msra.mxu0 0.0
        %3276 = vmatprep.subr.mxu0 0.0
        %3277 = vmatpush1.msra.mxu0 0.0
        %3278 = vmatprep.subr.mxu0 0.0
        %3279 = vmatpush1.msra.mxu0 0.0
        %3280 = vmatprep.subr.mxu0 0.0
        %3281 = vmatpush1.msra.mxu0 0.0
        %3282 = vmatprep.subr.mxu0 0.0
        %3283 = vmatpush1.msra.mxu0 0.0
        %3284 = vmatprep.subr.mxu0 0.0
        %3285 = vmatpush1.msra.mxu0 0.0
        %3286 = vmatprep.subr.mxu0 0.0
        %3287 = vmatpush1.msra.mxu0 0.0
        %3288 = vmatprep.subr.mxu0 0.0
        %3289 = vmatpush1.msra.mxu0 0.0
        %3290 = vmatprep.subr.mxu0 0.0
        %3291 = vmatpush1.msra.mxu0 0.0
        %3292 = vmatprep.subr.mxu0 0.0
        %3293 = vmatpush1.msra.mxu0 0.0
        %3294 = vmatprep.subr.mxu0 0.0
        %3295 = vmatpush1.msra.mxu0 0.0
        %3296 = vmatprep.subr.mxu0 0.0
        %3297 = vmatpush1.msra.mxu0 0.0
        %3298 = vmatprep.subr.mxu0 0.0
        %3299 = vmatpush1.msra.mxu0 0.0
        %3300 = vmatprep.subr.mxu0 0.0
        %3301 = vmatpush1.msra.mxu0 0.0
        %3302 = vmatprep.subr.mxu0 0.0
        %3303 = vmatpush1.msra.mxu0 0.0
        %3304 = vmatprep.subr.mxu0 0.0
        %3305 = vmatpush1.msra.mxu0 0.0
        %3306 = vmatprep.subr.mxu0 0.0
        %3307 = vmatpush1.msra.mxu0 0.0
        %3308 = vmatprep.subr.mxu0 0.0
        %3309 = vmatpush1.msra.mxu0 0.0
        %3310 = vmatprep.subr.mxu0 0.0
        %3311 = vmatpush1.msra.mxu0 0.0
        %3312 = vmatprep.subr.mxu0 0.0
        %3313 = vmatpush1.msra.mxu0 0.0
        %3314 = vmatprep.subr.mxu0 0.0
        %3315 = vmatpush1.msra.mxu0 0.0
        %3316 = vmatprep.subr.mxu0 0.0
        %3317 = vmatpush1.msra.mxu0 0.0
        %3318 = vmatprep.subr.mxu0 0.0
        %3319 = vmatpush1.msra.mxu0 0.0
        %3320 = vmatprep.subr.mxu0 0.0
        %3321 = vmatpush1.msra.mxu0 0.0
        %3322 = vmatprep.subr.mxu0 0.0
        %3323 = vmatpush1.msra.mxu0 0.0
        %3324 = vmatprep.subr.mxu0 0.0
        %3325 = vmatpush1.msra.mxu0 0.0
        %3326 = vmatprep.subr.mxu0 0.0
        %3327 = vmatpush1.msra.mxu0 0.0
        %3328 = vmatprep.mubr.f32.mxu0 0.0
        %3329 = vmatmul.mubr.f32.gmra.mrb[0].mxu0 %v2926
        %v3330 = vpop.f32.mrb[0].mxu0
        %v3331 = vadd.f32 %v2903, %v3330
        %v3332 = vpop.f32.mrb[0].mxu0
        %3333 = vmatprep.mubr.f32.mxu0 0.0
        %3334 = vmatmul.mubr.f32.gmra.mrb[0].mxu0 %v2929
        %v3335 = vpop.f32.mrb[0].mxu0
        %v3336 = vadd.f32 %v2908, %v3335
        %v3337 = vpop.f32.mrb[0].mxu0
        %3338 = vmatprep.mubr.f32.mxu0 0.0
        %3339 = vmatmul.mubr.f32.gmra.mrb[0].mxu0 %v2932
        %v3340 = vpop.f32.mrb[0].mxu0
        %v3341 = vadd.f32 %v2913, %v3340
        %v3342 = vpop.f32.mrb[0].mxu0
        %3343 = vmatprep.mubr.f32.mxu0 0.0
        %3344 = vmatmul.mubr.f32.gmra.mrb[0].mxu0 %v2935
        %v3345 = vpop.f32.mrb[0].mxu0
        %v3346 = vadd.f32 %v2918, %v3345
        %v3347 = vpop.f32.mrb[0].mxu0
        %3348 = vmatprep.mubr.f32.mxu0 0.0
        %3349 = vmatmul.mubr.f32.gmra.mrb[0].mxu0 %v2938
        %v3350 = vpop.f32.mrb[0].mxu0
        %v3351 = vadd.f32 %v2923, %v3350
        %v3352 = vpop.f32.mrb[0].mxu0
        %3353 = vdwg.mxu0
        %v3354 = vmul.f32 %v3331, 0.5
        %v3355 = vmul.f32 %v3336, 0.5
        %v3356 = vmul.f32 %v3341, 0.5
        %v3357 = vmul.f32 %v3346, 0.5
        %v3358 = vmul.f32 %v3351, 0.5
        %v3359 = vmul.f32 %v3331, 0.044715
        %v3360 = vmul.f32 %v3336, 0.044715
        %v3361 = vmul.f32 %v3341, 0.044715
        %v3362 = vmul.f32 %v3346, 0.044715
        %v3363 = vmul.f32 %v3351, 0.044715
        %v3364 = vmul.f32 %v3359, %v3331
        %v3365 = vmul.f32 %v3360, %v3336
        %v3366 = vmul.f32 %v3361, %v3341
        %v3367 = vmul.f32 %v3362, %v3346
        %v3368 = vmul.f32 %v3363, %v3351
        %v3369 = vmul.f32 %v3364, %v3331
        %v3370 = vmul.f32 %v3365, %v3336
        %v3371 = vmul.f32 %v3366, %v3341
        %v3372 = vmul.f32 %v3367, %v3346
        %v3373 = vmul.f32 %v3368, %v3351
        %v3374 = vadd.f32 %v3331, %v3369
        %v3375 = vadd.f32 %v3336, %v3370
        %v3376 = vadd.f32 %v3341, %v3371
        %v3377 = vadd.f32 %v3346, %v3372
        %v3378 = vadd.f32 %v3351, %v3373
        %v3379 = vmul.f32 %v3374, 0.7978846
        %v3380 = vmul.f32 %v3375, 0.7978846
        %v3381 = vmul.f32 %v3376, 0.7978846
        %v3382 = vmul.f32 %v3377, 0.7978846
        %v3383 = vmul.f32 %v3378, 0.7978846
        %v3384 = vtanh.pop %v3379
        %v3385 = vtanh.pop %v3380
        %v3386 = vtanh.pop %v3381
        %v3387 = vtanh.pop %v3382
        %v3388 = vtanh.pop %v3383
        %v3389 = vadd.f32 %v3384, 1.0
        %v3390 = vadd.f32 %v3385, 1.0
        %v3391 = vadd.f32 %v3386, 1.0
        %v3392 = vadd.f32 %v3387, 1.0
        %v3393 = vadd.f32 %v3388, 1.0
        %v3394 = vmul.f32 %v3354, %v3389
        %v3395 = vmul.f32 %v3355, %v3390
        %v3396 = vmul.f32 %v3356, %v3391
        %v3397 = vmul.f32 %v3357, %v3392
        %v3398 = vmul.f32 %v3358, %v3393
        %3399 = vmatprep.subr.mxu0 0.0
        %3400 = vmatpush1.msra.mxu0 %v3394
        %3401 = vmatprep.subr.mxu0 0.0
        %3402 = vmatpush1.msra.mxu0 %v3395
        %3403 = vmatprep.subr.mxu0 0.0
        %3404 = vmatpush1.msra.mxu0 %v3396
        %3405 = vmatprep.subr.mxu0 0.0
        %3406 = vmatpush1.msra.mxu0 %v3397
        %3407 = vmatprep.subr.mxu0 0.0
        %3408 = vmatpush1.msra.mxu0 %v3398
        %3409 = vmatprep.subr.mxu0 0.0
        %3410 = vmatpush1.msra.mxu0 0.0
        %3411 = vmatprep.subr.mxu0 0.0
        %3412 = vmatpush1.msra.mxu0 0.0
        %3413 = vmatprep.subr.mxu0 0.0
        %3414 = vmatpush1.msra.mxu0 0.0
        %3415 = vmatprep.subr.mxu0 0.0
        %3416 = vmatpush1.msra.mxu0 0.0
        %3417 = vmatprep.subr.mxu0 0.0
        %3418 = vmatpush1.msra.mxu0 0.0
        %3419 = vmatprep.subr.mxu0 0.0
        %3420 = vmatpush1.msra.mxu0 0.0
        %3421 = vmatprep.subr.mxu0 0.0
        %3422 = vmatpush1.msra.mxu0 0.0
        %3423 = vmatprep.subr.mxu0 0.0
        %3424 = vmatpush1.msra.mxu0 0.0
        %3425 = vmatprep.subr.mxu0 0.0
        %3426 = vmatpush1.msra.mxu0 0.0
        %3427 = vmatprep.subr.mxu0 0.0
        %3428 = vmatpush1.msra.mxu0 0.0
        %3429 = vmatprep.subr.mxu0 0.0
        %3430 = vmatpush1.msra.mxu0 0.0
        %3431 = vmatprep.subr.mxu0 0.0
        %3432 = vmatpush1.msra.mxu0 0.0
        %3433 = vmatprep.subr.mxu0 0.0
        %3434 = vmatpush1.msra.mxu0 0.0
        %3435 = vmatprep.subr.mxu0 0.0
        %3436 = vmatpush1.msra.mxu0 0.0
        %3437 = vmatprep.subr.mxu0 0.0
        %3438 = vmatpush1.msra.mxu0 0.0
        %3439 = vmatprep.subr.mxu0 0.0
        %3440 = vmatpush1.msra.mxu0 0.0
        %3441 = vmatprep.subr.mxu0 0.0
        %3442 = vmatpush1.msra.mxu0 0.0
        %3443 = vmatprep.subr.mxu0 0.0
        %3444 = vmatpush1.msra.mxu0 0.0
        %3445 = vmatprep.subr.mxu0 0.0
        %3446 = vmatpush1.msra.mxu0 0.0
        %3447 = vmatprep.subr.mxu0 0.0
        %3448 = vmatpush1.msra.mxu0 0.0
        %3449 = vmatprep.subr.mxu0 0.0
        %3450 = vmatpush1.msra.mxu0 0.0
        %3451 = vmatprep.subr.mxu0 0.0
        %3452 = vmatpush1.msra.mxu0 0.0
        %3453 = vmatprep.subr.mxu0 0.0
        %3454 = vmatpush1.msra.mxu0 0.0
        %3455 = vmatprep.subr.mxu0 0.0
        %3456 = vmatpush1.msra.mxu0 0.0
        %3457 = vmatprep.subr.mxu0 0.0
        %3458 = vmatpush1.msra.mxu0 0.0
        %3459 = vmatprep.subr.mxu0 0.0
        %3460 = vmatpush1.msra.mxu0 0.0
        %3461 = vmatprep.subr.mxu0 0.0
        %3462 = vmatpush1.msra.mxu0 0.0
        %3463 = vmatprep.mubr.f32.mxu0 0.0
        %3464 = vmatmul.mubr.f32.gmra.mrb[0].mxu0 %v3076
        %v3465 = vpop.f32.mrb[0].mxu0
        %v3466 = vadd.f32 0.0, %v3465
        %v3467 = vpop.f32.mrb[0].mxu0
        %3468 = vmatprep.mubr.f32.mxu0 0.0
        %3469 = vmatmul.mubr.f32.gmra.mrb[0].mxu0 %v3079
        %v3470 = vpop.f32.mrb[0].mxu0
        %v3471 = vadd.f32 0.0, %v3470
        %v3472 = vpop.f32.mrb[0].mxu0
        %3473 = vmatprep.mubr.f32.mxu0 0.0
        %3474 = vmatmul.mubr.f32.gmra.mrb[0].mxu0 %v3082
        %v3475 = vpop.f32.mrb[0].mxu0
        %v3476 = vadd.f32 0.0, %v3475
        %v3477 = vpop.f32.mrb[0].mxu0
        %3478 = vmatprep.mubr.f32.mxu0 0.0
        %3479 = vmatmul.mubr.f32.gmra.mrb[0].mxu0 %v3085
        %v3480 = vpop.f32.mrb[0].mxu0
        %v3481 = vadd.f32 0.0, %v3480
        %v3482 = vpop.f32.mrb[0].mxu0
        %3483 = vmatprep.mubr.f32.mxu0 0.0
        %3484 = vmatmul.mubr.f32.gmra.mrb[0].mxu0 %v3088
        %v3485 = vpop.f32.mrb[0].mxu0
        %v3486 = vadd.f32 0.0, %v3485
        %v3487 = vpop.f32.mrb[0].mxu0
        %3488 = vdwg.mxu0
        %v3489 = vadd.f32 %v2822, %v3466
        %v3490 = vadd.f32 %v2823, %v3471
        %v3491 = vadd.f32 %v2824, %v3476
        %v3492 = vadd.f32 %v2825, %v3481
        %v3493 = vadd.f32 %v2826, %v3486
        %v3494 = vadd.f32 %v3489, %v3188
        %v3495 = vadd.f32 %v3490, %v3193
        %v3496 = vadd.f32 %v3491, %v3198
        %v3497 = vadd.f32 %v3492, %v3203
        %v3498 = vadd.f32 %v3493, %v3208
        %s3499 = scalar_lea.vmem %s2, 120
        %v3500 = vld [vmem:[%s3499] sm:$0xff]
        %v3501 = vld [vmem:[%s3499 + $0x8] sm:$0xff]
        %v3502 = vld [vmem:[%s3499 + $0x10] sm:$0xff]
        %v3503 = vld [vmem:[%s3499 + $0x18] sm:$0xff]
        %v3504 = vld [vmem:[%s3499 + $0x20] sm:$0xff]
        %s3505 = scalar_lea.vmem %s3, 120
        %v3506 = vld [vmem:[%s3505] sm:$0xff]
        %v3507 = vld [vmem:[%s3505 + $0x8] sm:$0xff]
        %v3508 = vld [vmem:[%s3505 + $0x10] sm:$0xff]
        %v3509 = vld [vmem:[%s3505 + $0x18] sm:$0xff]
        %v3510 = vld [vmem:[%s3505 + $0x20] sm:$0xff]
        %s3511 = sld [smem:[#allocation2 + $0x24]]
        %s3512 = sld [smem:[#allocation2 + $0x25]]
        %s3513 = sld [smem:[#allocation2 + $0x26]]
        %s3514 = sld [smem:[#allocation2 + $0x27]]
        %s3515 = sld [smem:[#allocation2 + $0x28]]
        %s3516 = sld [smem:[#allocation2 + $0x29]]
        %s3517 = sld [smem:[#allocation2 + $0x2a]]
        %s3518 = sld [smem:[#allocation2 + $0x2b]]
        %s3519 = sld [smem:[#allocation2 + $0x2c]]
        %s3520 = sld [smem:[#allocation2 + $0x2d]]
        %s3521 = sld [smem:[#allocation2 + $0x2e]]
        %s3522 = sld [smem:[#allocation2 + $0x2f]]
        %v3523 = vadd.f32 %v3210, %v3211
        %v3524 = vadd.f32 %v3523, %v3212
        %v3525 = vadd.f32 %v3524, %v3213
        %v3526 = vadd.f32 %v3525, %v3214
        %v3527 = vrot.slane %v3526, 4
        %v3528 = vadd.f32 %v3526, %v3527
        %v3529 = vrot.slane %v3528, 2
        %v3530 = vadd.f32 %v3528, %v3529
        %v3531 = vrot.slane %v3530, 1
        %v3532 = vadd.f32 %v3530, %v3531
        %v3533 = vmul.f32 %v3532, %v427
        %v3534 = vsub.f32 %v3210, %v3533
        %v3535 = vsub.f32 %v3211, %v3533
        %v3536 = vsub.f32 %v3212, %v3533
        %v3537 = vsub.f32 %v3213, %v3533
        %v3538 = vsub.f32 %v3214, %v3533
        %v3539 = vmul.f32 %v3534, %v3534
        %v3540 = vmul.f32 %v3535, %v3535
        %v3541 = vmul.f32 %v3536, %v3536
        %v3542 = vmul.f32 %v3537, %v3537
        %v3543 = vmul.f32 %v3538, %v3538
        %v3544 = vadd.f32 %v3539, %v3540
        %v3545 = vadd.f32 %v3544, %v3541
        %v3546 = vadd.f32 %v3545, %v3542
        %v3547 = vadd.f32 %v3546, %v3543
        %v3548 = vrot.slane %v3547, 4
        %v3549 = vadd.f32 %v3547, %v3548
        %v3550 = vrot.slane %v3549, 2
        %v3551 = vadd.f32 %v3549, %v3550
        %v3552 = vrot.slane %v3551, 1
        %v3553 = vadd.f32 %v3551, %v3552
        %v3554 = vmul.f32 %v3553, %v427
        %v3555 = vadd.f32 %v3554, 1e-05
        %v3556 = vrsqrt.pop %v3555
        %v3557 = vmul.f32 %v3534, %v3556
        %v3558 = vmul.f32 %v3535, %v3556
        %v3559 = vmul.f32 %v3536, %v3556
        %v3560 = vmul.f32 %v3537, %v3556
        %v3561 = vmul.f32 %v3538, %v3556
        %3563 = vset.pattern.permute.xlu0 0
        %3564 = vperm.xlu0 %3563, %v3500
        %v3565 = vpop.permute.xlu0 %3564
        %3568 = vset.pattern.permute.xlu0 0
        %3569 = vperm.xlu0 %3568, %v3501
        %v3570 = vpop.permute.xlu0 %3569
        %3573 = vset.pattern.permute.xlu0 0
        %3574 = vperm.xlu0 %3573, %v3502
        %v3575 = vpop.permute.xlu0 %3574
        %3578 = vset.pattern.permute.xlu0 0
        %3579 = vperm.xlu0 %3578, %v3503
        %v3580 = vpop.permute.xlu0 %3579
        %3583 = vset.pattern.permute.xlu0 0
        %3584 = vperm.xlu0 %3583, %v3504
        %v3585 = vpop.permute.xlu0 %3584
        %v3587 = vmul.f32 %v3557, %v3565
        %v3588 = vmul.f32 %v3558, %v3570
        %v3589 = vmul.f32 %v3559, %v3575
        %v3590 = vmul.f32 %v3560, %v3580
        %v3591 = vmul.f32 %v3561, %v3585
        %3593 = vset.pattern.permute.xlu0 0
        %3594 = vperm.xlu0 %3593, %v3506
        %v3595 = vpop.permute.xlu0 %3594
        %3598 = vset.pattern.permute.xlu0 0
        %3599 = vperm.xlu0 %3598, %v3507
        %v3600 = vpop.permute.xlu0 %3599
        %3603 = vset.pattern.permute.xlu0 0
        %3604 = vperm.xlu0 %3603, %v3508
        %v3605 = vpop.permute.xlu0 %3604
        %3608 = vset.pattern.permute.xlu0 0
        %3609 = vperm.xlu0 %3608, %v3509
        %v3610 = vpop.permute.xlu0 %3609
        %3613 = vset.pattern.permute.xlu0 0
        %3614 = vperm.xlu0 %3613, %v3510
        %v3615 = vpop.permute.xlu0 %3614
        %v3617 = vadd.f32 %v3587, %v3595
        %v3618 = vadd.f32 %v3588, %v3600
        %v3619 = vadd.f32 %v3589, %v3605
        %v3620 = vadd.f32 %v3590, %v3610
        %v3621 = vadd.f32 %v3591, %v3615
        %v3622 = vadd.f32 %v3494, %v3495
        %v3623 = vadd.f32 %v3622, %v3496
        %v3624 = vadd.f32 %v3623, %v3497
        %v3625 = vadd.f32 %v3624, %v3498
        %v3626 = vrot.slane %v3625, 4
        %v3627 = vadd.f32 %v3625, %v3626
        %v3628 = vrot.slane %v3627, 2
        %v3629 = vadd.f32 %v3627, %v3628
        %v3630 = vrot.slane %v3629, 1
        %v3631 = vadd.f32 %v3629, %v3630
        %v3632 = vmul.f32 %v3631, %v427
        %v3633 = vsub.f32 %v3494, %v3632
        %v3634 = vsub.f32 %v3495, %v3632
        %v3635 = vsub.f32 %v3496, %v3632
        %v3636 = vsub.f32 %v3497, %v3632
        %v3637 = vsub.f32 %v3498, %v3632
        %v3638 = vmul.f32 %v3633, %v3633
        %v3639 = vmul.f32 %v3634, %v3634
        %v3640 = vmul.f32 %v3635, %v3635
        %v3641 = vmul.f32 %v3636, %v3636
        %v3642 = vmul.f32 %v3637, %v3637
        %v3643 = vadd.f32 %v3638, %v3639
        %v3644 = vadd.f32 %v3643, %v3640
        %v3645 = vadd.f32 %v3644, %v3641
        %v3646 = vadd.f32 %v3645, %v3642
        %v3647 = vrot.slane %v3646, 4
        %v3648 = vadd.f32 %v3646, %v3647
        %v3649 = vrot.slane %v3648, 2
        %v3650 = vadd.f32 %v3648, %v3649
        %v3651 = vrot.slane %v3650, 1
        %v3652 = vadd.f32 %v3650, %v3651
        %v3653 = vmul.f32 %v3652, %v427
        %v3654 = vadd.f32 %v3653, 1e-05
        %v3655 = vrsqrt.pop %v3654
        %v3656 = vmul.f32 %v3633, %v3655
        %v3657 = vmul.f32 %v3634, %v3655
        %v3658 = vmul.f32 %v3635, %v3655
        %v3659 = vmul.f32 %v3636, %v3655
        %v3660 = vmul.f32 %v3637, %v3655
        %v3661 = vmul.f32 %v3656, %v3565
        %v3662 = vmul.f32 %v3657, %v3570
        %v3663 = vmul.f32 %v3658, %v3575
        %v3664 = vmul.f32 %v3659, %v3580
        %v3665 = vmul.f32 %v3660, %v3585
        %v3666 = vadd.f32 %v3661, %v3595
        %v3667 = vadd.f32 %v3662, %v3600
        %v3668 = vadd.f32 %v3663, %v3605
        %v3669 = vadd.f32 %v3664, %v3610
        %v3670 = vadd.f32 %v3665, %v3615
        %v3671 = vstv %s3511
        %v3672 = vmul.f32 %v3617, %v3671
        %v3673 = vmul.f32 %v3618, %v3671
        %v3674 = vmul.f32 %v3619, %v3671
        %v3675 = vmul.f32 %v3620, %v3671
        %v3676 = vmul.f32 %v3621, %v3671
        %v3677 = vstv %s3512
        %v3678 = vmul.f32 %v3666, %v3677
        %v3679 = vmul.f32 %v3667, %v3677
        %v3680 = vmul.f32 %v3668, %v3677
        %v3681 = vmul.f32 %v3669, %v3677
        %v3682 = vmul.f32 %v3670, %v3677
        %v3683 = vadd.f32 %v3672, %v3678
        %v3684 = vadd.f32 %v3673, %v3679
        %v3685 = vadd.f32 %v3674, %v3680
        %v3686 = vadd.f32 %v3675, %v3681
        %v3687 = vadd.f32 %v3676, %v3682
        %v3688 = vstv %s3515
        %v3689 = vadd.f32 %v3683, %v3688
        %v3690 = vadd.f32 %v3684, %v3688
        %v3691 = vadd.f32 %v3685, %v3688
        %v3692 = vadd.f32 %v3686, %v3688
        %v3693 = vadd.f32 %v3687, %v3688
        %v3694 = vmul.f32 %v3689, 0.5
        %v3695 = vmul.f32 %v3690, 0.5
        %v3696 = vmul.f32 %v3691, 0.5
        %v3697 = vmul.f32 %v3692, 0.5
        %v3698 = vmul.f32 %v3693, 0.5
        %v3699 = vmul.f32 %v3689, 0.044715
        %v3700 = vmul.f32 %v3690, 0.044715
        %v3701 = vmul.f32 %v3691, 0.044715
        %v3702 = vmul.f32 %v3692, 0.044715
        %v3703 = vmul.f32 %v3693, 0.044715
        %v3704 = vmul.f32 %v3699, %v3689
        %v3705 = vmul.f32 %v3700, %v3690
        %v3706 = vmul.f32 %v3701, %v3691
        %v3707 = vmul.f32 %v3702, %v3692
        %v3708 = vmul.f32 %v3703, %v3693
        %v3709 = vmul.f32 %v3704, %v3689
        %v3710 = vmul.f32 %v3705, %v3690
        %v3711 = vmul.f32 %v3706, %v3691
        %v3712 = vmul.f32 %v3707, %v3692
        %v3713 = vmul.f32 %v3708, %v3693
        %v3714 = vadd.f32 %v3689, %v3709
        %v3715 = vadd.f32 %v3690, %v3710
        %v3716 = vadd.f32 %v3691, %v3711
        %v3717 = vadd.f32 %v3692, %v3712
        %v3718 = vadd.f32 %v3693, %v3713
        %v3719 = vmul.f32 %v3714, 0.7978846
        %v3720 = vmul.f32 %v3715, 0.7978846
        %v3721 = vmul.f32 %v3716, 0.7978846
        %v3722 = vmul.f32 %v3717, 0.7978846
        %v3723 = vmul.f32 %v3718, 0.7978846
        %v3724 = vtanh.pop %v3719
        %v3725 = vtanh.pop %v3720
        %v3726 = vtanh.pop %v3721
        %v3727 = vtanh.pop %v3722
        %v3728 = vtanh.pop %v3723
        %v3729 = vadd.f32 %v3724, 1.0
        %v3730 = vadd.f32 %v3725, 1.0
        %v3731 = vadd.f32 %v3726, 1.0
        %v3732 = vadd.f32 %v3727, 1.0
        %v3733 = vadd.f32 %v3728, 1.0
        %v3734 = vmul.f32 %v3694, %v3729
        %v3735 = vmul.f32 %v3695, %v3730
        %v3736 = vmul.f32 %v3696, %v3731
        %v3737 = vmul.f32 %v3697, %v3732
        %v3738 = vmul.f32 %v3698, %v3733
        %v3739 = vstv %s3513
        %v3740 = vmul.f32 %v3617, %v3739
        %v3741 = vmul.f32 %v3618, %v3739
        %v3742 = vmul.f32 %v3619, %v3739
        %v3743 = vmul.f32 %v3620, %v3739
        %v3744 = vmul.f32 %v3621, %v3739
        %v3745 = vstv %s3514
        %v3746 = vmul.f32 %v3666, %v3745
        %v3747 = vmul.f32 %v3667, %v3745
        %v3748 = vmul.f32 %v3668, %v3745
        %v3749 = vmul.f32 %v3669, %v3745
        %v3750 = vmul.f32 %v3670, %v3745
        %v3751 = vadd.f32 %v3740, %v3746
        %v3752 = vadd.f32 %v3741, %v3747
        %v3753 = vadd.f32 %v3742, %v3748
        %v3754 = vadd.f32 %v3743, %v3749
        %v3755 = vadd.f32 %v3744, %v3750
        %v3756 = vstv %s3516
        %v3757 = vadd.f32 %v3751, %v3756
        %v3758 = vadd.f32 %v3752, %v3756
        %v3759 = vadd.f32 %v3753, %v3756
        %v3760 = vadd.f32 %v3754, %v3756
        %v3761 = vadd.f32 %v3755, %v3756
        %v3762 = vmul.f32 %v3757, 0.5
        %v3763 = vmul.f32 %v3758, 0.5
        %v3764 = vmul.f32 %v3759, 0.5
        %v3765 = vmul.f32 %v3760, 0.5
        %v3766 = vmul.f32 %v3761, 0.5
        %v3767 = vmul.f32 %v3757, 0.044715
        %v3768 = vmul.f32 %v3758, 0.044715
        %v3769 = vmul.f32 %v3759, 0.044715
        %v3770 = vmul.f32 %v3760, 0.044715
        %v3771 = vmul.f32 %v3761, 0.044715
        %v3772 = vmul.f32 %v3767, %v3757
        %v3773 = vmul.f32 %v3768, %v3758
        %v3774 = vmul.f32 %v3769, %v3759
        %v3775 = vmul.f32 %v3770, %v3760
        %v3776 = vmul.f32 %v3771, %v3761
        %v3777 = vmul.f32 %v3772, %v3757
        %v3778 = vmul.f32 %v3773, %v3758
        %v3779 = vmul.f32 %v3774, %v3759
        %v3780 = vmul.f32 %v3775, %v3760
        %v3781 = vmul.f32 %v3776, %v3761
        %v3782 = vadd.f32 %v3757, %v3777
        %v3783 = vadd.f32 %v3758, %v3778
        %v3784 = vadd.f32 %v3759, %v3779
        %v3785 = vadd.f32 %v3760, %v3780
        %v3786 = vadd.f32 %v3761, %v3781
        %v3787 = vmul.f32 %v3782, 0.7978846
        %v3788 = vmul.f32 %v3783, 0.7978846
        %v3789 = vmul.f32 %v3784, 0.7978846
        %v3790 = vmul.f32 %v3785, 0.7978846
        %v3791 = vmul.f32 %v3786, 0.7978846
        %v3792 = vtanh.pop %v3787
        %v3793 = vtanh.pop %v3788
        %v3794 = vtanh.pop %v3789
        %v3795 = vtanh.pop %v3790
        %v3796 = vtanh.pop %v3791
        %v3797 = vadd.f32 %v3792, 1.0
        %v3798 = vadd.f32 %v3793, 1.0
        %v3799 = vadd.f32 %v3794, 1.0
        %v3800 = vadd.f32 %v3795, 1.0
        %v3801 = vadd.f32 %v3796, 1.0
        %v3802 = vmul.f32 %v3762, %v3797
        %v3803 = vmul.f32 %v3763, %v3798
        %v3804 = vmul.f32 %v3764, %v3799
        %v3805 = vmul.f32 %v3765, %v3800
        %v3806 = vmul.f32 %v3766, %v3801
        %v3807 = vstv %s3517
        %v3808 = vmul.f32 %v3734, %v3807
        %v3809 = vmul.f32 %v3735, %v3807
        %v3810 = vmul.f32 %v3736, %v3807
        %v3811 = vmul.f32 %v3737, %v3807
        %v3812 = vmul.f32 %v3738, %v3807
        %v3813 = vstv %s3518
        %v3814 = vmul.f32 %v3802, %v3813
        %v3815 = vmul.f32 %v3803, %v3813
        %v3816 = vmul.f32 %v3804, %v3813
        %v3817 = vmul.f32 %v3805, %v3813
        %v3818 = vmul.f32 %v3806, %v3813
        %v3819 = vadd.f32 %v3808, %v3814
        %v3820 = vadd.f32 %v3809, %v3815
        %v3821 = vadd.f32 %v3810, %v3816
        %v3822 = vadd.f32 %v3811, %v3817
        %v3823 = vadd.f32 %v3812, %v3818
        %v3824 = vadd.f32 %v3210, %v3819
        %v3825 = vadd.f32 %v3211, %v3820
        %v3826 = vadd.f32 %v3212, %v3821
        %v3827 = vadd.f32 %v3213, %v3822
        %v3828 = vadd.f32 %v3214, %v3823
        %v3829 = vstv %s3521
        %v3830 = vadd.f32 %v3824, %v3829
        %v3831 = vadd.f32 %v3825, %v3829
        %v3832 = vadd.f32 %v3826, %v3829
        %v3833 = vadd.f32 %v3827, %v3829
        %v3834 = vadd.f32 %v3828, %v3829
        %v3835 = vstv %s3519
        %v3836 = vmul.f32 %v3734, %v3835
        %v3837 = vmul.f32 %v3735, %v3835
        %v3838 = vmul.f32 %v3736, %v3835
        %v3839 = vmul.f32 %v3737, %v3835
        %v3840 = vmul.f32 %v3738, %v3835
        %v3841 = vstv %s3520
        %v3842 = vmul.f32 %v3802, %v3841
        %v3843 = vmul.f32 %v3803, %v3841
        %v3844 = vmul.f32 %v3804, %v3841
        %v3845 = vmul.f32 %v3805, %v3841
        %v3846 = vmul.f32 %v3806, %v3841
        %v3847 = vadd.f32 %v3836, %v3842
        %v3848 = vadd.f32 %v3837, %v3843
        %v3849 = vadd.f32 %v3838, %v3844
        %v3850 = vadd.f32 %v3839, %v3845
        %v3851 = vadd.f32 %v3840, %v3846
        %v3852 = vadd.f32 %v3494, %v3847
        %v3853 = vadd.f32 %v3495, %v3848
        %v3854 = vadd.f32 %v3496, %v3849
        %v3855 = vadd.f32 %v3497, %v3850
        %v3856 = vadd.f32 %v3498, %v3851
        %v3857 = vstv %s3522
        %v3858 = vadd.f32 %v3852, %v3857
        %v3859 = vadd.f32 %v3853, %v3857
        %v3860 = vadd.f32 %v3854, %v3857
        %v3861 = vadd.f32 %v3855, %v3857
        %v3862 = vadd.f32 %v3856, %v3857
        %s3863 = scalar_lea.vmem %s4, 120
        %v3864 = vld [vmem:[%s3863] sm:$0xff]
        %v3865 = vld [vmem:[%s3863 + $0x8] sm:$0xff]
        %v3866 = vld [vmem:[%s3863 + $0x10] sm:$0xff]
        %v3867 = vld [vmem:[%s3863 + $0x18] sm:$0xff]
        %v3868 = vld [vmem:[%s3863 + $0x20] sm:$0xff]
        %s3869 = scalar_lea.vmem %s5, 120
        %v3870 = vld [vmem:[%s3869] sm:$0xff]
        %v3871 = vld [vmem:[%s3869 + $0x8] sm:$0xff]
        %v3872 = vld [vmem:[%s3869 + $0x10] sm:$0xff]
        %v3873 = vld [vmem:[%s3869 + $0x18] sm:$0xff]
        %v3874 = vld [vmem:[%s3869 + $0x20] sm:$0xff]
        %s3875 = scalar_lea.vmem %s6, 120
        %v3876 = vld [vmem:[%s3875] sm:$0xff]
        %v3877 = vld [vmem:[%s3875 + $0x8] sm:$0xff]
        %v3878 = vld [vmem:[%s3875 + $0x10] sm:$0xff]
        %v3879 = vld [vmem:[%s3875 + $0x18] sm:$0xff]
        %v3880 = vld [vmem:[%s3875 + $0x20] sm:$0xff]
        %s3881 = scalar_lea.vmem %s7, 120
        %v3882 = vld [vmem:[%s3881] sm:$0xff]
        %v3883 = vld [vmem:[%s3881 + $0x8] sm:$0xff]
        %v3884 = vld [vmem:[%s3881 + $0x10] sm:$0xff]
        %v3885 = vld [vmem:[%s3881 + $0x18] sm:$0xff]
        %v3886 = vld [vmem:[%s3881 + $0x20] sm:$0xff]
        %v3887 = vadd.f32 %v3830, %v3831
        %v3888 = vadd.f32 %v3887, %v3832
        %v3889 = vadd.f32 %v3888, %v3833
        %v3890 = vadd.f32 %v3889, %v3834
        %v3891 = vrot.slane %v3890, 4
        %v3892 = vadd.f32 %v3890, %v3891
        %v3893 = vrot.slane %v3892, 2
        %v3894 = vadd.f32 %v3892, %v3893
        %v3895 = vrot.slane %v3894, 1
        %v3896 = vadd.f32 %v3894, %v3895
        %v3897 = vmul.f32 %v3896, %v427
        %v3898 = vsub.f32 %v3830, %v3897
        %v3899 = vsub.f32 %v3831, %v3897
        %v3900 = vsub.f32 %v3832, %v3897
        %v3901 = vsub.f32 %v3833, %v3897
        %v3902 = vsub.f32 %v3834, %v3897
        %v3903 = vmul.f32 %v3898, %v3898
        %v3904 = vmul.f32 %v3899, %v3899
        %v3905 = vmul.f32 %v3900, %v3900
        %v3906 = vmul.f32 %v3901, %v3901
        %v3907 = vmul.f32 %v3902, %v3902
        %v3908 = vadd.f32 %v3903, %v3904
        %v3909 = vadd.f32 %v3908, %v3905
        %v3910 = vadd.f32 %v3909, %v3906
        %v3911 = vadd.f32 %v3910, %v3907
        %v3912 = vrot.slane %v3911, 4
        %v3913 = vadd.f32 %v3911, %v3912
        %v3914 = vrot.slane %v3913, 2
        %v3915 = vadd.f32 %v3913, %v3914
        %v3916 = vrot.slane %v3915, 1
        %v3917 = vadd.f32 %v3915, %v3916
        %v3918 = vmul.f32 %v3917, %v427
        %v3919 = vadd.f32 %v3918, 1e-05
        %v3920 = vrsqrt.pop %v3919
        %v3921 = vmul.f32 %v3898, %v3920
        %v3922 = vmul.f32 %v3899, %v3920
        %v3923 = vmul.f32 %v3900, %v3920
        %v3924 = vmul.f32 %v3901, %v3920
        %v3925 = vmul.f32 %v3902, %v3920
        %v3926 = vmul.f32 %v3921, %v3565
        %v3927 = vmul.f32 %v3922, %v3570
        %v3928 = vmul.f32 %v3923, %v3575
        %v3929 = vmul.f32 %v3924, %v3580
        %v3930 = vmul.f32 %v3925, %v3585
        %v3931 = vadd.f32 %v3926, %v3595
        %v3932 = vadd.f32 %v3927, %v3600
        %v3933 = vadd.f32 %v3928, %v3605
        %v3934 = vadd.f32 %v3929, %v3610
        %v3935 = vadd.f32 %v3930, %v3615
        %3937 = vset.pattern.permute.xlu0 0
        %3938 = vperm.xlu0 %3937, %v3870
        %v3939 = vpop.permute.xlu0 %3938
        %3942 = vset.pattern.permute.xlu0 0
        %3943 = vperm.xlu0 %3942, %v3871
        %v3944 = vpop.permute.xlu0 %3943
        %3947 = vset.pattern.permute.xlu0 0
        %3948 = vperm.xlu0 %3947, %v3872
        %v3949 = vpop.permute.xlu0 %3948
        %3952 = vset.pattern.permute.xlu0 0
        %3953 = vperm.xlu0 %3952, %v3873
        %v3954 = vpop.permute.xlu0 %3953
        %3957 = vset.pattern.permute.xlu0 0
        %3958 = vperm.xlu0 %3957, %v3874
        %v3959 = vpop.permute.xlu0 %3958
        %v3962 = vsel %vm852, %v3864, 0
        %v3965 = vsel %vm852, %v3865, 0
        %v3968 = vsel %vm852, %v3866, 0
        %v3971 = vsel %vm852, %v3867, 0
        %v3974 = vsel %vm852, %v3868, 0
        %3976 = vmatprep.subr.mxu0 0.0
        %3977 = vmatpush1.msra.mxu0 %v3931
        %3978 = vmatprep.subr.mxu0 0.0
        %3979 = vmatpush1.msra.mxu0 %v3932
        %3980 = vmatprep.subr.mxu0 0.0
        %3981 = vmatpush1.msra.mxu0 %v3933
        %3982 = vmatprep.subr.mxu0 0.0
        %3983 = vmatpush1.msra.mxu0 %v3934
        %3984 = vmatprep.subr.mxu0 0.0
        %3985 = vmatpush1.msra.mxu0 %v3935
        %3986 = vmatprep.subr.mxu0 0.0
        %3987 = vmatpush1.msra.mxu0 0.0
        %3988 = vmatprep.subr.mxu0 0.0
        %3989 = vmatpush1.msra.mxu0 0.0
        %3990 = vmatprep.subr.mxu0 0.0
        %3991 = vmatpush1.msra.mxu0 0.0
        %3992 = vmatprep.subr.mxu0 0.0
        %3993 = vmatpush1.msra.mxu0 0.0
        %3994 = vmatprep.subr.mxu0 0.0
        %3995 = vmatpush1.msra.mxu0 0.0
        %3996 = vmatprep.subr.mxu0 0.0
        %3997 = vmatpush1.msra.mxu0 0.0
        %3998 = vmatprep.subr.mxu0 0.0
        %3999 = vmatpush1.msra.mxu0 0.0
        %4000 = vmatprep.subr.mxu0 0.0
        %4001 = vmatpush1.msra.mxu0 0.0
        %4002 = vmatprep.subr.mxu0 0.0
        %4003 = vmatpush1.msra.mxu0 0.0
        %4004 = vmatprep.subr.mxu0 0.0
        %4005 = vmatpush1.msra.mxu0 0.0
        %4006 = vmatprep.subr.mxu0 0.0
        %4007 = vmatpush1.msra.mxu0 0.0
        %4008 = vmatprep.subr.mxu0 0.0
        %4009 = vmatpush1.msra.mxu0 0.0
        %4010 = vmatprep.subr.mxu0 0.0
        %4011 = vmatpush1.msra.mxu0 0.0
        %4012 = vmatprep.subr.mxu0 0.0
        %4013 = vmatpush1.msra.mxu0 0.0
        %4014 = vmatprep.subr.mxu0 0.0
        %4015 = vmatpush1.msra.mxu0 0.0
        %4016 = vmatprep.subr.mxu0 0.0
        %4017 = vmatpush1.msra.mxu0 0.0
        %4018 = vmatprep.subr.mxu0 0.0
        %4019 = vmatpush1.msra.mxu0 0.0
        %4020 = vmatprep.subr.mxu0 0.0
        %4021 = vmatpush1.msra.mxu0 0.0
        %4022 = vmatprep.subr.mxu0 0.0
        %4023 = vmatpush1.msra.mxu0 0.0
        %4024 = vmatprep.subr.mxu0 0.0
        %4025 = vmatpush1.msra.mxu0 0.0
        %4026 = vmatprep.subr.mxu0 0.0
        %4027 = vmatpush1.msra.mxu0 0.0
        %4028 = vmatprep.subr.mxu0 0.0
        %4029 = vmatpush1.msra.mxu0 0.0
        %4030 = vmatprep.subr.mxu0 0.0
        %4031 = vmatpush1.msra.mxu0 0.0
        %4032 = vmatprep.subr.mxu0 0.0
        %4033 = vmatpush1.msra.mxu0 0.0
        %4034 = vmatprep.subr.mxu0 0.0
        %4035 = vmatpush1.msra.mxu0 0.0
        %4036 = vmatprep.subr.mxu0 0.0
        %4037 = vmatpush1.msra.mxu0 0.0
        %4038 = vmatprep.subr.mxu0 0.0
        %4039 = vmatpush1.msra.mxu0 0.0
        %4040 = vmatprep.mubr.f32.mxu0 0.0
        %4041 = vmatmul.mubr.f32.gmra.mrb[0].mxu0 %v3962
        %v4042 = vpop.f32.mrb[0].mxu0
        %v4043 = vadd.f32 %v3939, %v4042
        %v4044 = vpop.f32.mrb[0].mxu0
        %4045 = vmatprep.mubr.f32.mxu0 0.0
        %4046 = vmatmul.mubr.f32.gmra.mrb[0].mxu0 %v3965
        %v4047 = vpop.f32.mrb[0].mxu0
        %v4048 = vadd.f32 %v3944, %v4047
        %v4049 = vpop.f32.mrb[0].mxu0
        %4050 = vmatprep.mubr.f32.mxu0 0.0
        %4051 = vmatmul.mubr.f32.gmra.mrb[0].mxu0 %v3968
        %v4052 = vpop.f32.mrb[0].mxu0
        %v4053 = vadd.f32 %v3949, %v4052
        %v4054 = vpop.f32.mrb[0].mxu0
        %4055 = vmatprep.mubr.f32.mxu0 0.0
        %4056 = vmatmul.mubr.f32.gmra.mrb[0].mxu0 %v3971
        %v4057 = vpop.f32.mrb[0].mxu0
        %v4058 = vadd.f32 %v3954, %v4057
        %v4059 = vpop.f32.mrb[0].mxu0
        %4060 = vmatprep.mubr.f32.mxu0 0.0
        %4061 = vmatmul.mubr.f32.gmra.mrb[0].mxu0 %v3974
        %v4062 = vpop.f32.mrb[0].mxu0
        %v4063 = vadd.f32 %v3959, %v4062
        %v4064 = vpop.f32.mrb[0].mxu0
        %4065 = vdwg.mxu0
        %v4066 = vmul.f32 %v4043, 0.5
        %v4067 = vmul.f32 %v4048, 0.5
        %v4068 = vmul.f32 %v4053, 0.5
        %v4069 = vmul.f32 %v4058, 0.5
        %v4070 = vmul.f32 %v4063, 0.5
        %v4071 = vmul.f32 %v4043, 0.044715
        %v4072 = vmul.f32 %v4048, 0.044715
        %v4073 = vmul.f32 %v4053, 0.044715
        %v4074 = vmul.f32 %v4058, 0.044715
        %v4075 = vmul.f32 %v4063, 0.044715
        %v4076 = vmul.f32 %v4071, %v4043
        %v4077 = vmul.f32 %v4072, %v4048
        %v4078 = vmul.f32 %v4073, %v4053
        %v4079 = vmul.f32 %v4074, %v4058
        %v4080 = vmul.f32 %v4075, %v4063
        %v4081 = vmul.f32 %v4076, %v4043
        %v4082 = vmul.f32 %v4077, %v4048
        %v4083 = vmul.f32 %v4078, %v4053
        %v4084 = vmul.f32 %v4079, %v4058
        %v4085 = vmul.f32 %v4080, %v4063
        %v4086 = vadd.f32 %v4043, %v4081
        %v4087 = vadd.f32 %v4048, %v4082
        %v4088 = vadd.f32 %v4053, %v4083
        %v4089 = vadd.f32 %v4058, %v4084
        %v4090 = vadd.f32 %v4063, %v4085
        %v4091 = vmul.f32 %v4086, 0.7978846
        %v4092 = vmul.f32 %v4087, 0.7978846
        %v4093 = vmul.f32 %v4088, 0.7978846
        %v4094 = vmul.f32 %v4089, 0.7978846
        %v4095 = vmul.f32 %v4090, 0.7978846
        %v4096 = vtanh.pop %v4091
        %v4097 = vtanh.pop %v4092
        %v4098 = vtanh.pop %v4093
        %v4099 = vtanh.pop %v4094
        %v4100 = vtanh.pop %v4095
        %v4101 = vadd.f32 %v4096, 1.0
        %v4102 = vadd.f32 %v4097, 1.0
        %v4103 = vadd.f32 %v4098, 1.0
        %v4104 = vadd.f32 %v4099, 1.0
        %v4105 = vadd.f32 %v4100, 1.0
        %v4106 = vmul.f32 %v4066, %v4101
        %v4107 = vmul.f32 %v4067, %v4102
        %v4108 = vmul.f32 %v4068, %v4103
        %v4109 = vmul.f32 %v4069, %v4104
        %v4110 = vmul.f32 %v4070, %v4105
        %v4112 = vsel %vm852, %v3876, 0
        %v4115 = vsel %vm852, %v3877, 0
        %v4118 = vsel %vm852, %v3878, 0
        %v4121 = vsel %vm852, %v3879, 0
        %v4124 = vsel %vm852, %v3880, 0
        %4126 = vmatprep.subr.mxu0 0.0
        %4127 = vmatpush1.msra.mxu0 %v4106
        %4128 = vmatprep.subr.mxu0 0.0
        %4129 = vmatpush1.msra.mxu0 %v4107
        %4130 = vmatprep.subr.mxu0 0.0
        %4131 = vmatpush1.msra.mxu0 %v4108
        %4132 = vmatprep.subr.mxu0 0.0
        %4133 = vmatpush1.msra.mxu0 %v4109
        %4134 = vmatprep.subr.mxu0 0.0
        %4135 = vmatpush1.msra.mxu0 %v4110
        %4136 = vmatprep.subr.mxu0 0.0
        %4137 = vmatpush1.msra.mxu0 0.0
        %4138 = vmatprep.subr.mxu0 0.0
        %4139 = vmatpush1.msra.mxu0 0.0
        %4140 = vmatprep.subr.mxu0 0.0
        %4141 = vmatpush1.msra.mxu0 0.0
        %4142 = vmatprep.subr.mxu0 0.0
        %4143 = vmatpush1.msra.mxu0 0.0
        %4144 = vmatprep.subr.mxu0 0.0
        %4145 = vmatpush1.msra.mxu0 0.0
        %4146 = vmatprep.subr.mxu0 0.0
        %4147 = vmatpush1.msra.mxu0 0.0
        %4148 = vmatprep.subr.mxu0 0.0
        %4149 = vmatpush1.msra.mxu0 0.0
        %4150 = vmatprep.subr.mxu0 0.0
        %4151 = vmatpush1.msra.mxu0 0.0
        %4152 = vmatprep.subr.mxu0 0.0
        %4153 = vmatpush1.msra.mxu0 0.0
        %4154 = vmatprep.subr.mxu0 0.0
        %4155 = vmatpush1.msra.mxu0 0.0
        %4156 = vmatprep.subr.mxu0 0.0
        %4157 = vmatpush1.msra.mxu0 0.0
        %4158 = vmatprep.subr.mxu0 0.0
        %4159 = vmatpush1.msra.mxu0 0.0
        %4160 = vmatprep.subr.mxu0 0.0
        %4161 = vmatpush1.msra.mxu0 0.0
        %4162 = vmatprep.subr.mxu0 0.0
        %4163 = vmatpush1.msra.mxu0 0.0
        %4164 = vmatprep.subr.mxu0 0.0
        %4165 = vmatpush1.msra.mxu0 0.0
        %4166 = vmatprep.subr.mxu0 0.0
        %4167 = vmatpush1.msra.mxu0 0.0
        %4168 = vmatprep.subr.mxu0 0.0
        %4169 = vmatpush1.msra.mxu0 0.0
        %4170 = vmatprep.subr.mxu0 0.0
        %4171 = vmatpush1.msra.mxu0 0.0
        %4172 = vmatprep.subr.mxu0 0.0
        %4173 = vmatpush1.msra.mxu0 0.0
        %4174 = vmatprep.subr.mxu0 0.0
        %4175 = vmatpush1.msra.mxu0 0.0
        %4176 = vmatprep.subr.mxu0 0.0
        %4177 = vmatpush1.msra.mxu0 0.0
        %4178 = vmatprep.subr.mxu0 0.0
        %4179 = vmatpush1.msra.mxu0 0.0
        %4180 = vmatprep.subr.mxu0 0.0
        %4181 = vmatpush1.msra.mxu0 0.0
        %4182 = vmatprep.subr.mxu0 0.0
        %4183 = vmatpush1.msra.mxu0 0.0
        %4184 = vmatprep.subr.mxu0 0.0
        %4185 = vmatpush1.msra.mxu0 0.0
        %4186 = vmatprep.subr.mxu0 0.0
        %4187 = vmatpush1.msra.mxu0 0.0
        %4188 = vmatprep.subr.mxu0 0.0
        %4189 = vmatpush1.msra.mxu0 0.0
        %4190 = vmatprep.mubr.f32.mxu0 0.0
        %4191 = vmatmul.mubr.f32.gmra.mrb[0].mxu0 %v4112
        %v4192 = vpop.f32.mrb[0].mxu0
        %v4193 = vadd.f32 0.0, %v4192
        %v4194 = vpop.f32.mrb[0].mxu0
        %4195 = vmatprep.mubr.f32.mxu0 0.0
        %4196 = vmatmul.mubr.f32.gmra.mrb[0].mxu0 %v4115
        %v4197 = vpop.f32.mrb[0].mxu0
        %v4198 = vadd.f32 0.0, %v4197
        %v4199 = vpop.f32.mrb[0].mxu0
        %4200 = vmatprep.mubr.f32.mxu0 0.0
        %4201 = vmatmul.mubr.f32.gmra.mrb[0].mxu0 %v4118
        %v4202 = vpop.f32.mrb[0].mxu0
        %v4203 = vadd.f32 0.0, %v4202
        %v4204 = vpop.f32.mrb[0].mxu0
        %4205 = vmatprep.mubr.f32.mxu0 0.0
        %4206 = vmatmul.mubr.f32.gmra.mrb[0].mxu0 %v4121
        %v4207 = vpop.f32.mrb[0].mxu0
        %v4208 = vadd.f32 0.0, %v4207
        %v4209 = vpop.f32.mrb[0].mxu0
        %4210 = vmatprep.mubr.f32.mxu0 0.0
        %4211 = vmatmul.mubr.f32.gmra.mrb[0].mxu0 %v4124
        %v4212 = vpop.f32.mrb[0].mxu0
        %v4213 = vadd.f32 0.0, %v4212
        %v4214 = vpop.f32.mrb[0].mxu0
        %4215 = vdwg.mxu0
        %v4216 = vadd.f32 %v3830, %v4193
        %v4217 = vadd.f32 %v3831, %v4198
        %v4218 = vadd.f32 %v3832, %v4203
        %v4219 = vadd.f32 %v3833, %v4208
        %v4220 = vadd.f32 %v3834, %v4213
        %4222 = vset.pattern.permute.xlu0 0
        %4223 = vperm.xlu0 %4222, %v3882
        %v4224 = vpop.permute.xlu0 %4223
        %4227 = vset.pattern.permute.xlu0 0
        %4228 = vperm.xlu0 %4227, %v3883
        %v4229 = vpop.permute.xlu0 %4228
        %4232 = vset.pattern.permute.xlu0 0
        %4233 = vperm.xlu0 %4232, %v3884
        %v4234 = vpop.permute.xlu0 %4233
        %4237 = vset.pattern.permute.xlu0 0
        %4238 = vperm.xlu0 %4237, %v3885
        %v4239 = vpop.permute.xlu0 %4238
        %4242 = vset.pattern.permute.xlu0 0
        %4243 = vperm.xlu0 %4242, %v3886
        %v4244 = vpop.permute.xlu0 %4243
        %v4246 = vadd.f32 %v4216, %v4224
        %v4247 = vadd.f32 %v4217, %v4229
        %v4248 = vadd.f32 %v4218, %v4234
        %v4249 = vadd.f32 %v4219, %v4239
        %v4250 = vadd.f32 %v4220, %v4244
        %v4251 = vadd.f32 %v3858, %v3859
        %v4252 = vadd.f32 %v4251, %v3860
        %v4253 = vadd.f32 %v4252, %v3861
        %v4254 = vadd.f32 %v4253, %v3862
        %v4255 = vrot.slane %v4254, 4
        %v4256 = vadd.f32 %v4254, %v4255
        %v4257 = vrot.slane %v4256, 2
        %v4258 = vadd.f32 %v4256, %v4257
        %v4259 = vrot.slane %v4258, 1
        %v4260 = vadd.f32 %v4258, %v4259
        %v4261 = vmul.f32 %v4260, %v427
        %v4262 = vsub.f32 %v3858, %v4261
        %v4263 = vsub.f32 %v3859, %v4261
        %v4264 = vsub.f32 %v3860, %v4261
        %v4265 = vsub.f32 %v3861, %v4261
        %v4266 = vsub.f32 %v3862, %v4261
        %v4267 = vmul.f32 %v4262, %v4262
        %v4268 = vmul.f32 %v4263, %v4263
        %v4269 = vmul.f32 %v4264, %v4264
        %v4270 = vmul.f32 %v4265, %v4265
        %v4271 = vmul.f32 %v4266, %v4266
        %v4272 = vadd.f32 %v4267, %v4268
        %v4273 = vadd.f32 %v4272, %v4269
        %v4274 = vadd.f32 %v4273, %v4270
        %v4275 = vadd.f32 %v4274, %v4271
        %v4276 = vrot.slane %v4275, 4
        %v4277 = vadd.f32 %v4275, %v4276
        %v4278 = vrot.slane %v4277, 2
        %v4279 = vadd.f32 %v4277, %v4278
        %v4280 = vrot.slane %v4279, 1
        %v4281 = vadd.f32 %v4279, %v4280
        %v4282 = vmul.f32 %v4281, %v427
        %v4283 = vadd.f32 %v4282, 1e-05
        %v4284 = vrsqrt.pop %v4283
        %v4285 = vmul.f32 %v4262, %v4284
        %v4286 = vmul.f32 %v4263, %v4284
        %v4287 = vmul.f32 %v4264, %v4284
        %v4288 = vmul.f32 %v4265, %v4284
        %v4289 = vmul.f32 %v4266, %v4284
        %v4290 = vmul.f32 %v4285, %v3565
        %v4291 = vmul.f32 %v4286, %v3570
        %v4292 = vmul.f32 %v4287, %v3575
        %v4293 = vmul.f32 %v4288, %v3580
        %v4294 = vmul.f32 %v4289, %v3585
        %v4295 = vadd.f32 %v4290, %v3595
        %v4296 = vadd.f32 %v4291, %v3600
        %v4297 = vadd.f32 %v4292, %v3605
        %v4298 = vadd.f32 %v4293, %v3610
        %v4299 = vadd.f32 %v4294, %v3615
        %4300 = vmatprep.subr.mxu0 0.0
        %4301 = vmatpush1.msra.mxu0 %v4295
        %4302 = vmatprep.subr.mxu0 0.0
        %4303 = vmatpush1.msra.mxu0 %v4296
        %4304 = vmatprep.subr.mxu0 0.0
        %4305 = vmatpush1.msra.mxu0 %v4297
        %4306 = vmatprep.subr.mxu0 0.0
        %4307 = vmatpush1.msra.mxu0 %v4298
        %4308 = vmatprep.subr.mxu0 0.0
        %4309 = vmatpush1.msra.mxu0 %v4299
        %4310 = vmatprep.subr.mxu0 0.0
        %4311 = vmatpush1.msra.mxu0 0.0
        %4312 = vmatprep.subr.mxu0 0.0
        %4313 = vmatpush1.msra.mxu0 0.0
        %4314 = vmatprep.subr.mxu0 0.0
        %4315 = vmatpush1.msra.mxu0 0.0
        %4316 = vmatprep.subr.mxu0 0.0
        %4317 = vmatpush1.msra.mxu0 0.0
        %4318 = vmatprep.subr.mxu0 0.0
        %4319 = vmatpush1.msra.mxu0 0.0
        %4320 = vmatprep.subr.mxu0 0.0
        %4321 = vmatpush1.msra.mxu0 0.0
        %4322 = vmatprep.subr.mxu0 0.0
        %4323 = vmatpush1.msra.mxu0 0.0
        %4324 = vmatprep.subr.mxu0 0.0
        %4325 = vmatpush1.msra.mxu0 0.0
        %4326 = vmatprep.subr.mxu0 0.0
        %4327 = vmatpush1.msra.mxu0 0.0
        %4328 = vmatprep.subr.mxu0 0.0
        %4329 = vmatpush1.msra.mxu0 0.0
        %4330 = vmatprep.subr.mxu0 0.0
        %4331 = vmatpush1.msra.mxu0 0.0
        %4332 = vmatprep.subr.mxu0 0.0
        %4333 = vmatpush1.msra.mxu0 0.0
        %4334 = vmatprep.subr.mxu0 0.0
        %4335 = vmatpush1.msra.mxu0 0.0
        %4336 = vmatprep.subr.mxu0 0.0
        %4337 = vmatpush1.msra.mxu0 0.0
        %4338 = vmatprep.subr.mxu0 0.0
        %4339 = vmatpush1.msra.mxu0 0.0
        %4340 = vmatprep.subr.mxu0 0.0
        %4341 = vmatpush1.msra.mxu0 0.0
        %4342 = vmatprep.subr.mxu0 0.0
        %4343 = vmatpush1.msra.mxu0 0.0
        %4344 = vmatprep.subr.mxu0 0.0
        %4345 = vmatpush1.msra.mxu0 0.0
        %4346 = vmatprep.subr.mxu0 0.0
        %4347 = vmatpush1.msra.mxu0 0.0
        %4348 = vmatprep.subr.mxu0 0.0
        %4349 = vmatpush1.msra.mxu0 0.0
        %4350 = vmatprep.subr.mxu0 0.0
        %4351 = vmatpush1.msra.mxu0 0.0
        %4352 = vmatprep.subr.mxu0 0.0
        %4353 = vmatpush1.msra.mxu0 0.0
        %4354 = vmatprep.subr.mxu0 0.0
        %4355 = vmatpush1.msra.mxu0 0.0
        %4356 = vmatprep.subr.mxu0 0.0
        %4357 = vmatpush1.msra.mxu0 0.0
        %4358 = vmatprep.subr.mxu0 0.0
        %4359 = vmatpush1.msra.mxu0 0.0
        %4360 = vmatprep.subr.mxu0 0.0
        %4361 = vmatpush1.msra.mxu0 0.0
        %4362 = vmatprep.subr.mxu0 0.0
        %4363 = vmatpush1.msra.mxu0 0.0
        %4364 = vmatprep.mubr.f32.mxu0 0.0
        %4365 = vmatmul.mubr.f32.gmra.mrb[0].mxu0 %v3962
        %v4366 = vpop.f32.mrb[0].mxu0
        %v4367 = vadd.f32 %v3939, %v4366
        %v4368 = vpop.f32.mrb[0].mxu0
        %4369 = vmatprep.mubr.f32.mxu0 0.0
        %4370 = vmatmul.mubr.f32.gmra.mrb[0].mxu0 %v3965
        %v4371 = vpop.f32.mrb[0].mxu0
        %v4372 = vadd.f32 %v3944, %v4371
        %v4373 = vpop.f32.mrb[0].mxu0
        %4374 = vmatprep.mubr.f32.mxu0 0.0
        %4375 = vmatmul.mubr.f32.gmra.mrb[0].mxu0 %v3968
        %v4376 = vpop.f32.mrb[0].mxu0
        %v4377 = vadd.f32 %v3949, %v4376
        %v4378 = vpop.f32.mrb[0].mxu0
        %4379 = vmatprep.mubr.f32.mxu0 0.0
        %4380 = vmatmul.mubr.f32.gmra.mrb[0].mxu0 %v3971
        %v4381 = vpop.f32.mrb[0].mxu0
        %v4382 = vadd.f32 %v3954, %v4381
        %v4383 = vpop.f32.mrb[0].mxu0
        %4384 = vmatprep.mubr.f32.mxu0 0.0
        %4385 = vmatmul.mubr.f32.gmra.mrb[0].mxu0 %v3974
        %v4386 = vpop.f32.mrb[0].mxu0
        %v4387 = vadd.f32 %v3959, %v4386
        %v4388 = vpop.f32.mrb[0].mxu0
        %4389 = vdwg.mxu0
        %v4390 = vmul.f32 %v4367, 0.5
        %v4391 = vmul.f32 %v4372, 0.5
        %v4392 = vmul.f32 %v4377, 0.5
        %v4393 = vmul.f32 %v4382, 0.5
        %v4394 = vmul.f32 %v4387, 0.5
        %v4395 = vmul.f32 %v4367, 0.044715
        %v4396 = vmul.f32 %v4372, 0.044715
        %v4397 = vmul.f32 %v4377, 0.044715
        %v4398 = vmul.f32 %v4382, 0.044715
        %v4399 = vmul.f32 %v4387, 0.044715
        %v4400 = vmul.f32 %v4395, %v4367
        %v4401 = vmul.f32 %v4396, %v4372
        %v4402 = vmul.f32 %v4397, %v4377
        %v4403 = vmul.f32 %v4398, %v4382
        %v4404 = vmul.f32 %v4399, %v4387
        %v4405 = vmul.f32 %v4400, %v4367
        %v4406 = vmul.f32 %v4401, %v4372
        %v4407 = vmul.f32 %v4402, %v4377
        %v4408 = vmul.f32 %v4403, %v4382
        %v4409 = vmul.f32 %v4404, %v4387
        %v4410 = vadd.f32 %v4367, %v4405
        %v4411 = vadd.f32 %v4372, %v4406
        %v4412 = vadd.f32 %v4377, %v4407
        %v4413 = vadd.f32 %v4382, %v4408
        %v4414 = vadd.f32 %v4387, %v4409
        %v4415 = vmul.f32 %v4410, 0.7978846
        %v4416 = vmul.f32 %v4411, 0.7978846
        %v4417 = vmul.f32 %v4412, 0.7978846
        %v4418 = vmul.f32 %v4413, 0.7978846
        %v4419 = vmul.f32 %v4414, 0.7978846
        %v4420 = vtanh.pop %v4415
        %v4421 = vtanh.pop %v4416
        %v4422 = vtanh.pop %v4417
        %v4423 = vtanh.pop %v4418
        %v4424 = vtanh.pop %v4419
        %v4425 = vadd.f32 %v4420, 1.0
        %v4426 = vadd.f32 %v4421, 1.0
        %v4427 = vadd.f32 %v4422, 1.0
        %v4428 = vadd.f32 %v4423, 1.0
        %v4429 = vadd.f32 %v4424, 1.0
        %v4430 = vmul.f32 %v4390, %v4425
        %v4431 = vmul.f32 %v4391, %v4426
        %v4432 = vmul.f32 %v4392, %v4427
        %v4433 = vmul.f32 %v4393, %v4428
        %v4434 = vmul.f32 %v4394, %v4429
        %4435 = vmatprep.subr.mxu0 0.0
        %4436 = vmatpush1.msra.mxu0 %v4430
        %4437 = vmatprep.subr.mxu0 0.0
        %4438 = vmatpush1.msra.mxu0 %v4431
        %4439 = vmatprep.subr.mxu0 0.0
        %4440 = vmatpush1.msra.mxu0 %v4432
        %4441 = vmatprep.subr.mxu0 0.0
        %4442 = vmatpush1.msra.mxu0 %v4433
        %4443 = vmatprep.subr.mxu0 0.0
        %4444 = vmatpush1.msra.mxu0 %v4434
        %4445 = vmatprep.subr.mxu0 0.0
        %4446 = vmatpush1.msra.mxu0 0.0
        %4447 = vmatprep.subr.mxu0 0.0
        %4448 = vmatpush1.msra.mxu0 0.0
        %4449 = vmatprep.subr.mxu0 0.0
        %4450 = vmatpush1.msra.mxu0 0.0
        %4451 = vmatprep.subr.mxu0 0.0
        %4452 = vmatpush1.msra.mxu0 0.0
        %4453 = vmatprep.subr.mxu0 0.0
        %4454 = vmatpush1.msra.mxu0 0.0
        %4455 = vmatprep.subr.mxu0 0.0
        %4456 = vmatpush1.msra.mxu0 0.0
        %4457 = vmatprep.subr.mxu0 0.0
        %4458 = vmatpush1.msra.mxu0 0.0
        %4459 = vmatprep.subr.mxu0 0.0
        %4460 = vmatpush1.msra.mxu0 0.0
        %4461 = vmatprep.subr.mxu0 0.0
        %4462 = vmatpush1.msra.mxu0 0.0
        %4463 = vmatprep.subr.mxu0 0.0
        %4464 = vmatpush1.msra.mxu0 0.0
        %4465 = vmatprep.subr.mxu0 0.0
        %4466 = vmatpush1.msra.mxu0 0.0
        %4467 = vmatprep.subr.mxu0 0.0
        %4468 = vmatpush1.msra.mxu0 0.0
        %4469 = vmatprep.subr.mxu0 0.0
        %4470 = vmatpush1.msra.mxu0 0.0
        %4471 = vmatprep.subr.mxu0 0.0
        %4472 = vmatpush1.msra.mxu0 0.0
        %4473 = vmatprep.subr.mxu0 0.0
        %4474 = vmatpush1.msra.mxu0 0.0
        %4475 = vmatprep.subr.mxu0 0.0
        %4476 = vmatpush1.msra.mxu0 0.0
        %4477 = vmatprep.subr.mxu0 0.0
        %4478 = vmatpush1.msra.mxu0 0.0
        %4479 = vmatprep.subr.mxu0 0.0
        %4480 = vmatpush1.msra.mxu0 0.0
        %4481 = vmatprep.subr.mxu0 0.0
        %4482 = vmatpush1.msra.mxu0 0.0
        %4483 = vmatprep.subr.mxu0 0.0
        %4484 = vmatpush1.msra.mxu0 0.0
        %4485 = vmatprep.subr.mxu0 0.0
        %4486 = vmatpush1.msra.mxu0 0.0
        %4487 = vmatprep.subr.mxu0 0.0
        %4488 = vmatpush1.msra.mxu0 0.0
        %4489 = vmatprep.subr.mxu0 0.0
        %4490 = vmatpush1.msra.mxu0 0.0
        %4491 = vmatprep.subr.mxu0 0.0
        %4492 = vmatpush1.msra.mxu0 0.0
        %4493 = vmatprep.subr.mxu0 0.0
        %4494 = vmatpush1.msra.mxu0 0.0
        %4495 = vmatprep.subr.mxu0 0.0
        %4496 = vmatpush1.msra.mxu0 0.0
        %4497 = vmatprep.subr.mxu0 0.0
        %4498 = vmatpush1.msra.mxu0 0.0
        %4499 = vmatprep.mubr.f32.mxu0 0.0
        %4500 = vmatmul.mubr.f32.gmra.mrb[0].mxu0 %v4112
        %v4501 = vpop.f32.mrb[0].mxu0
        %v4502 = vadd.f32 0.0, %v4501
        %v4503 = vpop.f32.mrb[0].mxu0
        %4504 = vmatprep.mubr.f32.mxu0 0.0
        %4505 = vmatmul.mubr.f32.gmra.mrb[0].mxu0 %v4115
        %v4506 = vpop.f32.mrb[0].mxu0
        %v4507 = vadd.f32 0.0, %v4506
        %v4508 = vpop.f32.mrb[0].mxu0
        %4509 = vmatprep.mubr.f32.mxu0 0.0
        %4510 = vmatmul.mubr.f32.gmra.mrb[0].mxu0 %v4118
        %v4511 = vpop.f32.mrb[0].mxu0
        %v4512 = vadd.f32 0.0, %v4511
        %v4513 = vpop.f32.mrb[0].mxu0
        %4514 = vmatprep.mubr.f32.mxu0 0.0
        %4515 = vmatmul.mubr.f32.gmra.mrb[0].mxu0 %v4121
        %v4516 = vpop.f32.mrb[0].mxu0
        %v4517 = vadd.f32 0.0, %v4516
        %v4518 = vpop.f32.mrb[0].mxu0
        %4519 = vmatprep.mubr.f32.mxu0 0.0
        %4520 = vmatmul.mubr.f32.gmra.mrb[0].mxu0 %v4124
        %v4521 = vpop.f32.mrb[0].mxu0
        %v4522 = vadd.f32 0.0, %v4521
        %v4523 = vpop.f32.mrb[0].mxu0
        %4524 = vdwg.mxu0
        %v4525 = vadd.f32 %v3858, %v4502
        %v4526 = vadd.f32 %v3859, %v4507
        %v4527 = vadd.f32 %v3860, %v4512
        %v4528 = vadd.f32 %v3861, %v4517
        %v4529 = vadd.f32 %v3862, %v4522
        %v4530 = vadd.f32 %v4525, %v4224
        %v4531 = vadd.f32 %v4526, %v4229
        %v4532 = vadd.f32 %v4527, %v4234
        %v4533 = vadd.f32 %v4528, %v4239
        %v4534 = vadd.f32 %v4529, %v4244
        %s4535 = scalar_lea.vmem %s2, 160
        %v4536 = vld [vmem:[%s4535] sm:$0xff]
        %v4537 = vld [vmem:[%s4535 + $0x8] sm:$0xff]
        %v4538 = vld [vmem:[%s4535 + $0x10] sm:$0xff]
        %v4539 = vld [vmem:[%s4535 + $0x18] sm:$0xff]
        %v4540 = vld [vmem:[%s4535 + $0x20] sm:$0xff]
        %s4541 = scalar_lea.vmem %s3, 160
        %v4542 = vld [vmem:[%s4541] sm:$0xff]
        %v4543 = vld [vmem:[%s4541 + $0x8] sm:$0xff]
        %v4544 = vld [vmem:[%s4541 + $0x10] sm:$0xff]
        %v4545 = vld [vmem:[%s4541 + $0x18] sm:$0xff]
        %v4546 = vld [vmem:[%s4541 + $0x20] sm:$0xff]
        %s4547 = sld [smem:[#allocation2 + $0x30]]
        %s4548 = sld [smem:[#allocation2 + $0x31]]
        %s4549 = sld [smem:[#allocation2 + $0x32]]
        %s4550 = sld [smem:[#allocation2 + $0x33]]
        %s4551 = sld [smem:[#allocation2 + $0x34]]
        %s4552 = sld [smem:[#allocation2 + $0x35]]
        %s4553 = sld [smem:[#allocation2 + $0x36]]
        %s4554 = sld [smem:[#allocation2 + $0x37]]
        %s4555 = sld [smem:[#allocation2 + $0x38]]
        %s4556 = sld [smem:[#allocation2 + $0x39]]
        %s4557 = sld [smem:[#allocation2 + $0x3a]]
        %s4558 = sld [smem:[#allocation2 + $0x3b]]
        %v4559 = vadd.f32 %v4246, %v4247
        %v4560 = vadd.f32 %v4559, %v4248
        %v4561 = vadd.f32 %v4560, %v4249
        %v4562 = vadd.f32 %v4561, %v4250
        %v4563 = vrot.slane %v4562, 4
        %v4564 = vadd.f32 %v4562, %v4563
        %v4565 = vrot.slane %v4564, 2
        %v4566 = vadd.f32 %v4564, %v4565
        %v4567 = vrot.slane %v4566, 1
        %v4568 = vadd.f32 %v4566, %v4567
        %v4569 = vmul.f32 %v4568, %v427
        %v4570 = vsub.f32 %v4246, %v4569
        %v4571 = vsub.f32 %v4247, %v4569
        %v4572 = vsub.f32 %v4248, %v4569
        %v4573 = vsub.f32 %v4249, %v4569
        %v4574 = vsub.f32 %v4250, %v4569
        %v4575 = vmul.f32 %v4570, %v4570
        %v4576 = vmul.f32 %v4571, %v4571
        %v4577 = vmul.f32 %v4572, %v4572
        %v4578 = vmul.f32 %v4573, %v4573
        %v4579 = vmul.f32 %v4574, %v4574
        %v4580 = vadd.f32 %v4575, %v4576
        %v4581 = vadd.f32 %v4580, %v4577
        %v4582 = vadd.f32 %v4581, %v4578
        %v4583 = vadd.f32 %v4582, %v4579
        %v4584 = vrot.slane %v4583, 4
        %v4585 = vadd.f32 %v4583, %v4584
        %v4586 = vrot.slane %v4585, 2
        %v4587 = vadd.f32 %v4585, %v4586
        %v4588 = vrot.slane %v4587, 1
        %v4589 = vadd.f32 %v4587, %v4588
        %v4590 = vmul.f32 %v4589, %v427
        %v4591 = vadd.f32 %v4590, 1e-05
        %v4592 = vrsqrt.pop %v4591
        %v4593 = vmul.f32 %v4570, %v4592
        %v4594 = vmul.f32 %v4571, %v4592
        %v4595 = vmul.f32 %v4572, %v4592
        %v4596 = vmul.f32 %v4573, %v4592
        %v4597 = vmul.f32 %v4574, %v4592
        %4599 = vset.pattern.permute.xlu0 0
        %4600 = vperm.xlu0 %4599, %v4536
        %v4601 = vpop.permute.xlu0 %4600
        %4604 = vset.pattern.permute.xlu0 0
        %4605 = vperm.xlu0 %4604, %v4537
        %v4606 = vpop.permute.xlu0 %4605
        %4609 = vset.pattern.permute.xlu0 0
        %4610 = vperm.xlu0 %4609, %v4538
        %v4611 = vpop.permute.xlu0 %4610
        %4614 = vset.pattern.permute.xlu0 0
        %4615 = vperm.xlu0 %4614, %v4539
        %v4616 = vpop.permute.xlu0 %4615
        %4619 = vset.pattern.permute.xlu0 0
        %4620 = vperm.xlu0 %4619, %v4540
        %v4621 = vpop.permute.xlu0 %4620
        %v4623 = vmul.f32 %v4593, %v4601
        %v4624 = vmul.f32 %v4594, %v4606
        %v4625 = vmul.f32 %v4595, %v4611
        %v4626 = vmul.f32 %v4596, %v4616
        %v4627 = vmul.f32 %v4597, %v4621
        %4629 = vset.pattern.permute.xlu0 0
        %4630 = vperm.xlu0 %4629, %v4542
        %v4631 = vpop.permute.xlu0 %4630
        %4634 = vset.pattern.permute.xlu0 0
        %4635 = vperm.xlu0 %4634, %v4543
        %v4636 = vpop.permute.xlu0 %4635
        %4639 = vset.pattern.permute.xlu0 0
        %4640 = vperm.xlu0 %4639, %v4544
        %v4641 = vpop.permute.xlu0 %4640
        %4644 = vset.pattern.permute.xlu0 0
        %4645 = vperm.xlu0 %4644, %v4545
        %v4646 = vpop.permute.xlu0 %4645
        %4649 = vset.pattern.permute.xlu0 0
        %4650 = vperm.xlu0 %4649, %v4546
        %v4651 = vpop.permute.xlu0 %4650
        %v4653 = vadd.f32 %v4623, %v4631
        %v4654 = vadd.f32 %v4624, %v4636
        %v4655 = vadd.f32 %v4625, %v4641
        %v4656 = vadd.f32 %v4626, %v4646
        %v4657 = vadd.f32 %v4627, %v4651
        %v4658 = vadd.f32 %v4530, %v4531
        %v4659 = vadd.f32 %v4658, %v4532
        %v4660 = vadd.f32 %v4659, %v4533
        %v4661 = vadd.f32 %v4660, %v4534
        %v4662 = vrot.slane %v4661, 4
        %v4663 = vadd.f32 %v4661, %v4662
        %v4664 = vrot.slane %v4663, 2
        %v4665 = vadd.f32 %v4663, %v4664
        %v4666 = vrot.slane %v4665, 1
        %v4667 = vadd.f32 %v4665, %v4666
        %v4668 = vmul.f32 %v4667, %v427
        %v4669 = vsub.f32 %v4530, %v4668
        %v4670 = vsub.f32 %v4531, %v4668
        %v4671 = vsub.f32 %v4532, %v4668
        %v4672 = vsub.f32 %v4533, %v4668
        %v4673 = vsub.f32 %v4534, %v4668
        %v4674 = vmul.f32 %v4669, %v4669
        %v4675 = vmul.f32 %v4670, %v4670
        %v4676 = vmul.f32 %v4671, %v4671
        %v4677 = vmul.f32 %v4672, %v4672
        %v4678 = vmul.f32 %v4673, %v4673
        %v4679 = vadd.f32 %v4674, %v4675
        %v4680 = vadd.f32 %v4679, %v4676
        %v4681 = vadd.f32 %v4680, %v4677
        %v4682 = vadd.f32 %v4681, %v4678
        %v4683 = vrot.slane %v4682, 4
        %v4684 = vadd.f32 %v4682, %v4683
        %v4685 = vrot.slane %v4684, 2
        %v4686 = vadd.f32 %v4684, %v4685
        %v4687 = vrot.slane %v4686, 1
        %v4688 = vadd.f32 %v4686, %v4687
        %v4689 = vmul.f32 %v4688, %v427
        %v4690 = vadd.f32 %v4689, 1e-05
        %v4691 = vrsqrt.pop %v4690
        %v4692 = vmul.f32 %v4669, %v4691
        %v4693 = vmul.f32 %v4670, %v4691
        %v4694 = vmul.f32 %v4671, %v4691
        %v4695 = vmul.f32 %v4672, %v4691
        %v4696 = vmul.f32 %v4673, %v4691
        %v4697 = vmul.f32 %v4692, %v4601
        %v4698 = vmul.f32 %v4693, %v4606
        %v4699 = vmul.f32 %v4694, %v4611
        %v4700 = vmul.f32 %v4695, %v4616
        %v4701 = vmul.f32 %v4696, %v4621
        %v4702 = vadd.f32 %v4697, %v4631
        %v4703 = vadd.f32 %v4698, %v4636
        %v4704 = vadd.f32 %v4699, %v4641
        %v4705 = vadd.f32 %v4700, %v4646
        %v4706 = vadd.f32 %v4701, %v4651
        %v4707 = vstv %s4547
        %v4708 = vmul.f32 %v4653, %v4707
        %v4709 = vmul.f32 %v4654, %v4707
        %v4710 = vmul.f32 %v4655, %v4707
        %v4711 = vmul.f32 %v4656, %v4707
        %v4712 = vmul.f32 %v4657, %v4707
        %v4713 = vstv %s4548
        %v4714 = vmul.f32 %v4702, %v4713
        %v4715 = vmul.f32 %v4703, %v4713
        %v4716 = vmul.f32 %v4704, %v4713
        %v4717 = vmul.f32 %v4705, %v4713
        %v4718 = vmul.f32 %v4706, %v4713
        %v4719 = vadd.f32 %v4708, %v4714
        %v4720 = vadd.f32 %v4709, %v4715
        %v4721 = vadd.f32 %v4710, %v4716
        %v4722 = vadd.f32 %v4711, %v4717
        %v4723 = vadd.f32 %v4712, %v4718
        %v4724 = vstv %s4551
        %v4725 = vadd.f32 %v4719, %v4724
        %v4726 = vadd.f32 %v4720, %v4724
        %v4727 = vadd.f32 %v4721, %v4724
        %v4728 = vadd.f32 %v4722, %v4724
        %v4729 = vadd.f32 %v4723, %v4724
        %v4730 = vmul.f32 %v4725, 0.5
        %v4731 = vmul.f32 %v4726, 0.5
        %v4732 = vmul.f32 %v4727, 0.5
        %v4733 = vmul.f32 %v4728, 0.5
        %v4734 = vmul.f32 %v4729, 0.5
        %v4735 = vmul.f32 %v4725, 0.044715
        %v4736 = vmul.f32 %v4726, 0.044715
        %v4737 = vmul.f32 %v4727, 0.044715
        %v4738 = vmul.f32 %v4728, 0.044715
        %v4739 = vmul.f32 %v4729, 0.044715
        %v4740 = vmul.f32 %v4735, %v4725
        %v4741 = vmul.f32 %v4736, %v4726
        %v4742 = vmul.f32 %v4737, %v4727
        %v4743 = vmul.f32 %v4738, %v4728
        %v4744 = vmul.f32 %v4739, %v4729
        %v4745 = vmul.f32 %v4740, %v4725
        %v4746 = vmul.f32 %v4741, %v4726
        %v4747 = vmul.f32 %v4742, %v4727
        %v4748 = vmul.f32 %v4743, %v4728
        %v4749 = vmul.f32 %v4744, %v4729
        %v4750 = vadd.f32 %v4725, %v4745
        %v4751 = vadd.f32 %v4726, %v4746
        %v4752 = vadd.f32 %v4727, %v4747
        %v4753 = vadd.f32 %v4728, %v4748
        %v4754 = vadd.f32 %v4729, %v4749
        %v4755 = vmul.f32 %v4750, 0.7978846
        %v4756 = vmul.f32 %v4751, 0.7978846
        %v4757 = vmul.f32 %v4752, 0.7978846
        %v4758 = vmul.f32 %v4753, 0.7978846
        %v4759 = vmul.f32 %v4754, 0.7978846
        %v4760 = vtanh.pop %v4755
        %v4761 = vtanh.pop %v4756
        %v4762 = vtanh.pop %v4757
        %v4763 = vtanh.pop %v4758
        %v4764 = vtanh.pop %v4759
        %v4765 = vadd.f32 %v4760, 1.0
        %v4766 = vadd.f32 %v4761, 1.0
        %v4767 = vadd.f32 %v4762, 1.0
        %v4768 = vadd.f32 %v4763, 1.0
        %v4769 = vadd.f32 %v4764, 1.0
        %v4770 = vmul.f32 %v4730, %v4765
        %v4771 = vmul.f32 %v4731, %v4766
        %v4772 = vmul.f32 %v4732, %v4767
        %v4773 = vmul.f32 %v4733, %v4768
        %v4774 = vmul.f32 %v4734, %v4769
        %v4775 = vstv %s4549
        %v4776 = vmul.f32 %v4653, %v4775
        %v4777 = vmul.f32 %v4654, %v4775
        %v4778 = vmul.f32 %v4655, %v4775
        %v4779 = vmul.f32 %v4656, %v4775
        %v4780 = vmul.f32 %v4657, %v4775
        %v4781 = vstv %s4550
        %v4782 = vmul.f32 %v4702, %v4781
        %v4783 = vmul.f32 %v4703, %v4781
        %v4784 = vmul.f32 %v4704, %v4781
        %v4785 = vmul.f32 %v4705, %v4781
        %v4786 = vmul.f32 %v4706, %v4781
        %v4787 = vadd.f32 %v4776, %v4782
        %v4788 = vadd.f32 %v4777, %v4783
        %v4789 = vadd.f32 %v4778, %v4784
        %v4790 = vadd.f32 %v4779, %v4785
        %v4791 = vadd.f32 %v4780, %v4786
        %v4792 = vstv %s4552
        %v4793 = vadd.f32 %v4787, %v4792
        %v4794 = vadd.f32 %v4788, %v4792
        %v4795 = vadd.f32 %v4789, %v4792
        %v4796 = vadd.f32 %v4790, %v4792
        %v4797 = vadd.f32 %v4791, %v4792
        %v4798 = vmul.f32 %v4793, 0.5
        %v4799 = vmul.f32 %v4794, 0.5
        %v4800 = vmul.f32 %v4795, 0.5
        %v4801 = vmul.f32 %v4796, 0.5
        %v4802 = vmul.f32 %v4797, 0.5
        %v4803 = vmul.f32 %v4793, 0.044715
        %v4804 = vmul.f32 %v4794, 0.044715
        %v4805 = vmul.f32 %v4795, 0.044715
        %v4806 = vmul.f32 %v4796, 0.044715
        %v4807 = vmul.f32 %v4797, 0.044715
        %v4808 = vmul.f32 %v4803, %v4793
        %v4809 = vmul.f32 %v4804, %v4794
        %v4810 = vmul.f32 %v4805, %v4795
        %v4811 = vmul.f32 %v4806, %v4796
        %v4812 = vmul.f32 %v4807, %v4797
        %v4813 = vmul.f32 %v4808, %v4793
        %v4814 = vmul.f32 %v4809, %v4794
        %v4815 = vmul.f32 %v4810, %v4795
        %v4816 = vmul.f32 %v4811, %v4796
        %v4817 = vmul.f32 %v4812, %v4797
        %v4818 = vadd.f32 %v4793, %v4813
        %v4819 = vadd.f32 %v4794, %v4814
        %v4820 = vadd.f32 %v4795, %v4815
        %v4821 = vadd.f32 %v4796, %v4816
        %v4822 = vadd.f32 %v4797, %v4817
        %v4823 = vmul.f32 %v4818, 0.7978846
        %v4824 = vmul.f32 %v4819, 0.7978846
        %v4825 = vmul.f32 %v4820, 0.7978846
        %v4826 = vmul.f32 %v4821, 0.7978846
        %v4827 = vmul.f32 %v4822, 0.7978846
        %v4828 = vtanh.pop %v4823
        %v4829 = vtanh.pop %v4824
        %v4830 = vtanh.pop %v4825
        %v4831 = vtanh.pop %v4826
        %v4832 = vtanh.pop %v4827
        %v4833 = vadd.f32 %v4828, 1.0
        %v4834 = vadd.f32 %v4829, 1.0
        %v4835 = vadd.f32 %v4830, 1.0
        %v4836 = vadd.f32 %v4831, 1.0
        %v4837 = vadd.f32 %v4832, 1.0
        %v4838 = vmul.f32 %v4798, %v4833
        %v4839 = vmul.f32 %v4799, %v4834
        %v4840 = vmul.f32 %v4800, %v4835
        %v4841 = vmul.f32 %v4801, %v4836
        %v4842 = vmul.f32 %v4802, %v4837
        %v4843 = vstv %s4553
        %v4844 = vmul.f32 %v4770, %v4843
        %v4845 = vmul.f32 %v4771, %v4843
        %v4846 = vmul.f32 %v4772, %v4843
        %v4847 = vmul.f32 %v4773, %v4843
        %v4848 = vmul.f32 %v4774, %v4843
        %v4849 = vstv %s4554
        %v4850 = vmul.f32 %v4838, %v4849
        %v4851 = vmul.f32 %v4839, %v4849
        %v4852 = vmul.f32 %v4840, %v4849
        %v4853 = vmul.f32 %v4841, %v4849
        %v4854 = vmul.f32 %v4842, %v4849
        %v4855 = vadd.f32 %v4844, %v4850
        %v4856 = vadd.f32 %v4845, %v4851
        %v4857 = vadd.f32 %v4846, %v4852
        %v4858 = vadd.f32 %v4847, %v4853
        %v4859 = vadd.f32 %v4848, %v4854
        %v4860 = vadd.f32 %v4246, %v4855
        %v4861 = vadd.f32 %v4247, %v4856
        %v4862 = vadd.f32 %v4248, %v4857
        %v4863 = vadd.f32 %v4249, %v4858
        %v4864 = vadd.f32 %v4250, %v4859
        %v4865 = vstv %s4557
        %v4866 = vadd.f32 %v4860, %v4865
        %v4867 = vadd.f32 %v4861, %v4865
        %v4868 = vadd.f32 %v4862, %v4865
        %v4869 = vadd.f32 %v4863, %v4865
        %v4870 = vadd.f32 %v4864, %v4865
        %v4871 = vstv %s4555
        %v4872 = vmul.f32 %v4770, %v4871
        %v4873 = vmul.f32 %v4771, %v4871
        %v4874 = vmul.f32 %v4772, %v4871
        %v4875 = vmul.f32 %v4773, %v4871
        %v4876 = vmul.f32 %v4774, %v4871
        %v4877 = vstv %s4556
        %v4878 = vmul.f32 %v4838, %v4877
        %v4879 = vmul.f32 %v4839, %v4877
        %v4880 = vmul.f32 %v4840, %v4877
        %v4881 = vmul.f32 %v4841, %v4877
        %v4882 = vmul.f32 %v4842, %v4877
        %v4883 = vadd.f32 %v4872, %v4878
        %v4884 = vadd.f32 %v4873, %v4879
        %v4885 = vadd.f32 %v4874, %v4880
        %v4886 = vadd.f32 %v4875, %v4881
        %v4887 = vadd.f32 %v4876, %v4882
        %v4888 = vadd.f32 %v4530, %v4883
        %v4889 = vadd.f32 %v4531, %v4884
        %v4890 = vadd.f32 %v4532, %v4885
        %v4891 = vadd.f32 %v4533, %v4886
        %v4892 = vadd.f32 %v4534, %v4887
        %v4893 = vstv %s4558
        %v4894 = vadd.f32 %v4888, %v4893
        %v4895 = vadd.f32 %v4889, %v4893
        %v4896 = vadd.f32 %v4890, %v4893
        %v4897 = vadd.f32 %v4891, %v4893
        %v4898 = vadd.f32 %v4892, %v4893
        %s4899 = scalar_lea.vmem %s4, 160
        %v4900 = vld [vmem:[%s4899] sm:$0xff]
        %v4901 = vld [vmem:[%s4899 + $0x8] sm:$0xff]
        %v4902 = vld [vmem:[%s4899 + $0x10] sm:$0xff]
        %v4903 = vld [vmem:[%s4899 + $0x18] sm:$0xff]
        %v4904 = vld [vmem:[%s4899 + $0x20] sm:$0xff]
        %s4905 = scalar_lea.vmem %s5, 160
        %v4906 = vld [vmem:[%s4905] sm:$0xff]
        %v4907 = vld [vmem:[%s4905 + $0x8] sm:$0xff]
        %v4908 = vld [vmem:[%s4905 + $0x10] sm:$0xff]
        %v4909 = vld [vmem:[%s4905 + $0x18] sm:$0xff]
        %v4910 = vld [vmem:[%s4905 + $0x20] sm:$0xff]
        %s4911 = scalar_lea.vmem %s6, 160
        %v4912 = vld [vmem:[%s4911] sm:$0xff]
        %v4913 = vld [vmem:[%s4911 + $0x8] sm:$0xff]
        %v4914 = vld [vmem:[%s4911 + $0x10] sm:$0xff]
        %v4915 = vld [vmem:[%s4911 + $0x18] sm:$0xff]
        %v4916 = vld [vmem:[%s4911 + $0x20] sm:$0xff]
        %s4917 = scalar_lea.vmem %s7, 160
        %v4918 = vld [vmem:[%s4917] sm:$0xff]
        %v4919 = vld [vmem:[%s4917 + $0x8] sm:$0xff]
        %v4920 = vld [vmem:[%s4917 + $0x10] sm:$0xff]
        %v4921 = vld [vmem:[%s4917 + $0x18] sm:$0xff]
        %v4922 = vld [vmem:[%s4917 + $0x20] sm:$0xff]
        %v4923 = vadd.f32 %v4866, %v4867
        %v4924 = vadd.f32 %v4923, %v4868
        %v4925 = vadd.f32 %v4924, %v4869
        %v4926 = vadd.f32 %v4925, %v4870
        %v4927 = vrot.slane %v4926, 4
        %v4928 = vadd.f32 %v4926, %v4927
        %v4929 = vrot.slane %v4928, 2
        %v4930 = vadd.f32 %v4928, %v4929
        %v4931 = vrot.slane %v4930, 1
        %v4932 = vadd.f32 %v4930, %v4931
        %v4933 = vmul.f32 %v4932, %v427
        %v4934 = vsub.f32 %v4866, %v4933
        %v4935 = vsub.f32 %v4867, %v4933
        %v4936 = vsub.f32 %v4868, %v4933
        %v4937 = vsub.f32 %v4869, %v4933
        %v4938 = vsub.f32 %v4870, %v4933
        %v4939 = vmul.f32 %v4934, %v4934
        %v4940 = vmul.f32 %v4935, %v4935
        %v4941 = vmul.f32 %v4936, %v4936
        %v4942 = vmul.f32 %v4937, %v4937
        %v4943 = vmul.f32 %v4938, %v4938
        %v4944 = vadd.f32 %v4939, %v4940
        %v4945 = vadd.f32 %v4944, %v4941
        %v4946 = vadd.f32 %v4945, %v4942
        %v4947 = vadd.f32 %v4946, %v4943
        %v4948 = vrot.slane %v4947, 4
        %v4949 = vadd.f32 %v4947, %v4948
        %v4950 = vrot.slane %v4949, 2
        %v4951 = vadd.f32 %v4949, %v4950
        %v4952 = vrot.slane %v4951, 1
        %v4953 = vadd.f32 %v4951, %v4952
        %v4954 = vmul.f32 %v4953, %v427
        %v4955 = vadd.f32 %v4954, 1e-05
        %v4956 = vrsqrt.pop %v4955
        %v4957 = vmul.f32 %v4934, %v4956
        %v4958 = vmul.f32 %v4935, %v4956
        %v4959 = vmul.f32 %v4936, %v4956
        %v4960 = vmul.f32 %v4937, %v4956
        %v4961 = vmul.f32 %v4938, %v4956
        %v4962 = vmul.f32 %v4957, %v4601
        %v4963 = vmul.f32 %v4958, %v4606
        %v4964 = vmul.f32 %v4959, %v4611
        %v4965 = vmul.f32 %v4960, %v4616
        %v4966 = vmul.f32 %v4961, %v4621
        %v4967 = vadd.f32 %v4962, %v4631
        %v4968 = vadd.f32 %v4963, %v4636
        %v4969 = vadd.f32 %v4964, %v4641
        %v4970 = vadd.f32 %v4965, %v4646
        %v4971 = vadd.f32 %v4966, %v4651
        %4973 = vset.pattern.permute.xlu0 0
        %4974 = vperm.xlu0 %4973, %v4906
        %v4975 = vpop.permute.xlu0 %4974
        %4978 = vset.pattern.permute.xlu0 0
        %4979 = vperm.xlu0 %4978, %v4907
        %v4980 = vpop.permute.xlu0 %4979
        %4983 = vset.pattern.permute.xlu0 0
        %4984 = vperm.xlu0 %4983, %v4908
        %v4985 = vpop.permute.xlu0 %4984
        %4988 = vset.pattern.permute.xlu0 0
        %4989 = vperm.xlu0 %4988, %v4909
        %v4990 = vpop.permute.xlu0 %4989
        %4993 = vset.pattern.permute.xlu0 0
        %4994 = vperm.xlu0 %4993, %v4910
        %v4995 = vpop.permute.xlu0 %4994
        %v4998 = vsel %vm852, %v4900, 0
        %v5001 = vsel %vm852, %v4901, 0
        %v5004 = vsel %vm852, %v4902, 0
        %v5007 = vsel %vm852, %v4903, 0
        %v5010 = vsel %vm852, %v4904, 0
        %5012 = vmatprep.subr.mxu0 0.0
        %5013 = vmatpush1.msra.mxu0 %v4967
        %5014 = vmatprep.subr.mxu0 0.0
        %5015 = vmatpush1.msra.mxu0 %v4968
        %5016 = vmatprep.subr.mxu0 0.0
        %5017 = vmatpush1.msra.mxu0 %v4969
        %5018 = vmatprep.subr.mxu0 0.0
        %5019 = vmatpush1.msra.mxu0 %v4970
        %5020 = vmatprep.subr.mxu0 0.0
        %5021 = vmatpush1.msra.mxu0 %v4971
        %5022 = vmatprep.subr.mxu0 0.0
        %5023 = vmatpush1.msra.mxu0 0.0
        %5024 = vmatprep.subr.mxu0 0.0
        %5025 = vmatpush1.msra.mxu0 0.0
        %5026 = vmatprep.subr.mxu0 0.0
        %5027 = vmatpush1.msra.mxu0 0.0
        %5028 = vmatprep.subr.mxu0 0.0
        %5029 = vmatpush1.msra.mxu0 0.0
        %5030 = vmatprep.subr.mxu0 0.0
        %5031 = vmatpush1.msra.mxu0 0.0
        %5032 = vmatprep.subr.mxu0 0.0
        %5033 = vmatpush1.msra.mxu0 0.0
        %5034 = vmatprep.subr.mxu0 0.0
        %5035 = vmatpush1.msra.mxu0 0.0
        %5036 = vmatprep.subr.mxu0 0.0
        %5037 = vmatpush1.msra.mxu0 0.0
        %5038 = vmatprep.subr.mxu0 0.0
        %5039 = vmatpush1.msra.mxu0 0.0
        %5040 = vmatprep.subr.mxu0 0.0
        %5041 = vmatpush1.msra.mxu0 0.0
        %5042 = vmatprep.subr.mxu0 0.0
        %5043 = vmatpush1.msra.mxu0 0.0
        %5044 = vmatprep.subr.mxu0 0.0
        %5045 = vmatpush1.msra.mxu0 0.0
        %5046 = vmatprep.subr.mxu0 0.0
        %5047 = vmatpush1.msra.mxu0 0.0
        %5048 = vmatprep.subr.mxu0 0.0
        %5049 = vmatpush1.msra.mxu0 0.0
        %5050 = vmatprep.subr.mxu0 0.0
        %5051 = vmatpush1.msra.mxu0 0.0
        %5052 = vmatprep.subr.mxu0 0.0
        %5053 = vmatpush1.msra.mxu0 0.0
        %5054 = vmatprep.subr.mxu0 0.0
        %5055 = vmatpush1.msra.mxu0 0.0
        %5056 = vmatprep.subr.mxu0 0.0
        %5057 = vmatpush1.msra.mxu0 0.0
        %5058 = vmatprep.subr.mxu0 0.0
        %5059 = vmatpush1.msra.mxu0 0.0
        %5060 = vmatprep.subr.mxu0 0.0
        %5061 = vmatpush1.msra.mxu0 0.0
        %5062 = vmatprep.subr.mxu0 0.0
        %5063 = vmatpush1.msra.mxu0 0.0
        %5064 = vmatprep.subr.mxu0 0.0
        %5065 = vmatpush1.msra.mxu0 0.0
        %5066 = vmatprep.subr.mxu0 0.0
        %5067 = vmatpush1.msra.mxu0 0.0
        %5068 = vmatprep.subr.mxu0 0.0
        %5069 = vmatpush1.msra.mxu0 0.0
        %5070 = vmatprep.subr.mxu0 0.0
        %5071 = vmatpush1.msra.mxu0 0.0
        %5072 = vmatprep.subr.mxu0 0.0
        %5073 = vmatpush1.msra.mxu0 0.0
        %5074 = vmatprep.subr.mxu0 0.0
        %5075 = vmatpush1.msra.mxu0 0.0
        %5076 = vmatprep.mubr.f32.mxu0 0.0
        %5077 = vmatmul.mubr.f32.gmra.mrb[0].mxu0 %v4998
        %v5078 = vpop.f32.mrb[0].mxu0
        %v5079 = vadd.f32 %v4975, %v5078
        %v5080 = vpop.f32.mrb[0].mxu0
        %5081 = vmatprep.mubr.f32.mxu0 0.0
        %5082 = vmatmul.mubr.f32.gmra.mrb[0].mxu0 %v5001
        %v5083 = vpop.f32.mrb[0].mxu0
        %v5084 = vadd.f32 %v4980, %v5083
        %v5085 = vpop.f32.mrb[0].mxu0
        %5086 = vmatprep.mubr.f32.mxu0 0.0
        %5087 = vmatmul.mubr.f32.gmra.mrb[0].mxu0 %v5004
        %v5088 = vpop.f32.mrb[0].mxu0
        %v5089 = vadd.f32 %v4985, %v5088
        %v5090 = vpop.f32.mrb[0].mxu0
        %5091 = vmatprep.mubr.f32.mxu0 0.0
        %5092 = vmatmul.mubr.f32.gmra.mrb[0].mxu0 %v5007
        %v5093 = vpop.f32.mrb[0].mxu0
        %v5094 = vadd.f32 %v4990, %v5093
        %v5095 = vpop.f32.mrb[0].mxu0
        %5096 = vmatprep.mubr.f32.mxu0 0.0
        %5097 = vmatmul.mubr.f32.gmra.mrb[0].mxu0 %v5010
        %v5098 = vpop.f32.mrb[0].mxu0
        %v5099 = vadd.f32 %v4995, %v5098
        %v5100 = vpop.f32.mrb[0].mxu0
        %5101 = vdwg.mxu0
        %v5102 = vmul.f32 %v5079, 0.5
        %v5103 = vmul.f32 %v5084, 0.5
        %v5104 = vmul.f32 %v5089, 0.5
        %v5105 = vmul.f32 %v5094, 0.5
        %v5106 = vmul.f32 %v5099, 0.5
        %v5107 = vmul.f32 %v5079, 0.044715
        %v5108 = vmul.f32 %v5084, 0.044715
        %v5109 = vmul.f32 %v5089, 0.044715
        %v5110 = vmul.f32 %v5094, 0.044715
        %v5111 = vmul.f32 %v5099, 0.044715
        %v5112 = vmul.f32 %v5107, %v5079
        %v5113 = vmul.f32 %v5108, %v5084
        %v5114 = vmul.f32 %v5109, %v5089
        %v5115 = vmul.f32 %v5110, %v5094
        %v5116 = vmul.f32 %v5111, %v5099
        %v5117 = vmul.f32 %v5112, %v5079
        %v5118 = vmul.f32 %v5113, %v5084
        %v5119 = vmul.f32 %v5114, %v5089
        %v5120 = vmul.f32 %v5115, %v5094
        %v5121 = vmul.f32 %v5116, %v5099
        %v5122 = vadd.f32 %v5079, %v5117
        %v5123 = vadd.f32 %v5084, %v5118
        %v5124 = vadd.f32 %v5089, %v5119
        %v5125 = vadd.f32 %v5094, %v5120
        %v5126 = vadd.f32 %v5099, %v5121
        %v5127 = vmul.f32 %v5122, 0.7978846
        %v5128 = vmul.f32 %v5123, 0.7978846
        %v5129 = vmul.f32 %v5124, 0.7978846
        %v5130 = vmul.f32 %v5125, 0.7978846
        %v5131 = vmul.f32 %v5126, 0.7978846
        %v5132 = vtanh.pop %v5127
        %v5133 = vtanh.pop %v5128
        %v5134 = vtanh.pop %v5129
        %v5135 = vtanh.pop %v5130
        %v5136 = vtanh.pop %v5131
        %v5137 = vadd.f32 %v5132, 1.0
        %v5138 = vadd.f32 %v5133, 1.0
        %v5139 = vadd.f32 %v5134, 1.0
        %v5140 = vadd.f32 %v5135, 1.0
        %v5141 = vadd.f32 %v5136, 1.0
        %v5142 = vmul.f32 %v5102, %v5137
        %v5143 = vmul.f32 %v5103, %v5138
        %v5144 = vmul.f32 %v5104, %v5139
        %v5145 = vmul.f32 %v5105, %v5140
        %v5146 = vmul.f32 %v5106, %v5141
        %v5148 = vsel %vm852, %v4912, 0
        %v5151 = vsel %vm852, %v4913, 0
        %v5154 = vsel %vm852, %v4914, 0
        %v5157 = vsel %vm852, %v4915, 0
        %v5160 = vsel %vm852, %v4916, 0
        %5162 = vmatprep.subr.mxu0 0.0
        %5163 = vmatpush1.msra.mxu0 %v5142
        %5164 = vmatprep.subr.mxu0 0.0
        %5165 = vmatpush1.msra.mxu0 %v5143
        %5166 = vmatprep.subr.mxu0 0.0
        %5167 = vmatpush1.msra.mxu0 %v5144
        %5168 = vmatprep.subr.mxu0 0.0
        %5169 = vmatpush1.msra.mxu0 %v5145
        %5170 = vmatprep.subr.mxu0 0.0
        %5171 = vmatpush1.msra.mxu0 %v5146
        %5172 = vmatprep.subr.mxu0 0.0
        %5173 = vmatpush1.msra.mxu0 0.0
        %5174 = vmatprep.subr.mxu0 0.0
        %5175 = vmatpush1.msra.mxu0 0.0
        %5176 = vmatprep.subr.mxu0 0.0
        %5177 = vmatpush1.msra.mxu0 0.0
        %5178 = vmatprep.subr.mxu0 0.0
        %5179 = vmatpush1.msra.mxu0 0.0
        %5180 = vmatprep.subr.mxu0 0.0
        %5181 = vmatpush1.msra.mxu0 0.0
        %5182 = vmatprep.subr.mxu0 0.0
        %5183 = vmatpush1.msra.mxu0 0.0
        %5184 = vmatprep.subr.mxu0 0.0
        %5185 = vmatpush1.msra.mxu0 0.0
        %5186 = vmatprep.subr.mxu0 0.0
        %5187 = vmatpush1.msra.mxu0 0.0
        %5188 = vmatprep.subr.mxu0 0.0
        %5189 = vmatpush1.msra.mxu0 0.0
        %5190 = vmatprep.subr.mxu0 0.0
        %5191 = vmatpush1.msra.mxu0 0.0
        %5192 = vmatprep.subr.mxu0 0.0
        %5193 = vmatpush1.msra.mxu0 0.0
        %5194 = vmatprep.subr.mxu0 0.0
        %5195 = vmatpush1.msra.mxu0 0.0
        %5196 = vmatprep.subr.mxu0 0.0
        %5197 = vmatpush1.msra.mxu0 0.0
        %5198 = vmatprep.subr.mxu0 0.0
        %5199 = vmatpush1.msra.mxu0 0.0
        %5200 = vmatprep.subr.mxu0 0.0
        %5201 = vmatpush1.msra.mxu0 0.0
        %5202 = vmatprep.subr.mxu0 0.0
        %5203 = vmatpush1.msra.mxu0 0.0
        %5204 = vmatprep.subr.mxu0 0.0
        %5205 = vmatpush1.msra.mxu0 0.0
        %5206 = vmatprep.subr.mxu0 0.0
        %5207 = vmatpush1.msra.mxu0 0.0
        %5208 = vmatprep.subr.mxu0 0.0
        %5209 = vmatpush1.msra.mxu0 0.0
        %5210 = vmatprep.subr.mxu0 0.0
        %5211 = vmatpush1.msra.mxu0 0.0
        %5212 = vmatprep.subr.mxu0 0.0
        %5213 = vmatpush1.msra.mxu0 0.0
        %5214 = vmatprep.subr.mxu0 0.0
        %5215 = vmatpush1.msra.mxu0 0.0
        %5216 = vmatprep.subr.mxu0 0.0
        %5217 = vmatpush1.msra.mxu0 0.0
        %5218 = vmatprep.subr.mxu0 0.0
        %5219 = vmatpush1.msra.mxu0 0.0
        %5220 = vmatprep.subr.mxu0 0.0
        %5221 = vmatpush1.msra.mxu0 0.0
        %5222 = vmatprep.subr.mxu0 0.0
        %5223 = vmatpush1.msra.mxu0 0.0
        %5224 = vmatprep.subr.mxu0 0.0
        %5225 = vmatpush1.msra.mxu0 0.0
        %5226 = vmatprep.mubr.f32.mxu0 0.0
        %5227 = vmatmul.mubr.f32.gmra.mrb[0].mxu0 %v5148
        %v5228 = vpop.f32.mrb[0].mxu0
        %v5229 = vadd.f32 0.0, %v5228
        %v5230 = vpop.f32.mrb[0].mxu0
        %5231 = vmatprep.mubr.f32.mxu0 0.0
        %5232 = vmatmul.mubr.f32.gmra.mrb[0].mxu0 %v5151
        %v5233 = vpop.f32.mrb[0].mxu0
        %v5234 = vadd.f32 0.0, %v5233
        %v5235 = vpop.f32.mrb[0].mxu0
        %5236 = vmatprep.mubr.f32.mxu0 0.0
        %5237 = vmatmul.mubr.f32.gmra.mrb[0].mxu0 %v5154
        %v5238 = vpop.f32.mrb[0].mxu0
        %v5239 = vadd.f32 0.0, %v5238
        %v5240 = vpop.f32.mrb[0].mxu0
        %5241 = vmatprep.mubr.f32.mxu0 0.0
        %5242 = vmatmul.mubr.f32.gmra.mrb[0].mxu0 %v5157
        %v5243 = vpop.f32.mrb[0].mxu0
        %v5244 = vadd.f32 0.0, %v5243
        %v5245 = vpop.f32.mrb[0].mxu0
        %5246 = vmatprep.mubr.f32.mxu0 0.0
        %5247 = vmatmul.mubr.f32.gmra.mrb[0].mxu0 %v5160
        %v5248 = vpop.f32.mrb[0].mxu0
        %v5249 = vadd.f32 0.0, %v5248
        %v5250 = vpop.f32.mrb[0].mxu0
        %5251 = vdwg.mxu0
        %v5252 = vadd.f32 %v4866, %v5229
        %v5253 = vadd.f32 %v4867, %v5234
        %v5254 = vadd.f32 %v4868, %v5239
        %v5255 = vadd.f32 %v4869, %v5244
        %v5256 = vadd.f32 %v4870, %v5249
        %5258 = vset.pattern.permute.xlu0 0
        %5259 = vperm.xlu0 %5258, %v4918
        %v5260 = vpop.permute.xlu0 %5259
        %5263 = vset.pattern.permute.xlu0 0
        %5264 = vperm.xlu0 %5263, %v4919
        %v5265 = vpop.permute.xlu0 %5264
        %5268 = vset.pattern.permute.xlu0 0
        %5269 = vperm.xlu0 %5268, %v4920
        %v5270 = vpop.permute.xlu0 %5269
        %5273 = vset.pattern.permute.xlu0 0
        %5274 = vperm.xlu0 %5273, %v4921
        %v5275 = vpop.permute.xlu0 %5274
        %5278 = vset.pattern.permute.xlu0 0
        %5279 = vperm.xlu0 %5278, %v4922
        %v5280 = vpop.permute.xlu0 %5279
        %v5282 = vadd.f32 %v5252, %v5260
        %v5283 = vadd.f32 %v5253, %v5265
        %v5284 = vadd.f32 %v5254, %v5270
        %v5285 = vadd.f32 %v5255, %v5275
        %v5286 = vadd.f32 %v5256, %v5280
        %v5287 = vadd.f32 %v4894, %v4895
        %v5288 = vadd.f32 %v5287, %v4896
        %v5289 = vadd.f32 %v5288, %v4897
        %v5290 = vadd.f32 %v5289, %v4898
        %v5291 = vrot.slane %v5290, 4
        %v5292 = vadd.f32 %v5290, %v5291
        %v5293 = vrot.slane %v5292, 2
        %v5294 = vadd.f32 %v5292, %v5293
        %v5295 = vrot.slane %v5294, 1
        %v5296 = vadd.f32 %v5294, %v5295
        %v5297 = vmul.f32 %v5296, %v427
        %v5298 = vsub.f32 %v4894, %v5297
        %v5299 = vsub.f32 %v4895, %v5297
        %v5300 = vsub.f32 %v4896, %v5297
        %v5301 = vsub.f32 %v4897, %v5297
        %v5302 = vsub.f32 %v4898, %v5297
        %v5303 = vmul.f32 %v5298, %v5298
        %v5304 = vmul.f32 %v5299, %v5299
        %v5305 = vmul.f32 %v5300, %v5300
        %v5306 = vmul.f32 %v5301, %v5301
        %v5307 = vmul.f32 %v5302, %v5302
        %v5308 = vadd.f32 %v5303, %v5304
        %v5309 = vadd.f32 %v5308, %v5305
        %v5310 = vadd.f32 %v5309, %v5306
        %v5311 = vadd.f32 %v5310, %v5307
        %v5312 = vrot.slane %v5311, 4
        %v5313 = vadd.f32 %v5311, %v5312
        %v5314 = vrot.slane %v5313, 2
        %v5315 = vadd.f32 %v5313, %v5314
        %v5316 = vrot.slane %v5315, 1
        %v5317 = vadd.f32 %v5315, %v5316
        %v5318 = vmul.f32 %v5317, %v427
        %v5319 = vadd.f32 %v5318, 1e-05
        %v5320 = vrsqrt.pop %v5319
        %v5321 = vmul.f32 %v5298, %v5320
        %v5322 = vmul.f32 %v5299, %v5320
        %v5323 = vmul.f32 %v5300, %v5320
        %v5324 = vmul.f32 %v5301, %v5320
        %v5325 = vmul.f32 %v5302, %v5320
        %v5326 = vmul.f32 %v5321, %v4601
        %v5327 = vmul.f32 %v5322, %v4606
        %v5328 = vmul.f32 %v5323, %v4611
        %v5329 = vmul.f32 %v5324, %v4616
        %v5330 = vmul.f32 %v5325, %v4621
        %v5331 = vadd.f32 %v5326, %v4631
        %v5332 = vadd.f32 %v5327, %v4636
        %v5333 = vadd.f32 %v5328, %v4641
        %v5334 = vadd.f32 %v5329, %v4646
        %v5335 = vadd.f32 %v5330, %v4651
        %5336 = vmatprep.subr.mxu0 0.0
        %5337 = vmatpush1.msra.mxu0 %v5331
        %5338 = vmatprep.subr.mxu0 0.0
        %5339 = vmatpush1.msra.mxu0 %v5332
        %5340 = vmatprep.subr.mxu0 0.0
        %5341 = vmatpush1.msra.mxu0 %v5333
        %5342 = vmatprep.subr.mxu0 0.0
        %5343 = vmatpush1.msra.mxu0 %v5334
        %5344 = vmatprep.subr.mxu0 0.0
        %5345 = vmatpush1.msra.mxu0 %v5335
        %5346 = vmatprep.subr.mxu0 0.0
        %5347 = vmatpush1.msra.mxu0 0.0
        %5348 = vmatprep.subr.mxu0 0.0
        %5349 = vmatpush1.msra.mxu0 0.0
        %5350 = vmatprep.subr.mxu0 0.0
        %5351 = vmatpush1.msra.mxu0 0.0
        %5352 = vmatprep.subr.mxu0 0.0
        %5353 = vmatpush1.msra.mxu0 0.0
        %5354 = vmatprep.subr.mxu0 0.0
        %5355 = vmatpush1.msra.mxu0 0.0
        %5356 = vmatprep.subr.mxu0 0.0
        %5357 = vmatpush1.msra.mxu0 0.0
        %5358 = vmatprep.subr.mxu0 0.0
        %5359 = vmatpush1.msra.mxu0 0.0
        %5360 = vmatprep.subr.mxu0 0.0
        %5361 = vmatpush1.msra.mxu0 0.0
        %5362 = vmatprep.subr.mxu0 0.0
        %5363 = vmatpush1.msra.mxu0 0.0
        %5364 = vmatprep.subr.mxu0 0.0
        %5365 = vmatpush1.msra.mxu0 0.0
        %5366 = vmatprep.subr.mxu0 0.0
        %5367 = vmatpush1.msra.mxu0 0.0
        %5368 = vmatprep.subr.mxu0 0.0
        %5369 = vmatpush1.msra.mxu0 0.0
        %5370 = vmatprep.subr.mxu0 0.0
        %5371 = vmatpush1.msra.mxu0 0.0
        %5372 = vmatprep.subr.mxu0 0.0
        %5373 = vmatpush1.msra.mxu0 0.0
        %5374 = vmatprep.subr.mxu0 0.0
        %5375 = vmatpush1.msra.mxu0 0.0
        %5376 = vmatprep.subr.mxu0 0.0
        %5377 = vmatpush1.msra.mxu0 0.0
        %5378 = vmatprep.subr.mxu0 0.0
        %5379 = vmatpush1.msra.mxu0 0.0
        %5380 = vmatprep.subr.mxu0 0.0
        %5381 = vmatpush1.msra.mxu0 0.0
        %5382 = vmatprep.subr.mxu0 0.0
        %5383 = vmatpush1.msra.mxu0 0.0
        %5384 = vmatprep.subr.mxu0 0.0
        %5385 = vmatpush1.msra.mxu0 0.0
        %5386 = vmatprep.subr.mxu0 0.0
        %5387 = vmatpush1.msra.mxu0 0.0
        %5388 = vmatprep.subr.mxu0 0.0
        %5389 = vmatpush1.msra.mxu0 0.0
        %5390 = vmatprep.subr.mxu0 0.0
        %5391 = vmatpush1.msra.mxu0 0.0
        %5392 = vmatprep.subr.mxu0 0.0
        %5393 = vmatpush1.msra.mxu0 0.0
        %5394 = vmatprep.subr.mxu0 0.0
        %5395 = vmatpush1.msra.mxu0 0.0
        %5396 = vmatprep.subr.mxu0 0.0
        %5397 = vmatpush1.msra.mxu0 0.0
        %5398 = vmatprep.subr.mxu0 0.0
        %5399 = vmatpush1.msra.mxu0 0.0
        %5400 = vmatprep.mubr.f32.mxu0 0.0
        %5401 = vmatmul.mubr.f32.gmra.mrb[0].mxu0 %v4998
        %v5402 = vpop.f32.mrb[0].mxu0
        %v5403 = vadd.f32 %v4975, %v5402
        %v5404 = vpop.f32.mrb[0].mxu0
        %5405 = vmatprep.mubr.f32.mxu0 0.0
        %5406 = vmatmul.mubr.f32.gmra.mrb[0].mxu0 %v5001
        %v5407 = vpop.f32.mrb[0].mxu0
        %v5408 = vadd.f32 %v4980, %v5407
        %v5409 = vpop.f32.mrb[0].mxu0
        %5410 = vmatprep.mubr.f32.mxu0 0.0
        %5411 = vmatmul.mubr.f32.gmra.mrb[0].mxu0 %v5004
        %v5412 = vpop.f32.mrb[0].mxu0
        %v5413 = vadd.f32 %v4985, %v5412
        %v5414 = vpop.f32.mrb[0].mxu0
        %5415 = vmatprep.mubr.f32.mxu0 0.0
        %5416 = vmatmul.mubr.f32.gmra.mrb[0].mxu0 %v5007
        %v5417 = vpop.f32.mrb[0].mxu0
        %v5418 = vadd.f32 %v4990, %v5417
        %v5419 = vpop.f32.mrb[0].mxu0
        %5420 = vmatprep.mubr.f32.mxu0 0.0
        %5421 = vmatmul.mubr.f32.gmra.mrb[0].mxu0 %v5010
        %v5422 = vpop.f32.mrb[0].mxu0
        %v5423 = vadd.f32 %v4995, %v5422
        %v5424 = vpop.f32.mrb[0].mxu0
        %5425 = vdwg.mxu0
        %v5426 = vmul.f32 %v5403, 0.5
        %v5427 = vmul.f32 %v5408, 0.5
        %v5428 = vmul.f32 %v5413, 0.5
        %v5429 = vmul.f32 %v5418, 0.5
        %v5430 = vmul.f32 %v5423, 0.5
        %v5431 = vmul.f32 %v5403, 0.044715
        %v5432 = vmul.f32 %v5408, 0.044715
        %v5433 = vmul.f32 %v5413, 0.044715
        %v5434 = vmul.f32 %v5418, 0.044715
        %v5435 = vmul.f32 %v5423, 0.044715
        %v5436 = vmul.f32 %v5431, %v5403
        %v5437 = vmul.f32 %v5432, %v5408
        %v5438 = vmul.f32 %v5433, %v5413
        %v5439 = vmul.f32 %v5434, %v5418
        %v5440 = vmul.f32 %v5435, %v5423
        %v5441 = vmul.f32 %v5436, %v5403
        %v5442 = vmul.f32 %v5437, %v5408
        %v5443 = vmul.f32 %v5438, %v5413
        %v5444 = vmul.f32 %v5439, %v5418
        %v5445 = vmul.f32 %v5440, %v5423
        %v5446 = vadd.f32 %v5403, %v5441
        %v5447 = vadd.f32 %v5408, %v5442
        %v5448 = vadd.f32 %v5413, %v5443
        %v5449 = vadd.f32 %v5418, %v5444
        %v5450 = vadd.f32 %v5423, %v5445
        %v5451 = vmul.f32 %v5446, 0.7978846
        %v5452 = vmul.f32 %v5447, 0.7978846
        %v5453 = vmul.f32 %v5448, 0.7978846
        %v5454 = vmul.f32 %v5449, 0.7978846
        %v5455 = vmul.f32 %v5450, 0.7978846
        %v5456 = vtanh.pop %v5451
        %v5457 = vtanh.pop %v5452
        %v5458 = vtanh.pop %v5453
        %v5459 = vtanh.pop %v5454
        %v5460 = vtanh.pop %v5455
        %v5461 = vadd.f32 %v5456, 1.0
        %v5462 = vadd.f32 %v5457, 1.0
        %v5463 = vadd.f32 %v5458, 1.0
        %v5464 = vadd.f32 %v5459, 1.0
        %v5465 = vadd.f32 %v5460, 1.0
        %v5466 = vmul.f32 %v5426, %v5461
        %v5467 = vmul.f32 %v5427, %v5462
        %v5468 = vmul.f32 %v5428, %v5463
        %v5469 = vmul.f32 %v5429, %v5464
        %v5470 = vmul.f32 %v5430, %v5465
        %5471 = vmatprep.subr.mxu0 0.0
        %5472 = vmatpush1.msra.mxu0 %v5466
        %5473 = vmatprep.subr.mxu0 0.0
        %5474 = vmatpush1.msra.mxu0 %v5467
        %5475 = vmatprep.subr.mxu0 0.0
        %5476 = vmatpush1.msra.mxu0 %v5468
        %5477 = vmatprep.subr.mxu0 0.0
        %5478 = vmatpush1.msra.mxu0 %v5469
        %5479 = vmatprep.subr.mxu0 0.0
        %5480 = vmatpush1.msra.mxu0 %v5470
        %5481 = vmatprep.subr.mxu0 0.0
        %5482 = vmatpush1.msra.mxu0 0.0
        %5483 = vmatprep.subr.mxu0 0.0
        %5484 = vmatpush1.msra.mxu0 0.0
        %5485 = vmatprep.subr.mxu0 0.0
        %5486 = vmatpush1.msra.mxu0 0.0
        %5487 = vmatprep.subr.mxu0 0.0
        %5488 = vmatpush1.msra.mxu0 0.0
        %5489 = vmatprep.subr.mxu0 0.0
        %5490 = vmatpush1.msra.mxu0 0.0
        %5491 = vmatprep.subr.mxu0 0.0
        %5492 = vmatpush1.msra.mxu0 0.0
        %5493 = vmatprep.subr.mxu0 0.0
        %5494 = vmatpush1.msra.mxu0 0.0
        %5495 = vmatprep.subr.mxu0 0.0
        %5496 = vmatpush1.msra.mxu0 0.0
        %5497 = vmatprep.subr.mxu0 0.0
        %5498 = vmatpush1.msra.mxu0 0.0
        %5499 = vmatprep.subr.mxu0 0.0
        %5500 = vmatpush1.msra.mxu0 0.0
        %5501 = vmatprep.subr.mxu0 0.0
        %5502 = vmatpush1.msra.mxu0 0.0
        %5503 = vmatprep.subr.mxu0 0.0
        %5504 = vmatpush1.msra.mxu0 0.0
        %5505 = vmatprep.subr.mxu0 0.0
        %5506 = vmatpush1.msra.mxu0 0.0
        %5507 = vmatprep.subr.mxu0 0.0
        %5508 = vmatpush1.msra.mxu0 0.0
        %5509 = vmatprep.subr.mxu0 0.0
        %5510 = vmatpush1.msra.mxu0 0.0
        %5511 = vmatprep.subr.mxu0 0.0
        %5512 = vmatpush1.msra.mxu0 0.0
        %5513 = vmatprep.subr.mxu0 0.0
        %5514 = vmatpush1.msra.mxu0 0.0
        %5515 = vmatprep.subr.mxu0 0.0
        %5516 = vmatpush1.msra.mxu0 0.0
        %5517 = vmatprep.subr.mxu0 0.0
        %5518 = vmatpush1.msra.mxu0 0.0
        %5519 = vmatprep.subr.mxu0 0.0
        %5520 = vmatpush1.msra.mxu0 0.0
        %5521 = vmatprep.subr.mxu0 0.0
        %5522 = vmatpush1.msra.mxu0 0.0
        %5523 = vmatprep.subr.mxu0 0.0
        %5524 = vmatpush1.msra.mxu0 0.0
        %5525 = vmatprep.subr.mxu0 0.0
        %5526 = vmatpush1.msra.mxu0 0.0
        %5527 = vmatprep.subr.mxu0 0.0
        %5528 = vmatpush1.msra.mxu0 0.0
        %5529 = vmatprep.subr.mxu0 0.0
        %5530 = vmatpush1.msra.mxu0 0.0
        %5531 = vmatprep.subr.mxu0 0.0
        %5532 = vmatpush1.msra.mxu0 0.0
        %5533 = vmatprep.subr.mxu0 0.0
        %5534 = vmatpush1.msra.mxu0 0.0
        %5535 = vmatprep.mubr.f32.mxu0 0.0
        %5536 = vmatmul.mubr.f32.gmra.mrb[0].mxu0 %v5148
        %v5537 = vpop.f32.mrb[0].mxu0
        %v5538 = vadd.f32 0.0, %v5537
        %v5539 = vpop.f32.mrb[0].mxu0
        %5540 = vmatprep.mubr.f32.mxu0 0.0
        %5541 = vmatmul.mubr.f32.gmra.mrb[0].mxu0 %v5151
        %v5542 = vpop.f32.mrb[0].mxu0
        %v5543 = vadd.f32 0.0, %v5542
        %v5544 = vpop.f32.mrb[0].mxu0
        %5545 = vmatprep.mubr.f32.mxu0 0.0
        %5546 = vmatmul.mubr.f32.gmra.mrb[0].mxu0 %v5154
        %v5547 = vpop.f32.mrb[0].mxu0
        %v5548 = vadd.f32 0.0, %v5547
        %v5549 = vpop.f32.mrb[0].mxu0
        %5550 = vmatprep.mubr.f32.mxu0 0.0
        %5551 = vmatmul.mubr.f32.gmra.mrb[0].mxu0 %v5157
        %v5552 = vpop.f32.mrb[0].mxu0
        %v5553 = vadd.f32 0.0, %v5552
        %v5554 = vpop.f32.mrb[0].mxu0
        %5555 = vmatprep.mubr.f32.mxu0 0.0
        %5556 = vmatmul.mubr.f32.gmra.mrb[0].mxu0 %v5160
        %v5557 = vpop.f32.mrb[0].mxu0
        %v5558 = vadd.f32 0.0, %v5557
        %v5559 = vpop.f32.mrb[0].mxu0
        %5560 = vdwg.mxu0
        %v5561 = vadd.f32 %v4894, %v5538
        %v5562 = vadd.f32 %v4895, %v5543
        %v5563 = vadd.f32 %v4896, %v5548
        %v5564 = vadd.f32 %v4897, %v5553
        %v5565 = vadd.f32 %v4898, %v5558
        %v5566 = vadd.f32 %v5561, %v5260
        %v5567 = vadd.f32 %v5562, %v5265
        %v5568 = vadd.f32 %v5563, %v5270
        %v5569 = vadd.f32 %v5564, %v5275
        %v5570 = vadd.f32 %v5565, %v5280
        %5571 = vst [vmem:[%s383] sm:$0xff] %v5282
        %5572 = vst [vmem:[%s383 + $0x8] sm:$0xff] %v5283
        %5573 = vst [vmem:[%s383 + $0x10] sm:$0xff] %v5284
        %5574 = vst [vmem:[%s383 + $0x18] sm:$0xff] %v5285
        %5575 = vst [vmem:[%s383 + $0x20] sm:$0xff] %v5286
        %s5576 = scalar_lea.vmem %s383, 40 [#allocation5]
        %5577 = vst [vmem:[%s5576] sm:$0xff] %v5566
        %5578 = vst [vmem:[%s5576 + $0x8] sm:$0xff] %v5567
        %5579 = vst [vmem:[%s5576 + $0x10] sm:$0xff] %v5568
        %5580 = vst [vmem:[%s5576 + $0x18] sm:$0xff] %v5569
        %5581 = vst [vmem:[%s5576 + $0x20] sm:$0xff] %v5570
        %s5582 = sand.u32 %s201, 1
        %s5583 = sand.u32 %s201, 1
        %s5584 = smul.addr %s5583, 80
        %s5585 = scalar_lea.vmem [#allocation5], %s5584
        // Predicated region
        $region95: #{mlp_blocks_forward.1} parent=85 // pred_check
          %p5586 = pneg %p211
        $region96: #{mlp_blocks_forward.1} parent=85 // pred_check_branch
          %5588 = sbr.rel (%p5586) target = $region98
        $region97: #{mlp_blocks_forward.1} parent=85 // pred_region
          %s5589 = smul.addr %s20, 8
          %s5590 = scalar_lea.vmem %s8, %s5589
          // Predicated region
          $region99: #{mlp_blocks_forward.1} parent=97 // pred_check
            _
          $region100: #{mlp_blocks_forward.1} parent=97 // pred_check_branch
            %5592 = sbr.rel (0) target = $region102
          $region101: #{mlp_blocks_forward.1} parent=97 // pred_region
            // Predicated region
            $region103: #{mlp_blocks_forward.1} parent=101 // pred_check
              _
            $region104: #{mlp_blocks_forward.1} parent=101 // pred_check_branch
              %5594 = sbr.rel (0) target = $region106
            $region105: #{mlp_blocks_forward.1} parent=101 // pred_region
              // Predicated region
              $region118: #{mlp_blocks_forward.1} parent=105 // pred_check
                _
              $region119: #{mlp_blocks_forward.1} parent=105 // pred_check_branch
                %5627 = sbr.rel (0) target = $region121
              $region120: #{mlp_blocks_forward.1} parent=105 // pred_region
                loop: start=0, step=1, limit=1
                $region122: #{mlp_blocks_forward.1} parent=120 // loop_pre_header
                  _
                $region123: #{mlp_blocks_forward.1} parent=120 // loop_header
                  %s5629 = sphi 0, %s5633
                  %p5630 = scmp.ge.s32.totalorder %s5629, 1
                  %s5634 = sphi %s5585, %s5585
                  %s5635 = sphi %s5590, %s5590
                $region124: #{mlp_blocks_forward.1} parent=120 // loop_header_branch
                  %5632 = sbr.rel (%p5630) target = $region128
                $region125: #{mlp_blocks_forward.1} parent=120 // loop_body
                  %v5636 = vld [vmem:[%s5634] sm:$0xff]
                  %5637 = vst [vmem:[%s5635] sm:$0xff] %v5636
                  %v5638 = vld [vmem:[%s5634 + $0x8] sm:$0xff]
                  %5639 = vst [vmem:[%s5635 + $0x10] sm:$0xff] %v5638
                  %v5640 = vld [vmem:[%s5634 + $0x10] sm:$0xff]
                  %5641 = vst [vmem:[%s5635 + $0x20] sm:$0xff] %v5640
                  %v5642 = vld [vmem:[%s5634 + $0x18] sm:$0xff]
                  %5643 = vst [vmem:[%s5635 + $0x30] sm:$0xff] %v5642
                  %v5644 = vld [vmem:[%s5634 + $0x20] sm:$0xff]
                  %5645 = vst [vmem:[%s5635 + $0x40] sm:$0xff] %v5644
                  %v5646 = vld [vmem:[%s5634 + $0x28] sm:$0xff]
                  %5647 = vst [vmem:[%s5635 + $0x50] sm:$0xff] %v5646
                  %v5648 = vld [vmem:[%s5634 + $0x30] sm:$0xff]
                  %5649 = vst [vmem:[%s5635 + $0x60] sm:$0xff] %v5648
                  %v5650 = vld [vmem:[%s5634 + $0x38] sm:$0xff]
                  %5651 = vst [vmem:[%s5635 + $0x70] sm:$0xff] %v5650
                  %v5652 = vld [vmem:[%s5634 + $0x40] sm:$0xff]
                  %5653 = vst [vmem:[%s5635 + $0x80] sm:$0xff] %v5652
                  %v5654 = vld [vmem:[%s5634 + $0x48] sm:$0xff]
                  %5655 = vst [vmem:[%s5635 + $0x90] sm:$0xff] %v5654
                $region126: #{mlp_blocks_forward.1} parent=120 // loop_footer
                  %s5633 = sadd.s32 1, %s5629
                $region127: #{mlp_blocks_forward.1} parent=120 // loop_footer_branch
                  %5628 = sbr.rel target = $region123
                $region128: #{mlp_blocks_forward.1} parent=120 // loop_exit
                  _
              $region121: #{mlp_blocks_forward.1} parent=105 // pred_fallthru
                _
              // Predicated region
              $region129: #{mlp_blocks_forward.1} parent=105 // pred_check
                _
              $region130: #{mlp_blocks_forward.1} parent=105 // pred_check_branch
                %5657 = sbr.rel target = $region132
              $region131: #{mlp_blocks_forward.1} parent=105 // pred_region
                _
              $region132: #{mlp_blocks_forward.1} parent=105 // pred_fallthru
                _
            $region106: #{mlp_blocks_forward.1} parent=101 // pred_fallthru
              _
            // Predicated region
            $region107: #{mlp_blocks_forward.1} parent=101 // pred_check
              _
            $region108: #{mlp_blocks_forward.1} parent=101 // pred_check_branch
              %5596 = sbr.rel target = $region110
            $region109: #{mlp_blocks_forward.1} parent=101 // pred_region
              loop: start=0, step=1, limit=1
              $region111: #{mlp_blocks_forward.1} parent=109 // loop_pre_header
                _
              $region112: #{mlp_blocks_forward.1} parent=109 // loop_header
                %s5599 = sphi 0, %s5603
                %p5600 = scmp.ge.s32.totalorder %s5599, 1
                %s5604 = sphi %s5585, %s5585
                %s5605 = sphi %s5590, %s5590
              $region113: #{mlp_blocks_forward.1} parent=109 // loop_header_branch
                %5602 = sbr.rel (%p5600) target = $region117
              $region114: #{mlp_blocks_forward.1} parent=109 // loop_body
                %v5606 = vld [vmem:[%s5604] sm:$0xff]
                %5607 = vst [vmem:[%s5605] sm:$0xff] %v5606
                %v5608 = vld [vmem:[%s5604 + $0x8] sm:$0xff]
                %5609 = vst [vmem:[%s5605 + $0x10] sm:$0xff] %v5608
                %v5610 = vld [vmem:[%s5604 + $0x10] sm:$0xff]
                %5611 = vst [vmem:[%s5605 + $0x20] sm:$0xff] %v5610
                %v5612 = vld [vmem:[%s5604 + $0x18] sm:$0xff]
                %5613 = vst [vmem:[%s5605 + $0x30] sm:$0xff] %v5612
                %v5614 = vld [vmem:[%s5604 + $0x20] sm:$0xff]
                %5615 = vst [vmem:[%s5605 + $0x40] sm:$0xff] %v5614
                %v5616 = vld [vmem:[%s5604 + $0x28] sm:$0xff]
                %5617 = vst [vmem:[%s5605 + $0x50] sm:$0xff] %v5616
                %v5618 = vld [vmem:[%s5604 + $0x30] sm:$0xff]
                %5619 = vst [vmem:[%s5605 + $0x60] sm:$0xff] %v5618
                %v5620 = vld [vmem:[%s5604 + $0x38] sm:$0xff]
                %5621 = vst [vmem:[%s5605 + $0x70] sm:$0xff] %v5620
                %v5622 = vld [vmem:[%s5604 + $0x40] sm:$0xff]
                %5623 = vst [vmem:[%s5605 + $0x80] sm:$0xff] %v5622
                %v5624 = vld [vmem:[%s5604 + $0x48] sm:$0xff]
                %5625 = vst [vmem:[%s5605 + $0x90] sm:$0xff] %v5624
              $region115: #{mlp_blocks_forward.1} parent=109 // loop_footer
                %s5603 = sadd.s32 1, %s5599
              $region116: #{mlp_blocks_forward.1} parent=109 // loop_footer_branch
                %5598 = sbr.rel target = $region112
              $region117: #{mlp_blocks_forward.1} parent=109 // loop_exit
                _
            $region110: #{mlp_blocks_forward.1} parent=101 // pred_fallthru
              _
          $region102: #{mlp_blocks_forward.1} parent=97 // pred_fallthru
            _
          %5658 = vnop
        $region98: #{mlp_blocks_forward.1} parent=85 // pred_fallthru
          _
      $region86: #{mlp_blocks_forward.1} parent=5 // pred_fallthru
        _
      %p5659 = scmp.le.s32.totalorder 2, %s15
      // Predicated region
      $region133: #{mlp_blocks_forward.1} parent=5 // pred_check
        %p5660 = pneg %p5659
      $region134: #{mlp_blocks_forward.1} parent=5 // pred_check_branch
        %5662 = sbr.rel (%p5660) target = $region136
      $region135: #{mlp_blocks_forward.1} parent=5 // pred_region
        %s5663 = ssub.s32 %s15, 2
        // Predicated region
        $region137: #{mlp_blocks_forward.1} parent=135 // pred_check
          %p5664 = pneg %p217
        $region138: #{mlp_blocks_forward.1} parent=135 // pred_check_branch
          %5666 = sbr.rel (%p5664) target = $region140
        $region139: #{mlp_blocks_forward.1} parent=135 // pred_region
          %s5667 = sand.u32 %s202, 1
          %s5668 = sand.u32 %s202, 1
          %s5669 = smul.addr %s5668, 80
          %s5670 = scalar_lea.vmem [#allocation5], %s5669
        $region140: #{mlp_blocks_forward.1} parent=135 // pred_fallthru
          _
      $region136: #{mlp_blocks_forward.1} parent=5 // pred_fallthru
        _
    $region6: #{mlp_blocks_forward.1} parent=1 // loop_footer
      %s19 = sadd.s32 1, %s15
    $region7: #{mlp_blocks_forward.1} parent=1 // loop_footer_branch
      %14 = sbr.rel target = $region3
    $region8: #{mlp_blocks_forward.1} parent=1 // loop_exit
      _
    %5671 = vsyncpa [#allocation3], 1
    %s5672 = scalar_lea.sflag [#allocation3], 1
    %5673 = vsyncpa %s5672, 1

</llo_original>
